<compile_context>
chip_gen: v6e
topology: v6e:2x2x1
jax: 0.10.0
libtpu: 0.0.40
codegen_flags: <defaults>
</compile_context>

<pallas_src>
import functools

import jax
import jax.numpy as jnp
from jax import lax
from jax.experimental import pallas as pl
from jax.experimental.pallas import tpu as pltpu


# ----------------------------------------------------------------------------
# Fused Bottleneck kernel (one grid step == one image)
# ----------------------------------------------------------------------------
def _bottleneck_kernel(*refs, H, W, Cin, Cmid, Cout, has_downsample, im2col,
                       compute_dtype):
    if has_downsample:
        (x_ref, w1_ref, b1_ref, w2_ref, b2_ref, w3_ref, b3_ref,
         wd_ref, bd_ref, o_ref, y1pad_ref) = refs
    else:
        (x_ref, w1_ref, b1_ref, w2_ref, b2_ref, w3_ref, b3_ref,
         o_ref, y1pad_ref) = refs
        wd_ref = bd_ref = None

    # Flatten spatial dims; channels stay on the lane axis.
    x2d = x_ref[0].reshape(H * W, Cin)                        # compute_dtype

    # ---- conv1 (1x1) + folded BN1 + ReLU  (f32 accumulation) ----------------
    y1 = jnp.dot(x2d, w1_ref[...], preferred_element_type=jnp.float32)
    y1 = jnp.maximum(y1 + b1_ref[...], 0.0)                   # (H*W, Cmid) f32

    # ---- zero-padded y1 staged entirely in VMEM (no jnp.pad / HBM copy) -----
    y1pad_ref[...] = jnp.zeros(y1pad_ref.shape, y1pad_ref.dtype)
    y1pad_ref[1:H + 1, 1:W + 1, :] = y1.reshape(H, W, Cmid)

    # ---- conv2 (3x3, stride 1) + folded BN2 + ReLU --------------------------
    taps = [
        y1pad_ref[ky:ky + H, kx:kx + W, :].reshape(H * W, Cmid)
        for ky in range(3) for kx in range(3)
    ]
    if im2col:
        # Single MXU matmul with K = 9*Cmid against the tap-major weight.
        patches = jnp.concatenate(taps, axis=-1).astype(compute_dtype)
        y2 = jnp.dot(patches, w2_ref[...], preferred_element_type=jnp.float32)
    else:
        # Fallback: 9 per-tap accumulating matmuls (K = Cmid each).
        y2 = jnp.zeros((H * W, Cmid), jnp.float32)
        for t, tap in enumerate(taps):
            y2 = y2 + jnp.dot(tap.astype(compute_dtype),
                              w2_ref[t * Cmid:(t + 1) * Cmid, :],
                              preferred_element_type=jnp.float32)
    y2 = jnp.maximum(y2 + b2_ref[...], 0.0).astype(compute_dtype)

    # ---- conv3 (1x1) + folded BN3 -------------------------------------------
    y3 = jnp.dot(y2, w3_ref[...], preferred_element_type=jnp.float32)
    y3 = y3 + b3_ref[...]                                     # (H*W, Cout) f32

    # ---- skip branch: 1x1 downsample + folded BN, or identity ---------------
    if has_downsample:
        skip = jnp.dot(x2d, wd_ref[...], preferred_element_type=jnp.float32)
        skip = skip + bd_ref[...]
    else:
        skip = x2d.astype(jnp.float32)

    # ---- residual add + ReLU, single HBM store -------------------------------
    out = jnp.maximum(y3 + skip, 0.0)
    o_ref[...] = out.reshape(1, H, W, Cout).astype(o_ref.dtype)


# ----------------------------------------------------------------------------
# Wrappers
# ----------------------------------------------------------------------------
def _fold_bn_into_weight(w, bn, compute_dtype, eps=1e-5):
    """Return (w * scale) in compute_dtype and the f32 additive shift."""
    gamma, beta, mean, var = bn
    scale = gamma / jnp.sqrt(var + eps)
    shift = beta - mean * scale
    return (w * scale).astype(compute_dtype), shift.reshape(1, -1).astype(jnp.float32)


def bottleneck_forward_nhwc(x_nhwc, params, *, compute_dtype=jnp.bfloat16,
                            im2col=True, eps=1e-5):
    """Fused HRNetV2 Bottleneck forward on NHWC input (preferred layout)."""
    N, H, W, Cin = x_nhwc.shape
    Cmid = params["w1"].shape[1]
    Cout = params["w3"].shape[1]
    has_ds = "wd" in params
    if not has_ds:
        assert Cin == Cout, "identity skip requires in_chan == out_chan"

    # Trace-time BN folding (inference mode, matching fuse_conv_bn()).
    w1f, b1 = _fold_bn_into_weight(params["w1"], params["bn1"], compute_dtype, eps)
    w2f, b2 = _fold_bn_into_weight(params["w2"].reshape(9 * Cmid, Cmid),
                                   params["bn2"], compute_dtype, eps)
    w3f, b3 = _fold_bn_into_weight(params["w3"], params["bn3"], compute_dtype, eps)

    args = [x_nhwc.astype(compute_dtype), w1f, b1, w2f, b2, w3f, b3]
    in_specs = [
        pl.BlockSpec((1, H, W, Cin), lambda n: (n, 0, 0, 0)),
        pl.BlockSpec((Cin, Cmid), lambda n: (0, 0)),
        pl.BlockSpec((1, Cmid), lambda n: (0, 0)),
        pl.BlockSpec((9 * Cmid, Cmid), lambda n: (0, 0)),
        pl.BlockSpec((1, Cmid), lambda n: (0, 0)),
        pl.BlockSpec((Cmid, Cout), lambda n: (0, 0)),
        pl.BlockSpec((1, Cout), lambda n: (0, 0)),
    ]
    if has_ds:
        wdf, bd = _fold_bn_into_weight(params["wd"], params["bnd"], compute_dtype, eps)
        args += [wdf, bd]
        in_specs += [
            pl.BlockSpec((Cin, Cout), lambda n: (0, 0)),
            pl.BlockSpec((1, Cout), lambda n: (0, 0)),
        ]

    kernel = functools.partial(
        _bottleneck_kernel, H=H, W=W, Cin=Cin, Cmid=Cmid, Cout=Cout,
        has_downsample=has_ds, im2col=im2col, compute_dtype=compute_dtype)

    return pl.pallas_call(
        kernel,
        out_shape=jax.ShapeDtypeStruct((N, H, W, Cout), x_nhwc.dtype),
        grid=(N,),
        in_specs=in_specs,
        out_specs=pl.BlockSpec((1, H, W, Cout), lambda n: (n, 0, 0, 0)),
        scratch_shapes=[pltpu.VMEM((H + 2, W + 2, Cmid), jnp.float32)],
        compiler_params=pltpu.CompilerParams(
            dimension_semantics=("parallel",)),  # v7x: one image per TensorCore
    )(*args)


def bottleneck_forward(x_nchw, params, **kwargs):
    """NCHW adapter matching the PyTorch interface.

    The transposes below are interface plumbing only; a full network should
    stay NHWC end-to-end and call bottleneck_forward_nhwc directly.
    """
    x = jnp.transpose(x_nchw, (0, 2, 3, 1))            # NCHW -> NHWC
    y = bottleneck_forward_nhwc(x, params, **kwargs)
    return jnp.transpose(y, (0, 3, 1, 2))              # NHWC -> NCHW


# ----------------------------------------------------------------------------
# Deterministic parameter initialization (synthetic weights)
# ----------------------------------------------------------------------------
def init_params(key, in_chan, out_chan):
    assert out_chan % 4 == 0
    mid = out_chan // 4
    keys = jax.random.split(key, 8)

    def conv_w(k, shape, fan_in):
        return jax.random.normal(k, shape, jnp.float32) * (1.0 / jnp.sqrt(fan_in))

    def bn_p(k, c):
        k1, k2, k3, k4 = jax.random.split(k, 4)
        gamma = 1.0 + 0.1 * jax.random.normal(k1, (c,), jnp.float32)
        beta = 0.1 * jax.random.normal(k2, (c,), jnp.float32)
        mean = 0.1 * jax.random.normal(k3, (c,), jnp.float32)
        var = jax.random.uniform(k4, (c,), jnp.float32, minval=0.5, maxval=1.5)
        return (gamma, beta, mean, var)

    params = {
        "w1": conv_w(keys[0], (in_chan, mid), in_chan),       # 1x1: (Cin, Cmid)
        "bn1": bn_p(keys[1], mid),
        "w2": conv_w(keys[2], (3, 3, mid, mid), 9 * mid),     # 3x3 HWIO
        "bn2": bn_p(keys[3], mid),
        "w3": conv_w(keys[4], (mid, out_chan), mid),          # 1x1: (Cmid, Cout)
        "bn3": bn_p(keys[5], out_chan),
    }
    if in_chan != out_chan:                                   # downsample branch
        params["wd"] = conv_w(keys[6], (in_chan, out_chan), in_chan)
        params["bnd"] = bn_p(keys[7], out_chan)
    return params


# ----------------------------------------------------------------------------
# Pure-JAX reference (eval-mode BN) for correctness check
# ----------------------------------------------------------------------------
def reference_forward(x_nchw, params, eps=1e-5):
    x = jnp.transpose(x_nchw, (0, 2, 3, 1)).astype(jnp.float32)

    def bn(y, p):
        g, b, m, v = p
        return (y - m) * (g / jnp.sqrt(v + eps)) + b

    y = jnp.einsum("nhwc,co->nhwo", x, params["w1"])
    y = jax.nn.relu(bn(y, params["bn1"]))
    y = lax.conv_general_dilated(
        y, params["w2"], window_strides=(1, 1), padding="SAME",
        dimension_numbers=("NHWC", "HWIO", "NHWC"))
    y = jax.nn.relu(bn(y, params["bn2"]))
    y = jnp.einsum("nhwc,co->nhwo", y, params["w3"])
    y = bn(y, params["bn3"])
    if "wd" in params:
        skip = bn(jnp.einsum("nhwc,co->nhwo", x, params["wd"]), params["bnd"])
    else:
        skip = x
    out = jax.nn.relu(y + skip)
    return jnp.transpose(out, (0, 3, 1, 2))


# ----------------------------------------------------------------------------
if __name__ == "__main__":
    key = jax.random.PRNGKey(0)
    kx, kp, kx2, kp2 = jax.random.split(key, 4)

    # Case 1: in_chan != out_chan -> 1x1 downsample branch (mid_chan = 16).
    N, Cin, H, W = 2, 32, 16, 16
    Cout = 64
    x = jax.random.normal(kx, (N, Cin, H, W), jnp.float32)
    params = init_params(kp, Cin, Cout)

    # Case 2: in_chan == out_chan -> identity skip.
    x_id = jax.random.normal(kx2, (N, Cout, H, W), jnp.float32)
    params_id = init_params(kp2, Cout, Cout)

    def run(use_im2col):
        o_bf = bottleneck_forward(x, params, im2col=use_im2col)  # bf16 compute (default)
        o_f32 = bottleneck_forward(x, params, compute_dtype=jnp.float32,
                                   im2col=use_im2col)
        o_id = bottleneck_forward(x_id, params_id, compute_dtype=jnp.float32,
                                  im2col=use_im2col)
        return jax.block_until_ready((o_bf, o_f32, o_id))

    try:
        out_bf, out_f32, out_id = run(use_im2col=True)
    except Exception:
        # TODO(synk): fallback for Mosaic builds lacking unaligned lane-dim
        # concatenation; uses 9 per-tap MXU accumulations instead of im2col.
        out_bf, out_f32, out_id = run(use_im2col=False)

    ref = reference_forward(x, params)
    ref_id = reference_forward(x_id, params_id)

    assert out_f32.shape == (N, Cout, H, W), out_f32.shape
    err_f32 = float(jnp.max(jnp.abs(out_f32 - ref)))
    assert jnp.allclose(out_f32, ref, atol=2e-3, rtol=2e-3), err_f32

    err_id = float(jnp.max(jnp.abs(out_id - ref_id)))
    assert jnp.allclose(out_id, ref_id, atol=2e-3, rtol=2e-3), err_id

    # bf16 matmul inputs with f32 accumulation: looser tolerance vs f32 reference.
    err_bf = float(jnp.max(jnp.abs(out_bf - ref)))
    assert jnp.allclose(out_bf, ref, atol=2e-1, rtol=1e-1), err_bf

    print("KERNEL_OK")
</pallas_src>

<mosaic_0001>
module attributes {stable_mosaic.version = 11 : i64} {
  func.func @_bottleneck_kernel(%arg0: i32, %arg1: memref<1x16x16x32xbf16, #tpu.memory_space<vmem>>, %arg2: memref<32x16xbf16, #tpu.memory_space<vmem>>, %arg3: memref<1x16xf32, #tpu.memory_space<vmem>>, %arg4: memref<144x16xbf16, #tpu.memory_space<vmem>>, %arg5: memref<1x16xf32, #tpu.memory_space<vmem>>, %arg6: memref<16x64xbf16, #tpu.memory_space<vmem>>, %arg7: memref<1x64xf32, #tpu.memory_space<vmem>>, %arg8: memref<32x64xbf16, #tpu.memory_space<vmem>>, %arg9: memref<1x64xf32, #tpu.memory_space<vmem>>, %arg10: memref<1x16x16x64xf32, #tpu.memory_space<vmem>>, %arg11: memref<18x18x16xf32, #tpu.memory_space<vmem>>) attributes {dimension_semantics = [#tpu.dimension_semantics<parallel>], iteration_bounds = array<i64: 2>, scalar_prefetch = 0 : i64, scratch_operands = 1 : i64, tpu.core_type = #tpu.core_type<tc>, window_params = [{transform_indices = @transform_0, window_bounds = array<i64: 1, 16, 16, 32>}, {pipeline_mode = #tpu.pipeline_mode<synchronous>, transform_indices = @transform_1, window_bounds = array<i64: 32, 16>}, {pipeline_mode = #tpu.pipeline_mode<synchronous>, transform_indices = @transform_2, window_bounds = array<i64: 1, 16>}, {pipeline_mode = #tpu.pipeline_mode<synchronous>, transform_indices = @transform_3, window_bounds = array<i64: 144, 16>}, {pipeline_mode = #tpu.pipeline_mode<synchronous>, transform_indices = @transform_4, window_bounds = array<i64: 1, 16>}, {pipeline_mode = #tpu.pipeline_mode<synchronous>, transform_indices = @transform_5, window_bounds = array<i64: 16, 64>}, {pipeline_mode = #tpu.pipeline_mode<synchronous>, transform_indices = @transform_6, window_bounds = array<i64: 1, 64>}, {pipeline_mode = #tpu.pipeline_mode<synchronous>, transform_indices = @transform_7, window_bounds = array<i64: 32, 64>}, {pipeline_mode = #tpu.pipeline_mode<synchronous>, transform_indices = @transform_8, window_bounds = array<i64: 1, 64>}, {transform_indices = @transform_9, window_bounds = array<i64: 1, 16, 16, 64>}]} {
    %c0 = arith.constant 0 : index
    %c0_0 = arith.constant 0 : index
    %c0_1 = arith.constant 0 : index
    %c0_2 = arith.constant 0 : index
    %0 = vector.load %arg1[%c0, %c0_0, %c0_1, %c0_2] : memref<1x16x16x32xbf16, #tpu.memory_space<vmem>>, vector<1x16x16x32xbf16>
    %1 = vector.shape_cast %0 : vector<1x16x16x32xbf16> to vector<16x16x32xbf16>
    %2 = vector.shape_cast %1 : vector<16x16x32xbf16> to vector<256x32xbf16>
    %c0_3 = arith.constant 0 : index
    %c0_4 = arith.constant 0 : index
    %3 = vector.load %arg2[%c0_3, %c0_4] : memref<32x16xbf16, #tpu.memory_space<vmem>>, vector<32x16xbf16>
    %cst = arith.constant dense<0.000000e+00> : vector<256x16xf32>
    %4 = tpu.matmul %2, %3, %cst {dimension_numbers = #tpu.dot_dimension_numbers<[1], [0], [0], [1], [0, 0, 1, 1], [], []>} : vector<256x32xbf16>, vector<32x16xbf16>, vector<256x16xf32> -> vector<256x16xf32>
    %c0_5 = arith.constant 0 : index
    %c0_6 = arith.constant 0 : index
    %5 = vector.load %arg3[%c0_5, %c0_6] : memref<1x16xf32, #tpu.memory_space<vmem>>, vector<1x16xf32>
    %6 = vector.broadcast %5 : vector<1x16xf32> to vector<256x16xf32>
    %7 = arith.addf %4, %6 : vector<256x16xf32>
    %cst_7 = arith.constant 0.000000e+00 : f32
    %8 = vector.broadcast %cst_7 : f32 to vector<256x16xf32>
    %9 = arith.maximumf %7, %8 : vector<256x16xf32>
    %cst_8 = arith.constant 0.000000e+00 : f32
    %10 = vector.broadcast %cst_8 : f32 to vector<18x18x16xf32>
    %c0_9 = arith.constant 0 : index
    %c0_10 = arith.constant 0 : index
    %c0_11 = arith.constant 0 : index
    %11 = vector.load %arg11[%c0_9, %c0_10, %c0_11] : memref<18x18x16xf32, #tpu.memory_space<vmem>>, vector<18x18x16xf32>
    tpu.vector_store %arg11[%c0_9, %c0_10, %c0_11], %10 {strides = array<i32>} : memref<18x18x16xf32, #tpu.memory_space<vmem>>, vector<18x18x16xf32>,
    %12 = vector.shape_cast %9 : vector<256x16xf32> to vector<16x16x16xf32>
    %c1 = arith.constant 1 : index
    %c1_12 = arith.constant 1 : index
    %c0_13 = arith.constant 0 : index
    %13 = vector.load %arg11[%c1, %c1_12, %c0_13] : memref<18x18x16xf32, #tpu.memory_space<vmem>>, vector<16x16x16xf32>
    tpu.vector_store %arg11[%c1, %c1_12, %c0_13], %12 {strides = array<i32>} : memref<18x18x16xf32, #tpu.memory_space<vmem>>, vector<16x16x16xf32>,
    %c0_14 = arith.constant 0 : index
    %c0_15 = arith.constant 0 : index
    %c0_16 = arith.constant 0 : index
    %14 = vector.load %arg11[%c0_14, %c0_15, %c0_16] : memref<18x18x16xf32, #tpu.memory_space<vmem>>, vector<16x16x16xf32>
    %15 = vector.shape_cast %14 : vector<16x16x16xf32> to vector<256x16xf32>
    %c0_17 = arith.constant 0 : index
    %c1_18 = arith.constant 1 : index
    %c0_19 = arith.constant 0 : index
    %16 = vector.load %arg11[%c0_17, %c1_18, %c0_19] : memref<18x18x16xf32, #tpu.memory_space<vmem>>, vector<16x16x16xf32>
    %17 = vector.shape_cast %16 : vector<16x16x16xf32> to vector<256x16xf32>
    %c0_20 = arith.constant 0 : index
    %c2 = arith.constant 2 : index
    %c0_21 = arith.constant 0 : index
    %18 = vector.load %arg11[%c0_20, %c2, %c0_21] : memref<18x18x16xf32, #tpu.memory_space<vmem>>, vector<16x16x16xf32>
    %19 = vector.shape_cast %18 : vector<16x16x16xf32> to vector<256x16xf32>
    %c1_22 = arith.constant 1 : index
    %c0_23 = arith.constant 0 : index
    %c0_24 = arith.constant 0 : index
    %20 = vector.load %arg11[%c1_22, %c0_23, %c0_24] : memref<18x18x16xf32, #tpu.memory_space<vmem>>, vector<16x16x16xf32>
    %21 = vector.shape_cast %20 : vector<16x16x16xf32> to vector<256x16xf32>
    %c1_25 = arith.constant 1 : index
    %c1_26 = arith.constant 1 : index
    %c0_27 = arith.constant 0 : index
    %22 = vector.load %arg11[%c1_25, %c1_26, %c0_27] : memref<18x18x16xf32, #tpu.memory_space<vmem>>, vector<16x16x16xf32>
    %23 = vector.shape_cast %22 : vector<16x16x16xf32> to vector<256x16xf32>
    %c1_28 = arith.constant 1 : index
    %c2_29 = arith.constant 2 : index
    %c0_30 = arith.constant 0 : index
    %24 = vector.load %arg11[%c1_28, %c2_29, %c0_30] : memref<18x18x16xf32, #tpu.memory_space<vmem>>, vector<16x16x16xf32>
    %25 = vector.shape_cast %24 : vector<16x16x16xf32> to vector<256x16xf32>
    %c2_31 = arith.constant 2 : index
    %c0_32 = arith.constant 0 : index
    %c0_33 = arith.constant 0 : index
    %26 = vector.load %arg11[%c2_31, %c0_32, %c0_33] : memref<18x18x16xf32, #tpu.memory_space<vmem>>, vector<16x16x16xf32>
    %27 = vector.shape_cast %26 : vector<16x16x16xf32> to vector<256x16xf32>
    %c2_34 = arith.constant 2 : index
    %c1_35 = arith.constant 1 : index
    %c0_36 = arith.constant 0 : index
    %28 = vector.load %arg11[%c2_34, %c1_35, %c0_36] : memref<18x18x16xf32, #tpu.memory_space<vmem>>, vector<16x16x16xf32>
    %29 = vector.shape_cast %28 : vector<16x16x16xf32> to vector<256x16xf32>
    %c2_37 = arith.constant 2 : index
    %c2_38 = arith.constant 2 : index
    %c0_39 = arith.constant 0 : index
    %30 = vector.load %arg11[%c2_37, %c2_38, %c0_39] : memref<18x18x16xf32, #tpu.memory_space<vmem>>, vector<16x16x16xf32>
    %31 = vector.shape_cast %30 : vector<16x16x16xf32> to vector<256x16xf32>
    %32 = tpu.concatenate %15, %17, %19, %21, %23, %25, %27, %29, %31 in 1 : vector<256x16xf32>, vector<256x16xf32>, vector<256x16xf32>, vector<256x16xf32>, vector<256x16xf32>, vector<256x16xf32>, vector<256x16xf32>, vector<256x16xf32>, vector<256x16xf32> -> vector<256x144xf32>
    %33 = arith.truncf %32 : vector<256x144xf32> to vector<256x144xbf16>
    %c0_40 = arith.constant 0 : index
    %c0_41 = arith.constant 0 : index
    %34 = vector.load %arg4[%c0_40, %c0_41] : memref<144x16xbf16, #tpu.memory_space<vmem>>, vector<144x16xbf16>
    %cst_42 = arith.constant dense<0.000000e+00> : vector<256x16xf32>
    %35 = tpu.matmul %33, %34, %cst_42 {dimension_numbers = #tpu.dot_dimension_numbers<[1], [0], [0], [1], [0, 0, 1, 1], [], []>} : vector<256x144xbf16>, vector<144x16xbf16>, vector<256x16xf32> -> vector<256x16xf32>
    %c0_43 = arith.constant 0 : index
    %c0_44 = arith.constant 0 : index
    %36 = vector.load %arg5[%c0_43, %c0_44] : memref<1x16xf32, #tpu.memory_space<vmem>>, vector<1x16xf32>
    %37 = vector.broadcast %36 : vector<1x16xf32> to vector<256x16xf32>
    %38 = arith.addf %35, %37 : vector<256x16xf32>
    %cst_45 = arith.constant 0.000000e+00 : f32
    %39 = vector.broadcast %cst_45 : f32 to vector<256x16xf32>
    %40 = arith.maximumf %38, %39 : vector<256x16xf32>
    %41 = arith.truncf %40 : vector<256x16xf32> to vector<256x16xbf16>
    %c0_46 = arith.constant 0 : index
    %c0_47 = arith.constant 0 : index
    %42 = vector.load %arg6[%c0_46, %c0_47] : memref<16x64xbf16, #tpu.memory_space<vmem>>, vector<16x64xbf16>
    %cst_48 = arith.constant dense<0.000000e+00> : vector<256x64xf32>
    %43 = tpu.matmul %41, %42, %cst_48 {dimension_numbers = #tpu.dot_dimension_numbers<[1], [0], [0], [1], [0, 0, 1, 1], [], []>} : vector<256x16xbf16>, vector<16x64xbf16>, vector<256x64xf32> -> vector<256x64xf32>
    %c0_49 = arith.constant 0 : index
    %c0_50 = arith.constant 0 : index
    %44 = vector.load %arg7[%c0_49, %c0_50] : memref<1x64xf32, #tpu.memory_space<vmem>>, vector<1x64xf32>
    %45 = vector.broadcast %44 : vector<1x64xf32> to vector<256x64xf32>
    %46 = arith.addf %43, %45 : vector<256x64xf32>
    %c0_51 = arith.constant 0 : index
    %c0_52 = arith.constant 0 : index
    %47 = vector.load %arg8[%c0_51, %c0_52] : memref<32x64xbf16, #tpu.memory_space<vmem>>, vector<32x64xbf16>
    %cst_53 = arith.constant dense<0.000000e+00> : vector<256x64xf32>
    %48 = tpu.matmul %2, %47, %cst_53 {dimension_numbers = #tpu.dot_dimension_numbers<[1], [0], [0], [1], [0, 0, 1, 1], [], []>} : vector<256x32xbf16>, vector<32x64xbf16>, vector<256x64xf32> -> vector<256x64xf32>
    %c0_54 = arith.constant 0 : index
    %c0_55 = arith.constant 0 : index
    %49 = vector.load %arg9[%c0_54, %c0_55] : memref<1x64xf32, #tpu.memory_space<vmem>>, vector<1x64xf32>
    %50 = vector.broadcast %49 : vector<1x64xf32> to vector<256x64xf32>
    %51 = arith.addf %48, %50 : vector<256x64xf32>
    %52 = arith.addf %46, %51 : vector<256x64xf32>
    %cst_56 = arith.constant 0.000000e+00 : f32
    %53 = vector.broadcast %cst_56 : f32 to vector<256x64xf32>
    %54 = arith.maximumf %52, %53 : vector<256x64xf32>
    %55 = vector.shape_cast %54 : vector<256x64xf32> to vector<1x16x16x64xf32>
    %c0_57 = arith.constant 0 : index
    %c0_58 = arith.constant 0 : index
    %c0_59 = arith.constant 0 : index
    %c0_60 = arith.constant 0 : index
    %56 = vector.load %arg10[%c0_57, %c0_58, %c0_59, %c0_60] : memref<1x16x16x64xf32, #tpu.memory_space<vmem>>, vector<1x16x16x64xf32>
    tpu.vector_store %arg10[%c0_57, %c0_58, %c0_59, %c0_60], %55 {strides = array<i32>} : memref<1x16x16x64xf32, #tpu.memory_space<vmem>>, vector<1x16x16x64xf32>,
    return
  }
  func.func @transform_0(%arg0: i32) -> (i32, i32, i32, i32) {
    %c0_i32 = arith.constant 0 : i32
    %c0_i32_0 = arith.constant 0 : i32
    %c0_i32_1 = arith.constant 0 : i32
    %c0_i32_2 = arith.constant 0 : i32
    return %arg0, %c0_i32, %c0_i32_0, %c0_i32_1 : i32, i32, i32, i32
  }
  func.func @transform_1(%arg0: i32) -> (i32, i32) {
    %c0_i32 = arith.constant 0 : i32
    %c0_i32_0 = arith.constant 0 : i32
    %c0_i32_1 = arith.constant 0 : i32
    return %c0_i32, %c0_i32_0 : i32, i32
  }
  func.func @transform_2(%arg0: i32) -> (i32, i32) {
    %c0_i32 = arith.constant 0 : i32
    %c0_i32_0 = arith.constant 0 : i32
    %c0_i32_1 = arith.constant 0 : i32
    return %c0_i32, %c0_i32_0 : i32, i32
  }
  func.func @transform_3(%arg0: i32) -> (i32, i32) {
    %c0_i32 = arith.constant 0 : i32
    %c0_i32_0 = arith.constant 0 : i32
    %c0_i32_1 = arith.constant 0 : i32
    return %c0_i32, %c0_i32_0 : i32, i32
  }
  func.func @transform_4(%arg0: i32) -> (i32, i32) {
    %c0_i32 = arith.constant 0 : i32
    %c0_i32_0 = arith.constant 0 : i32
    %c0_i32_1 = arith.constant 0 : i32
    return %c0_i32, %c0_i32_0 : i32, i32
  }
  func.func @transform_5(%arg0: i32) -> (i32, i32) {
    %c0_i32 = arith.constant 0 : i32
    %c0_i32_0 = arith.constant 0 : i32
    %c0_i32_1 = arith.constant 0 : i32
    return %c0_i32, %c0_i32_0 : i32, i32
  }
  func.func @transform_6(%arg0: i32) -> (i32, i32) {
    %c0_i32 = arith.constant 0 : i32
    %c0_i32_0 = arith.constant 0 : i32
    %c0_i32_1 = arith.constant 0 : i32
    return %c0_i32, %c0_i32_0 : i32, i32
  }
  func.func @transform_7(%arg0: i32) -> (i32, i32) {
    %c0_i32 = arith.constant 0 : i32
    %c0_i32_0 = arith.constant 0 : i32
    %c0_i32_1 = arith.constant 0 : i32
    return %c0_i32, %c0_i32_0 : i32, i32
  }
  func.func @transform_8(%arg0: i32) -> (i32, i32) {
    %c0_i32 = arith.constant 0 : i32
    %c0_i32_0 = arith.constant 0 : i32
    %c0_i32_1 = arith.constant 0 : i32
    return %c0_i32, %c0_i32_0 : i32, i32
  }
  func.func @transform_9(%arg0: i32) -> (i32, i32, i32, i32) {
    %c0_i32 = arith.constant 0 : i32
    %c0_i32_0 = arith.constant 0 : i32
    %c0_i32_1 = arith.constant 0 : i32
    %c0_i32_2 = arith.constant 0 : i32
    return %arg0, %c0_i32, %c0_i32_0, %c0_i32_1 : i32, i32, i32, i32
  }
}

module attributes {stable_mosaic.version = 11 : i64} {
  func.func @_bottleneck_kernel(%arg0: i32, %arg1: memref<1x16x16x32xbf16, #tpu.memory_space<vmem>>, %arg2: memref<32x16xbf16, #tpu.memory_space<vmem>>, %arg3: memref<1x16xf32, #tpu.memory_space<vmem>>, %arg4: memref<144x16xbf16, #tpu.memory_space<vmem>>, %arg5: memref<1x16xf32, #tpu.memory_space<vmem>>, %arg6: memref<16x64xbf16, #tpu.memory_space<vmem>>, %arg7: memref<1x64xf32, #tpu.memory_space<vmem>>, %arg8: memref<32x64xbf16, #tpu.memory_space<vmem>>, %arg9: memref<1x64xf32, #tpu.memory_space<vmem>>, %arg10: memref<1x16x16x64xf32, #tpu.memory_space<vmem>>, %arg11: memref<18x18x16xf32, #tpu.memory_space<vmem>>) attributes {dimension_semantics = [#tpu.dimension_semantics<parallel>], iteration_bounds = array<i64: 2>, scalar_prefetch = 0 : i64, scratch_operands = 1 : i64, tpu.core_type = #tpu.core_type<tc>, window_params = [{transform_indices = @transform_0, window_bounds = array<i64: 1, 16, 16, 32>}, {pipeline_mode = #tpu.pipeline_mode<synchronous>, transform_indices = @transform_1, window_bounds = array<i64: 32, 16>}, {pipeline_mode = #tpu.pipeline_mode<synchronous>, transform_indices = @transform_2, window_bounds = array<i64: 1, 16>}, {pipeline_mode = #tpu.pipeline_mode<synchronous>, transform_indices = @transform_3, window_bounds = array<i64: 144, 16>}, {pipeline_mode = #tpu.pipeline_mode<synchronous>, transform_indices = @transform_4, window_bounds = array<i64: 1, 16>}, {pipeline_mode = #tpu.pipeline_mode<synchronous>, transform_indices = @transform_5, window_bounds = array<i64: 16, 64>}, {pipeline_mode = #tpu.pipeline_mode<synchronous>, transform_indices = @transform_6, window_bounds = array<i64: 1, 64>}, {pipeline_mode = #tpu.pipeline_mode<synchronous>, transform_indices = @transform_7, window_bounds = array<i64: 32, 64>}, {pipeline_mode = #tpu.pipeline_mode<synchronous>, transform_indices = @transform_8, window_bounds = array<i64: 1, 64>}, {transform_indices = @transform_9, window_bounds = array<i64: 1, 16, 16, 64>}]} {
    %c0 = arith.constant 0 : index
    %c0_0 = arith.constant 0 : index
    %c0_1 = arith.constant 0 : index
    %c0_2 = arith.constant 0 : index
    %0 = vector.load %arg1[%c0, %c0_0, %c0_1, %c0_2] : memref<1x16x16x32xbf16, #tpu.memory_space<vmem>>, vector<1x16x16x32xbf16>
    %1 = vector.shape_cast %0 : vector<1x16x16x32xbf16> to vector<16x16x32xbf16>
    %2 = vector.shape_cast %1 : vector<16x16x32xbf16> to vector<256x32xbf16>
    %c0_3 = arith.constant 0 : index
    %c0_4 = arith.constant 0 : index
    %3 = vector.load %arg2[%c0_3, %c0_4] : memref<32x16xbf16, #tpu.memory_space<vmem>>, vector<32x16xbf16>
    %cst = arith.constant dense<0.000000e+00> : vector<256x16xf32>
    %4 = tpu.matmul %2, %3, %cst {dimension_numbers = #tpu.dot_dimension_numbers<[1], [0], [0], [1], [0, 0, 1, 1], [], []>} : vector<256x32xbf16>, vector<32x16xbf16>, vector<256x16xf32> -> vector<256x16xf32>
    %c0_5 = arith.constant 0 : index
    %c0_6 = arith.constant 0 : index
    %5 = vector.load %arg3[%c0_5, %c0_6] : memref<1x16xf32, #tpu.memory_space<vmem>>, vector<1x16xf32>
    %6 = vector.broadcast %5 : vector<1x16xf32> to vector<256x16xf32>
    %7 = arith.addf %4, %6 : vector<256x16xf32>
    %cst_7 = arith.constant 0.000000e+00 : f32
    %8 = vector.broadcast %cst_7 : f32 to vector<256x16xf32>
    %9 = arith.maximumf %7, %8 : vector<256x16xf32>
    %cst_8 = arith.constant 0.000000e+00 : f32
    %10 = vector.broadcast %cst_8 : f32 to vector<18x18x16xf32>
    %c0_9 = arith.constant 0 : index
    %c0_10 = arith.constant 0 : index
    %c0_11 = arith.constant 0 : index
    %11 = vector.load %arg11[%c0_9, %c0_10, %c0_11] : memref<18x18x16xf32, #tpu.memory_space<vmem>>, vector<18x18x16xf32>
    tpu.vector_store %arg11[%c0_9, %c0_10, %c0_11], %10 {strides = array<i32>} : memref<18x18x16xf32, #tpu.memory_space<vmem>>, vector<18x18x16xf32>,
    %12 = vector.shape_cast %9 : vector<256x16xf32> to vector<16x16x16xf32>
    %c1 = arith.constant 1 : index
    %c1_12 = arith.constant 1 : index
    %c0_13 = arith.constant 0 : index
    %13 = vector.load %arg11[%c1, %c1_12, %c0_13] : memref<18x18x16xf32, #tpu.memory_space<vmem>>, vector<16x16x16xf32>
    tpu.vector_store %arg11[%c1, %c1_12, %c0_13], %12 {strides = array<i32>} : memref<18x18x16xf32, #tpu.memory_space<vmem>>, vector<16x16x16xf32>,
    %c0_14 = arith.constant 0 : index
    %c0_15 = arith.constant 0 : index
    %c0_16 = arith.constant 0 : index
    %14 = vector.load %arg11[%c0_14, %c0_15, %c0_16] : memref<18x18x16xf32, #tpu.memory_space<vmem>>, vector<16x16x16xf32>
    %15 = vector.shape_cast %14 : vector<16x16x16xf32> to vector<256x16xf32>
    %c0_17 = arith.constant 0 : index
    %c1_18 = arith.constant 1 : index
    %c0_19 = arith.constant 0 : index
    %16 = vector.load %arg11[%c0_17, %c1_18, %c0_19] : memref<18x18x16xf32, #tpu.memory_space<vmem>>, vector<16x16x16xf32>
    %17 = vector.shape_cast %16 : vector<16x16x16xf32> to vector<256x16xf32>
    %c0_20 = arith.constant 0 : index
    %c2 = arith.constant 2 : index
    %c0_21 = arith.constant 0 : index
    %18 = vector.load %arg11[%c0_20, %c2, %c0_21] : memref<18x18x16xf32, #tpu.memory_space<vmem>>, vector<16x16x16xf32>
    %19 = vector.shape_cast %18 : vector<16x16x16xf32> to vector<256x16xf32>
    %c1_22 = arith.constant 1 : index
    %c0_23 = arith.constant 0 : index
    %c0_24 = arith.constant 0 : index
    %20 = vector.load %arg11[%c1_22, %c0_23, %c0_24] : memref<18x18x16xf32, #tpu.memory_space<vmem>>, vector<16x16x16xf32>
    %21 = vector.shape_cast %20 : vector<16x16x16xf32> to vector<256x16xf32>
    %c1_25 = arith.constant 1 : index
    %c1_26 = arith.constant 1 : index
    %c0_27 = arith.constant 0 : index
    %22 = vector.load %arg11[%c1_25, %c1_26, %c0_27] : memref<18x18x16xf32, #tpu.memory_space<vmem>>, vector<16x16x16xf32>
    %23 = vector.shape_cast %22 : vector<16x16x16xf32> to vector<256x16xf32>
    %c1_28 = arith.constant 1 : index
    %c2_29 = arith.constant 2 : index
    %c0_30 = arith.constant 0 : index
    %24 = vector.load %arg11[%c1_28, %c2_29, %c0_30] : memref<18x18x16xf32, #tpu.memory_space<vmem>>, vector<16x16x16xf32>
    %25 = vector.shape_cast %24 : vector<16x16x16xf32> to vector<256x16xf32>
    %c2_31 = arith.constant 2 : index
    %c0_32 = arith.constant 0 : index
    %c0_33 = arith.constant 0 : index
    %26 = vector.load %arg11[%c2_31, %c0_32, %c0_33] : memref<18x18x16xf32, #tpu.memory_space<vmem>>, vector<16x16x16xf32>
    %27 = vector.shape_cast %26 : vector<16x16x16xf32> to vector<256x16xf32>
    %c2_34 = arith.constant 2 : index
    %c1_35 = arith.constant 1 : index
    %c0_36 = arith.constant 0 : index
    %28 = vector.load %arg11[%c2_34, %c1_35, %c0_36] : memref<18x18x16xf32, #tpu.memory_space<vmem>>, vector<16x16x16xf32>
    %29 = vector.shape_cast %28 : vector<16x16x16xf32> to vector<256x16xf32>
    %c2_37 = arith.constant 2 : index
    %c2_38 = arith.constant 2 : index
    %c0_39 = arith.constant 0 : index
    %30 = vector.load %arg11[%c2_37, %c2_38, %c0_39] : memref<18x18x16xf32, #tpu.memory_space<vmem>>, vector<16x16x16xf32>
    %31 = vector.shape_cast %30 : vector<16x16x16xf32> to vector<256x16xf32>
    %cst_40 = arith.constant 0.000000e+00 : f32
    %32 = vector.broadcast %cst_40 : f32 to vector<256x16xf32>
    %33 = arith.truncf %15 : vector<256x16xf32> to vector<256x16xbf16>
    %c0_41 = arith.constant 0 : index
    %c0_42 = arith.constant 0 : index
    %34 = vector.load %arg4[%c0_41, %c0_42] : memref<144x16xbf16, #tpu.memory_space<vmem>>, vector<16x16xbf16>
    %cst_43 = arith.constant dense<0.000000e+00> : vector<256x16xf32>
    %35 = tpu.matmul %33, %34, %cst_43 {dimension_numbers = #tpu.dot_dimension_numbers<[1], [0], [0], [1], [0, 0, 1, 1], [], []>} : vector<256x16xbf16>, vector<16x16xbf16>, vector<256x16xf32> -> vector<256x16xf32>
    %36 = arith.addf %32, %35 : vector<256x16xf32>
    %37 = arith.truncf %17 : vector<256x16xf32> to vector<256x16xbf16>
    %c16 = arith.constant 16 : index
    %c0_44 = arith.constant 0 : index
    %38 = vector.load %arg4[%c16, %c0_44] : memref<144x16xbf16, #tpu.memory_space<vmem>>, vector<16x16xbf16>
    %cst_45 = arith.constant dense<0.000000e+00> : vector<256x16xf32>
    %39 = tpu.matmul %37, %38, %cst_45 {dimension_numbers = #tpu.dot_dimension_numbers<[1], [0], [0], [1], [0, 0, 1, 1], [], []>} : vector<256x16xbf16>, vector<16x16xbf16>, vector<256x16xf32> -> vector<256x16xf32>
    %40 = arith.addf %36, %39 : vector<256x16xf32>
    %41 = arith.truncf %19 : vector<256x16xf32> to vector<256x16xbf16>
    %c32 = arith.constant 32 : index
    %c0_46 = arith.constant 0 : index
    %42 = vector.load %arg4[%c32, %c0_46] : memref<144x16xbf16, #tpu.memory_space<vmem>>, vector<16x16xbf16>
    %cst_47 = arith.constant dense<0.000000e+00> : vector<256x16xf32>
    %43 = tpu.matmul %41, %42, %cst_47 {dimension_numbers = #tpu.dot_dimension_numbers<[1], [0], [0], [1], [0, 0, 1, 1], [], []>} : vector<256x16xbf16>, vector<16x16xbf16>, vector<256x16xf32> -> vector<256x16xf32>
    %44 = arith.addf %40, %43 : vector<256x16xf32>
    %45 = arith.truncf %21 : vector<256x16xf32> to vector<256x16xbf16>
    %c48 = arith.constant 48 : index
    %c0_48 = arith.constant 0 : index
    %46 = vector.load %arg4[%c48, %c0_48] : memref<144x16xbf16, #tpu.memory_space<vmem>>, vector<16x16xbf16>
    %cst_49 = arith.constant dense<0.000000e+00> : vector<256x16xf32>
    %47 = tpu.matmul %45, %46, %cst_49 {dimension_numbers = #tpu.dot_dimension_numbers<[1], [0], [0], [1], [0, 0, 1, 1], [], []>} : vector<256x16xbf16>, vector<16x16xbf16>, vector<256x16xf32> -> vector<256x16xf32>
    %48 = arith.addf %44, %47 : vector<256x16xf32>
    %49 = arith.truncf %23 : vector<256x16xf32> to vector<256x16xbf16>
    %c64 = arith.constant 64 : index
    %c0_50 = arith.constant 0 : index
    %50 = vector.load %arg4[%c64, %c0_50] : memref<144x16xbf16, #tpu.memory_space<vmem>>, vector<16x16xbf16>
    %cst_51 = arith.constant dense<0.000000e+00> : vector<256x16xf32>
    %51 = tpu.matmul %49, %50, %cst_51 {dimension_numbers = #tpu.dot_dimension_numbers<[1], [0], [0], [1], [0, 0, 1, 1], [], []>} : vector<256x16xbf16>, vector<16x16xbf16>, vector<256x16xf32> -> vector<256x16xf32>
    %52 = arith.addf %48, %51 : vector<256x16xf32>
    %53 = arith.truncf %25 : vector<256x16xf32> to vector<256x16xbf16>
    %c80 = arith.constant 80 : index
    %c0_52 = arith.constant 0 : index
    %54 = vector.load %arg4[%c80, %c0_52] : memref<144x16xbf16, #tpu.memory_space<vmem>>, vector<16x16xbf16>
    %cst_53 = arith.constant dense<0.000000e+00> : vector<256x16xf32>
    %55 = tpu.matmul %53, %54, %cst_53 {dimension_numbers = #tpu.dot_dimension_numbers<[1], [0], [0], [1], [0, 0, 1, 1], [], []>} : vector<256x16xbf16>, vector<16x16xbf16>, vector<256x16xf32> -> vector<256x16xf32>
    %56 = arith.addf %52, %55 : vector<256x16xf32>
    %57 = arith.truncf %27 : vector<256x16xf32> to vector<256x16xbf16>
    %c96 = arith.constant 96 : index
    %c0_54 = arith.constant 0 : index
    %58 = vector.load %arg4[%c96, %c0_54] : memref<144x16xbf16, #tpu.memory_space<vmem>>, vector<16x16xbf16>
    %cst_55 = arith.constant dense<0.000000e+00> : vector<256x16xf32>
    %59 = tpu.matmul %57, %58, %cst_55 {dimension_numbers = #tpu.dot_dimension_numbers<[1], [0], [0], [1], [0, 0, 1, 1], [], []>} : vector<256x16xbf16>, vector<16x16xbf16>, vector<256x16xf32> -> vector<256x16xf32>
    %60 = arith.addf %56, %59 : vector<256x16xf32>
    %61 = arith.truncf %29 : vector<256x16xf32> to vector<256x16xbf16>
    %c112 = arith.constant 112 : index
    %c0_56 = arith.constant 0 : index
    %62 = vector.load %arg4[%c112, %c0_56] : memref<144x16xbf16, #tpu.memory_space<vmem>>, vector<16x16xbf16>
    %cst_57 = arith.constant dense<0.000000e+00> : vector<256x16xf32>
    %63 = tpu.matmul %61, %62, %cst_57 {dimension_numbers = #tpu.dot_dimension_numbers<[1], [0], [0], [1], [0, 0, 1, 1], [], []>} : vector<256x16xbf16>, vector<16x16xbf16>, vector<256x16xf32> -> vector<256x16xf32>
    %64 = arith.addf %60, %63 : vector<256x16xf32>
    %65 = arith.truncf %31 : vector<256x16xf32> to vector<256x16xbf16>
    %c128 = arith.constant 128 : index
    %c0_58 = arith.constant 0 : index
    %66 = vector.load %arg4[%c128, %c0_58] : memref<144x16xbf16, #tpu.memory_space<vmem>>, vector<16x16xbf16>
    %cst_59 = arith.constant dense<0.000000e+00> : vector<256x16xf32>
    %67 = tpu.matmul %65, %66, %cst_59 {dimension_numbers = #tpu.dot_dimension_numbers<[1], [0], [0], [1], [0, 0, 1, 1], [], []>} : vector<256x16xbf16>, vector<16x16xbf16>, vector<256x16xf32> -> vector<256x16xf32>
    %68 = arith.addf %64, %67 : vector<256x16xf32>
    %c0_60 = arith.constant 0 : index
    %c0_61 = arith.constant 0 : index
    %69 = vector.load %arg5[%c0_60, %c0_61] : memref<1x16xf32, #tpu.memory_space<vmem>>, vector<1x16xf32>
    %70 = vector.broadcast %69 : vector<1x16xf32> to vector<256x16xf32>
    %71 = arith.addf %68, %70 : vector<256x16xf32>
    %cst_62 = arith.constant 0.000000e+00 : f32
    %72 = vector.broadcast %cst_62 : f32 to vector<256x16xf32>
    %73 = arith.maximumf %71, %72 : vector<256x16xf32>
    %74 = arith.truncf %73 : vector<256x16xf32> to vector<256x16xbf16>
    %c0_63 = arith.constant 0 : index
    %c0_64 = arith.constant 0 : index
    %75 = vector.load %arg6[%c0_63, %c0_64] : memref<16x64xbf16, #tpu.memory_space<vmem>>, vector<16x64xbf16>
    %cst_65 = arith.constant dense<0.000000e+00> : vector<256x64xf32>
    %76 = tpu.matmul %74, %75, %cst_65 {dimension_numbers = #tpu.dot_dimension_numbers<[1], [0], [0], [1], [0, 0, 1, 1], [], []>} : vector<256x16xbf16>, vector<16x64xbf16>, vector<256x64xf32> -> vector<256x64xf32>
    %c0_66 = arith.constant 0 : index
    %c0_67 = arith.constant 0 : index
    %77 = vector.load %arg7[%c0_66, %c0_67] : memref<1x64xf32, #tpu.memory_space<vmem>>, vector<1x64xf32>
    %78 = vector.broadcast %77 : vector<1x64xf32> to vector<256x64xf32>
    %79 = arith.addf %76, %78 : vector<256x64xf32>
    %c0_68 = arith.constant 0 : index
    %c0_69 = arith.constant 0 : index
    %80 = vector.load %arg8[%c0_68, %c0_69] : memref<32x64xbf16, #tpu.memory_space<vmem>>, vector<32x64xbf16>
    %cst_70 = arith.constant dense<0.000000e+00> : vector<256x64xf32>
    %81 = tpu.matmul %2, %80, %cst_70 {dimension_numbers = #tpu.dot_dimension_numbers<[1], [0], [0], [1], [0, 0, 1, 1], [], []>} : vector<256x32xbf16>, vector<32x64xbf16>, vector<256x64xf32> -> vector<256x64xf32>
    %c0_71 = arith.constant 0 : index
    %c0_72 = arith.constant 0 : index
    %82 = vector.load %arg9[%c0_71, %c0_72] : memref<1x64xf32, #tpu.memory_space<vmem>>, vector<1x64xf32>
    %83 = vector.broadcast %82 : vector<1x64xf32> to vector<256x64xf32>
    %84 = arith.addf %81, %83 : vector<256x64xf32>
    %85 = arith.addf %79, %84 : vector<256x64xf32>
    %cst_73 = arith.constant 0.000000e+00 : f32
    %86 = vector.broadcast %cst_73 : f32 to vector<256x64xf32>
    %87 = arith.maximumf %85, %86 : vector<256x64xf32>
    %88 = vector.shape_cast %87 : vector<256x64xf32> to vector<1x16x16x64xf32>
    %c0_74 = arith.constant 0 : index
    %c0_75 = arith.constant 0 : index
    %c0_76 = arith.constant 0 : index
    %c0_77 = arith.constant 0 : index
    %89 = vector.load %arg10[%c0_74, %c0_75, %c0_76, %c0_77] : memref<1x16x16x64xf32, #tpu.memory_space<vmem>>, vector<1x16x16x64xf32>
    tpu.vector_store %arg10[%c0_74, %c0_75, %c0_76, %c0_77], %88 {strides = array<i32>} : memref<1x16x16x64xf32, #tpu.memory_space<vmem>>, vector<1x16x16x64xf32>,
    return
  }
  func.func @transform_0(%arg0: i32) -> (i32, i32, i32, i32) {
    %c0_i32 = arith.constant 0 : i32
    %c0_i32_0 = arith.constant 0 : i32
    %c0_i32_1 = arith.constant 0 : i32
    %c0_i32_2 = arith.constant 0 : i32
    return %arg0, %c0_i32, %c0_i32_0, %c0_i32_1 : i32, i32, i32, i32
  }
  func.func @transform_1(%arg0: i32) -> (i32, i32) {
    %c0_i32 = arith.constant 0 : i32
    %c0_i32_0 = arith.constant 0 : i32
    %c0_i32_1 = arith.constant 0 : i32
    return %c0_i32, %c0_i32_0 : i32, i32
  }
  func.func @transform_2(%arg0: i32) -> (i32, i32) {
    %c0_i32 = arith.constant 0 : i32
    %c0_i32_0 = arith.constant 0 : i32
    %c0_i32_1 = arith.constant 0 : i32
    return %c0_i32, %c0_i32_0 : i32, i32
  }
  func.func @transform_3(%arg0: i32) -> (i32, i32) {
    %c0_i32 = arith.constant 0 : i32
    %c0_i32_0 = arith.constant 0 : i32
    %c0_i32_1 = arith.constant 0 : i32
    return %c0_i32, %c0_i32_0 : i32, i32
  }
  func.func @transform_4(%arg0: i32) -> (i32, i32) {
    %c0_i32 = arith.constant 0 : i32
    %c0_i32_0 = arith.constant 0 : i32
    %c0_i32_1 = arith.constant 0 : i32
    return %c0_i32, %c0_i32_0 : i32, i32
  }
  func.func @transform_5(%arg0: i32) -> (i32, i32) {
    %c0_i32 = arith.constant 0 : i32
    %c0_i32_0 = arith.constant 0 : i32
    %c0_i32_1 = arith.constant 0 : i32
    return %c0_i32, %c0_i32_0 : i32, i32
  }
  func.func @transform_6(%arg0: i32) -> (i32, i32) {
    %c0_i32 = arith.constant 0 : i32
    %c0_i32_0 = arith.constant 0 : i32
    %c0_i32_1 = arith.constant 0 : i32
    return %c0_i32, %c0_i32_0 : i32, i32
  }
  func.func @transform_7(%arg0: i32) -> (i32, i32) {
    %c0_i32 = arith.constant 0 : i32
    %c0_i32_0 = arith.constant 0 : i32
    %c0_i32_1 = arith.constant 0 : i32
    return %c0_i32, %c0_i32_0 : i32, i32
  }
  func.func @transform_8(%arg0: i32) -> (i32, i32) {
    %c0_i32 = arith.constant 0 : i32
    %c0_i32_0 = arith.constant 0 : i32
    %c0_i32_1 = arith.constant 0 : i32
    return %c0_i32, %c0_i32_0 : i32, i32
  }
  func.func @transform_9(%arg0: i32) -> (i32, i32, i32, i32) {
    %c0_i32 = arith.constant 0 : i32
    %c0_i32_0 = arith.constant 0 : i32
    %c0_i32_1 = arith.constant 0 : i32
    %c0_i32_2 = arith.constant 0 : i32
    return %arg0, %c0_i32, %c0_i32_0, %c0_i32_1 : i32, i32, i32, i32
  }
}

</mosaic_0001>

<llo_original>
// kernel: tpu_custom_call.1
$region0: #{tpu_custom_call.1}
  #allocation0 [shape = 'u32[]', space=smem, size = 0x4, offset = 0x4, fixed_abs, tag = 'smem constant byte address 0x4 - core index']
  #allocation1 [shape = 'u32[144,128]{1,0:T(1,128)}', space=vmem, size = 0x12000, scoped, tag = 'internal scratch']
  #allocation2 [shape = 'f32[18,18,16]{2,1,0:T(8,128)}', space=vmem, size = 0x36000, scoped, tag = 'scratch operand']
  %s0 = inlined_call_operand.hbm [shape: bf16[2,16,16,32], index: 0, kind: input, shape index: {}]
  %s1 = inlined_call_operand.vmem [shape: bf16[32,16], index: 1, kind: input, shape index: {}]
  %s2 = inlined_call_operand.vmem [shape: f32[1,16], index: 2, kind: input, shape index: {}]
  %s3 = inlined_call_operand.vmem [shape: bf16[144,16], index: 3, kind: input, shape index: {}]
  %s4 = inlined_call_operand.vmem [shape: f32[1,16], index: 4, kind: input, shape index: {}]
  %s5 = inlined_call_operand.vmem [shape: bf16[16,64], index: 5, kind: input, shape index: {}]
  %s6 = inlined_call_operand.vmem [shape: f32[1,64], index: 6, kind: input, shape index: {}]
  %s7 = inlined_call_operand.vmem [shape: bf16[32,64], index: 7, kind: input, shape index: {}]
  %s8 = inlined_call_operand.vmem [shape: f32[1,64], index: 8, kind: input, shape index: {}]
  %s9 = inlined_call_operand.hbm [shape: f32[2,16,16,64], index: 9, kind: output, shape index: {}]
  %s10 = sld [smem:[#allocation0]]
  $region73: #{tpu_custom_call.1} parent=0
    _
  %s12 = ssub.s32 1, %s10
  %s13 = scalar_select 0, %s12, %s10
  $region1: #{tpu_custom_call.1} parent=0
    #allocation3 [shape = 'u8[131072]{0}', space=vmem, size = 0x20000, scoped, tag = 'input window, operand 0']
    #allocation4 [shape = 's32[2]{0}', space=sflag, size = 0x8, scoped, tag = 'scoped memory for tpu_custom_call.1']
    #allocation5 [shape = 's32[2]{0}', space=sflag, size = 0x8, scoped, tag = 'scoped memory for tpu_custom_call.1']
    #allocation6 [shape = 'u8[262144]{0}', space=vmem, size = 0x40000, scoped, tag = 'output window, operand 0']
    %14 = vsyncpa [#allocation4], 0
    %s15 = scalar_lea.sflag [#allocation4], 1
    %16 = vsyncpa %s15, 0
    %17 = vsyncpa [#allocation5], 0
    %s18 = scalar_lea.sflag [#allocation5], 1
    %19 = vsyncpa %s18, 0
    loop: start=0, step=1, limit=4
    $region2: #{tpu_custom_call.1} parent=1 // loop_pre_header
      _
    $region3: #{tpu_custom_call.1} parent=1 // loop_header
      %s21 = sphi 0, %s25
      %p22 = scmp.ge.s32.totalorder %s21, 4
      %s31 = sphi 0, %s33
      %s34 = sphi 0, %s31
      %s35 = sphi 0, %s34
      %s51 = sphi 0, %s35
      %s55 = sphi 0, %s55
      %s57 = sphi 0, %s55
      %s58 = sphi 0, %s57
      %s72 = sphi 0, %s58
      %s76 = sphi 0, %s76
      %s78 = sphi 0, %s76
      %s79 = sphi 0, %s78
      %s93 = sphi 0, %s79
      %s97 = sphi 0, %s97
      %s99 = sphi 0, %s97
      %s100 = sphi 0, %s99
      %s114 = sphi 0, %s100
      %s118 = sphi 0, %s118
      %s120 = sphi 0, %s118
      %s121 = sphi 0, %s120
      %s135 = sphi 0, %s121
      %s139 = sphi 0, %s139
      %s141 = sphi 0, %s139
      %s142 = sphi 0, %s141
      %s156 = sphi 0, %s142
      %s160 = sphi 0, %s160
      %s162 = sphi 0, %s160
      %s163 = sphi 0, %s162
      %s177 = sphi 0, %s163
      %s181 = sphi 0, %s181
      %s183 = sphi 0, %s181
      %s184 = sphi 0, %s183
      %s198 = sphi 0, %s184
      %s202 = sphi 0, %s202
      %s204 = sphi 0, %s202
      %s205 = sphi 0, %s204
      %s219 = sphi 0, %s205
      %s225 = sphi 0, %s227
      %s228 = sphi 0, %s225
      %s229 = sphi 0, %s228
      %s245 = sphi 0, %s229
    $region4: #{tpu_custom_call.1} parent=1 // loop_header_branch
      %24 = sbr.rel (%p22) target = $region8
    $region5: #{tpu_custom_call.1} parent=1 // loop_body
      %s26 = ssub.s32 %s21, 1
      %s27 = ssub.s32 %s21, 2
      %s28 = sadd.s32 %s21, 1
      %s29 = ssub.s32 %s21, %s28
      %p30 = scmp.eq.s32.totalorder %s29, 0
      %s32 = sadd.s32 %s31, 1
      %s33 = scalar_select %p30, %s31, %s32
      %p36 = pneg %p30
      %p37 = scmp.eq.s32.totalorder %s21, 1
      %p38 = por %p36, %p37
      %p39 = scmp.ne.s32.totalorder %s31, %s34
      %p40 = scmp.eq.s32.totalorder %s21, 0
      %p41 = por %p39, %p40
      %p42 = scmp.ne.s32.totalorder %s31, %s34
      %p43 = scmp.eq.s32.totalorder %s26, 1
      %p44 = por %p42, %p43
      %p45 = scmp.ne.s32.totalorder %s34, %s35
      %p46 = scmp.eq.s32.totalorder %s26, 0
      %p47 = por %p45, %p46
      %p48 = scmp.ne.s32.totalorder %s34, %s35
      %p49 = scmp.eq.s32.totalorder %s27, 1
      %p50 = por %p48, %p49
      %p52 = scmp.ne.s32.totalorder %s35, %s51
      %p53 = scmp.eq.s32.totalorder %s27, 0
      %p54 = por %p52, %p53
      %s56 = sadd.s32 %s55, 1
      %p59 = scmp.eq.s32.totalorder %s21, 1
      %p60 = scmp.ne.s32.totalorder %s55, %s57
      %p61 = scmp.eq.s32.totalorder %s21, 0
      %p62 = por %p60, %p61
      %p63 = scmp.ne.s32.totalorder %s55, %s57
      %p64 = scmp.eq.s32.totalorder %s26, 1
      %p65 = por %p63, %p64
      %p66 = scmp.ne.s32.totalorder %s57, %s58
      %p67 = scmp.eq.s32.totalorder %s26, 0
      %p68 = por %p66, %p67
      %p69 = scmp.ne.s32.totalorder %s57, %s58
      %p70 = scmp.eq.s32.totalorder %s27, 1
      %p71 = por %p69, %p70
      %p73 = scmp.ne.s32.totalorder %s58, %s72
      %p74 = scmp.eq.s32.totalorder %s27, 0
      %p75 = por %p73, %p74
      %s77 = sadd.s32 %s76, 1
      %p80 = scmp.eq.s32.totalorder %s21, 1
      %p81 = scmp.ne.s32.totalorder %s76, %s78
      %p82 = scmp.eq.s32.totalorder %s21, 0
      %p83 = por %p81, %p82
      %p84 = scmp.ne.s32.totalorder %s76, %s78
      %p85 = scmp.eq.s32.totalorder %s26, 1
      %p86 = por %p84, %p85
      %p87 = scmp.ne.s32.totalorder %s78, %s79
      %p88 = scmp.eq.s32.totalorder %s26, 0
      %p89 = por %p87, %p88
      %p90 = scmp.ne.s32.totalorder %s78, %s79
      %p91 = scmp.eq.s32.totalorder %s27, 1
      %p92 = por %p90, %p91
      %p94 = scmp.ne.s32.totalorder %s79, %s93
      %p95 = scmp.eq.s32.totalorder %s27, 0
      %p96 = por %p94, %p95
      %s98 = sadd.s32 %s97, 1
      %p101 = scmp.eq.s32.totalorder %s21, 1
      %p102 = scmp.ne.s32.totalorder %s97, %s99
      %p103 = scmp.eq.s32.totalorder %s21, 0
      %p104 = por %p102, %p103
      %p105 = scmp.ne.s32.totalorder %s97, %s99
      %p106 = scmp.eq.s32.totalorder %s26, 1
      %p107 = por %p105, %p106
      %p108 = scmp.ne.s32.totalorder %s99, %s100
      %p109 = scmp.eq.s32.totalorder %s26, 0
      %p110 = por %p108, %p109
      %p111 = scmp.ne.s32.totalorder %s99, %s100
      %p112 = scmp.eq.s32.totalorder %s27, 1
      %p113 = por %p111, %p112
      %p115 = scmp.ne.s32.totalorder %s100, %s114
      %p116 = scmp.eq.s32.totalorder %s27, 0
      %p117 = por %p115, %p116
      %s119 = sadd.s32 %s118, 1
      %p122 = scmp.eq.s32.totalorder %s21, 1
      %p123 = scmp.ne.s32.totalorder %s118, %s120
      %p124 = scmp.eq.s32.totalorder %s21, 0
      %p125 = por %p123, %p124
      %p126 = scmp.ne.s32.totalorder %s118, %s120
      %p127 = scmp.eq.s32.totalorder %s26, 1
      %p128 = por %p126, %p127
      %p129 = scmp.ne.s32.totalorder %s120, %s121
      %p130 = scmp.eq.s32.totalorder %s26, 0
      %p131 = por %p129, %p130
      %p132 = scmp.ne.s32.totalorder %s120, %s121
      %p133 = scmp.eq.s32.totalorder %s27, 1
      %p134 = por %p132, %p133
      %p136 = scmp.ne.s32.totalorder %s121, %s135
      %p137 = scmp.eq.s32.totalorder %s27, 0
      %p138 = por %p136, %p137
      %s140 = sadd.s32 %s139, 1
      %p143 = scmp.eq.s32.totalorder %s21, 1
      %p144 = scmp.ne.s32.totalorder %s139, %s141
      %p145 = scmp.eq.s32.totalorder %s21, 0
      %p146 = por %p144, %p145
      %p147 = scmp.ne.s32.totalorder %s139, %s141
      %p148 = scmp.eq.s32.totalorder %s26, 1
      %p149 = por %p147, %p148
      %p150 = scmp.ne.s32.totalorder %s141, %s142
      %p151 = scmp.eq.s32.totalorder %s26, 0
      %p152 = por %p150, %p151
      %p153 = scmp.ne.s32.totalorder %s141, %s142
      %p154 = scmp.eq.s32.totalorder %s27, 1
      %p155 = por %p153, %p154
      %p157 = scmp.ne.s32.totalorder %s142, %s156
      %p158 = scmp.eq.s32.totalorder %s27, 0
      %p159 = por %p157, %p158
      %s161 = sadd.s32 %s160, 1
      %p164 = scmp.eq.s32.totalorder %s21, 1
      %p165 = scmp.ne.s32.totalorder %s160, %s162
      %p166 = scmp.eq.s32.totalorder %s21, 0
      %p167 = por %p165, %p166
      %p168 = scmp.ne.s32.totalorder %s160, %s162
      %p169 = scmp.eq.s32.totalorder %s26, 1
      %p170 = por %p168, %p169
      %p171 = scmp.ne.s32.totalorder %s162, %s163
      %p172 = scmp.eq.s32.totalorder %s26, 0
      %p173 = por %p171, %p172
      %p174 = scmp.ne.s32.totalorder %s162, %s163
      %p175 = scmp.eq.s32.totalorder %s27, 1
      %p176 = por %p174, %p175
      %p178 = scmp.ne.s32.totalorder %s163, %s177
      %p179 = scmp.eq.s32.totalorder %s27, 0
      %p180 = por %p178, %p179
      %s182 = sadd.s32 %s181, 1
      %p185 = scmp.eq.s32.totalorder %s21, 1
      %p186 = scmp.ne.s32.totalorder %s181, %s183
      %p187 = scmp.eq.s32.totalorder %s21, 0
      %p188 = por %p186, %p187
      %p189 = scmp.ne.s32.totalorder %s181, %s183
      %p190 = scmp.eq.s32.totalorder %s26, 1
      %p191 = por %p189, %p190
      %p192 = scmp.ne.s32.totalorder %s183, %s184
      %p193 = scmp.eq.s32.totalorder %s26, 0
      %p194 = por %p192, %p193
      %p195 = scmp.ne.s32.totalorder %s183, %s184
      %p196 = scmp.eq.s32.totalorder %s27, 1
      %p197 = por %p195, %p196
      %p199 = scmp.ne.s32.totalorder %s184, %s198
      %p200 = scmp.eq.s32.totalorder %s27, 0
      %p201 = por %p199, %p200
      %s203 = sadd.s32 %s202, 1
      %p206 = scmp.eq.s32.totalorder %s21, 1
      %p207 = scmp.ne.s32.totalorder %s202, %s204
      %p208 = scmp.eq.s32.totalorder %s21, 0
      %p209 = por %p207, %p208
      %p210 = scmp.ne.s32.totalorder %s202, %s204
      %p211 = scmp.eq.s32.totalorder %s26, 1
      %p212 = por %p210, %p211
      %p213 = scmp.ne.s32.totalorder %s204, %s205
      %p214 = scmp.eq.s32.totalorder %s26, 0
      %p215 = por %p213, %p214
      %p216 = scmp.ne.s32.totalorder %s204, %s205
      %p217 = scmp.eq.s32.totalorder %s27, 1
      %p218 = por %p216, %p217
      %p220 = scmp.ne.s32.totalorder %s205, %s219
      %p221 = scmp.eq.s32.totalorder %s27, 0
      %p222 = por %p220, %p221
      %s223 = ssub.s32 %s21, %s28
      %p224 = scmp.eq.s32.totalorder %s223, 0
      %s226 = sadd.s32 %s225, 1
      %s227 = scalar_select %p224, %s225, %s226
      %p230 = pneg %p224
      %p231 = scmp.eq.s32.totalorder %s21, 1
      %p232 = por %p230, %p231
      %p233 = scmp.ne.s32.totalorder %s225, %s228
      %p234 = scmp.eq.s32.totalorder %s21, 0
      %p235 = por %p233, %p234
      %p236 = scmp.ne.s32.totalorder %s225, %s228
      %p237 = scmp.eq.s32.totalorder %s26, 1
      %p238 = por %p236, %p237
      %p239 = scmp.ne.s32.totalorder %s228, %s229
      %p240 = scmp.eq.s32.totalorder %s26, 0
      %p241 = por %p239, %p240
      %p242 = scmp.ne.s32.totalorder %s228, %s229
      %p243 = scmp.eq.s32.totalorder %s27, 1
      %p244 = por %p242, %p243
      %p246 = scmp.ne.s32.totalorder %s229, %s245
      %p247 = scmp.eq.s32.totalorder %s27, 0
      %p248 = por %p246, %p247
      %p249 = scmp.le.s32.totalorder 1, %s21
      %p250 = scmp.lt.s32.totalorder %s21, 3
      %p251 = pnand %p249, %p250
      %p252 = pneg %p251
      // Predicated region
      $region9: #{tpu_custom_call.1} parent=5 // pred_check
        _
      $region10: #{tpu_custom_call.1} parent=5 // pred_check_branch
        %254 = sbr.rel (%p251) target = $region12
      $region11: #{tpu_custom_call.1} parent=5 // pred_region
        %s255 = ssub.s32 %s21, 1
        // Predicated region
        $region13: #{tpu_custom_call.1} parent=11 // pred_check
          %p256 = pneg %p68
        $region14: #{tpu_custom_call.1} parent=11 // pred_check_branch
          %258 = sbr.rel (%p256) target = $region16
        $region15: #{tpu_custom_call.1} parent=11 // pred_region
          _
        $region16: #{tpu_custom_call.1} parent=11 // pred_fallthru
          _
        // Predicated region
        $region17: #{tpu_custom_call.1} parent=11 // pred_check
          %p259 = pneg %p89
        $region18: #{tpu_custom_call.1} parent=11 // pred_check_branch
          %261 = sbr.rel (%p259) target = $region20
        $region19: #{tpu_custom_call.1} parent=11 // pred_region
          _
        $region20: #{tpu_custom_call.1} parent=11 // pred_fallthru
          _
        // Predicated region
        $region21: #{tpu_custom_call.1} parent=11 // pred_check
          %p262 = pneg %p110
        $region22: #{tpu_custom_call.1} parent=11 // pred_check_branch
          %264 = sbr.rel (%p262) target = $region24
        $region23: #{tpu_custom_call.1} parent=11 // pred_region
          _
        $region24: #{tpu_custom_call.1} parent=11 // pred_fallthru
          _
        // Predicated region
        $region25: #{tpu_custom_call.1} parent=11 // pred_check
          %p265 = pneg %p131
        $region26: #{tpu_custom_call.1} parent=11 // pred_check_branch
          %267 = sbr.rel (%p265) target = $region28
        $region27: #{tpu_custom_call.1} parent=11 // pred_region
          _
        $region28: #{tpu_custom_call.1} parent=11 // pred_fallthru
          _
        // Predicated region
        $region29: #{tpu_custom_call.1} parent=11 // pred_check
          %p268 = pneg %p152
        $region30: #{tpu_custom_call.1} parent=11 // pred_check_branch
          %270 = sbr.rel (%p268) target = $region32
        $region31: #{tpu_custom_call.1} parent=11 // pred_region
          _
        $region32: #{tpu_custom_call.1} parent=11 // pred_fallthru
          _
        // Predicated region
        $region33: #{tpu_custom_call.1} parent=11 // pred_check
          %p271 = pneg %p173
        $region34: #{tpu_custom_call.1} parent=11 // pred_check_branch
          %273 = sbr.rel (%p271) target = $region36
        $region35: #{tpu_custom_call.1} parent=11 // pred_region
          _
        $region36: #{tpu_custom_call.1} parent=11 // pred_fallthru
          _
        // Predicated region
        $region37: #{tpu_custom_call.1} parent=11 // pred_check
          %p274 = pneg %p194
        $region38: #{tpu_custom_call.1} parent=11 // pred_check_branch
          %276 = sbr.rel (%p274) target = $region40
        $region39: #{tpu_custom_call.1} parent=11 // pred_region
          _
        $region40: #{tpu_custom_call.1} parent=11 // pred_fallthru
          _
        // Predicated region
        $region41: #{tpu_custom_call.1} parent=11 // pred_check
          %p277 = pneg %p215
        $region42: #{tpu_custom_call.1} parent=11 // pred_check_branch
          %279 = sbr.rel (%p277) target = $region44
        $region43: #{tpu_custom_call.1} parent=11 // pred_region
          _
        $region44: #{tpu_custom_call.1} parent=11 // pred_fallthru
          _
      $region12: #{tpu_custom_call.1} parent=5 // pred_fallthru
        _
      %p280 = scmp.lt.s32.totalorder %s21, 2
      // Predicated region
      $region45: #{tpu_custom_call.1} parent=5 // pred_check
        %p281 = pneg %p280
      $region46: #{tpu_custom_call.1} parent=5 // pred_check_branch
        %283 = sbr.rel (%p281) target = $region48
      $region47: #{tpu_custom_call.1} parent=5 // pred_region
        // Predicated region
        $region49: #{tpu_custom_call.1} parent=47 // pred_check
          %p284 = pneg %p41
        $region50: #{tpu_custom_call.1} parent=47 // pred_check_branch
          %286 = sbr.rel (%p284) target = $region52
        $region51: #{tpu_custom_call.1} parent=47 // pred_region
          %s287 = sand.u32 %s31, 1
          %s288 = scalar_lea.sflag [#allocation4], %s287
          %s289 = sand.u32 %s31, 1
          %s290 = smul.addr %s289, 128
          %s291 = scalar_lea.vmem [#allocation3], %s290
          %s293 = ssub.s32 2048, 2048
          %294 = vsyncadd %s288, %s293
          %s295 = smul.addr %s21, 32
          %s296 = smul.addr %s295, 64
          %s297 = scalar_lea.hbm %s0, %s296
          %s298 = sshll.u32 %s291, 4
          %s299 = int_to_ptr.vmem [resolvable:$true] %s298
          %304 = dma.hbm_to_vmem [thread:$0]  %s297, 2048, %s299, %s288, 64, 64, 4
        $region52: #{tpu_custom_call.1} parent=47 // pred_fallthru
          _
      $region48: #{tpu_custom_call.1} parent=5 // pred_fallthru
        _
      %p305 = scmp.le.s32.totalorder 1, %s21
      %p306 = scmp.lt.s32.totalorder %s21, 3
      %p307 = pnand %p305, %p306
      %p308 = pneg %p307
      // Predicated region
      $region53: #{tpu_custom_call.1} parent=5 // pred_check
        _
      $region54: #{tpu_custom_call.1} parent=5 // pred_check_branch
        %310 = sbr.rel (%p307) target = $region56
      $region55: #{tpu_custom_call.1} parent=5 // pred_region
        %s311 = ssub.s32 %s21, 1
        %s312 = sand.u32 %s34, 1
        %s313 = scalar_lea.sflag [#allocation4], %s312
        %s314 = sand.u32 %s34, 1
        %s315 = smul.addr %s314, 128
        %s316 = scalar_lea.vmem [#allocation3], %s315
        // Predicated region
        $region57: #{tpu_custom_call.1} parent=55 // pred_check
          %p317 = pneg %p47
        $region58: #{tpu_custom_call.1} parent=55 // pred_check_branch
          %319 = sbr.rel (%p317) target = $region60
        $region59: #{tpu_custom_call.1} parent=55 // pred_region
          %320 = dma.done %s313, 2048
        $region60: #{tpu_custom_call.1} parent=55 // pred_fallthru
          _
        %s321 = sand.u32 %s34, 1
        %s322 = scalar_lea.sflag [#allocation4], %s321
        %s323 = sand.u32 %s34, 1
        %s324 = smul.addr %s323, 128
        %s325 = scalar_lea.vmem [#allocation3], %s324
        %p326 = pneg %p47
        %p327 = pneg %p44
        %p328 = pneg %p68
        %p329 = pneg %p65
        %p330 = pneg %p89
        %p331 = pneg %p86
        %p332 = pneg %p110
        %p333 = pneg %p107
        %p334 = pneg %p131
        %p335 = pneg %p128
        %p336 = pneg %p152
        %p337 = pneg %p149
        %p338 = pneg %p173
        %p339 = pneg %p170
        %p340 = pneg %p194
        %p341 = pneg %p191
        %p342 = pneg %p215
        %p343 = pneg %p212
        %p344 = pneg %p241
        %p345 = pneg %p238
        %s346 = sand.u32 %s228, 1
        %s347 = scalar_lea.sflag [#allocation5], %s346
        %s348 = sand.u32 %s228, 1
        %s349 = smul.addr %s348, 256
        %s350 = scalar_lea.vmem [#allocation6], %s349
        %v352 = vld [vmem:[%s316] sm:$0xf]
        %v353 = vld [vmem:[%s316 + $0x4] sm:$0xf]
        %v354 = vld [vmem:[%s316 + $0x8] sm:$0xf]
        %v355 = vld [vmem:[%s316 + $0xc] sm:$0xf]
        %v356 = vld [vmem:[%s316 + $0x10] sm:$0xf]
        %v357 = vld [vmem:[%s316 + $0x14] sm:$0xf]
        %v358 = vld [vmem:[%s316 + $0x18] sm:$0xf]
        %v359 = vld [vmem:[%s316 + $0x1c] sm:$0xf]
        %v360 = vld [vmem:[%s316 + $0x20] sm:$0xf]
        %v361 = vld [vmem:[%s316 + $0x24] sm:$0xf]
        %v362 = vld [vmem:[%s316 + $0x28] sm:$0xf]
        %v363 = vld [vmem:[%s316 + $0x2c] sm:$0xf]
        %v364 = vld [vmem:[%s316 + $0x30] sm:$0xf]
        %v365 = vld [vmem:[%s316 + $0x34] sm:$0xf]
        %v366 = vld [vmem:[%s316 + $0x38] sm:$0xf]
        %v367 = vld [vmem:[%s316 + $0x3c] sm:$0xf]
        %v368 = vld [vmem:[%s316 + $0x40] sm:$0xf]
        %v369 = vld [vmem:[%s316 + $0x44] sm:$0xf]
        %v370 = vld [vmem:[%s316 + $0x48] sm:$0xf]
        %v371 = vld [vmem:[%s316 + $0x4c] sm:$0xf]
        %v372 = vld [vmem:[%s316 + $0x50] sm:$0xf]
        %v373 = vld [vmem:[%s316 + $0x54] sm:$0xf]
        %v374 = vld [vmem:[%s316 + $0x58] sm:$0xf]
        %v375 = vld [vmem:[%s316 + $0x5c] sm:$0xf]
        %v376 = vld [vmem:[%s316 + $0x60] sm:$0xf]
        %v377 = vld [vmem:[%s316 + $0x64] sm:$0xf]
        %v378 = vld [vmem:[%s316 + $0x68] sm:$0xf]
        %v379 = vld [vmem:[%s316 + $0x6c] sm:$0xf]
        %v380 = vld [vmem:[%s316 + $0x70] sm:$0xf]
        %v381 = vld [vmem:[%s316 + $0x74] sm:$0xf]
        %v382 = vld [vmem:[%s316 + $0x78] sm:$0xf]
        %v383 = vld [vmem:[%s316 + $0x7c] sm:$0xf]
        %v384 = vld [vmem:[%s1] sm:$0xf]
        %v385 = vld [vmem:[%s1 + $0x4] sm:$0xf]
        %v386 = vld [vmem:[%s1 + $0x8] sm:$0xf]
        %v387 = vld [vmem:[%s1 + $0xc] sm:$0xf]
        %v388 = vld [vmem:[%s2] sm:$0x1]
        %v390 = vlaneseq
        %v391 = vshrl.u32 %v390, 7
        %v392 = vsub.s32 0, %v391
        %v393 = vrot.slane %v388, %v392
        %v427 = vunpack.c.l.b16 %v352
        %v428 = vunpack.c.l.b16 %v353
        %v429 = vunpack.c.l.b16 %v354
        %v430 = vunpack.c.l.b16 %v355
        %v431 = vunpack.c.l.b16 %v356
        %v432 = vunpack.c.l.b16 %v357
        %v433 = vunpack.c.l.b16 %v358
        %v434 = vunpack.c.l.b16 %v359
        %v435 = vunpack.c.l.b16 %v360
        %v436 = vunpack.c.l.b16 %v361
        %v437 = vunpack.c.l.b16 %v362
        %v438 = vunpack.c.l.b16 %v363
        %v439 = vunpack.c.l.b16 %v364
        %v440 = vunpack.c.l.b16 %v365
        %v441 = vunpack.c.l.b16 %v366
        %v442 = vunpack.c.l.b16 %v367
        %v443 = vunpack.c.l.b16 %v368
        %v444 = vunpack.c.l.b16 %v369
        %v445 = vunpack.c.l.b16 %v370
        %v446 = vunpack.c.l.b16 %v371
        %v447 = vunpack.c.l.b16 %v372
        %v448 = vunpack.c.l.b16 %v373
        %v449 = vunpack.c.l.b16 %v374
        %v450 = vunpack.c.l.b16 %v375
        %v451 = vunpack.c.l.b16 %v376
        %v452 = vunpack.c.l.b16 %v377
        %v453 = vunpack.c.l.b16 %v378
        %v454 = vunpack.c.l.b16 %v379
        %v455 = vunpack.c.l.b16 %v380
        %v456 = vunpack.c.l.b16 %v381
        %v457 = vunpack.c.l.b16 %v382
        %v458 = vunpack.c.l.b16 %v383
        %v459 = vpack.c.b16 %v428, %v427
        %v460 = vpack.c.b16 %v430, %v429
        %v461 = vpack.c.b16 %v432, %v431
        %v462 = vpack.c.b16 %v434, %v433
        %v463 = vpack.c.b16 %v436, %v435
        %v464 = vpack.c.b16 %v438, %v437
        %v465 = vpack.c.b16 %v440, %v439
        %v466 = vpack.c.b16 %v442, %v441
        %v467 = vpack.c.b16 %v444, %v443
        %v468 = vpack.c.b16 %v446, %v445
        %v469 = vpack.c.b16 %v448, %v447
        %v470 = vpack.c.b16 %v450, %v449
        %v471 = vpack.c.b16 %v452, %v451
        %v472 = vpack.c.b16 %v454, %v453
        %v473 = vpack.c.b16 %v456, %v455
        %v474 = vpack.c.b16 %v458, %v457
        %v479 = vunpack.c.l.b16 %v384
        %v480 = vunpack.c.l.b16 %v385
        %v481 = vunpack.c.l.b16 %v386
        %v482 = vunpack.c.l.b16 %v387
        %v483 = vpack.c.b16 %v480, %v479
        %v484 = vpack.c.b16 %v482, %v481
        %vm487 = vcmask 261120
        %v489 = vsel %vm487, %v459, 0
        %v492 = vsel %vm487, %v460, 0
        %v495 = vsel %vm487, %v461, 0
        %v498 = vsel %vm487, %v462, 0
        %v501 = vsel %vm487, %v463, 0
        %v504 = vsel %vm487, %v464, 0
        %v507 = vsel %vm487, %v465, 0
        %v510 = vsel %vm487, %v466, 0
        %v513 = vsel %vm487, %v467, 0
        %v516 = vsel %vm487, %v468, 0
        %v519 = vsel %vm487, %v469, 0
        %v522 = vsel %vm487, %v470, 0
        %v525 = vsel %vm487, %v471, 0
        %v528 = vsel %vm487, %v472, 0
        %v531 = vsel %vm487, %v473, 0
        %v534 = vsel %vm487, %v474, 0
        %536 = vmatprep.subr.bf16.mxu0 0
        %537 = vmatpush1.bf16.msra.mxu0 0
        %538 = vmatprep.subr.bf16.mxu0 0
        %539 = vmatpush1.bf16.msra.mxu0 0
        %540 = vmatprep.subr.bf16.mxu0 0
        %541 = vmatpush1.bf16.msra.mxu0 0
        %542 = vmatprep.subr.bf16.mxu0 0
        %543 = vmatpush1.bf16.msra.mxu0 0
        %544 = vmatprep.subr.bf16.mxu0 0
        %545 = vmatpush1.bf16.msra.mxu0 0
        %546 = vmatprep.subr.bf16.mxu0 0
        %547 = vmatpush1.bf16.msra.mxu0 0
        %548 = vmatprep.subr.bf16.mxu0 0
        %549 = vmatpush1.bf16.msra.mxu0 %v484
        %550 = vmatprep.subr.bf16.mxu0 0
        %551 = vmatpush1.bf16.msra.mxu0 %v483
        %552 = vmatprep.subr.bf16.mxu0 0
        %553 = vmatpush2.bf16.msra.mxu0 0
        %554 = vmatprep.subr.bf16.mxu0 0
        %555 = vmatpush2.bf16.msra.mxu0 0
        %556 = vmatprep.subr.bf16.mxu0 0
        %557 = vmatpush2.bf16.msra.mxu0 0
        %558 = vmatprep.subr.bf16.mxu0 0
        %559 = vmatpush2.bf16.msra.mxu0 0
        %560 = vmatprep.subr.bf16.mxu0 0
        %561 = vmatpush2.bf16.msra.mxu0 0
        %562 = vmatprep.subr.bf16.mxu0 0
        %563 = vmatpush2.bf16.msra.mxu0 0
        %564 = vmatprep.subr.bf16.mxu0 0
        %565 = vmatpush2.bf16.msra.mxu0 0
        %566 = vmatprep.subr.bf16.mxu0 0
        %567 = vmatpush2.bf16.msra.mxu0 0
        %568 = vmatprep.mubr.bf16.mxu0 0
        %569 = vmatmul.mubr.bf16.gmra.mxu0 %v489
        %v570 = vpop.f32.mrf.mxu0
        %v571 = vadd.f32 %v393, %v570
        %v572 = vpop.f32.mrf.mxu0
        %v573 = vpop.f32.mrf.mxu0
        %v574 = vadd.f32 %v393, %v573
        %v575 = vpop.f32.mrf.mxu0
        %576 = vmatprep.mubr.bf16.mxu0 0
        %577 = vmatmul.mubr.bf16.gmra.mxu0 %v492
        %v578 = vpop.f32.mrf.mxu0
        %v579 = vadd.f32 %v393, %v578
        %v580 = vpop.f32.mrf.mxu0
        %v581 = vpop.f32.mrf.mxu0
        %v582 = vadd.f32 %v393, %v581
        %v583 = vpop.f32.mrf.mxu0
        %584 = vmatprep.mubr.bf16.mxu0 0
        %585 = vmatmul.mubr.bf16.gmra.mxu0 %v495
        %v586 = vpop.f32.mrf.mxu0
        %v587 = vadd.f32 %v393, %v586
        %v588 = vpop.f32.mrf.mxu0
        %v589 = vpop.f32.mrf.mxu0
        %v590 = vadd.f32 %v393, %v589
        %v591 = vpop.f32.mrf.mxu0
        %592 = vmatprep.mubr.bf16.mxu0 0
        %593 = vmatmul.mubr.bf16.gmra.mxu0 %v498
        %v594 = vpop.f32.mrf.mxu0
        %v595 = vadd.f32 %v393, %v594
        %v596 = vpop.f32.mrf.mxu0
        %v597 = vpop.f32.mrf.mxu0
        %v598 = vadd.f32 %v393, %v597
        %v599 = vpop.f32.mrf.mxu0
        %600 = vmatprep.mubr.bf16.mxu0 0
        %601 = vmatmul.mubr.bf16.gmra.mxu0 %v501
        %v602 = vpop.f32.mrf.mxu0
        %v603 = vadd.f32 %v393, %v602
        %v604 = vpop.f32.mrf.mxu0
        %v605 = vpop.f32.mrf.mxu0
        %v606 = vadd.f32 %v393, %v605
        %v607 = vpop.f32.mrf.mxu0
        %608 = vmatprep.mubr.bf16.mxu0 0
        %609 = vmatmul.mubr.bf16.gmra.mxu0 %v504
        %v610 = vpop.f32.mrf.mxu0
        %v611 = vadd.f32 %v393, %v610
        %v612 = vpop.f32.mrf.mxu0
        %v613 = vpop.f32.mrf.mxu0
        %v614 = vadd.f32 %v393, %v613
        %v615 = vpop.f32.mrf.mxu0
        %616 = vmatprep.mubr.bf16.mxu0 0
        %617 = vmatmul.mubr.bf16.gmra.mxu0 %v507
        %v618 = vpop.f32.mrf.mxu0
        %v619 = vadd.f32 %v393, %v618
        %v620 = vpop.f32.mrf.mxu0
        %v621 = vpop.f32.mrf.mxu0
        %v622 = vadd.f32 %v393, %v621
        %v623 = vpop.f32.mrf.mxu0
        %624 = vmatprep.mubr.bf16.mxu0 0
        %625 = vmatmul.mubr.bf16.gmra.mxu0 %v510
        %v626 = vpop.f32.mrf.mxu0
        %v627 = vadd.f32 %v393, %v626
        %v628 = vpop.f32.mrf.mxu0
        %v629 = vpop.f32.mrf.mxu0
        %v630 = vadd.f32 %v393, %v629
        %v631 = vpop.f32.mrf.mxu0
        %632 = vmatprep.mubr.bf16.mxu0 0
        %633 = vmatmul.mubr.bf16.gmra.mxu0 %v513
        %v634 = vpop.f32.mrf.mxu0
        %v635 = vadd.f32 %v393, %v634
        %v636 = vpop.f32.mrf.mxu0
        %v637 = vpop.f32.mrf.mxu0
        %v638 = vadd.f32 %v393, %v637
        %v639 = vpop.f32.mrf.mxu0
        %640 = vmatprep.mubr.bf16.mxu0 0
        %641 = vmatmul.mubr.bf16.gmra.mxu0 %v516
        %v642 = vpop.f32.mrf.mxu0
        %v643 = vadd.f32 %v393, %v642
        %v644 = vpop.f32.mrf.mxu0
        %v645 = vpop.f32.mrf.mxu0
        %v646 = vadd.f32 %v393, %v645
        %v647 = vpop.f32.mrf.mxu0
        %648 = vmatprep.mubr.bf16.mxu0 0
        %649 = vmatmul.mubr.bf16.gmra.mxu0 %v519
        %v650 = vpop.f32.mrf.mxu0
        %v651 = vadd.f32 %v393, %v650
        %v652 = vpop.f32.mrf.mxu0
        %v653 = vpop.f32.mrf.mxu0
        %v654 = vadd.f32 %v393, %v653
        %v655 = vpop.f32.mrf.mxu0
        %656 = vmatprep.mubr.bf16.mxu0 0
        %657 = vmatmul.mubr.bf16.gmra.mxu0 %v522
        %v658 = vpop.f32.mrf.mxu0
        %v659 = vadd.f32 %v393, %v658
        %v660 = vpop.f32.mrf.mxu0
        %v661 = vpop.f32.mrf.mxu0
        %v662 = vadd.f32 %v393, %v661
        %v663 = vpop.f32.mrf.mxu0
        %664 = vmatprep.mubr.bf16.mxu0 0
        %665 = vmatmul.mubr.bf16.gmra.mxu0 %v525
        %v666 = vpop.f32.mrf.mxu0
        %v667 = vadd.f32 %v393, %v666
        %v668 = vpop.f32.mrf.mxu0
        %v669 = vpop.f32.mrf.mxu0
        %v670 = vadd.f32 %v393, %v669
        %v671 = vpop.f32.mrf.mxu0
        %672 = vmatprep.mubr.bf16.mxu0 0
        %673 = vmatmul.mubr.bf16.gmra.mxu0 %v528
        %v674 = vpop.f32.mrf.mxu0
        %v675 = vadd.f32 %v393, %v674
        %v676 = vpop.f32.mrf.mxu0
        %v677 = vpop.f32.mrf.mxu0
        %v678 = vadd.f32 %v393, %v677
        %v679 = vpop.f32.mrf.mxu0
        %680 = vmatprep.mubr.bf16.mxu0 0
        %681 = vmatmul.mubr.bf16.gmra.mxu0 %v531
        %v682 = vpop.f32.mrf.mxu0
        %v683 = vadd.f32 %v393, %v682
        %v684 = vpop.f32.mrf.mxu0
        %v685 = vpop.f32.mrf.mxu0
        %v686 = vadd.f32 %v393, %v685
        %v687 = vpop.f32.mrf.mxu0
        %688 = vmatprep.mubr.bf16.mxu0 0
        %689 = vmatmul.mubr.bf16.gmra.mxu0 %v534
        %v690 = vpop.f32.mrf.mxu0
        %v691 = vadd.f32 %v393, %v690
        %v692 = vpop.f32.mrf.mxu0
        %v693 = vpop.f32.mrf.mxu0
        %v694 = vadd.f32 %v393, %v693
        %v695 = vpop.f32.mrf.mxu0
        %696 = vdwg.mxu0
        %v697 = vmax.f32 %v571, 0.0
        %v698 = vmax.f32 %v574, 0.0
        %v699 = vmax.f32 %v579, 0.0
        %v700 = vmax.f32 %v582, 0.0
        %v701 = vmax.f32 %v587, 0.0
        %v702 = vmax.f32 %v590, 0.0
        %v703 = vmax.f32 %v595, 0.0
        %v704 = vmax.f32 %v598, 0.0
        %v705 = vmax.f32 %v603, 0.0
        %v706 = vmax.f32 %v606, 0.0
        %v707 = vmax.f32 %v611, 0.0
        %v708 = vmax.f32 %v614, 0.0
        %v709 = vmax.f32 %v619, 0.0
        %v710 = vmax.f32 %v622, 0.0
        %v711 = vmax.f32 %v627, 0.0
        %v712 = vmax.f32 %v630, 0.0
        %v713 = vmax.f32 %v635, 0.0
        %v714 = vmax.f32 %v638, 0.0
        %v715 = vmax.f32 %v643, 0.0
        %v716 = vmax.f32 %v646, 0.0
        %v717 = vmax.f32 %v651, 0.0
        %v718 = vmax.f32 %v654, 0.0
        %v719 = vmax.f32 %v659, 0.0
        %v720 = vmax.f32 %v662, 0.0
        %v721 = vmax.f32 %v667, 0.0
        %v722 = vmax.f32 %v670, 0.0
        %v723 = vmax.f32 %v675, 0.0
        %v724 = vmax.f32 %v678, 0.0
        %v725 = vmax.f32 %v683, 0.0
        %v726 = vmax.f32 %v686, 0.0
        %v727 = vmax.f32 %v691, 0.0
        %v728 = vmax.f32 %v694, 0.0
        %vm729 = vcmask 130048
        %730 = vst.msk [vmem:[#allocation2] sm:$0xff] %vm729, 0.0
        %731 = vst.msk [vmem:[#allocation2 + $0x8] sm:$0xff] %vm729, 0.0
        %vm732 = vcmask 123904
        %733 = vst.msk [vmem:[#allocation2 + $0x10] sm:$0x3] %vm732, 0.0
        %734 = vst.msk [vmem:[#allocation2 + $0x18] sm:$0xff] %vm729, 0.0
        %735 = vst.msk [vmem:[#allocation2 + $0x20] sm:$0xff] %vm729, 0.0
        %736 = vst.msk [vmem:[#allocation2 + $0x28] sm:$0x3] %vm732, 0.0
        %737 = vst.msk [vmem:[#allocation2 + $0x30] sm:$0xff] %vm729, 0.0
        %738 = vst.msk [vmem:[#allocation2 + $0x38] sm:$0xff] %vm729, 0.0
        %739 = vst.msk [vmem:[#allocation2 + $0x40] sm:$0x3] %vm732, 0.0
        %740 = vst.msk [vmem:[#allocation2 + $0x48] sm:$0xff] %vm729, 0.0
        %741 = vst.msk [vmem:[#allocation2 + $0x50] sm:$0xff] %vm729, 0.0
        %742 = vst.msk [vmem:[#allocation2 + $0x58] sm:$0x3] %vm732, 0.0
        %743 = vst.msk [vmem:[#allocation2 + $0x60] sm:$0xff] %vm729, 0.0
        %744 = vst.msk [vmem:[#allocation2 + $0x68] sm:$0xff] %vm729, 0.0
        %745 = vst.msk [vmem:[#allocation2 + $0x70] sm:$0x3] %vm732, 0.0
        %746 = vst.msk [vmem:[#allocation2 + $0x78] sm:$0xff] %vm729, 0.0
        %747 = vst.msk [vmem:[#allocation2 + $0x80] sm:$0xff] %vm729, 0.0
        %748 = vst.msk [vmem:[#allocation2 + $0x88] sm:$0x3] %vm732, 0.0
        %749 = vst.msk [vmem:[#allocation2 + $0x90] sm:$0xff] %vm729, 0.0
        %750 = vst.msk [vmem:[#allocation2 + $0x98] sm:$0xff] %vm729, 0.0
        %751 = vst.msk [vmem:[#allocation2 + $0xa0] sm:$0x3] %vm732, 0.0
        %752 = vst.msk [vmem:[#allocation2 + $0xa8] sm:$0xff] %vm729, 0.0
        %753 = vst.msk [vmem:[#allocation2 + $0xb0] sm:$0xff] %vm729, 0.0
        %754 = vst.msk [vmem:[#allocation2 + $0xb8] sm:$0x3] %vm732, 0.0
        %755 = vst.msk [vmem:[#allocation2 + $0xc0] sm:$0xff] %vm729, 0.0
        %756 = vst.msk [vmem:[#allocation2 + $0xc8] sm:$0xff] %vm729, 0.0
        %757 = vst.msk [vmem:[#allocation2 + $0xd0] sm:$0x3] %vm732, 0.0
        %758 = vst.msk [vmem:[#allocation2 + $0xd8] sm:$0xff] %vm729, 0.0
        %759 = vst.msk [vmem:[#allocation2 + $0xe0] sm:$0xff] %vm729, 0.0
        %760 = vst.msk [vmem:[#allocation2 + $0xe8] sm:$0x3] %vm732, 0.0
        %761 = vst.msk [vmem:[#allocation2 + $0xf0] sm:$0xff] %vm729, 0.0
        %762 = vst.msk [vmem:[#allocation2 + $0xf8] sm:$0xff] %vm729, 0.0
        %763 = vst.msk [vmem:[#allocation2 + $0x100] sm:$0x3] %vm732, 0.0
        %764 = vst.msk [vmem:[#allocation2 + $0x108] sm:$0xff] %vm729, 0.0
        %765 = vst.msk [vmem:[#allocation2 + $0x110] sm:$0xff] %vm729, 0.0
        %766 = vst.msk [vmem:[#allocation2 + $0x118] sm:$0x3] %vm732, 0.0
        %767 = vst.msk [vmem:[#allocation2 + $0x120] sm:$0xff] %vm729, 0.0
        %768 = vst.msk [vmem:[#allocation2 + $0x128] sm:$0xff] %vm729, 0.0
        %769 = vst.msk [vmem:[#allocation2 + $0x130] sm:$0x3] %vm732, 0.0
        %770 = vst.msk [vmem:[#allocation2 + $0x138] sm:$0xff] %vm729, 0.0
        %771 = vst.msk [vmem:[#allocation2 + $0x140] sm:$0xff] %vm729, 0.0
        %772 = vst.msk [vmem:[#allocation2 + $0x148] sm:$0x3] %vm732, 0.0
        %773 = vst.msk [vmem:[#allocation2 + $0x150] sm:$0xff] %vm729, 0.0
        %774 = vst.msk [vmem:[#allocation2 + $0x158] sm:$0xff] %vm729, 0.0
        %775 = vst.msk [vmem:[#allocation2 + $0x160] sm:$0x3] %vm732, 0.0
        %776 = vst.msk [vmem:[#allocation2 + $0x168] sm:$0xff] %vm729, 0.0
        %777 = vst.msk [vmem:[#allocation2 + $0x170] sm:$0xff] %vm729, 0.0
        %778 = vst.msk [vmem:[#allocation2 + $0x178] sm:$0x3] %vm732, 0.0
        %779 = vst.msk [vmem:[#allocation2 + $0x180] sm:$0xff] %vm729, 0.0
        %780 = vst.msk [vmem:[#allocation2 + $0x188] sm:$0xff] %vm729, 0.0
        %781 = vst.msk [vmem:[#allocation2 + $0x190] sm:$0x3] %vm732, 0.0
        %782 = vst.msk [vmem:[#allocation2 + $0x198] sm:$0xff] %vm729, 0.0
        %783 = vst.msk [vmem:[#allocation2 + $0x1a0] sm:$0xff] %vm729, 0.0
        %784 = vst.msk [vmem:[#allocation2 + $0x1a8] sm:$0x3] %vm732, 0.0
        %s785 = scalar_lea.vmem [#allocation2], 24
        %786 = vst.msk [vmem:[%s785 + $0x1] sm:$0xff] %vm729, %v697
        %787 = vst.msk [vmem:[%s785 + $0x9] sm:$0xff] %vm729, %v698
        %788 = vst.msk [vmem:[%s785 + $0x19] sm:$0xff] %vm729, %v699
        %789 = vst.msk [vmem:[%s785 + $0x21] sm:$0xff] %vm729, %v700
        %790 = vst.msk [vmem:[%s785 + $0x31] sm:$0xff] %vm729, %v701
        %791 = vst.msk [vmem:[%s785 + $0x39] sm:$0xff] %vm729, %v702
        %792 = vst.msk [vmem:[%s785 + $0x49] sm:$0xff] %vm729, %v703
        %793 = vst.msk [vmem:[%s785 + $0x51] sm:$0xff] %vm729, %v704
        %794 = vst.msk [vmem:[%s785 + $0x61] sm:$0xff] %vm729, %v705
        %795 = vst.msk [vmem:[%s785 + $0x69] sm:$0xff] %vm729, %v706
        %796 = vst.msk [vmem:[%s785 + $0x79] sm:$0xff] %vm729, %v707
        %797 = vst.msk [vmem:[%s785 + $0x81] sm:$0xff] %vm729, %v708
        %798 = vst.msk [vmem:[%s785 + $0x91] sm:$0xff] %vm729, %v709
        %799 = vst.msk [vmem:[%s785 + $0x99] sm:$0xff] %vm729, %v710
        %800 = vst.msk [vmem:[%s785 + $0xa9] sm:$0xff] %vm729, %v711
        %801 = vst.msk [vmem:[%s785 + $0xb1] sm:$0xff] %vm729, %v712
        %802 = vst.msk [vmem:[%s785 + $0xc1] sm:$0xff] %vm729, %v713
        %803 = vst.msk [vmem:[%s785 + $0xc9] sm:$0xff] %vm729, %v714
        %804 = vst.msk [vmem:[%s785 + $0xd9] sm:$0xff] %vm729, %v715
        %805 = vst.msk [vmem:[%s785 + $0xe1] sm:$0xff] %vm729, %v716
        %806 = vst.msk [vmem:[%s785 + $0xf1] sm:$0xff] %vm729, %v717
        %807 = vst.msk [vmem:[%s785 + $0xf9] sm:$0xff] %vm729, %v718
        %808 = vst.msk [vmem:[%s785 + $0x109] sm:$0xff] %vm729, %v719
        %809 = vst.msk [vmem:[%s785 + $0x111] sm:$0xff] %vm729, %v720
        %810 = vst.msk [vmem:[%s785 + $0x121] sm:$0xff] %vm729, %v721
        %811 = vst.msk [vmem:[%s785 + $0x129] sm:$0xff] %vm729, %v722
        %812 = vst.msk [vmem:[%s785 + $0x139] sm:$0xff] %vm729, %v723
        %813 = vst.msk [vmem:[%s785 + $0x141] sm:$0xff] %vm729, %v724
        %814 = vst.msk [vmem:[%s785 + $0x151] sm:$0xff] %vm729, %v725
        %815 = vst.msk [vmem:[%s785 + $0x159] sm:$0xff] %vm729, %v726
        %816 = vst.msk [vmem:[%s785 + $0x169] sm:$0xff] %vm729, %v727
        %817 = vst.msk [vmem:[%s785 + $0x171] sm:$0xff] %vm729, %v728
        %v818 = vld [vmem:[#allocation2] sm:$0xff]
        %v819 = vld [vmem:[#allocation2 + $0x8] sm:$0xff]
        %v820 = vld [vmem:[#allocation2 + $0x18] sm:$0xff]
        %v821 = vld [vmem:[#allocation2 + $0x20] sm:$0xff]
        %v822 = vld [vmem:[#allocation2 + $0x30] sm:$0xff]
        %v823 = vld [vmem:[#allocation2 + $0x38] sm:$0xff]
        %v824 = vld [vmem:[#allocation2 + $0x48] sm:$0xff]
        %v825 = vld [vmem:[#allocation2 + $0x50] sm:$0xff]
        %v826 = vld [vmem:[#allocation2 + $0x60] sm:$0xff]
        %v827 = vld [vmem:[#allocation2 + $0x68] sm:$0xff]
        %v828 = vld [vmem:[#allocation2 + $0x78] sm:$0xff]
        %v829 = vld [vmem:[#allocation2 + $0x80] sm:$0xff]
        %v830 = vld [vmem:[#allocation2 + $0x90] sm:$0xff]
        %v831 = vld [vmem:[#allocation2 + $0x98] sm:$0xff]
        %v832 = vld [vmem:[#allocation2 + $0xa8] sm:$0xff]
        %v833 = vld [vmem:[#allocation2 + $0xb0] sm:$0xff]
        %v834 = vld [vmem:[#allocation2 + $0xc0] sm:$0xff]
        %v835 = vld [vmem:[#allocation2 + $0xc8] sm:$0xff]
        %v836 = vld [vmem:[#allocation2 + $0xd8] sm:$0xff]
        %v837 = vld [vmem:[#allocation2 + $0xe0] sm:$0xff]
        %v838 = vld [vmem:[#allocation2 + $0xf0] sm:$0xff]
        %v839 = vld [vmem:[#allocation2 + $0xf8] sm:$0xff]
        %v840 = vld [vmem:[#allocation2 + $0x108] sm:$0xff]
        %v841 = vld [vmem:[#allocation2 + $0x110] sm:$0xff]
        %v842 = vld [vmem:[#allocation2 + $0x120] sm:$0xff]
        %v843 = vld [vmem:[#allocation2 + $0x128] sm:$0xff]
        %v844 = vld [vmem:[#allocation2 + $0x138] sm:$0xff]
        %v845 = vld [vmem:[#allocation2 + $0x140] sm:$0xff]
        %v846 = vld [vmem:[#allocation2 + $0x150] sm:$0xff]
        %v847 = vld [vmem:[#allocation2 + $0x158] sm:$0xff]
        %v848 = vld [vmem:[#allocation2 + $0x168] sm:$0xff]
        %v849 = vld [vmem:[#allocation2 + $0x170] sm:$0xff]
        %v850 = vld [vmem:[#allocation2 + $0x1] sm:$0xff]
        %v851 = vld [vmem:[#allocation2 + $0x9] sm:$0xff]
        %v852 = vld [vmem:[#allocation2 + $0x19] sm:$0xff]
        %v853 = vld [vmem:[#allocation2 + $0x21] sm:$0xff]
        %v854 = vld [vmem:[#allocation2 + $0x31] sm:$0xff]
        %v855 = vld [vmem:[#allocation2 + $0x39] sm:$0xff]
        %v856 = vld [vmem:[#allocation2 + $0x49] sm:$0xff]
        %v857 = vld [vmem:[#allocation2 + $0x51] sm:$0xff]
        %v858 = vld [vmem:[#allocation2 + $0x61] sm:$0xff]
        %v859 = vld [vmem:[#allocation2 + $0x69] sm:$0xff]
        %v860 = vld [vmem:[#allocation2 + $0x79] sm:$0xff]
        %v861 = vld [vmem:[#allocation2 + $0x81] sm:$0xff]
        %v862 = vld [vmem:[#allocation2 + $0x91] sm:$0xff]
        %v863 = vld [vmem:[#allocation2 + $0x99] sm:$0xff]
        %v864 = vld [vmem:[#allocation2 + $0xa9] sm:$0xff]
        %v865 = vld [vmem:[#allocation2 + $0xb1] sm:$0xff]
        %v866 = vld [vmem:[#allocation2 + $0xc1] sm:$0xff]
        %v867 = vld [vmem:[#allocation2 + $0xc9] sm:$0xff]
        %v868 = vld [vmem:[#allocation2 + $0xd9] sm:$0xff]
        %v869 = vld [vmem:[#allocation2 + $0xe1] sm:$0xff]
        %v870 = vld [vmem:[#allocation2 + $0xf1] sm:$0xff]
        %v871 = vld [vmem:[#allocation2 + $0xf9] sm:$0xff]
        %v872 = vld [vmem:[#allocation2 + $0x109] sm:$0xff]
        %v873 = vld [vmem:[#allocation2 + $0x111] sm:$0xff]
        %v874 = vld [vmem:[#allocation2 + $0x121] sm:$0xff]
        %v875 = vld [vmem:[#allocation2 + $0x129] sm:$0xff]
        %v876 = vld [vmem:[#allocation2 + $0x139] sm:$0xff]
        %v877 = vld [vmem:[#allocation2 + $0x141] sm:$0xff]
        %v878 = vld [vmem:[#allocation2 + $0x151] sm:$0xff]
        %v879 = vld [vmem:[#allocation2 + $0x159] sm:$0xff]
        %v880 = vld [vmem:[#allocation2 + $0x169] sm:$0xff]
        %v881 = vld [vmem:[#allocation2 + $0x171] sm:$0xff]
        %v882 = vld [vmem:[#allocation2 + $0x2] sm:$0xff]
        %v883 = vld [vmem:[#allocation2 + $0xa] sm:$0xff]
        %v884 = vld [vmem:[#allocation2 + $0x1a] sm:$0xff]
        %v885 = vld [vmem:[#allocation2 + $0x22] sm:$0xff]
        %v886 = vld [vmem:[#allocation2 + $0x32] sm:$0xff]
        %v887 = vld [vmem:[#allocation2 + $0x3a] sm:$0xff]
        %v888 = vld [vmem:[#allocation2 + $0x4a] sm:$0xff]
        %v889 = vld [vmem:[#allocation2 + $0x52] sm:$0xff]
        %v890 = vld [vmem:[#allocation2 + $0x62] sm:$0xff]
        %v891 = vld [vmem:[#allocation2 + $0x6a] sm:$0xff]
        %v892 = vld [vmem:[#allocation2 + $0x7a] sm:$0xff]
        %v893 = vld [vmem:[#allocation2 + $0x82] sm:$0xff]
        %v894 = vld [vmem:[#allocation2 + $0x92] sm:$0xff]
        %v895 = vld [vmem:[#allocation2 + $0x9a] sm:$0xff]
        %v896 = vld [vmem:[#allocation2 + $0xaa] sm:$0xff]
        %v897 = vld [vmem:[#allocation2 + $0xb2] sm:$0xff]
        %v898 = vld [vmem:[#allocation2 + $0xc2] sm:$0xff]
        %v899 = vld [vmem:[#allocation2 + $0xca] sm:$0xff]
        %v900 = vld [vmem:[#allocation2 + $0xda] sm:$0xff]
        %v901 = vld [vmem:[#allocation2 + $0xe2] sm:$0xff]
        %v902 = vld [vmem:[#allocation2 + $0xf2] sm:$0xff]
        %v903 = vld [vmem:[#allocation2 + $0xfa] sm:$0xff]
        %v904 = vld [vmem:[#allocation2 + $0x10a] sm:$0xff]
        %v905 = vld [vmem:[#allocation2 + $0x112] sm:$0xff]
        %v906 = vld [vmem:[#allocation2 + $0x122] sm:$0xff]
        %v907 = vld [vmem:[#allocation2 + $0x12a] sm:$0xff]
        %v908 = vld [vmem:[#allocation2 + $0x13a] sm:$0xff]
        %v909 = vld [vmem:[#allocation2 + $0x142] sm:$0xff]
        %v910 = vld [vmem:[#allocation2 + $0x152] sm:$0xff]
        %v911 = vld [vmem:[#allocation2 + $0x15a] sm:$0xff]
        %v912 = vld [vmem:[#allocation2 + $0x16a] sm:$0xff]
        %v913 = vld [vmem:[#allocation2 + $0x172] sm:$0xff]
        %v914 = vld [vmem:[%s785] sm:$0xff]
        %v915 = vld [vmem:[%s785 + $0x8] sm:$0xff]
        %v916 = vld [vmem:[%s785 + $0x18] sm:$0xff]
        %v917 = vld [vmem:[%s785 + $0x20] sm:$0xff]
        %v918 = vld [vmem:[%s785 + $0x30] sm:$0xff]
        %v919 = vld [vmem:[%s785 + $0x38] sm:$0xff]
        %v920 = vld [vmem:[%s785 + $0x48] sm:$0xff]
        %v921 = vld [vmem:[%s785 + $0x50] sm:$0xff]
        %v922 = vld [vmem:[%s785 + $0x60] sm:$0xff]
        %v923 = vld [vmem:[%s785 + $0x68] sm:$0xff]
        %v924 = vld [vmem:[%s785 + $0x78] sm:$0xff]
        %v925 = vld [vmem:[%s785 + $0x80] sm:$0xff]
        %v926 = vld [vmem:[%s785 + $0x90] sm:$0xff]
        %v927 = vld [vmem:[%s785 + $0x98] sm:$0xff]
        %v928 = vld [vmem:[%s785 + $0xa8] sm:$0xff]
        %v929 = vld [vmem:[%s785 + $0xb0] sm:$0xff]
        %v930 = vld [vmem:[%s785 + $0xc0] sm:$0xff]
        %v931 = vld [vmem:[%s785 + $0xc8] sm:$0xff]
        %v932 = vld [vmem:[%s785 + $0xd8] sm:$0xff]
        %v933 = vld [vmem:[%s785 + $0xe0] sm:$0xff]
        %v934 = vld [vmem:[%s785 + $0xf0] sm:$0xff]
        %v935 = vld [vmem:[%s785 + $0xf8] sm:$0xff]
        %v936 = vld [vmem:[%s785 + $0x108] sm:$0xff]
        %v937 = vld [vmem:[%s785 + $0x110] sm:$0xff]
        %v938 = vld [vmem:[%s785 + $0x120] sm:$0xff]
        %v939 = vld [vmem:[%s785 + $0x128] sm:$0xff]
        %v940 = vld [vmem:[%s785 + $0x138] sm:$0xff]
        %v941 = vld [vmem:[%s785 + $0x140] sm:$0xff]
        %v942 = vld [vmem:[%s785 + $0x150] sm:$0xff]
        %v943 = vld [vmem:[%s785 + $0x158] sm:$0xff]
        %v944 = vld [vmem:[%s785 + $0x168] sm:$0xff]
        %v945 = vld [vmem:[%s785 + $0x170] sm:$0xff]
        %v946 = vld [vmem:[%s785 + $0x1] sm:$0xff]
        %v947 = vld [vmem:[%s785 + $0x9] sm:$0xff]
        %v948 = vld [vmem:[%s785 + $0x19] sm:$0xff]
        %v949 = vld [vmem:[%s785 + $0x21] sm:$0xff]
        %v950 = vld [vmem:[%s785 + $0x31] sm:$0xff]
        %v951 = vld [vmem:[%s785 + $0x39] sm:$0xff]
        %v952 = vld [vmem:[%s785 + $0x49] sm:$0xff]
        %v953 = vld [vmem:[%s785 + $0x51] sm:$0xff]
        %v954 = vld [vmem:[%s785 + $0x61] sm:$0xff]
        %v955 = vld [vmem:[%s785 + $0x69] sm:$0xff]
        %v956 = vld [vmem:[%s785 + $0x79] sm:$0xff]
        %v957 = vld [vmem:[%s785 + $0x81] sm:$0xff]
        %v958 = vld [vmem:[%s785 + $0x91] sm:$0xff]
        %v959 = vld [vmem:[%s785 + $0x99] sm:$0xff]
        %v960 = vld [vmem:[%s785 + $0xa9] sm:$0xff]
        %v961 = vld [vmem:[%s785 + $0xb1] sm:$0xff]
        %v962 = vld [vmem:[%s785 + $0xc1] sm:$0xff]
        %v963 = vld [vmem:[%s785 + $0xc9] sm:$0xff]
        %v964 = vld [vmem:[%s785 + $0xd9] sm:$0xff]
        %v965 = vld [vmem:[%s785 + $0xe1] sm:$0xff]
        %v966 = vld [vmem:[%s785 + $0xf1] sm:$0xff]
        %v967 = vld [vmem:[%s785 + $0xf9] sm:$0xff]
        %v968 = vld [vmem:[%s785 + $0x109] sm:$0xff]
        %v969 = vld [vmem:[%s785 + $0x111] sm:$0xff]
        %v970 = vld [vmem:[%s785 + $0x121] sm:$0xff]
        %v971 = vld [vmem:[%s785 + $0x129] sm:$0xff]
        %v972 = vld [vmem:[%s785 + $0x139] sm:$0xff]
        %v973 = vld [vmem:[%s785 + $0x141] sm:$0xff]
        %v974 = vld [vmem:[%s785 + $0x151] sm:$0xff]
        %v975 = vld [vmem:[%s785 + $0x159] sm:$0xff]
        %v976 = vld [vmem:[%s785 + $0x169] sm:$0xff]
        %v977 = vld [vmem:[%s785 + $0x171] sm:$0xff]
        %v978 = vld [vmem:[%s785 + $0x2] sm:$0xff]
        %v979 = vld [vmem:[%s785 + $0xa] sm:$0xff]
        %v980 = vld [vmem:[%s785 + $0x1a] sm:$0xff]
        %v981 = vld [vmem:[%s785 + $0x22] sm:$0xff]
        %v982 = vld [vmem:[%s785 + $0x32] sm:$0xff]
        %v983 = vld [vmem:[%s785 + $0x3a] sm:$0xff]
        %v984 = vld [vmem:[%s785 + $0x4a] sm:$0xff]
        %v985 = vld [vmem:[%s785 + $0x52] sm:$0xff]
        %v986 = vld [vmem:[%s785 + $0x62] sm:$0xff]
        %v987 = vld [vmem:[%s785 + $0x6a] sm:$0xff]
        %v988 = vld [vmem:[%s785 + $0x7a] sm:$0xff]
        %v989 = vld [vmem:[%s785 + $0x82] sm:$0xff]
        %v990 = vld [vmem:[%s785 + $0x92] sm:$0xff]
        %v991 = vld [vmem:[%s785 + $0x9a] sm:$0xff]
        %v992 = vld [vmem:[%s785 + $0xaa] sm:$0xff]
        %v993 = vld [vmem:[%s785 + $0xb2] sm:$0xff]
        %v994 = vld [vmem:[%s785 + $0xc2] sm:$0xff]
        %v995 = vld [vmem:[%s785 + $0xca] sm:$0xff]
        %v996 = vld [vmem:[%s785 + $0xda] sm:$0xff]
        %v997 = vld [vmem:[%s785 + $0xe2] sm:$0xff]
        %v998 = vld [vmem:[%s785 + $0xf2] sm:$0xff]
        %v999 = vld [vmem:[%s785 + $0xfa] sm:$0xff]
        %v1000 = vld [vmem:[%s785 + $0x10a] sm:$0xff]
        %v1001 = vld [vmem:[%s785 + $0x112] sm:$0xff]
        %v1002 = vld [vmem:[%s785 + $0x122] sm:$0xff]
        %v1003 = vld [vmem:[%s785 + $0x12a] sm:$0xff]
        %v1004 = vld [vmem:[%s785 + $0x13a] sm:$0xff]
        %v1005 = vld [vmem:[%s785 + $0x142] sm:$0xff]
        %v1006 = vld [vmem:[%s785 + $0x152] sm:$0xff]
        %v1007 = vld [vmem:[%s785 + $0x15a] sm:$0xff]
        %v1008 = vld [vmem:[%s785 + $0x16a] sm:$0xff]
        %v1009 = vld [vmem:[%s785 + $0x172] sm:$0xff]
        %s1010 = scalar_lea.vmem [#allocation2], 48
        %v1011 = vld [vmem:[%s1010] sm:$0xff]
        %v1012 = vld [vmem:[%s1010 + $0x8] sm:$0xff]
        %v1013 = vld [vmem:[%s1010 + $0x18] sm:$0xff]
        %v1014 = vld [vmem:[%s1010 + $0x20] sm:$0xff]
        %v1015 = vld [vmem:[%s1010 + $0x30] sm:$0xff]
        %v1016 = vld [vmem:[%s1010 + $0x38] sm:$0xff]
        %v1017 = vld [vmem:[%s1010 + $0x48] sm:$0xff]
        %v1018 = vld [vmem:[%s1010 + $0x50] sm:$0xff]
        %v1019 = vld [vmem:[%s1010 + $0x60] sm:$0xff]
        %v1020 = vld [vmem:[%s1010 + $0x68] sm:$0xff]
        %v1021 = vld [vmem:[%s1010 + $0x78] sm:$0xff]
        %v1022 = vld [vmem:[%s1010 + $0x80] sm:$0xff]
        %v1023 = vld [vmem:[%s1010 + $0x90] sm:$0xff]
        %v1024 = vld [vmem:[%s1010 + $0x98] sm:$0xff]
        %v1025 = vld [vmem:[%s1010 + $0xa8] sm:$0xff]
        %v1026 = vld [vmem:[%s1010 + $0xb0] sm:$0xff]
        %v1027 = vld [vmem:[%s1010 + $0xc0] sm:$0xff]
        %v1028 = vld [vmem:[%s1010 + $0xc8] sm:$0xff]
        %v1029 = vld [vmem:[%s1010 + $0xd8] sm:$0xff]
        %v1030 = vld [vmem:[%s1010 + $0xe0] sm:$0xff]
        %v1031 = vld [vmem:[%s1010 + $0xf0] sm:$0xff]
        %v1032 = vld [vmem:[%s1010 + $0xf8] sm:$0xff]
        %v1033 = vld [vmem:[%s1010 + $0x108] sm:$0xff]
        %v1034 = vld [vmem:[%s1010 + $0x110] sm:$0xff]
        %v1035 = vld [vmem:[%s1010 + $0x120] sm:$0xff]
        %v1036 = vld [vmem:[%s1010 + $0x128] sm:$0xff]
        %v1037 = vld [vmem:[%s1010 + $0x138] sm:$0xff]
        %v1038 = vld [vmem:[%s1010 + $0x140] sm:$0xff]
        %v1039 = vld [vmem:[%s1010 + $0x150] sm:$0xff]
        %v1040 = vld [vmem:[%s1010 + $0x158] sm:$0xff]
        %v1041 = vld [vmem:[%s1010 + $0x168] sm:$0xff]
        %v1042 = vld [vmem:[%s1010 + $0x170] sm:$0xff]
        %v1043 = vld [vmem:[%s1010 + $0x1] sm:$0xff]
        %v1044 = vld [vmem:[%s1010 + $0x9] sm:$0xff]
        %v1045 = vld [vmem:[%s1010 + $0x19] sm:$0xff]
        %v1046 = vld [vmem:[%s1010 + $0x21] sm:$0xff]
        %v1047 = vld [vmem:[%s1010 + $0x31] sm:$0xff]
        %v1048 = vld [vmem:[%s1010 + $0x39] sm:$0xff]
        %v1049 = vld [vmem:[%s1010 + $0x49] sm:$0xff]
        %v1050 = vld [vmem:[%s1010 + $0x51] sm:$0xff]
        %v1051 = vld [vmem:[%s1010 + $0x61] sm:$0xff]
        %v1052 = vld [vmem:[%s1010 + $0x69] sm:$0xff]
        %v1053 = vld [vmem:[%s1010 + $0x79] sm:$0xff]
        %v1054 = vld [vmem:[%s1010 + $0x81] sm:$0xff]
        %v1055 = vld [vmem:[%s1010 + $0x91] sm:$0xff]
        %v1056 = vld [vmem:[%s1010 + $0x99] sm:$0xff]
        %v1057 = vld [vmem:[%s1010 + $0xa9] sm:$0xff]
        %v1058 = vld [vmem:[%s1010 + $0xb1] sm:$0xff]
        %v1059 = vld [vmem:[%s1010 + $0xc1] sm:$0xff]
        %v1060 = vld [vmem:[%s1010 + $0xc9] sm:$0xff]
        %v1061 = vld [vmem:[%s1010 + $0xd9] sm:$0xff]
        %v1062 = vld [vmem:[%s1010 + $0xe1] sm:$0xff]
        %v1063 = vld [vmem:[%s1010 + $0xf1] sm:$0xff]
        %v1064 = vld [vmem:[%s1010 + $0xf9] sm:$0xff]
        %v1065 = vld [vmem:[%s1010 + $0x109] sm:$0xff]
        %v1066 = vld [vmem:[%s1010 + $0x111] sm:$0xff]
        %v1067 = vld [vmem:[%s1010 + $0x121] sm:$0xff]
        %v1068 = vld [vmem:[%s1010 + $0x129] sm:$0xff]
        %v1069 = vld [vmem:[%s1010 + $0x139] sm:$0xff]
        %v1070 = vld [vmem:[%s1010 + $0x141] sm:$0xff]
        %v1071 = vld [vmem:[%s1010 + $0x151] sm:$0xff]
        %v1072 = vld [vmem:[%s1010 + $0x159] sm:$0xff]
        %v1073 = vld [vmem:[%s1010 + $0x169] sm:$0xff]
        %v1074 = vld [vmem:[%s1010 + $0x171] sm:$0xff]
        %v1075 = vld [vmem:[%s1010 + $0x2] sm:$0xff]
        %v1076 = vld [vmem:[%s1010 + $0xa] sm:$0xff]
        %v1077 = vld [vmem:[%s1010 + $0x1a] sm:$0xff]
        %v1078 = vld [vmem:[%s1010 + $0x22] sm:$0xff]
        %v1079 = vld [vmem:[%s1010 + $0x32] sm:$0xff]
        %v1080 = vld [vmem:[%s1010 + $0x3a] sm:$0xff]
        %v1081 = vld [vmem:[%s1010 + $0x4a] sm:$0xff]
        %v1082 = vld [vmem:[%s1010 + $0x52] sm:$0xff]
        %v1083 = vld [vmem:[%s1010 + $0x62] sm:$0xff]
        %v1084 = vld [vmem:[%s1010 + $0x6a] sm:$0xff]
        %v1085 = vld [vmem:[%s1010 + $0x7a] sm:$0xff]
        %v1086 = vld [vmem:[%s1010 + $0x82] sm:$0xff]
        %v1087 = vld [vmem:[%s1010 + $0x92] sm:$0xff]
        %v1088 = vld [vmem:[%s1010 + $0x9a] sm:$0xff]
        %v1089 = vld [vmem:[%s1010 + $0xaa] sm:$0xff]
        %v1090 = vld [vmem:[%s1010 + $0xb2] sm:$0xff]
        %v1091 = vld [vmem:[%s1010 + $0xc2] sm:$0xff]
        %v1092 = vld [vmem:[%s1010 + $0xca] sm:$0xff]
        %v1093 = vld [vmem:[%s1010 + $0xda] sm:$0xff]
        %v1094 = vld [vmem:[%s1010 + $0xe2] sm:$0xff]
        %v1095 = vld [vmem:[%s1010 + $0xf2] sm:$0xff]
        %v1096 = vld [vmem:[%s1010 + $0xfa] sm:$0xff]
        %v1097 = vld [vmem:[%s1010 + $0x10a] sm:$0xff]
        %v1098 = vld [vmem:[%s1010 + $0x112] sm:$0xff]
        %v1099 = vld [vmem:[%s1010 + $0x122] sm:$0xff]
        %v1100 = vld [vmem:[%s1010 + $0x12a] sm:$0xff]
        %v1101 = vld [vmem:[%s1010 + $0x13a] sm:$0xff]
        %v1102 = vld [vmem:[%s1010 + $0x142] sm:$0xff]
        %v1103 = vld [vmem:[%s1010 + $0x152] sm:$0xff]
        %v1104 = vld [vmem:[%s1010 + $0x15a] sm:$0xff]
        %v1105 = vld [vmem:[%s1010 + $0x16a] sm:$0xff]
        %v1106 = vld [vmem:[%s1010 + $0x172] sm:$0xff]
        %1139 = vrot.lane.b32.xlu0 %v850, 16
        %v1140 = vpop.permute.xlu0 %1139
        %1141 = vrot.lane.b32.xlu0 %v851, 16
        %v1142 = vpop.permute.xlu0 %1141
        %1143 = vrot.lane.b32.xlu0 %v852, 16
        %v1144 = vpop.permute.xlu0 %1143
        %1145 = vrot.lane.b32.xlu0 %v853, 16
        %v1146 = vpop.permute.xlu0 %1145
        %1147 = vrot.lane.b32.xlu0 %v854, 16
        %v1148 = vpop.permute.xlu0 %1147
        %1149 = vrot.lane.b32.xlu0 %v855, 16
        %v1150 = vpop.permute.xlu0 %1149
        %1151 = vrot.lane.b32.xlu0 %v856, 16
        %v1152 = vpop.permute.xlu0 %1151
        %1153 = vrot.lane.b32.xlu0 %v857, 16
        %v1154 = vpop.permute.xlu0 %1153
        %1155 = vrot.lane.b32.xlu0 %v858, 16
        %v1156 = vpop.permute.xlu0 %1155
        %1157 = vrot.lane.b32.xlu0 %v859, 16
        %v1158 = vpop.permute.xlu0 %1157
        %1159 = vrot.lane.b32.xlu0 %v860, 16
        %v1160 = vpop.permute.xlu0 %1159
        %1161 = vrot.lane.b32.xlu0 %v861, 16
        %v1162 = vpop.permute.xlu0 %1161
        %1163 = vrot.lane.b32.xlu0 %v862, 16
        %v1164 = vpop.permute.xlu0 %1163
        %1165 = vrot.lane.b32.xlu0 %v863, 16
        %v1166 = vpop.permute.xlu0 %1165
        %1167 = vrot.lane.b32.xlu0 %v864, 16
        %v1168 = vpop.permute.xlu0 %1167
        %1169 = vrot.lane.b32.xlu0 %v865, 16
        %v1170 = vpop.permute.xlu0 %1169
        %1171 = vrot.lane.b32.xlu0 %v866, 16
        %v1172 = vpop.permute.xlu0 %1171
        %1173 = vrot.lane.b32.xlu0 %v867, 16
        %v1174 = vpop.permute.xlu0 %1173
        %1175 = vrot.lane.b32.xlu0 %v868, 16
        %v1176 = vpop.permute.xlu0 %1175
        %1177 = vrot.lane.b32.xlu0 %v869, 16
        %v1178 = vpop.permute.xlu0 %1177
        %1179 = vrot.lane.b32.xlu0 %v870, 16
        %v1180 = vpop.permute.xlu0 %1179
        %1181 = vrot.lane.b32.xlu0 %v871, 16
        %v1182 = vpop.permute.xlu0 %1181
        %1183 = vrot.lane.b32.xlu0 %v872, 16
        %v1184 = vpop.permute.xlu0 %1183
        %1185 = vrot.lane.b32.xlu0 %v873, 16
        %v1186 = vpop.permute.xlu0 %1185
        %1187 = vrot.lane.b32.xlu0 %v874, 16
        %v1188 = vpop.permute.xlu0 %1187
        %1189 = vrot.lane.b32.xlu0 %v875, 16
        %v1190 = vpop.permute.xlu0 %1189
        %1191 = vrot.lane.b32.xlu0 %v876, 16
        %v1192 = vpop.permute.xlu0 %1191
        %1193 = vrot.lane.b32.xlu0 %v877, 16
        %v1194 = vpop.permute.xlu0 %1193
        %1195 = vrot.lane.b32.xlu0 %v878, 16
        %v1196 = vpop.permute.xlu0 %1195
        %1197 = vrot.lane.b32.xlu0 %v879, 16
        %v1198 = vpop.permute.xlu0 %1197
        %1199 = vrot.lane.b32.xlu0 %v880, 16
        %v1200 = vpop.permute.xlu0 %1199
        %1201 = vrot.lane.b32.xlu0 %v881, 16
        %v1202 = vpop.permute.xlu0 %1201
        %1267 = vrot.lane.b32.xlu0 %v882, 32
        %v1268 = vpop.permute.xlu0 %1267
        %1269 = vrot.lane.b32.xlu0 %v883, 32
        %v1270 = vpop.permute.xlu0 %1269
        %1271 = vrot.lane.b32.xlu0 %v884, 32
        %v1272 = vpop.permute.xlu0 %1271
        %1273 = vrot.lane.b32.xlu0 %v885, 32
        %v1274 = vpop.permute.xlu0 %1273
        %1275 = vrot.lane.b32.xlu0 %v886, 32
        %v1276 = vpop.permute.xlu0 %1275
        %1277 = vrot.lane.b32.xlu0 %v887, 32
        %v1278 = vpop.permute.xlu0 %1277
        %1279 = vrot.lane.b32.xlu0 %v888, 32
        %v1280 = vpop.permute.xlu0 %1279
        %1281 = vrot.lane.b32.xlu0 %v889, 32
        %v1282 = vpop.permute.xlu0 %1281
        %1283 = vrot.lane.b32.xlu0 %v890, 32
        %v1284 = vpop.permute.xlu0 %1283
        %1285 = vrot.lane.b32.xlu0 %v891, 32
        %v1286 = vpop.permute.xlu0 %1285
        %1287 = vrot.lane.b32.xlu0 %v892, 32
        %v1288 = vpop.permute.xlu0 %1287
        %1289 = vrot.lane.b32.xlu0 %v893, 32
        %v1290 = vpop.permute.xlu0 %1289
        %1291 = vrot.lane.b32.xlu0 %v894, 32
        %v1292 = vpop.permute.xlu0 %1291
        %1293 = vrot.lane.b32.xlu0 %v895, 32
        %v1294 = vpop.permute.xlu0 %1293
        %1295 = vrot.lane.b32.xlu0 %v896, 32
        %v1296 = vpop.permute.xlu0 %1295
        %1297 = vrot.lane.b32.xlu0 %v897, 32
        %v1298 = vpop.permute.xlu0 %1297
        %1299 = vrot.lane.b32.xlu0 %v898, 32
        %v1300 = vpop.permute.xlu0 %1299
        %1301 = vrot.lane.b32.xlu0 %v899, 32
        %v1302 = vpop.permute.xlu0 %1301
        %1303 = vrot.lane.b32.xlu0 %v900, 32
        %v1304 = vpop.permute.xlu0 %1303
        %1305 = vrot.lane.b32.xlu0 %v901, 32
        %v1306 = vpop.permute.xlu0 %1305
        %1307 = vrot.lane.b32.xlu0 %v902, 32
        %v1308 = vpop.permute.xlu0 %1307
        %1309 = vrot.lane.b32.xlu0 %v903, 32
        %v1310 = vpop.permute.xlu0 %1309
        %1311 = vrot.lane.b32.xlu0 %v904, 32
        %v1312 = vpop.permute.xlu0 %1311
        %1313 = vrot.lane.b32.xlu0 %v905, 32
        %v1314 = vpop.permute.xlu0 %1313
        %1315 = vrot.lane.b32.xlu0 %v906, 32
        %v1316 = vpop.permute.xlu0 %1315
        %1317 = vrot.lane.b32.xlu0 %v907, 32
        %v1318 = vpop.permute.xlu0 %1317
        %1319 = vrot.lane.b32.xlu0 %v908, 32
        %v1320 = vpop.permute.xlu0 %1319
        %1321 = vrot.lane.b32.xlu0 %v909, 32
        %v1322 = vpop.permute.xlu0 %1321
        %1323 = vrot.lane.b32.xlu0 %v910, 32
        %v1324 = vpop.permute.xlu0 %1323
        %1325 = vrot.lane.b32.xlu0 %v911, 32
        %v1326 = vpop.permute.xlu0 %1325
        %1327 = vrot.lane.b32.xlu0 %v912, 32
        %v1328 = vpop.permute.xlu0 %1327
        %1329 = vrot.lane.b32.xlu0 %v913, 32
        %v1330 = vpop.permute.xlu0 %1329
        %1395 = vrot.lane.b32.xlu0 %v914, 48
        %v1396 = vpop.permute.xlu0 %1395
        %1397 = vrot.lane.b32.xlu0 %v915, 48
        %v1398 = vpop.permute.xlu0 %1397
        %1399 = vrot.lane.b32.xlu0 %v916, 48
        %v1400 = vpop.permute.xlu0 %1399
        %1401 = vrot.lane.b32.xlu0 %v917, 48
        %v1402 = vpop.permute.xlu0 %1401
        %1403 = vrot.lane.b32.xlu0 %v918, 48
        %v1404 = vpop.permute.xlu0 %1403
        %1405 = vrot.lane.b32.xlu0 %v919, 48
        %v1406 = vpop.permute.xlu0 %1405
        %1407 = vrot.lane.b32.xlu0 %v920, 48
        %v1408 = vpop.permute.xlu0 %1407
        %1409 = vrot.lane.b32.xlu0 %v921, 48
        %v1410 = vpop.permute.xlu0 %1409
        %1411 = vrot.lane.b32.xlu0 %v922, 48
        %v1412 = vpop.permute.xlu0 %1411
        %1413 = vrot.lane.b32.xlu0 %v923, 48
        %v1414 = vpop.permute.xlu0 %1413
        %1415 = vrot.lane.b32.xlu0 %v924, 48
        %v1416 = vpop.permute.xlu0 %1415
        %1417 = vrot.lane.b32.xlu0 %v925, 48
        %v1418 = vpop.permute.xlu0 %1417
        %1419 = vrot.lane.b32.xlu0 %v926, 48
        %v1420 = vpop.permute.xlu0 %1419
        %1421 = vrot.lane.b32.xlu0 %v927, 48
        %v1422 = vpop.permute.xlu0 %1421
        %1423 = vrot.lane.b32.xlu0 %v928, 48
        %v1424 = vpop.permute.xlu0 %1423
        %1425 = vrot.lane.b32.xlu0 %v929, 48
        %v1426 = vpop.permute.xlu0 %1425
        %1427 = vrot.lane.b32.xlu0 %v930, 48
        %v1428 = vpop.permute.xlu0 %1427
        %1429 = vrot.lane.b32.xlu0 %v931, 48
        %v1430 = vpop.permute.xlu0 %1429
        %1431 = vrot.lane.b32.xlu0 %v932, 48
        %v1432 = vpop.permute.xlu0 %1431
        %1433 = vrot.lane.b32.xlu0 %v933, 48
        %v1434 = vpop.permute.xlu0 %1433
        %1435 = vrot.lane.b32.xlu0 %v934, 48
        %v1436 = vpop.permute.xlu0 %1435
        %1437 = vrot.lane.b32.xlu0 %v935, 48
        %v1438 = vpop.permute.xlu0 %1437
        %1439 = vrot.lane.b32.xlu0 %v936, 48
        %v1440 = vpop.permute.xlu0 %1439
        %1441 = vrot.lane.b32.xlu0 %v937, 48
        %v1442 = vpop.permute.xlu0 %1441
        %1443 = vrot.lane.b32.xlu0 %v938, 48
        %v1444 = vpop.permute.xlu0 %1443
        %1445 = vrot.lane.b32.xlu0 %v939, 48
        %v1446 = vpop.permute.xlu0 %1445
        %1447 = vrot.lane.b32.xlu0 %v940, 48
        %v1448 = vpop.permute.xlu0 %1447
        %1449 = vrot.lane.b32.xlu0 %v941, 48
        %v1450 = vpop.permute.xlu0 %1449
        %1451 = vrot.lane.b32.xlu0 %v942, 48
        %v1452 = vpop.permute.xlu0 %1451
        %1453 = vrot.lane.b32.xlu0 %v943, 48
        %v1454 = vpop.permute.xlu0 %1453
        %1455 = vrot.lane.b32.xlu0 %v944, 48
        %v1456 = vpop.permute.xlu0 %1455
        %1457 = vrot.lane.b32.xlu0 %v945, 48
        %v1458 = vpop.permute.xlu0 %1457
        %1523 = vrot.lane.b32.xlu0 %v946, 64
        %v1524 = vpop.permute.xlu0 %1523
        %1525 = vrot.lane.b32.xlu0 %v947, 64
        %v1526 = vpop.permute.xlu0 %1525
        %1527 = vrot.lane.b32.xlu0 %v948, 64
        %v1528 = vpop.permute.xlu0 %1527
        %1529 = vrot.lane.b32.xlu0 %v949, 64
        %v1530 = vpop.permute.xlu0 %1529
        %1531 = vrot.lane.b32.xlu0 %v950, 64
        %v1532 = vpop.permute.xlu0 %1531
        %1533 = vrot.lane.b32.xlu0 %v951, 64
        %v1534 = vpop.permute.xlu0 %1533
        %1535 = vrot.lane.b32.xlu0 %v952, 64
        %v1536 = vpop.permute.xlu0 %1535
        %1537 = vrot.lane.b32.xlu0 %v953, 64
        %v1538 = vpop.permute.xlu0 %1537
        %1539 = vrot.lane.b32.xlu0 %v954, 64
        %v1540 = vpop.permute.xlu0 %1539
        %1541 = vrot.lane.b32.xlu0 %v955, 64
        %v1542 = vpop.permute.xlu0 %1541
        %1543 = vrot.lane.b32.xlu0 %v956, 64
        %v1544 = vpop.permute.xlu0 %1543
        %1545 = vrot.lane.b32.xlu0 %v957, 64
        %v1546 = vpop.permute.xlu0 %1545
        %1547 = vrot.lane.b32.xlu0 %v958, 64
        %v1548 = vpop.permute.xlu0 %1547
        %1549 = vrot.lane.b32.xlu0 %v959, 64
        %v1550 = vpop.permute.xlu0 %1549
        %1551 = vrot.lane.b32.xlu0 %v960, 64
        %v1552 = vpop.permute.xlu0 %1551
        %1553 = vrot.lane.b32.xlu0 %v961, 64
        %v1554 = vpop.permute.xlu0 %1553
        %1555 = vrot.lane.b32.xlu0 %v962, 64
        %v1556 = vpop.permute.xlu0 %1555
        %1557 = vrot.lane.b32.xlu0 %v963, 64
        %v1558 = vpop.permute.xlu0 %1557
        %1559 = vrot.lane.b32.xlu0 %v964, 64
        %v1560 = vpop.permute.xlu0 %1559
        %1561 = vrot.lane.b32.xlu0 %v965, 64
        %v1562 = vpop.permute.xlu0 %1561
        %1563 = vrot.lane.b32.xlu0 %v966, 64
        %v1564 = vpop.permute.xlu0 %1563
        %1565 = vrot.lane.b32.xlu0 %v967, 64
        %v1566 = vpop.permute.xlu0 %1565
        %1567 = vrot.lane.b32.xlu0 %v968, 64
        %v1568 = vpop.permute.xlu0 %1567
        %1569 = vrot.lane.b32.xlu0 %v969, 64
        %v1570 = vpop.permute.xlu0 %1569
        %1571 = vrot.lane.b32.xlu0 %v970, 64
        %v1572 = vpop.permute.xlu0 %1571
        %1573 = vrot.lane.b32.xlu0 %v971, 64
        %v1574 = vpop.permute.xlu0 %1573
        %1575 = vrot.lane.b32.xlu0 %v972, 64
        %v1576 = vpop.permute.xlu0 %1575
        %1577 = vrot.lane.b32.xlu0 %v973, 64
        %v1578 = vpop.permute.xlu0 %1577
        %1579 = vrot.lane.b32.xlu0 %v974, 64
        %v1580 = vpop.permute.xlu0 %1579
        %1581 = vrot.lane.b32.xlu0 %v975, 64
        %v1582 = vpop.permute.xlu0 %1581
        %1583 = vrot.lane.b32.xlu0 %v976, 64
        %v1584 = vpop.permute.xlu0 %1583
        %1585 = vrot.lane.b32.xlu0 %v977, 64
        %v1586 = vpop.permute.xlu0 %1585
        %1651 = vrot.lane.b32.xlu0 %v978, 80
        %v1652 = vpop.permute.xlu0 %1651
        %1653 = vrot.lane.b32.xlu0 %v979, 80
        %v1654 = vpop.permute.xlu0 %1653
        %1655 = vrot.lane.b32.xlu0 %v980, 80
        %v1656 = vpop.permute.xlu0 %1655
        %1657 = vrot.lane.b32.xlu0 %v981, 80
        %v1658 = vpop.permute.xlu0 %1657
        %1659 = vrot.lane.b32.xlu0 %v982, 80
        %v1660 = vpop.permute.xlu0 %1659
        %1661 = vrot.lane.b32.xlu0 %v983, 80
        %v1662 = vpop.permute.xlu0 %1661
        %1663 = vrot.lane.b32.xlu0 %v984, 80
        %v1664 = vpop.permute.xlu0 %1663
        %1665 = vrot.lane.b32.xlu0 %v985, 80
        %v1666 = vpop.permute.xlu0 %1665
        %1667 = vrot.lane.b32.xlu0 %v986, 80
        %v1668 = vpop.permute.xlu0 %1667
        %1669 = vrot.lane.b32.xlu0 %v987, 80
        %v1670 = vpop.permute.xlu0 %1669
        %1671 = vrot.lane.b32.xlu0 %v988, 80
        %v1672 = vpop.permute.xlu0 %1671
        %1673 = vrot.lane.b32.xlu0 %v989, 80
        %v1674 = vpop.permute.xlu0 %1673
        %1675 = vrot.lane.b32.xlu0 %v990, 80
        %v1676 = vpop.permute.xlu0 %1675
        %1677 = vrot.lane.b32.xlu0 %v991, 80
        %v1678 = vpop.permute.xlu0 %1677
        %1679 = vrot.lane.b32.xlu0 %v992, 80
        %v1680 = vpop.permute.xlu0 %1679
        %1681 = vrot.lane.b32.xlu0 %v993, 80
        %v1682 = vpop.permute.xlu0 %1681
        %1683 = vrot.lane.b32.xlu0 %v994, 80
        %v1684 = vpop.permute.xlu0 %1683
        %1685 = vrot.lane.b32.xlu0 %v995, 80
        %v1686 = vpop.permute.xlu0 %1685
        %1687 = vrot.lane.b32.xlu0 %v996, 80
        %v1688 = vpop.permute.xlu0 %1687
        %1689 = vrot.lane.b32.xlu0 %v997, 80
        %v1690 = vpop.permute.xlu0 %1689
        %1691 = vrot.lane.b32.xlu0 %v998, 80
        %v1692 = vpop.permute.xlu0 %1691
        %1693 = vrot.lane.b32.xlu0 %v999, 80
        %v1694 = vpop.permute.xlu0 %1693
        %1695 = vrot.lane.b32.xlu0 %v1000, 80
        %v1696 = vpop.permute.xlu0 %1695
        %1697 = vrot.lane.b32.xlu0 %v1001, 80
        %v1698 = vpop.permute.xlu0 %1697
        %1699 = vrot.lane.b32.xlu0 %v1002, 80
        %v1700 = vpop.permute.xlu0 %1699
        %1701 = vrot.lane.b32.xlu0 %v1003, 80
        %v1702 = vpop.permute.xlu0 %1701
        %1703 = vrot.lane.b32.xlu0 %v1004, 80
        %v1704 = vpop.permute.xlu0 %1703
        %1705 = vrot.lane.b32.xlu0 %v1005, 80
        %v1706 = vpop.permute.xlu0 %1705
        %1707 = vrot.lane.b32.xlu0 %v1006, 80
        %v1708 = vpop.permute.xlu0 %1707
        %1709 = vrot.lane.b32.xlu0 %v1007, 80
        %v1710 = vpop.permute.xlu0 %1709
        %1711 = vrot.lane.b32.xlu0 %v1008, 80
        %v1712 = vpop.permute.xlu0 %1711
        %1713 = vrot.lane.b32.xlu0 %v1009, 80
        %v1714 = vpop.permute.xlu0 %1713
        %1779 = vrot.lane.b32.xlu0 %v1011, 96
        %v1780 = vpop.permute.xlu0 %1779
        %1781 = vrot.lane.b32.xlu0 %v1012, 96
        %v1782 = vpop.permute.xlu0 %1781
        %1783 = vrot.lane.b32.xlu0 %v1013, 96
        %v1784 = vpop.permute.xlu0 %1783
        %1785 = vrot.lane.b32.xlu0 %v1014, 96
        %v1786 = vpop.permute.xlu0 %1785
        %1787 = vrot.lane.b32.xlu0 %v1015, 96
        %v1788 = vpop.permute.xlu0 %1787
        %1789 = vrot.lane.b32.xlu0 %v1016, 96
        %v1790 = vpop.permute.xlu0 %1789
        %1791 = vrot.lane.b32.xlu0 %v1017, 96
        %v1792 = vpop.permute.xlu0 %1791
        %1793 = vrot.lane.b32.xlu0 %v1018, 96
        %v1794 = vpop.permute.xlu0 %1793
        %1795 = vrot.lane.b32.xlu0 %v1019, 96
        %v1796 = vpop.permute.xlu0 %1795
        %1797 = vrot.lane.b32.xlu0 %v1020, 96
        %v1798 = vpop.permute.xlu0 %1797
        %1799 = vrot.lane.b32.xlu0 %v1021, 96
        %v1800 = vpop.permute.xlu0 %1799
        %1801 = vrot.lane.b32.xlu0 %v1022, 96
        %v1802 = vpop.permute.xlu0 %1801
        %1803 = vrot.lane.b32.xlu0 %v1023, 96
        %v1804 = vpop.permute.xlu0 %1803
        %1805 = vrot.lane.b32.xlu0 %v1024, 96
        %v1806 = vpop.permute.xlu0 %1805
        %1807 = vrot.lane.b32.xlu0 %v1025, 96
        %v1808 = vpop.permute.xlu0 %1807
        %1809 = vrot.lane.b32.xlu0 %v1026, 96
        %v1810 = vpop.permute.xlu0 %1809
        %1811 = vrot.lane.b32.xlu0 %v1027, 96
        %v1812 = vpop.permute.xlu0 %1811
        %1813 = vrot.lane.b32.xlu0 %v1028, 96
        %v1814 = vpop.permute.xlu0 %1813
        %1815 = vrot.lane.b32.xlu0 %v1029, 96
        %v1816 = vpop.permute.xlu0 %1815
        %1817 = vrot.lane.b32.xlu0 %v1030, 96
        %v1818 = vpop.permute.xlu0 %1817
        %1819 = vrot.lane.b32.xlu0 %v1031, 96
        %v1820 = vpop.permute.xlu0 %1819
        %1821 = vrot.lane.b32.xlu0 %v1032, 96
        %v1822 = vpop.permute.xlu0 %1821
        %1823 = vrot.lane.b32.xlu0 %v1033, 96
        %v1824 = vpop.permute.xlu0 %1823
        %1825 = vrot.lane.b32.xlu0 %v1034, 96
        %v1826 = vpop.permute.xlu0 %1825
        %1827 = vrot.lane.b32.xlu0 %v1035, 96
        %v1828 = vpop.permute.xlu0 %1827
        %1829 = vrot.lane.b32.xlu0 %v1036, 96
        %v1830 = vpop.permute.xlu0 %1829
        %1831 = vrot.lane.b32.xlu0 %v1037, 96
        %v1832 = vpop.permute.xlu0 %1831
        %1833 = vrot.lane.b32.xlu0 %v1038, 96
        %v1834 = vpop.permute.xlu0 %1833
        %1835 = vrot.lane.b32.xlu0 %v1039, 96
        %v1836 = vpop.permute.xlu0 %1835
        %1837 = vrot.lane.b32.xlu0 %v1040, 96
        %v1838 = vpop.permute.xlu0 %1837
        %1839 = vrot.lane.b32.xlu0 %v1041, 96
        %v1840 = vpop.permute.xlu0 %1839
        %1841 = vrot.lane.b32.xlu0 %v1042, 96
        %v1842 = vpop.permute.xlu0 %1841
        %1907 = vrot.lane.b32.xlu0 %v1043, 112
        %v1908 = vpop.permute.xlu0 %1907
        %1909 = vrot.lane.b32.xlu0 %v1044, 112
        %v1910 = vpop.permute.xlu0 %1909
        %1911 = vrot.lane.b32.xlu0 %v1045, 112
        %v1912 = vpop.permute.xlu0 %1911
        %1913 = vrot.lane.b32.xlu0 %v1046, 112
        %v1914 = vpop.permute.xlu0 %1913
        %1915 = vrot.lane.b32.xlu0 %v1047, 112
        %v1916 = vpop.permute.xlu0 %1915
        %1917 = vrot.lane.b32.xlu0 %v1048, 112
        %v1918 = vpop.permute.xlu0 %1917
        %1919 = vrot.lane.b32.xlu0 %v1049, 112
        %v1920 = vpop.permute.xlu0 %1919
        %1921 = vrot.lane.b32.xlu0 %v1050, 112
        %v1922 = vpop.permute.xlu0 %1921
        %1923 = vrot.lane.b32.xlu0 %v1051, 112
        %v1924 = vpop.permute.xlu0 %1923
        %1925 = vrot.lane.b32.xlu0 %v1052, 112
        %v1926 = vpop.permute.xlu0 %1925
        %1927 = vrot.lane.b32.xlu0 %v1053, 112
        %v1928 = vpop.permute.xlu0 %1927
        %1929 = vrot.lane.b32.xlu0 %v1054, 112
        %v1930 = vpop.permute.xlu0 %1929
        %1931 = vrot.lane.b32.xlu0 %v1055, 112
        %v1932 = vpop.permute.xlu0 %1931
        %1933 = vrot.lane.b32.xlu0 %v1056, 112
        %v1934 = vpop.permute.xlu0 %1933
        %1935 = vrot.lane.b32.xlu0 %v1057, 112
        %v1936 = vpop.permute.xlu0 %1935
        %1937 = vrot.lane.b32.xlu0 %v1058, 112
        %v1938 = vpop.permute.xlu0 %1937
        %1939 = vrot.lane.b32.xlu0 %v1059, 112
        %v1940 = vpop.permute.xlu0 %1939
        %1941 = vrot.lane.b32.xlu0 %v1060, 112
        %v1942 = vpop.permute.xlu0 %1941
        %1943 = vrot.lane.b32.xlu0 %v1061, 112
        %v1944 = vpop.permute.xlu0 %1943
        %1945 = vrot.lane.b32.xlu0 %v1062, 112
        %v1946 = vpop.permute.xlu0 %1945
        %1947 = vrot.lane.b32.xlu0 %v1063, 112
        %v1948 = vpop.permute.xlu0 %1947
        %1949 = vrot.lane.b32.xlu0 %v1064, 112
        %v1950 = vpop.permute.xlu0 %1949
        %1951 = vrot.lane.b32.xlu0 %v1065, 112
        %v1952 = vpop.permute.xlu0 %1951
        %1953 = vrot.lane.b32.xlu0 %v1066, 112
        %v1954 = vpop.permute.xlu0 %1953
        %1955 = vrot.lane.b32.xlu0 %v1067, 112
        %v1956 = vpop.permute.xlu0 %1955
        %1957 = vrot.lane.b32.xlu0 %v1068, 112
        %v1958 = vpop.permute.xlu0 %1957
        %1959 = vrot.lane.b32.xlu0 %v1069, 112
        %v1960 = vpop.permute.xlu0 %1959
        %1961 = vrot.lane.b32.xlu0 %v1070, 112
        %v1962 = vpop.permute.xlu0 %1961
        %1963 = vrot.lane.b32.xlu0 %v1071, 112
        %v1964 = vpop.permute.xlu0 %1963
        %1965 = vrot.lane.b32.xlu0 %v1072, 112
        %v1966 = vpop.permute.xlu0 %1965
        %1967 = vrot.lane.b32.xlu0 %v1073, 112
        %v1968 = vpop.permute.xlu0 %1967
        %1969 = vrot.lane.b32.xlu0 %v1074, 112
        %v1970 = vpop.permute.xlu0 %1969
        %v2003 = vsel %vm729, %v818, %v1140
        %v2004 = vsel %vm729, %v819, %v1142
        %v2005 = vsel %vm729, %v820, %v1144
        %v2006 = vsel %vm729, %v821, %v1146
        %v2007 = vsel %vm729, %v822, %v1148
        %v2008 = vsel %vm729, %v823, %v1150
        %v2009 = vsel %vm729, %v824, %v1152
        %v2010 = vsel %vm729, %v825, %v1154
        %v2011 = vsel %vm729, %v826, %v1156
        %v2012 = vsel %vm729, %v827, %v1158
        %v2013 = vsel %vm729, %v828, %v1160
        %v2014 = vsel %vm729, %v829, %v1162
        %v2015 = vsel %vm729, %v830, %v1164
        %v2016 = vsel %vm729, %v831, %v1166
        %v2017 = vsel %vm729, %v832, %v1168
        %v2018 = vsel %vm729, %v833, %v1170
        %v2019 = vsel %vm729, %v834, %v1172
        %v2020 = vsel %vm729, %v835, %v1174
        %v2021 = vsel %vm729, %v836, %v1176
        %v2022 = vsel %vm729, %v837, %v1178
        %v2023 = vsel %vm729, %v838, %v1180
        %v2024 = vsel %vm729, %v839, %v1182
        %v2025 = vsel %vm729, %v840, %v1184
        %v2026 = vsel %vm729, %v841, %v1186
        %v2027 = vsel %vm729, %v842, %v1188
        %v2028 = vsel %vm729, %v843, %v1190
        %v2029 = vsel %vm729, %v844, %v1192
        %v2030 = vsel %vm729, %v845, %v1194
        %v2031 = vsel %vm729, %v846, %v1196
        %v2032 = vsel %vm729, %v847, %v1198
        %v2033 = vsel %vm729, %v848, %v1200
        %v2034 = vsel %vm729, %v849, %v1202
        %v2035 = vsel %vm487, %v2003, %v1268
        %v2036 = vsel %vm487, %v2004, %v1270
        %v2037 = vsel %vm487, %v2005, %v1272
        %v2038 = vsel %vm487, %v2006, %v1274
        %v2039 = vsel %vm487, %v2007, %v1276
        %v2040 = vsel %vm487, %v2008, %v1278
        %v2041 = vsel %vm487, %v2009, %v1280
        %v2042 = vsel %vm487, %v2010, %v1282
        %v2043 = vsel %vm487, %v2011, %v1284
        %v2044 = vsel %vm487, %v2012, %v1286
        %v2045 = vsel %vm487, %v2013, %v1288
        %v2046 = vsel %vm487, %v2014, %v1290
        %v2047 = vsel %vm487, %v2015, %v1292
        %v2048 = vsel %vm487, %v2016, %v1294
        %v2049 = vsel %vm487, %v2017, %v1296
        %v2050 = vsel %vm487, %v2018, %v1298
        %v2051 = vsel %vm487, %v2019, %v1300
        %v2052 = vsel %vm487, %v2020, %v1302
        %v2053 = vsel %vm487, %v2021, %v1304
        %v2054 = vsel %vm487, %v2022, %v1306
        %v2055 = vsel %vm487, %v2023, %v1308
        %v2056 = vsel %vm487, %v2024, %v1310
        %v2057 = vsel %vm487, %v2025, %v1312
        %v2058 = vsel %vm487, %v2026, %v1314
        %v2059 = vsel %vm487, %v2027, %v1316
        %v2060 = vsel %vm487, %v2028, %v1318
        %v2061 = vsel %vm487, %v2029, %v1320
        %v2062 = vsel %vm487, %v2030, %v1322
        %v2063 = vsel %vm487, %v2031, %v1324
        %v2064 = vsel %vm487, %v2032, %v1326
        %v2065 = vsel %vm487, %v2033, %v1328
        %v2066 = vsel %vm487, %v2034, %v1330
        %vm2067 = vcmask 392192
        %v2068 = vsel %vm2067, %v2035, %v1396
        %v2069 = vsel %vm2067, %v2036, %v1398
        %v2070 = vsel %vm2067, %v2037, %v1400
        %v2071 = vsel %vm2067, %v2038, %v1402
        %v2072 = vsel %vm2067, %v2039, %v1404
        %v2073 = vsel %vm2067, %v2040, %v1406
        %v2074 = vsel %vm2067, %v2041, %v1408
        %v2075 = vsel %vm2067, %v2042, %v1410
        %v2076 = vsel %vm2067, %v2043, %v1412
        %v2077 = vsel %vm2067, %v2044, %v1414
        %v2078 = vsel %vm2067, %v2045, %v1416
        %v2079 = vsel %vm2067, %v2046, %v1418
        %v2080 = vsel %vm2067, %v2047, %v1420
        %v2081 = vsel %vm2067, %v2048, %v1422
        %v2082 = vsel %vm2067, %v2049, %v1424
        %v2083 = vsel %vm2067, %v2050, %v1426
        %v2084 = vsel %vm2067, %v2051, %v1428
        %v2085 = vsel %vm2067, %v2052, %v1430
        %v2086 = vsel %vm2067, %v2053, %v1432
        %v2087 = vsel %vm2067, %v2054, %v1434
        %v2088 = vsel %vm2067, %v2055, %v1436
        %v2089 = vsel %vm2067, %v2056, %v1438
        %v2090 = vsel %vm2067, %v2057, %v1440
        %v2091 = vsel %vm2067, %v2058, %v1442
        %v2092 = vsel %vm2067, %v2059, %v1444
        %v2093 = vsel %vm2067, %v2060, %v1446
        %v2094 = vsel %vm2067, %v2061, %v1448
        %v2095 = vsel %vm2067, %v2062, %v1450
        %v2096 = vsel %vm2067, %v2063, %v1452
        %v2097 = vsel %vm2067, %v2064, %v1454
        %v2098 = vsel %vm2067, %v2065, %v1456
        %v2099 = vsel %vm2067, %v2066, %v1458
        %vm2100 = vcmask 523264
        %v2101 = vsel %vm2100, %v2068, %v1524
        %v2102 = vsel %vm2100, %v2069, %v1526
        %v2103 = vsel %vm2100, %v2070, %v1528
        %v2104 = vsel %vm2100, %v2071, %v1530
        %v2105 = vsel %vm2100, %v2072, %v1532
        %v2106 = vsel %vm2100, %v2073, %v1534
        %v2107 = vsel %vm2100, %v2074, %v1536
        %v2108 = vsel %vm2100, %v2075, %v1538
        %v2109 = vsel %vm2100, %v2076, %v1540
        %v2110 = vsel %vm2100, %v2077, %v1542
        %v2111 = vsel %vm2100, %v2078, %v1544
        %v2112 = vsel %vm2100, %v2079, %v1546
        %v2113 = vsel %vm2100, %v2080, %v1548
        %v2114 = vsel %vm2100, %v2081, %v1550
        %v2115 = vsel %vm2100, %v2082, %v1552
        %v2116 = vsel %vm2100, %v2083, %v1554
        %v2117 = vsel %vm2100, %v2084, %v1556
        %v2118 = vsel %vm2100, %v2085, %v1558
        %v2119 = vsel %vm2100, %v2086, %v1560
        %v2120 = vsel %vm2100, %v2087, %v1562
        %v2121 = vsel %vm2100, %v2088, %v1564
        %v2122 = vsel %vm2100, %v2089, %v1566
        %v2123 = vsel %vm2100, %v2090, %v1568
        %v2124 = vsel %vm2100, %v2091, %v1570
        %v2125 = vsel %vm2100, %v2092, %v1572
        %v2126 = vsel %vm2100, %v2093, %v1574
        %v2127 = vsel %vm2100, %v2094, %v1576
        %v2128 = vsel %vm2100, %v2095, %v1578
        %v2129 = vsel %vm2100, %v2096, %v1580
        %v2130 = vsel %vm2100, %v2097, %v1582
        %v2131 = vsel %vm2100, %v2098, %v1584
        %v2132 = vsel %vm2100, %v2099, %v1586
        %vm2133 = vcmask 654336
        %v2134 = vsel %vm2133, %v2101, %v1652
        %v2135 = vsel %vm2133, %v2102, %v1654
        %v2136 = vsel %vm2133, %v2103, %v1656
        %v2137 = vsel %vm2133, %v2104, %v1658
        %v2138 = vsel %vm2133, %v2105, %v1660
        %v2139 = vsel %vm2133, %v2106, %v1662
        %v2140 = vsel %vm2133, %v2107, %v1664
        %v2141 = vsel %vm2133, %v2108, %v1666
        %v2142 = vsel %vm2133, %v2109, %v1668
        %v2143 = vsel %vm2133, %v2110, %v1670
        %v2144 = vsel %vm2133, %v2111, %v1672
        %v2145 = vsel %vm2133, %v2112, %v1674
        %v2146 = vsel %vm2133, %v2113, %v1676
        %v2147 = vsel %vm2133, %v2114, %v1678
        %v2148 = vsel %vm2133, %v2115, %v1680
        %v2149 = vsel %vm2133, %v2116, %v1682
        %v2150 = vsel %vm2133, %v2117, %v1684
        %v2151 = vsel %vm2133, %v2118, %v1686
        %v2152 = vsel %vm2133, %v2119, %v1688
        %v2153 = vsel %vm2133, %v2120, %v1690
        %v2154 = vsel %vm2133, %v2121, %v1692
        %v2155 = vsel %vm2133, %v2122, %v1694
        %v2156 = vsel %vm2133, %v2123, %v1696
        %v2157 = vsel %vm2133, %v2124, %v1698
        %v2158 = vsel %vm2133, %v2125, %v1700
        %v2159 = vsel %vm2133, %v2126, %v1702
        %v2160 = vsel %vm2133, %v2127, %v1704
        %v2161 = vsel %vm2133, %v2128, %v1706
        %v2162 = vsel %vm2133, %v2129, %v1708
        %v2163 = vsel %vm2133, %v2130, %v1710
        %v2164 = vsel %vm2133, %v2131, %v1712
        %v2165 = vsel %vm2133, %v2132, %v1714
        %vm2166 = vcmask 785408
        %v2167 = vsel %vm2166, %v2134, %v1780
        %v2168 = vsel %vm2166, %v2135, %v1782
        %v2169 = vsel %vm2166, %v2136, %v1784
        %v2170 = vsel %vm2166, %v2137, %v1786
        %v2171 = vsel %vm2166, %v2138, %v1788
        %v2172 = vsel %vm2166, %v2139, %v1790
        %v2173 = vsel %vm2166, %v2140, %v1792
        %v2174 = vsel %vm2166, %v2141, %v1794
        %v2175 = vsel %vm2166, %v2142, %v1796
        %v2176 = vsel %vm2166, %v2143, %v1798
        %v2177 = vsel %vm2166, %v2144, %v1800
        %v2178 = vsel %vm2166, %v2145, %v1802
        %v2179 = vsel %vm2166, %v2146, %v1804
        %v2180 = vsel %vm2166, %v2147, %v1806
        %v2181 = vsel %vm2166, %v2148, %v1808
        %v2182 = vsel %vm2166, %v2149, %v1810
        %v2183 = vsel %vm2166, %v2150, %v1812
        %v2184 = vsel %vm2166, %v2151, %v1814
        %v2185 = vsel %vm2166, %v2152, %v1816
        %v2186 = vsel %vm2166, %v2153, %v1818
        %v2187 = vsel %vm2166, %v2154, %v1820
        %v2188 = vsel %vm2166, %v2155, %v1822
        %v2189 = vsel %vm2166, %v2156, %v1824
        %v2190 = vsel %vm2166, %v2157, %v1826
        %v2191 = vsel %vm2166, %v2158, %v1828
        %v2192 = vsel %vm2166, %v2159, %v1830
        %v2193 = vsel %vm2166, %v2160, %v1832
        %v2194 = vsel %vm2166, %v2161, %v1834
        %v2195 = vsel %vm2166, %v2162, %v1836
        %v2196 = vsel %vm2166, %v2163, %v1838
        %v2197 = vsel %vm2166, %v2164, %v1840
        %v2198 = vsel %vm2166, %v2165, %v1842
        %vm2199 = vcmask 916480
        %v2200 = vsel %vm2199, %v2167, %v1908
        %v2201 = vsel %vm2199, %v2168, %v1910
        %v2202 = vsel %vm2199, %v2169, %v1912
        %v2203 = vsel %vm2199, %v2170, %v1914
        %v2204 = vsel %vm2199, %v2171, %v1916
        %v2205 = vsel %vm2199, %v2172, %v1918
        %v2206 = vsel %vm2199, %v2173, %v1920
        %v2207 = vsel %vm2199, %v2174, %v1922
        %v2208 = vsel %vm2199, %v2175, %v1924
        %v2209 = vsel %vm2199, %v2176, %v1926
        %v2210 = vsel %vm2199, %v2177, %v1928
        %v2211 = vsel %vm2199, %v2178, %v1930
        %v2212 = vsel %vm2199, %v2179, %v1932
        %v2213 = vsel %vm2199, %v2180, %v1934
        %v2214 = vsel %vm2199, %v2181, %v1936
        %v2215 = vsel %vm2199, %v2182, %v1938
        %v2216 = vsel %vm2199, %v2183, %v1940
        %v2217 = vsel %vm2199, %v2184, %v1942
        %v2218 = vsel %vm2199, %v2185, %v1944
        %v2219 = vsel %vm2199, %v2186, %v1946
        %v2220 = vsel %vm2199, %v2187, %v1948
        %v2221 = vsel %vm2199, %v2188, %v1950
        %v2222 = vsel %vm2199, %v2189, %v1952
        %v2223 = vsel %vm2199, %v2190, %v1954
        %v2224 = vsel %vm2199, %v2191, %v1956
        %v2225 = vsel %vm2199, %v2192, %v1958
        %v2226 = vsel %vm2199, %v2193, %v1960
        %v2227 = vsel %vm2199, %v2194, %v1962
        %v2228 = vsel %vm2199, %v2195, %v1964
        %v2229 = vsel %vm2199, %v2196, %v1966
        %v2230 = vsel %vm2199, %v2197, %v1968
        %v2231 = vsel %vm2199, %v2198, %v1970
        %v2232 = vpack.c.bf16 %v2201, %v2200
        %v2233 = vpack.c.bf16 %v1076, %v1075
        %v2234 = vpack.c.bf16 %v2203, %v2202
        %v2235 = vpack.c.bf16 %v1078, %v1077
        %v2236 = vpack.c.bf16 %v2205, %v2204
        %v2237 = vpack.c.bf16 %v1080, %v1079
        %v2238 = vpack.c.bf16 %v2207, %v2206
        %v2239 = vpack.c.bf16 %v1082, %v1081
        %v2240 = vpack.c.bf16 %v2209, %v2208
        %v2241 = vpack.c.bf16 %v1084, %v1083
        %v2242 = vpack.c.bf16 %v2211, %v2210
        %v2243 = vpack.c.bf16 %v1086, %v1085
        %v2244 = vpack.c.bf16 %v2213, %v2212
        %v2245 = vpack.c.bf16 %v1088, %v1087
        %v2246 = vpack.c.bf16 %v2215, %v2214
        %v2247 = vpack.c.bf16 %v1090, %v1089
        %v2248 = vpack.c.bf16 %v2217, %v2216
        %v2249 = vpack.c.bf16 %v1092, %v1091
        %v2250 = vpack.c.bf16 %v2219, %v2218
        %v2251 = vpack.c.bf16 %v1094, %v1093
        %v2252 = vpack.c.bf16 %v2221, %v2220
        %v2253 = vpack.c.bf16 %v1096, %v1095
        %v2254 = vpack.c.bf16 %v2223, %v2222
        %v2255 = vpack.c.bf16 %v1098, %v1097
        %v2256 = vpack.c.bf16 %v2225, %v2224
        %v2257 = vpack.c.bf16 %v1100, %v1099
        %v2258 = vpack.c.bf16 %v2227, %v2226
        %v2259 = vpack.c.bf16 %v1102, %v1101
        %v2260 = vpack.c.bf16 %v2229, %v2228
        %v2261 = vpack.c.bf16 %v1104, %v1103
        %v2262 = vpack.c.bf16 %v2231, %v2230
        %v2263 = vpack.c.bf16 %v1106, %v1105
        %v2264 = vld [vmem:[%s3] sm:$0xf]
        %v2265 = vld [vmem:[%s3 + $0x4] sm:$0xf]
        %v2266 = vld [vmem:[%s3 + $0x8] sm:$0xf]
        %v2267 = vld [vmem:[%s3 + $0xc] sm:$0xf]
        %v2268 = vld [vmem:[%s3 + $0x10] sm:$0xf]
        %v2269 = vld [vmem:[%s3 + $0x14] sm:$0xf]
        %v2270 = vld [vmem:[%s3 + $0x18] sm:$0xf]
        %v2271 = vld [vmem:[%s3 + $0x1c] sm:$0xf]
        %v2272 = vld [vmem:[%s3 + $0x20] sm:$0xf]
        %v2273 = vld [vmem:[%s3 + $0x24] sm:$0xf]
        %v2274 = vld [vmem:[%s3 + $0x28] sm:$0xf]
        %v2275 = vld [vmem:[%s3 + $0x2c] sm:$0xf]
        %v2276 = vld [vmem:[%s3 + $0x30] sm:$0xf]
        %v2277 = vld [vmem:[%s3 + $0x34] sm:$0xf]
        %v2278 = vld [vmem:[%s3 + $0x38] sm:$0xf]
        %v2279 = vld [vmem:[%s3 + $0x3c] sm:$0xf]
        %v2280 = vld [vmem:[%s3 + $0x40] sm:$0xf]
        %v2281 = vld [vmem:[%s3 + $0x44] sm:$0xf]
        %v2282 = vld [vmem:[%s4] sm:$0x1]
        %v2284 = vlaneseq
        %v2285 = vshrl.u32 %v2284, 7
        %v2286 = vsub.s32 0, %v2285
        %v2287 = vrot.slane %v2282, %v2286
        %v2307 = vunpack.c.l.b16 %v2264
        %v2308 = vunpack.c.l.b16 %v2265
        %v2309 = vunpack.c.l.b16 %v2266
        %v2310 = vunpack.c.l.b16 %v2267
        %v2311 = vunpack.c.l.b16 %v2268
        %v2312 = vunpack.c.l.b16 %v2269
        %v2313 = vunpack.c.l.b16 %v2270
        %v2314 = vunpack.c.l.b16 %v2271
        %v2315 = vunpack.c.l.b16 %v2272
        %v2316 = vunpack.c.l.b16 %v2273
        %v2317 = vunpack.c.l.b16 %v2274
        %v2318 = vunpack.c.l.b16 %v2275
        %v2319 = vunpack.c.l.b16 %v2276
        %v2320 = vunpack.c.l.b16 %v2277
        %v2321 = vunpack.c.l.b16 %v2278
        %v2322 = vunpack.c.l.b16 %v2279
        %v2323 = vunpack.c.l.b16 %v2280
        %v2324 = vunpack.c.l.b16 %v2281
        %v2325 = vpack.c.b16 %v2308, %v2307
        %v2326 = vpack.c.b16 %v2310, %v2309
        %v2327 = vpack.c.b16 %v2312, %v2311
        %v2328 = vpack.c.b16 %v2314, %v2313
        %v2329 = vpack.c.b16 %v2316, %v2315
        %v2330 = vpack.c.b16 %v2318, %v2317
        %v2331 = vpack.c.b16 %v2320, %v2319
        %v2332 = vpack.c.b16 %v2322, %v2321
        %v2333 = vpack.c.b16 %v2324, %v2323
        %v2344 = vsel %vm729, %v2233, 0
        %v2347 = vsel %vm729, %v2235, 0
        %v2350 = vsel %vm729, %v2237, 0
        %v2353 = vsel %vm729, %v2239, 0
        %v2356 = vsel %vm729, %v2241, 0
        %v2359 = vsel %vm729, %v2243, 0
        %v2362 = vsel %vm729, %v2245, 0
        %v2365 = vsel %vm729, %v2247, 0
        %v2368 = vsel %vm729, %v2249, 0
        %v2371 = vsel %vm729, %v2251, 0
        %v2374 = vsel %vm729, %v2253, 0
        %v2377 = vsel %vm729, %v2255, 0
        %v2380 = vsel %vm729, %v2257, 0
        %v2383 = vsel %vm729, %v2259, 0
        %v2386 = vsel %vm729, %v2261, 0
        %v2389 = vsel %vm729, %v2263, 0
        %2391 = vmatprep.subr.bf16.mxu0 0
        %2392 = vmatpush1.bf16.msra.mxu0 %v2332
        %2393 = vmatprep.subr.bf16.mxu0 0
        %2394 = vmatpush1.bf16.msra.mxu0 %v2331
        %2395 = vmatprep.subr.bf16.mxu0 0
        %2396 = vmatpush1.bf16.msra.mxu0 %v2330
        %2397 = vmatprep.subr.bf16.mxu0 0
        %2398 = vmatpush1.bf16.msra.mxu0 %v2329
        %2399 = vmatprep.subr.bf16.mxu0 0
        %2400 = vmatpush1.bf16.msra.mxu0 %v2328
        %2401 = vmatprep.subr.bf16.mxu0 0
        %2402 = vmatpush1.bf16.msra.mxu0 %v2327
        %2403 = vmatprep.subr.bf16.mxu0 0
        %2404 = vmatpush1.bf16.msra.mxu0 %v2326
        %2405 = vmatprep.subr.bf16.mxu0 0
        %2406 = vmatpush1.bf16.msra.mxu0 %v2325
        %2407 = vmatprep.subr.bf16.mxu0 0
        %2408 = vmatpush2.bf16.msra.mxu0 0
        %2409 = vmatprep.subr.bf16.mxu0 0
        %2410 = vmatpush2.bf16.msra.mxu0 0
        %2411 = vmatprep.subr.bf16.mxu0 0
        %2412 = vmatpush2.bf16.msra.mxu0 0
        %2413 = vmatprep.subr.bf16.mxu0 0
        %2414 = vmatpush2.bf16.msra.mxu0 0
        %2415 = vmatprep.subr.bf16.mxu0 0
        %2416 = vmatpush2.bf16.msra.mxu0 0
        %2417 = vmatprep.subr.bf16.mxu0 0
        %2418 = vmatpush2.bf16.msra.mxu0 0
        %2419 = vmatprep.subr.bf16.mxu0 0
        %2420 = vmatpush2.bf16.msra.mxu0 0
        %2421 = vmatprep.subr.bf16.mxu0 0
        %2422 = vmatpush2.bf16.msra.mxu0 %v2333
        %2423 = vmatprep.mubr.bf16.mxu0 %v2344
        %2424 = vmatmul.mubr.bf16.gmra.mxu0 %v2232
        %v2425 = vpop.f32.mrf.mxu0
        %v2426 = vadd.f32 %v2287, %v2425
        %v2427 = vpop.f32.mrf.mxu0
        %v2428 = vpop.f32.mrf.mxu0
        %v2429 = vadd.f32 %v2287, %v2428
        %v2430 = vpop.f32.mrf.mxu0
        %2431 = vmatprep.mubr.bf16.mxu0 %v2347
        %2432 = vmatmul.mubr.bf16.gmra.mxu0 %v2234
        %v2433 = vpop.f32.mrf.mxu0
        %v2434 = vadd.f32 %v2287, %v2433
        %v2435 = vpop.f32.mrf.mxu0
        %v2436 = vpop.f32.mrf.mxu0
        %v2437 = vadd.f32 %v2287, %v2436
        %v2438 = vpop.f32.mrf.mxu0
        %2439 = vmatprep.mubr.bf16.mxu0 %v2350
        %2440 = vmatmul.mubr.bf16.gmra.mxu0 %v2236
        %v2441 = vpop.f32.mrf.mxu0
        %v2442 = vadd.f32 %v2287, %v2441
        %v2443 = vpop.f32.mrf.mxu0
        %v2444 = vpop.f32.mrf.mxu0
        %v2445 = vadd.f32 %v2287, %v2444
        %v2446 = vpop.f32.mrf.mxu0
        %2447 = vmatprep.mubr.bf16.mxu0 %v2353
        %2448 = vmatmul.mubr.bf16.gmra.mxu0 %v2238
        %v2449 = vpop.f32.mrf.mxu0
        %v2450 = vadd.f32 %v2287, %v2449
        %v2451 = vpop.f32.mrf.mxu0
        %v2452 = vpop.f32.mrf.mxu0
        %v2453 = vadd.f32 %v2287, %v2452
        %v2454 = vpop.f32.mrf.mxu0
        %2455 = vmatprep.mubr.bf16.mxu0 %v2356
        %2456 = vmatmul.mubr.bf16.gmra.mxu0 %v2240
        %v2457 = vpop.f32.mrf.mxu0
        %v2458 = vadd.f32 %v2287, %v2457
        %v2459 = vpop.f32.mrf.mxu0
        %v2460 = vpop.f32.mrf.mxu0
        %v2461 = vadd.f32 %v2287, %v2460
        %v2462 = vpop.f32.mrf.mxu0
        %2463 = vmatprep.mubr.bf16.mxu0 %v2359
        %2464 = vmatmul.mubr.bf16.gmra.mxu0 %v2242
        %v2465 = vpop.f32.mrf.mxu0
        %v2466 = vadd.f32 %v2287, %v2465
        %v2467 = vpop.f32.mrf.mxu0
        %v2468 = vpop.f32.mrf.mxu0
        %v2469 = vadd.f32 %v2287, %v2468
        %v2470 = vpop.f32.mrf.mxu0
        %2471 = vmatprep.mubr.bf16.mxu0 %v2362
        %2472 = vmatmul.mubr.bf16.gmra.mxu0 %v2244
        %v2473 = vpop.f32.mrf.mxu0
        %v2474 = vadd.f32 %v2287, %v2473
        %v2475 = vpop.f32.mrf.mxu0
        %v2476 = vpop.f32.mrf.mxu0
        %v2477 = vadd.f32 %v2287, %v2476
        %v2478 = vpop.f32.mrf.mxu0
        %2479 = vmatprep.mubr.bf16.mxu0 %v2365
        %2480 = vmatmul.mubr.bf16.gmra.mxu0 %v2246
        %v2481 = vpop.f32.mrf.mxu0
        %v2482 = vadd.f32 %v2287, %v2481
        %v2483 = vpop.f32.mrf.mxu0
        %v2484 = vpop.f32.mrf.mxu0
        %v2485 = vadd.f32 %v2287, %v2484
        %v2486 = vpop.f32.mrf.mxu0
        %2487 = vmatprep.mubr.bf16.mxu0 %v2368
        %2488 = vmatmul.mubr.bf16.gmra.mxu0 %v2248
        %v2489 = vpop.f32.mrf.mxu0
        %v2490 = vadd.f32 %v2287, %v2489
        %v2491 = vpop.f32.mrf.mxu0
        %v2492 = vpop.f32.mrf.mxu0
        %v2493 = vadd.f32 %v2287, %v2492
        %v2494 = vpop.f32.mrf.mxu0
        %2495 = vmatprep.mubr.bf16.mxu0 %v2371
        %2496 = vmatmul.mubr.bf16.gmra.mxu0 %v2250
        %v2497 = vpop.f32.mrf.mxu0
        %v2498 = vadd.f32 %v2287, %v2497
        %v2499 = vpop.f32.mrf.mxu0
        %v2500 = vpop.f32.mrf.mxu0
        %v2501 = vadd.f32 %v2287, %v2500
        %v2502 = vpop.f32.mrf.mxu0
        %2503 = vmatprep.mubr.bf16.mxu0 %v2374
        %2504 = vmatmul.mubr.bf16.gmra.mxu0 %v2252
        %v2505 = vpop.f32.mrf.mxu0
        %v2506 = vadd.f32 %v2287, %v2505
        %v2507 = vpop.f32.mrf.mxu0
        %v2508 = vpop.f32.mrf.mxu0
        %v2509 = vadd.f32 %v2287, %v2508
        %v2510 = vpop.f32.mrf.mxu0
        %2511 = vmatprep.mubr.bf16.mxu0 %v2377
        %2512 = vmatmul.mubr.bf16.gmra.mxu0 %v2254
        %v2513 = vpop.f32.mrf.mxu0
        %v2514 = vadd.f32 %v2287, %v2513
        %v2515 = vpop.f32.mrf.mxu0
        %v2516 = vpop.f32.mrf.mxu0
        %v2517 = vadd.f32 %v2287, %v2516
        %v2518 = vpop.f32.mrf.mxu0
        %2519 = vmatprep.mubr.bf16.mxu0 %v2380
        %2520 = vmatmul.mubr.bf16.gmra.mxu0 %v2256
        %v2521 = vpop.f32.mrf.mxu0
        %v2522 = vadd.f32 %v2287, %v2521
        %v2523 = vpop.f32.mrf.mxu0
        %v2524 = vpop.f32.mrf.mxu0
        %v2525 = vadd.f32 %v2287, %v2524
        %v2526 = vpop.f32.mrf.mxu0
        %2527 = vmatprep.mubr.bf16.mxu0 %v2383
        %2528 = vmatmul.mubr.bf16.gmra.mxu0 %v2258
        %v2529 = vpop.f32.mrf.mxu0
        %v2530 = vadd.f32 %v2287, %v2529
        %v2531 = vpop.f32.mrf.mxu0
        %v2532 = vpop.f32.mrf.mxu0
        %v2533 = vadd.f32 %v2287, %v2532
        %v2534 = vpop.f32.mrf.mxu0
        %2535 = vmatprep.mubr.bf16.mxu0 %v2386
        %2536 = vmatmul.mubr.bf16.gmra.mxu0 %v2260
        %v2537 = vpop.f32.mrf.mxu0
        %v2538 = vadd.f32 %v2287, %v2537
        %v2539 = vpop.f32.mrf.mxu0
        %v2540 = vpop.f32.mrf.mxu0
        %v2541 = vadd.f32 %v2287, %v2540
        %v2542 = vpop.f32.mrf.mxu0
        %2543 = vmatprep.mubr.bf16.mxu0 %v2389
        %2544 = vmatmul.mubr.bf16.gmra.mxu0 %v2262
        %v2545 = vpop.f32.mrf.mxu0
        %v2546 = vadd.f32 %v2287, %v2545
        %v2547 = vpop.f32.mrf.mxu0
        %v2548 = vpop.f32.mrf.mxu0
        %v2549 = vadd.f32 %v2287, %v2548
        %v2550 = vpop.f32.mrf.mxu0
        %2551 = vdwg.mxu0
        %v2552 = vmax.f32 %v2426, 0.0
        %v2553 = vmax.f32 %v2429, 0.0
        %v2554 = vmax.f32 %v2434, 0.0
        %v2555 = vmax.f32 %v2437, 0.0
        %v2556 = vmax.f32 %v2442, 0.0
        %v2557 = vmax.f32 %v2445, 0.0
        %v2558 = vmax.f32 %v2450, 0.0
        %v2559 = vmax.f32 %v2453, 0.0
        %v2560 = vmax.f32 %v2458, 0.0
        %v2561 = vmax.f32 %v2461, 0.0
        %v2562 = vmax.f32 %v2466, 0.0
        %v2563 = vmax.f32 %v2469, 0.0
        %v2564 = vmax.f32 %v2474, 0.0
        %v2565 = vmax.f32 %v2477, 0.0
        %v2566 = vmax.f32 %v2482, 0.0
        %v2567 = vmax.f32 %v2485, 0.0
        %v2568 = vmax.f32 %v2490, 0.0
        %v2569 = vmax.f32 %v2493, 0.0
        %v2570 = vmax.f32 %v2498, 0.0
        %v2571 = vmax.f32 %v2501, 0.0
        %v2572 = vmax.f32 %v2506, 0.0
        %v2573 = vmax.f32 %v2509, 0.0
        %v2574 = vmax.f32 %v2514, 0.0
        %v2575 = vmax.f32 %v2517, 0.0
        %v2576 = vmax.f32 %v2522, 0.0
        %v2577 = vmax.f32 %v2525, 0.0
        %v2578 = vmax.f32 %v2530, 0.0
        %v2579 = vmax.f32 %v2533, 0.0
        %v2580 = vmax.f32 %v2538, 0.0
        %v2581 = vmax.f32 %v2541, 0.0
        %v2582 = vmax.f32 %v2546, 0.0
        %v2583 = vmax.f32 %v2549, 0.0
        %v2584 = vpack.c.bf16 %v2553, %v2552
        %v2585 = vpack.c.bf16 %v2555, %v2554
        %v2586 = vpack.c.bf16 %v2557, %v2556
        %v2587 = vpack.c.bf16 %v2559, %v2558
        %v2588 = vpack.c.bf16 %v2561, %v2560
        %v2589 = vpack.c.bf16 %v2563, %v2562
        %v2590 = vpack.c.bf16 %v2565, %v2564
        %v2591 = vpack.c.bf16 %v2567, %v2566
        %v2592 = vpack.c.bf16 %v2569, %v2568
        %v2593 = vpack.c.bf16 %v2571, %v2570
        %v2594 = vpack.c.bf16 %v2573, %v2572
        %v2595 = vpack.c.bf16 %v2575, %v2574
        %v2596 = vpack.c.bf16 %v2577, %v2576
        %v2597 = vpack.c.bf16 %v2579, %v2578
        %v2598 = vpack.c.bf16 %v2581, %v2580
        %v2599 = vpack.c.bf16 %v2583, %v2582
        %v2600 = vld [vmem:[%s5] sm:$0xf]
        %v2601 = vld [vmem:[%s5 + $0x4] sm:$0xf]
        %v2602 = vld [vmem:[%s6] sm:$0x1]
        %v2604 = vlaneseq
        %v2605 = vshrl.u32 %v2604, 7
        %v2606 = vsub.s32 0, %v2605
        %v2607 = vrot.slane %v2602, %v2606
        %v2611 = vunpack.c.l.b16 %v2600
        %v2612 = vunpack.c.l.b16 %v2601
        %v2613 = vpack.c.b16 %v2612, %v2611
        %v2616 = vsel %vm729, %v2584, 0
        %v2619 = vsel %vm729, %v2585, 0
        %v2622 = vsel %vm729, %v2586, 0
        %v2625 = vsel %vm729, %v2587, 0
        %v2628 = vsel %vm729, %v2588, 0
        %v2631 = vsel %vm729, %v2589, 0
        %v2634 = vsel %vm729, %v2590, 0
        %v2637 = vsel %vm729, %v2591, 0
        %v2640 = vsel %vm729, %v2592, 0
        %v2643 = vsel %vm729, %v2593, 0
        %v2646 = vsel %vm729, %v2594, 0
        %v2649 = vsel %vm729, %v2595, 0
        %v2652 = vsel %vm729, %v2596, 0
        %v2655 = vsel %vm729, %v2597, 0
        %v2658 = vsel %vm729, %v2598, 0
        %v2661 = vsel %vm729, %v2599, 0
        %2663 = vmatprep.subr.bf16.mxu0 0
        %2664 = vmatpush1.bf16.msra.mxu0 0
        %2665 = vmatprep.subr.bf16.mxu0 0
        %2666 = vmatpush1.bf16.msra.mxu0 0
        %2667 = vmatprep.subr.bf16.mxu0 0
        %2668 = vmatpush1.bf16.msra.mxu0 0
        %2669 = vmatprep.subr.bf16.mxu0 0
        %2670 = vmatpush1.bf16.msra.mxu0 0
        %2671 = vmatprep.subr.bf16.mxu0 0
        %2672 = vmatpush1.bf16.msra.mxu0 0
        %2673 = vmatprep.subr.bf16.mxu0 0
        %2674 = vmatpush1.bf16.msra.mxu0 0
        %2675 = vmatprep.subr.bf16.mxu0 0
        %2676 = vmatpush1.bf16.msra.mxu0 0
        %2677 = vmatprep.subr.bf16.mxu0 0
        %2678 = vmatpush1.bf16.msra.mxu0 %v2613
        %2679 = vmatprep.subr.bf16.mxu0 0
        %2680 = vmatpush2.bf16.msra.mxu0 0
        %2681 = vmatprep.subr.bf16.mxu0 0
        %2682 = vmatpush2.bf16.msra.mxu0 0
        %2683 = vmatprep.subr.bf16.mxu0 0
        %2684 = vmatpush2.bf16.msra.mxu0 0
        %2685 = vmatprep.subr.bf16.mxu0 0
        %2686 = vmatpush2.bf16.msra.mxu0 0
        %2687 = vmatprep.subr.bf16.mxu0 0
        %2688 = vmatpush2.bf16.msra.mxu0 0
        %2689 = vmatprep.subr.bf16.mxu0 0
        %2690 = vmatpush2.bf16.msra.mxu0 0
        %2691 = vmatprep.subr.bf16.mxu0 0
        %2692 = vmatpush2.bf16.msra.mxu0 0
        %2693 = vmatprep.subr.bf16.mxu0 0
        %2694 = vmatpush2.bf16.msra.mxu0 0
        %2695 = vmatprep.mubr.bf16.mxu0 0
        %2696 = vmatmul.mubr.bf16.gmra.mxu0 %v2616
        %v2697 = vpop.f32.mrf.mxu0
        %v2698 = vadd.f32 %v2607, %v2697
        %v2699 = vpop.f32.mrf.mxu0
        %v2700 = vpop.f32.mrf.mxu0
        %v2701 = vadd.f32 %v2607, %v2700
        %v2702 = vpop.f32.mrf.mxu0
        %2703 = vmatprep.mubr.bf16.mxu0 0
        %2704 = vmatmul.mubr.bf16.gmra.mxu0 %v2619
        %v2705 = vpop.f32.mrf.mxu0
        %v2706 = vadd.f32 %v2607, %v2705
        %v2707 = vpop.f32.mrf.mxu0
        %v2708 = vpop.f32.mrf.mxu0
        %v2709 = vadd.f32 %v2607, %v2708
        %v2710 = vpop.f32.mrf.mxu0
        %2711 = vmatprep.mubr.bf16.mxu0 0
        %2712 = vmatmul.mubr.bf16.gmra.mxu0 %v2622
        %v2713 = vpop.f32.mrf.mxu0
        %v2714 = vadd.f32 %v2607, %v2713
        %v2715 = vpop.f32.mrf.mxu0
        %v2716 = vpop.f32.mrf.mxu0
        %v2717 = vadd.f32 %v2607, %v2716
        %v2718 = vpop.f32.mrf.mxu0
        %2719 = vmatprep.mubr.bf16.mxu0 0
        %2720 = vmatmul.mubr.bf16.gmra.mxu0 %v2625
        %v2721 = vpop.f32.mrf.mxu0
        %v2722 = vadd.f32 %v2607, %v2721
        %v2723 = vpop.f32.mrf.mxu0
        %v2724 = vpop.f32.mrf.mxu0
        %v2725 = vadd.f32 %v2607, %v2724
        %v2726 = vpop.f32.mrf.mxu0
        %2727 = vmatprep.mubr.bf16.mxu0 0
        %2728 = vmatmul.mubr.bf16.gmra.mxu0 %v2628
        %v2729 = vpop.f32.mrf.mxu0
        %v2730 = vadd.f32 %v2607, %v2729
        %v2731 = vpop.f32.mrf.mxu0
        %v2732 = vpop.f32.mrf.mxu0
        %v2733 = vadd.f32 %v2607, %v2732
        %v2734 = vpop.f32.mrf.mxu0
        %2735 = vmatprep.mubr.bf16.mxu0 0
        %2736 = vmatmul.mubr.bf16.gmra.mxu0 %v2631
        %v2737 = vpop.f32.mrf.mxu0
        %v2738 = vadd.f32 %v2607, %v2737
        %v2739 = vpop.f32.mrf.mxu0
        %v2740 = vpop.f32.mrf.mxu0
        %v2741 = vadd.f32 %v2607, %v2740
        %v2742 = vpop.f32.mrf.mxu0
        %2743 = vmatprep.mubr.bf16.mxu0 0
        %2744 = vmatmul.mubr.bf16.gmra.mxu0 %v2634
        %v2745 = vpop.f32.mrf.mxu0
        %v2746 = vadd.f32 %v2607, %v2745
        %v2747 = vpop.f32.mrf.mxu0
        %v2748 = vpop.f32.mrf.mxu0
        %v2749 = vadd.f32 %v2607, %v2748
        %v2750 = vpop.f32.mrf.mxu0
        %2751 = vmatprep.mubr.bf16.mxu0 0
        %2752 = vmatmul.mubr.bf16.gmra.mxu0 %v2637
        %v2753 = vpop.f32.mrf.mxu0
        %v2754 = vadd.f32 %v2607, %v2753
        %v2755 = vpop.f32.mrf.mxu0
        %v2756 = vpop.f32.mrf.mxu0
        %v2757 = vadd.f32 %v2607, %v2756
        %v2758 = vpop.f32.mrf.mxu0
        %2759 = vmatprep.mubr.bf16.mxu0 0
        %2760 = vmatmul.mubr.bf16.gmra.mxu0 %v2640
        %v2761 = vpop.f32.mrf.mxu0
        %v2762 = vadd.f32 %v2607, %v2761
        %v2763 = vpop.f32.mrf.mxu0
        %v2764 = vpop.f32.mrf.mxu0
        %v2765 = vadd.f32 %v2607, %v2764
        %v2766 = vpop.f32.mrf.mxu0
        %2767 = vmatprep.mubr.bf16.mxu0 0
        %2768 = vmatmul.mubr.bf16.gmra.mxu0 %v2643
        %v2769 = vpop.f32.mrf.mxu0
        %v2770 = vadd.f32 %v2607, %v2769
        %v2771 = vpop.f32.mrf.mxu0
        %v2772 = vpop.f32.mrf.mxu0
        %v2773 = vadd.f32 %v2607, %v2772
        %v2774 = vpop.f32.mrf.mxu0
        %2775 = vmatprep.mubr.bf16.mxu0 0
        %2776 = vmatmul.mubr.bf16.gmra.mxu0 %v2646
        %v2777 = vpop.f32.mrf.mxu0
        %v2778 = vadd.f32 %v2607, %v2777
        %v2779 = vpop.f32.mrf.mxu0
        %v2780 = vpop.f32.mrf.mxu0
        %v2781 = vadd.f32 %v2607, %v2780
        %v2782 = vpop.f32.mrf.mxu0
        %2783 = vmatprep.mubr.bf16.mxu0 0
        %2784 = vmatmul.mubr.bf16.gmra.mxu0 %v2649
        %v2785 = vpop.f32.mrf.mxu0
        %v2786 = vadd.f32 %v2607, %v2785
        %v2787 = vpop.f32.mrf.mxu0
        %v2788 = vpop.f32.mrf.mxu0
        %v2789 = vadd.f32 %v2607, %v2788
        %v2790 = vpop.f32.mrf.mxu0
        %2791 = vmatprep.mubr.bf16.mxu0 0
        %2792 = vmatmul.mubr.bf16.gmra.mxu0 %v2652
        %v2793 = vpop.f32.mrf.mxu0
        %v2794 = vadd.f32 %v2607, %v2793
        %v2795 = vpop.f32.mrf.mxu0
        %v2796 = vpop.f32.mrf.mxu0
        %v2797 = vadd.f32 %v2607, %v2796
        %v2798 = vpop.f32.mrf.mxu0
        %2799 = vmatprep.mubr.bf16.mxu0 0
        %2800 = vmatmul.mubr.bf16.gmra.mxu0 %v2655
        %v2801 = vpop.f32.mrf.mxu0
        %v2802 = vadd.f32 %v2607, %v2801
        %v2803 = vpop.f32.mrf.mxu0
        %v2804 = vpop.f32.mrf.mxu0
        %v2805 = vadd.f32 %v2607, %v2804
        %v2806 = vpop.f32.mrf.mxu0
        %2807 = vmatprep.mubr.bf16.mxu0 0
        %2808 = vmatmul.mubr.bf16.gmra.mxu0 %v2658
        %v2809 = vpop.f32.mrf.mxu0
        %v2810 = vadd.f32 %v2607, %v2809
        %v2811 = vpop.f32.mrf.mxu0
        %v2812 = vpop.f32.mrf.mxu0
        %v2813 = vadd.f32 %v2607, %v2812
        %v2814 = vpop.f32.mrf.mxu0
        %2815 = vmatprep.mubr.bf16.mxu0 0
        %2816 = vmatmul.mubr.bf16.gmra.mxu0 %v2661
        %v2817 = vpop.f32.mrf.mxu0
        %v2818 = vadd.f32 %v2607, %v2817
        %v2819 = vpop.f32.mrf.mxu0
        %v2820 = vpop.f32.mrf.mxu0
        %v2821 = vadd.f32 %v2607, %v2820
        %v2822 = vpop.f32.mrf.mxu0
        %2823 = vdwg.mxu0
        %v2824 = vld [vmem:[%s7] sm:$0xf]
        %v2825 = vld [vmem:[%s7 + $0x4] sm:$0xf]
        %v2826 = vld [vmem:[%s7 + $0x8] sm:$0xf]
        %v2827 = vld [vmem:[%s7 + $0xc] sm:$0xf]
        %v2828 = vld [vmem:[%s8] sm:$0x1]
        %v2830 = vlaneseq
        %v2831 = vshrl.u32 %v2830, 7
        %v2832 = vsub.s32 0, %v2831
        %v2833 = vrot.slane %v2828, %v2832
        %v2839 = vunpack.c.l.b16 %v2824
        %v2840 = vunpack.c.l.b16 %v2825
        %v2841 = vunpack.c.l.b16 %v2826
        %v2842 = vunpack.c.l.b16 %v2827
        %v2843 = vpack.c.b16 %v2840, %v2839
        %v2844 = vpack.c.b16 %v2842, %v2841
        %2847 = vmatprep.subr.bf16.mxu0 0
        %2848 = vmatpush1.bf16.msra.mxu0 0
        %2849 = vmatprep.subr.bf16.mxu0 0
        %2850 = vmatpush1.bf16.msra.mxu0 0
        %2851 = vmatprep.subr.bf16.mxu0 0
        %2852 = vmatpush1.bf16.msra.mxu0 0
        %2853 = vmatprep.subr.bf16.mxu0 0
        %2854 = vmatpush1.bf16.msra.mxu0 0
        %2855 = vmatprep.subr.bf16.mxu0 0
        %2856 = vmatpush1.bf16.msra.mxu0 0
        %2857 = vmatprep.subr.bf16.mxu0 0
        %2858 = vmatpush1.bf16.msra.mxu0 0
        %2859 = vmatprep.subr.bf16.mxu0 0
        %2860 = vmatpush1.bf16.msra.mxu0 %v2844
        %2861 = vmatprep.subr.bf16.mxu0 0
        %2862 = vmatpush1.bf16.msra.mxu0 %v2843
        %2863 = vmatprep.subr.bf16.mxu0 0
        %2864 = vmatpush2.bf16.msra.mxu0 0
        %2865 = vmatprep.subr.bf16.mxu0 0
        %2866 = vmatpush2.bf16.msra.mxu0 0
        %2867 = vmatprep.subr.bf16.mxu0 0
        %2868 = vmatpush2.bf16.msra.mxu0 0
        %2869 = vmatprep.subr.bf16.mxu0 0
        %2870 = vmatpush2.bf16.msra.mxu0 0
        %2871 = vmatprep.subr.bf16.mxu0 0
        %2872 = vmatpush2.bf16.msra.mxu0 0
        %2873 = vmatprep.subr.bf16.mxu0 0
        %2874 = vmatpush2.bf16.msra.mxu0 0
        %2875 = vmatprep.subr.bf16.mxu0 0
        %2876 = vmatpush2.bf16.msra.mxu0 0
        %2877 = vmatprep.subr.bf16.mxu0 0
        %2878 = vmatpush2.bf16.msra.mxu0 0
        %2879 = vmatprep.mubr.bf16.mxu0 0
        %2880 = vmatmul.mubr.bf16.gmra.mxu0 %v489
        %v2881 = vpop.f32.mrf.mxu0
        %v2882 = vadd.f32 %v2833, %v2881
        %v2883 = vpop.f32.mrf.mxu0
        %v2884 = vpop.f32.mrf.mxu0
        %v2885 = vadd.f32 %v2833, %v2884
        %v2886 = vpop.f32.mrf.mxu0
        %2887 = vmatprep.mubr.bf16.mxu0 0
        %2888 = vmatmul.mubr.bf16.gmra.mxu0 %v492
        %v2889 = vpop.f32.mrf.mxu0
        %v2890 = vadd.f32 %v2833, %v2889
        %v2891 = vpop.f32.mrf.mxu0
        %v2892 = vpop.f32.mrf.mxu0
        %v2893 = vadd.f32 %v2833, %v2892
        %v2894 = vpop.f32.mrf.mxu0
        %2895 = vmatprep.mubr.bf16.mxu0 0
        %2896 = vmatmul.mubr.bf16.gmra.mxu0 %v495
        %v2897 = vpop.f32.mrf.mxu0
        %v2898 = vadd.f32 %v2833, %v2897
        %v2899 = vpop.f32.mrf.mxu0
        %v2900 = vpop.f32.mrf.mxu0
        %v2901 = vadd.f32 %v2833, %v2900
        %v2902 = vpop.f32.mrf.mxu0
        %2903 = vmatprep.mubr.bf16.mxu0 0
        %2904 = vmatmul.mubr.bf16.gmra.mxu0 %v498
        %v2905 = vpop.f32.mrf.mxu0
        %v2906 = vadd.f32 %v2833, %v2905
        %v2907 = vpop.f32.mrf.mxu0
        %v2908 = vpop.f32.mrf.mxu0
        %v2909 = vadd.f32 %v2833, %v2908
        %v2910 = vpop.f32.mrf.mxu0
        %2911 = vmatprep.mubr.bf16.mxu0 0
        %2912 = vmatmul.mubr.bf16.gmra.mxu0 %v501
        %v2913 = vpop.f32.mrf.mxu0
        %v2914 = vadd.f32 %v2833, %v2913
        %v2915 = vpop.f32.mrf.mxu0
        %v2916 = vpop.f32.mrf.mxu0
        %v2917 = vadd.f32 %v2833, %v2916
        %v2918 = vpop.f32.mrf.mxu0
        %2919 = vmatprep.mubr.bf16.mxu0 0
        %2920 = vmatmul.mubr.bf16.gmra.mxu0 %v504
        %v2921 = vpop.f32.mrf.mxu0
        %v2922 = vadd.f32 %v2833, %v2921
        %v2923 = vpop.f32.mrf.mxu0
        %v2924 = vpop.f32.mrf.mxu0
        %v2925 = vadd.f32 %v2833, %v2924
        %v2926 = vpop.f32.mrf.mxu0
        %2927 = vmatprep.mubr.bf16.mxu0 0
        %2928 = vmatmul.mubr.bf16.gmra.mxu0 %v507
        %v2929 = vpop.f32.mrf.mxu0
        %v2930 = vadd.f32 %v2833, %v2929
        %v2931 = vpop.f32.mrf.mxu0
        %v2932 = vpop.f32.mrf.mxu0
        %v2933 = vadd.f32 %v2833, %v2932
        %v2934 = vpop.f32.mrf.mxu0
        %2935 = vmatprep.mubr.bf16.mxu0 0
        %2936 = vmatmul.mubr.bf16.gmra.mxu0 %v510
        %v2937 = vpop.f32.mrf.mxu0
        %v2938 = vadd.f32 %v2833, %v2937
        %v2939 = vpop.f32.mrf.mxu0
        %v2940 = vpop.f32.mrf.mxu0
        %v2941 = vadd.f32 %v2833, %v2940
        %v2942 = vpop.f32.mrf.mxu0
        %2943 = vmatprep.mubr.bf16.mxu0 0
        %2944 = vmatmul.mubr.bf16.gmra.mxu0 %v513
        %v2945 = vpop.f32.mrf.mxu0
        %v2946 = vadd.f32 %v2833, %v2945
        %v2947 = vpop.f32.mrf.mxu0
        %v2948 = vpop.f32.mrf.mxu0
        %v2949 = vadd.f32 %v2833, %v2948
        %v2950 = vpop.f32.mrf.mxu0
        %2951 = vmatprep.mubr.bf16.mxu0 0
        %2952 = vmatmul.mubr.bf16.gmra.mxu0 %v516
        %v2953 = vpop.f32.mrf.mxu0
        %v2954 = vadd.f32 %v2833, %v2953
        %v2955 = vpop.f32.mrf.mxu0
        %v2956 = vpop.f32.mrf.mxu0
        %v2957 = vadd.f32 %v2833, %v2956
        %v2958 = vpop.f32.mrf.mxu0
        %2959 = vmatprep.mubr.bf16.mxu0 0
        %2960 = vmatmul.mubr.bf16.gmra.mxu0 %v519
        %v2961 = vpop.f32.mrf.mxu0
        %v2962 = vadd.f32 %v2833, %v2961
        %v2963 = vpop.f32.mrf.mxu0
        %v2964 = vpop.f32.mrf.mxu0
        %v2965 = vadd.f32 %v2833, %v2964
        %v2966 = vpop.f32.mrf.mxu0
        %2967 = vmatprep.mubr.bf16.mxu0 0
        %2968 = vmatmul.mubr.bf16.gmra.mxu0 %v522
        %v2969 = vpop.f32.mrf.mxu0
        %v2970 = vadd.f32 %v2833, %v2969
        %v2971 = vpop.f32.mrf.mxu0
        %v2972 = vpop.f32.mrf.mxu0
        %v2973 = vadd.f32 %v2833, %v2972
        %v2974 = vpop.f32.mrf.mxu0
        %2975 = vmatprep.mubr.bf16.mxu0 0
        %2976 = vmatmul.mubr.bf16.gmra.mxu0 %v525
        %v2977 = vpop.f32.mrf.mxu0
        %v2978 = vadd.f32 %v2833, %v2977
        %v2979 = vpop.f32.mrf.mxu0
        %v2980 = vpop.f32.mrf.mxu0
        %v2981 = vadd.f32 %v2833, %v2980
        %v2982 = vpop.f32.mrf.mxu0
        %2983 = vmatprep.mubr.bf16.mxu0 0
        %2984 = vmatmul.mubr.bf16.gmra.mxu0 %v528
        %v2985 = vpop.f32.mrf.mxu0
        %v2986 = vadd.f32 %v2833, %v2985
        %v2987 = vpop.f32.mrf.mxu0
        %v2988 = vpop.f32.mrf.mxu0
        %v2989 = vadd.f32 %v2833, %v2988
        %v2990 = vpop.f32.mrf.mxu0
        %2991 = vmatprep.mubr.bf16.mxu0 0
        %2992 = vmatmul.mubr.bf16.gmra.mxu0 %v531
        %v2993 = vpop.f32.mrf.mxu0
        %v2994 = vadd.f32 %v2833, %v2993
        %v2995 = vpop.f32.mrf.mxu0
        %v2996 = vpop.f32.mrf.mxu0
        %v2997 = vadd.f32 %v2833, %v2996
        %v2998 = vpop.f32.mrf.mxu0
        %2999 = vmatprep.mubr.bf16.mxu0 0
        %3000 = vmatmul.mubr.bf16.gmra.mxu0 %v534
        %v3001 = vpop.f32.mrf.mxu0
        %v3002 = vadd.f32 %v2833, %v3001
        %v3003 = vpop.f32.mrf.mxu0
        %v3004 = vpop.f32.mrf.mxu0
        %v3005 = vadd.f32 %v2833, %v3004
        %v3006 = vpop.f32.mrf.mxu0
        %3007 = vdwg.mxu0
        %v3008 = vadd.f32 %v2698, %v2882
        %v3009 = vadd.f32 %v2701, %v2885
        %v3010 = vadd.f32 %v2706, %v2890
        %v3011 = vadd.f32 %v2709, %v2893
        %v3012 = vadd.f32 %v2714, %v2898
        %v3013 = vadd.f32 %v2717, %v2901
        %v3014 = vadd.f32 %v2722, %v2906
        %v3015 = vadd.f32 %v2725, %v2909
        %v3016 = vadd.f32 %v2730, %v2914
        %v3017 = vadd.f32 %v2733, %v2917
        %v3018 = vadd.f32 %v2738, %v2922
        %v3019 = vadd.f32 %v2741, %v2925
        %v3020 = vadd.f32 %v2746, %v2930
        %v3021 = vadd.f32 %v2749, %v2933
        %v3022 = vadd.f32 %v2754, %v2938
        %v3023 = vadd.f32 %v2757, %v2941
        %v3024 = vadd.f32 %v2762, %v2946
        %v3025 = vadd.f32 %v2765, %v2949
        %v3026 = vadd.f32 %v2770, %v2954
        %v3027 = vadd.f32 %v2773, %v2957
        %v3028 = vadd.f32 %v2778, %v2962
        %v3029 = vadd.f32 %v2781, %v2965
        %v3030 = vadd.f32 %v2786, %v2970
        %v3031 = vadd.f32 %v2789, %v2973
        %v3032 = vadd.f32 %v2794, %v2978
        %v3033 = vadd.f32 %v2797, %v2981
        %v3034 = vadd.f32 %v2802, %v2986
        %v3035 = vadd.f32 %v2805, %v2989
        %v3036 = vadd.f32 %v2810, %v2994
        %v3037 = vadd.f32 %v2813, %v2997
        %v3038 = vadd.f32 %v2818, %v3002
        %v3039 = vadd.f32 %v2821, %v3005
        %v3040 = vmax.f32 %v3008, 0.0
        %v3041 = vmax.f32 %v3009, 0.0
        %v3042 = vmax.f32 %v3010, 0.0
        %v3043 = vmax.f32 %v3011, 0.0
        %v3044 = vmax.f32 %v3012, 0.0
        %v3045 = vmax.f32 %v3013, 0.0
        %v3046 = vmax.f32 %v3014, 0.0
        %v3047 = vmax.f32 %v3015, 0.0
        %v3048 = vmax.f32 %v3016, 0.0
        %v3049 = vmax.f32 %v3017, 0.0
        %v3050 = vmax.f32 %v3018, 0.0
        %v3051 = vmax.f32 %v3019, 0.0
        %v3052 = vmax.f32 %v3020, 0.0
        %v3053 = vmax.f32 %v3021, 0.0
        %v3054 = vmax.f32 %v3022, 0.0
        %v3055 = vmax.f32 %v3023, 0.0
        %v3056 = vmax.f32 %v3024, 0.0
        %v3057 = vmax.f32 %v3025, 0.0
        %v3058 = vmax.f32 %v3026, 0.0
        %v3059 = vmax.f32 %v3027, 0.0
        %v3060 = vmax.f32 %v3028, 0.0
        %v3061 = vmax.f32 %v3029, 0.0
        %v3062 = vmax.f32 %v3030, 0.0
        %v3063 = vmax.f32 %v3031, 0.0
        %v3064 = vmax.f32 %v3032, 0.0
        %v3065 = vmax.f32 %v3033, 0.0
        %v3066 = vmax.f32 %v3034, 0.0
        %v3067 = vmax.f32 %v3035, 0.0
        %v3068 = vmax.f32 %v3036, 0.0
        %v3069 = vmax.f32 %v3037, 0.0
        %v3070 = vmax.f32 %v3038, 0.0
        %v3071 = vmax.f32 %v3039, 0.0
        %3072 = vst.msk [vmem:[%s350] sm:$0xff] %vm2100, %v3040
        %3073 = vst.msk [vmem:[%s350 + $0x8] sm:$0xff] %vm2100, %v3041
        %3074 = vst.msk [vmem:[%s350 + $0x10] sm:$0xff] %vm2100, %v3042
        %3075 = vst.msk [vmem:[%s350 + $0x18] sm:$0xff] %vm2100, %v3043
        %3076 = vst.msk [vmem:[%s350 + $0x20] sm:$0xff] %vm2100, %v3044
        %3077 = vst.msk [vmem:[%s350 + $0x28] sm:$0xff] %vm2100, %v3045
        %3078 = vst.msk [vmem:[%s350 + $0x30] sm:$0xff] %vm2100, %v3046
        %3079 = vst.msk [vmem:[%s350 + $0x38] sm:$0xff] %vm2100, %v3047
        %3080 = vst.msk [vmem:[%s350 + $0x40] sm:$0xff] %vm2100, %v3048
        %3081 = vst.msk [vmem:[%s350 + $0x48] sm:$0xff] %vm2100, %v3049
        %3082 = vst.msk [vmem:[%s350 + $0x50] sm:$0xff] %vm2100, %v3050
        %3083 = vst.msk [vmem:[%s350 + $0x58] sm:$0xff] %vm2100, %v3051
        %3084 = vst.msk [vmem:[%s350 + $0x60] sm:$0xff] %vm2100, %v3052
        %3085 = vst.msk [vmem:[%s350 + $0x68] sm:$0xff] %vm2100, %v3053
        %3086 = vst.msk [vmem:[%s350 + $0x70] sm:$0xff] %vm2100, %v3054
        %3087 = vst.msk [vmem:[%s350 + $0x78] sm:$0xff] %vm2100, %v3055
        %3088 = vst.msk [vmem:[%s350 + $0x80] sm:$0xff] %vm2100, %v3056
        %3089 = vst.msk [vmem:[%s350 + $0x88] sm:$0xff] %vm2100, %v3057
        %3090 = vst.msk [vmem:[%s350 + $0x90] sm:$0xff] %vm2100, %v3058
        %3091 = vst.msk [vmem:[%s350 + $0x98] sm:$0xff] %vm2100, %v3059
        %3092 = vst.msk [vmem:[%s350 + $0xa0] sm:$0xff] %vm2100, %v3060
        %3093 = vst.msk [vmem:[%s350 + $0xa8] sm:$0xff] %vm2100, %v3061
        %3094 = vst.msk [vmem:[%s350 + $0xb0] sm:$0xff] %vm2100, %v3062
        %3095 = vst.msk [vmem:[%s350 + $0xb8] sm:$0xff] %vm2100, %v3063
        %3096 = vst.msk [vmem:[%s350 + $0xc0] sm:$0xff] %vm2100, %v3064
        %3097 = vst.msk [vmem:[%s350 + $0xc8] sm:$0xff] %vm2100, %v3065
        %3098 = vst.msk [vmem:[%s350 + $0xd0] sm:$0xff] %vm2100, %v3066
        %3099 = vst.msk [vmem:[%s350 + $0xd8] sm:$0xff] %vm2100, %v3067
        %3100 = vst.msk [vmem:[%s350 + $0xe0] sm:$0xff] %vm2100, %v3068
        %3101 = vst.msk [vmem:[%s350 + $0xe8] sm:$0xff] %vm2100, %v3069
        %3102 = vst.msk [vmem:[%s350 + $0xf0] sm:$0xff] %vm2100, %v3070
        %3103 = vst.msk [vmem:[%s350 + $0xf8] sm:$0xff] %vm2100, %v3071
        %s3104 = sand.u32 %s228, 1
        %s3105 = scalar_lea.sflag [#allocation5], %s3104
        %s3106 = sand.u32 %s228, 1
        %s3107 = smul.addr %s3106, 256
        %s3108 = scalar_lea.vmem [#allocation6], %s3107
        // Predicated region
        $region61: #{tpu_custom_call.1} parent=55 // pred_check
          %p3109 = pneg %p238
        $region62: #{tpu_custom_call.1} parent=55 // pred_check_branch
          %3111 = sbr.rel (%p3109) target = $region64
        $region63: #{tpu_custom_call.1} parent=55 // pred_region
          %s3113 = ssub.s32 4096, 4096
          %3114 = vsyncadd %s3105, %s3113
          %s3115 = smul.addr %s26, 32
          %s3116 = smul.addr %s3115, 128
          %s3117 = scalar_lea.hbm %s9, %s3116
          %s3118 = sshll.u32 %s3108, 4
          %s3119 = int_to_ptr.vmem [resolvable:$true] %s3118
          %3124 = dma.vmem_to_hbm [thread:$0]  %s3119, 4096, %s3117, %s3105, 128, 128, 8
        $region64: #{tpu_custom_call.1} parent=55 // pred_fallthru
          _
      $region56: #{tpu_custom_call.1} parent=5 // pred_fallthru
        _
      %p3125 = scmp.le.s32.totalorder 2, %s21
      // Predicated region
      $region65: #{tpu_custom_call.1} parent=5 // pred_check
        %p3126 = pneg %p3125
      $region66: #{tpu_custom_call.1} parent=5 // pred_check_branch
        %3128 = sbr.rel (%p3126) target = $region68
      $region67: #{tpu_custom_call.1} parent=5 // pred_region
        %s3129 = ssub.s32 %s21, 2
        // Predicated region
        $region69: #{tpu_custom_call.1} parent=67 // pred_check
          %p3130 = pneg %p244
        $region70: #{tpu_custom_call.1} parent=67 // pred_check_branch
          %3132 = sbr.rel (%p3130) target = $region72
        $region71: #{tpu_custom_call.1} parent=67 // pred_region
          %s3133 = sand.u32 %s229, 1
          %s3134 = scalar_lea.sflag [#allocation5], %s3133
          %s3135 = sand.u32 %s229, 1
          %s3136 = smul.addr %s3135, 256
          %s3137 = scalar_lea.vmem [#allocation6], %s3136
          %3138 = dma.done %s3134, 4096
        $region72: #{tpu_custom_call.1} parent=67 // pred_fallthru
          _
      $region68: #{tpu_custom_call.1} parent=5 // pred_fallthru
        _
    $region6: #{tpu_custom_call.1} parent=1 // loop_footer
      %s25 = sadd.s32 1, %s21
    $region7: #{tpu_custom_call.1} parent=1 // loop_footer_branch
      %20 = sbr.rel target = $region3
    $region8: #{tpu_custom_call.1} parent=1 // loop_exit
      _
    %3139 = vsyncpa [#allocation4], 1
    %s3140 = scalar_lea.sflag [#allocation4], 1
    %3141 = vsyncpa %s3140, 1
    %3142 = vsyncpa [#allocation5], 1
    %s3143 = scalar_lea.sflag [#allocation5], 1
    %3144 = vsyncpa %s3143, 1

// kernel: tpu_custom_call.1
$region0: #{tpu_custom_call.1}
  #allocation0 [shape = 'u32[]', space=smem, size = 0x4, offset = 0x4, fixed_abs, tag = 'smem constant byte address 0x4 - core index']
  #allocation1 [shape = 'u32[144,128]{1,0:T(1,128)}', space=vmem, size = 0x12000, scoped, tag = 'internal scratch']
  #allocation2 [shape = 'f32[18,18,16]{2,1,0:T(8,128)}', space=vmem, size = 0x36000, scoped, tag = 'scratch operand']
  %s0 = inlined_call_operand.hbm [shape: bf16[2,16,16,32], index: 0, kind: input, shape index: {}]
  %s1 = inlined_call_operand.vmem [shape: bf16[32,16], index: 1, kind: input, shape index: {}]
  %s2 = inlined_call_operand.vmem [shape: f32[1,16], index: 2, kind: input, shape index: {}]
  %s3 = inlined_call_operand.vmem [shape: bf16[144,16], index: 3, kind: input, shape index: {}]
  %s4 = inlined_call_operand.vmem [shape: f32[1,16], index: 4, kind: input, shape index: {}]
  %s5 = inlined_call_operand.vmem [shape: bf16[16,64], index: 5, kind: input, shape index: {}]
  %s6 = inlined_call_operand.vmem [shape: f32[1,64], index: 6, kind: input, shape index: {}]
  %s7 = inlined_call_operand.vmem [shape: bf16[32,64], index: 7, kind: input, shape index: {}]
  %s8 = inlined_call_operand.vmem [shape: f32[1,64], index: 8, kind: input, shape index: {}]
  %s9 = inlined_call_operand.hbm [shape: f32[2,16,16,64], index: 9, kind: output, shape index: {}]
  %s10 = sld [smem:[#allocation0]]
  $region73: #{tpu_custom_call.1} parent=0
    _
  %s12 = ssub.s32 1, %s10
  %s13 = scalar_select 0, %s12, %s10
  $region1: #{tpu_custom_call.1} parent=0
    #allocation3 [shape = 'u8[131072]{0}', space=vmem, size = 0x20000, scoped, tag = 'input window, operand 0']
    #allocation4 [shape = 's32[2]{0}', space=sflag, size = 0x8, scoped, tag = 'scoped memory for tpu_custom_call.1']
    #allocation5 [shape = 's32[2]{0}', space=sflag, size = 0x8, scoped, tag = 'scoped memory for tpu_custom_call.1']
    #allocation6 [shape = 'u8[262144]{0}', space=vmem, size = 0x40000, scoped, tag = 'output window, operand 0']
    %14 = vsyncpa [#allocation4], 0
    %s15 = scalar_lea.sflag [#allocation4], 1
    %16 = vsyncpa %s15, 0
    %17 = vsyncpa [#allocation5], 0
    %s18 = scalar_lea.sflag [#allocation5], 1
    %19 = vsyncpa %s18, 0
    loop: start=0, step=1, limit=4
    $region2: #{tpu_custom_call.1} parent=1 // loop_pre_header
      _
    $region3: #{tpu_custom_call.1} parent=1 // loop_header
      %s21 = sphi 0, %s25
      %p22 = scmp.ge.s32.totalorder %s21, 4
      %s31 = sphi 0, %s33
      %s34 = sphi 0, %s31
      %s35 = sphi 0, %s34
      %s51 = sphi 0, %s35
      %s55 = sphi 0, %s55
      %s57 = sphi 0, %s55
      %s58 = sphi 0, %s57
      %s72 = sphi 0, %s58
      %s76 = sphi 0, %s76
      %s78 = sphi 0, %s76
      %s79 = sphi 0, %s78
      %s93 = sphi 0, %s79
      %s97 = sphi 0, %s97
      %s99 = sphi 0, %s97
      %s100 = sphi 0, %s99
      %s114 = sphi 0, %s100
      %s118 = sphi 0, %s118
      %s120 = sphi 0, %s118
      %s121 = sphi 0, %s120
      %s135 = sphi 0, %s121
      %s139 = sphi 0, %s139
      %s141 = sphi 0, %s139
      %s142 = sphi 0, %s141
      %s156 = sphi 0, %s142
      %s160 = sphi 0, %s160
      %s162 = sphi 0, %s160
      %s163 = sphi 0, %s162
      %s177 = sphi 0, %s163
      %s181 = sphi 0, %s181
      %s183 = sphi 0, %s181
      %s184 = sphi 0, %s183
      %s198 = sphi 0, %s184
      %s202 = sphi 0, %s202
      %s204 = sphi 0, %s202
      %s205 = sphi 0, %s204
      %s219 = sphi 0, %s205
      %s225 = sphi 0, %s227
      %s228 = sphi 0, %s225
      %s229 = sphi 0, %s228
      %s245 = sphi 0, %s229
    $region4: #{tpu_custom_call.1} parent=1 // loop_header_branch
      %24 = sbr.rel (%p22) target = $region8
    $region5: #{tpu_custom_call.1} parent=1 // loop_body
      %s26 = ssub.s32 %s21, 1
      %s27 = ssub.s32 %s21, 2
      %s28 = sadd.s32 %s21, 1
      %s29 = ssub.s32 %s21, %s28
      %p30 = scmp.eq.s32.totalorder %s29, 0
      %s32 = sadd.s32 %s31, 1
      %s33 = scalar_select %p30, %s31, %s32
      %p36 = pneg %p30
      %p37 = scmp.eq.s32.totalorder %s21, 1
      %p38 = por %p36, %p37
      %p39 = scmp.ne.s32.totalorder %s31, %s34
      %p40 = scmp.eq.s32.totalorder %s21, 0
      %p41 = por %p39, %p40
      %p42 = scmp.ne.s32.totalorder %s31, %s34
      %p43 = scmp.eq.s32.totalorder %s26, 1
      %p44 = por %p42, %p43
      %p45 = scmp.ne.s32.totalorder %s34, %s35
      %p46 = scmp.eq.s32.totalorder %s26, 0
      %p47 = por %p45, %p46
      %p48 = scmp.ne.s32.totalorder %s34, %s35
      %p49 = scmp.eq.s32.totalorder %s27, 1
      %p50 = por %p48, %p49
      %p52 = scmp.ne.s32.totalorder %s35, %s51
      %p53 = scmp.eq.s32.totalorder %s27, 0
      %p54 = por %p52, %p53
      %s56 = sadd.s32 %s55, 1
      %p59 = scmp.eq.s32.totalorder %s21, 1
      %p60 = scmp.ne.s32.totalorder %s55, %s57
      %p61 = scmp.eq.s32.totalorder %s21, 0
      %p62 = por %p60, %p61
      %p63 = scmp.ne.s32.totalorder %s55, %s57
      %p64 = scmp.eq.s32.totalorder %s26, 1
      %p65 = por %p63, %p64
      %p66 = scmp.ne.s32.totalorder %s57, %s58
      %p67 = scmp.eq.s32.totalorder %s26, 0
      %p68 = por %p66, %p67
      %p69 = scmp.ne.s32.totalorder %s57, %s58
      %p70 = scmp.eq.s32.totalorder %s27, 1
      %p71 = por %p69, %p70
      %p73 = scmp.ne.s32.totalorder %s58, %s72
      %p74 = scmp.eq.s32.totalorder %s27, 0
      %p75 = por %p73, %p74
      %s77 = sadd.s32 %s76, 1
      %p80 = scmp.eq.s32.totalorder %s21, 1
      %p81 = scmp.ne.s32.totalorder %s76, %s78
      %p82 = scmp.eq.s32.totalorder %s21, 0
      %p83 = por %p81, %p82
      %p84 = scmp.ne.s32.totalorder %s76, %s78
      %p85 = scmp.eq.s32.totalorder %s26, 1
      %p86 = por %p84, %p85
      %p87 = scmp.ne.s32.totalorder %s78, %s79
      %p88 = scmp.eq.s32.totalorder %s26, 0
      %p89 = por %p87, %p88
      %p90 = scmp.ne.s32.totalorder %s78, %s79
      %p91 = scmp.eq.s32.totalorder %s27, 1
      %p92 = por %p90, %p91
      %p94 = scmp.ne.s32.totalorder %s79, %s93
      %p95 = scmp.eq.s32.totalorder %s27, 0
      %p96 = por %p94, %p95
      %s98 = sadd.s32 %s97, 1
      %p101 = scmp.eq.s32.totalorder %s21, 1
      %p102 = scmp.ne.s32.totalorder %s97, %s99
      %p103 = scmp.eq.s32.totalorder %s21, 0
      %p104 = por %p102, %p103
      %p105 = scmp.ne.s32.totalorder %s97, %s99
      %p106 = scmp.eq.s32.totalorder %s26, 1
      %p107 = por %p105, %p106
      %p108 = scmp.ne.s32.totalorder %s99, %s100
      %p109 = scmp.eq.s32.totalorder %s26, 0
      %p110 = por %p108, %p109
      %p111 = scmp.ne.s32.totalorder %s99, %s100
      %p112 = scmp.eq.s32.totalorder %s27, 1
      %p113 = por %p111, %p112
      %p115 = scmp.ne.s32.totalorder %s100, %s114
      %p116 = scmp.eq.s32.totalorder %s27, 0
      %p117 = por %p115, %p116
      %s119 = sadd.s32 %s118, 1
      %p122 = scmp.eq.s32.totalorder %s21, 1
      %p123 = scmp.ne.s32.totalorder %s118, %s120
      %p124 = scmp.eq.s32.totalorder %s21, 0
      %p125 = por %p123, %p124
      %p126 = scmp.ne.s32.totalorder %s118, %s120
      %p127 = scmp.eq.s32.totalorder %s26, 1
      %p128 = por %p126, %p127
      %p129 = scmp.ne.s32.totalorder %s120, %s121
      %p130 = scmp.eq.s32.totalorder %s26, 0
      %p131 = por %p129, %p130
      %p132 = scmp.ne.s32.totalorder %s120, %s121
      %p133 = scmp.eq.s32.totalorder %s27, 1
      %p134 = por %p132, %p133
      %p136 = scmp.ne.s32.totalorder %s121, %s135
      %p137 = scmp.eq.s32.totalorder %s27, 0
      %p138 = por %p136, %p137
      %s140 = sadd.s32 %s139, 1
      %p143 = scmp.eq.s32.totalorder %s21, 1
      %p144 = scmp.ne.s32.totalorder %s139, %s141
      %p145 = scmp.eq.s32.totalorder %s21, 0
      %p146 = por %p144, %p145
      %p147 = scmp.ne.s32.totalorder %s139, %s141
      %p148 = scmp.eq.s32.totalorder %s26, 1
      %p149 = por %p147, %p148
      %p150 = scmp.ne.s32.totalorder %s141, %s142
      %p151 = scmp.eq.s32.totalorder %s26, 0
      %p152 = por %p150, %p151
      %p153 = scmp.ne.s32.totalorder %s141, %s142
      %p154 = scmp.eq.s32.totalorder %s27, 1
      %p155 = por %p153, %p154
      %p157 = scmp.ne.s32.totalorder %s142, %s156
      %p158 = scmp.eq.s32.totalorder %s27, 0
      %p159 = por %p157, %p158
      %s161 = sadd.s32 %s160, 1
      %p164 = scmp.eq.s32.totalorder %s21, 1
      %p165 = scmp.ne.s32.totalorder %s160, %s162
      %p166 = scmp.eq.s32.totalorder %s21, 0
      %p167 = por %p165, %p166
      %p168 = scmp.ne.s32.totalorder %s160, %s162
      %p169 = scmp.eq.s32.totalorder %s26, 1
      %p170 = por %p168, %p169
      %p171 = scmp.ne.s32.totalorder %s162, %s163
      %p172 = scmp.eq.s32.totalorder %s26, 0
      %p173 = por %p171, %p172
      %p174 = scmp.ne.s32.totalorder %s162, %s163
      %p175 = scmp.eq.s32.totalorder %s27, 1
      %p176 = por %p174, %p175
      %p178 = scmp.ne.s32.totalorder %s163, %s177
      %p179 = scmp.eq.s32.totalorder %s27, 0
      %p180 = por %p178, %p179
      %s182 = sadd.s32 %s181, 1
      %p185 = scmp.eq.s32.totalorder %s21, 1
      %p186 = scmp.ne.s32.totalorder %s181, %s183
      %p187 = scmp.eq.s32.totalorder %s21, 0
      %p188 = por %p186, %p187
      %p189 = scmp.ne.s32.totalorder %s181, %s183
      %p190 = scmp.eq.s32.totalorder %s26, 1
      %p191 = por %p189, %p190
      %p192 = scmp.ne.s32.totalorder %s183, %s184
      %p193 = scmp.eq.s32.totalorder %s26, 0
      %p194 = por %p192, %p193
      %p195 = scmp.ne.s32.totalorder %s183, %s184
      %p196 = scmp.eq.s32.totalorder %s27, 1
      %p197 = por %p195, %p196
      %p199 = scmp.ne.s32.totalorder %s184, %s198
      %p200 = scmp.eq.s32.totalorder %s27, 0
      %p201 = por %p199, %p200
      %s203 = sadd.s32 %s202, 1
      %p206 = scmp.eq.s32.totalorder %s21, 1
      %p207 = scmp.ne.s32.totalorder %s202, %s204
      %p208 = scmp.eq.s32.totalorder %s21, 0
      %p209 = por %p207, %p208
      %p210 = scmp.ne.s32.totalorder %s202, %s204
      %p211 = scmp.eq.s32.totalorder %s26, 1
      %p212 = por %p210, %p211
      %p213 = scmp.ne.s32.totalorder %s204, %s205
      %p214 = scmp.eq.s32.totalorder %s26, 0
      %p215 = por %p213, %p214
      %p216 = scmp.ne.s32.totalorder %s204, %s205
      %p217 = scmp.eq.s32.totalorder %s27, 1
      %p218 = por %p216, %p217
      %p220 = scmp.ne.s32.totalorder %s205, %s219
      %p221 = scmp.eq.s32.totalorder %s27, 0
      %p222 = por %p220, %p221
      %s223 = ssub.s32 %s21, %s28
      %p224 = scmp.eq.s32.totalorder %s223, 0
      %s226 = sadd.s32 %s225, 1
      %s227 = scalar_select %p224, %s225, %s226
      %p230 = pneg %p224
      %p231 = scmp.eq.s32.totalorder %s21, 1
      %p232 = por %p230, %p231
      %p233 = scmp.ne.s32.totalorder %s225, %s228
      %p234 = scmp.eq.s32.totalorder %s21, 0
      %p235 = por %p233, %p234
      %p236 = scmp.ne.s32.totalorder %s225, %s228
      %p237 = scmp.eq.s32.totalorder %s26, 1
      %p238 = por %p236, %p237
      %p239 = scmp.ne.s32.totalorder %s228, %s229
      %p240 = scmp.eq.s32.totalorder %s26, 0
      %p241 = por %p239, %p240
      %p242 = scmp.ne.s32.totalorder %s228, %s229
      %p243 = scmp.eq.s32.totalorder %s27, 1
      %p244 = por %p242, %p243
      %p246 = scmp.ne.s32.totalorder %s229, %s245
      %p247 = scmp.eq.s32.totalorder %s27, 0
      %p248 = por %p246, %p247
      %p249 = scmp.le.s32.totalorder 1, %s21
      %p250 = scmp.lt.s32.totalorder %s21, 3
      %p251 = pnand %p249, %p250
      %p252 = pneg %p251
      // Predicated region
      $region9: #{tpu_custom_call.1} parent=5 // pred_check
        _
      $region10: #{tpu_custom_call.1} parent=5 // pred_check_branch
        %254 = sbr.rel (%p251) target = $region12
      $region11: #{tpu_custom_call.1} parent=5 // pred_region
        %s255 = ssub.s32 %s21, 1
        // Predicated region
        $region13: #{tpu_custom_call.1} parent=11 // pred_check
          %p256 = pneg %p68
        $region14: #{tpu_custom_call.1} parent=11 // pred_check_branch
          %258 = sbr.rel (%p256) target = $region16
        $region15: #{tpu_custom_call.1} parent=11 // pred_region
          _
        $region16: #{tpu_custom_call.1} parent=11 // pred_fallthru
          _
        // Predicated region
        $region17: #{tpu_custom_call.1} parent=11 // pred_check
          %p259 = pneg %p89
        $region18: #{tpu_custom_call.1} parent=11 // pred_check_branch
          %261 = sbr.rel (%p259) target = $region20
        $region19: #{tpu_custom_call.1} parent=11 // pred_region
          _
        $region20: #{tpu_custom_call.1} parent=11 // pred_fallthru
          _
        // Predicated region
        $region21: #{tpu_custom_call.1} parent=11 // pred_check
          %p262 = pneg %p110
        $region22: #{tpu_custom_call.1} parent=11 // pred_check_branch
          %264 = sbr.rel (%p262) target = $region24
        $region23: #{tpu_custom_call.1} parent=11 // pred_region
          _
        $region24: #{tpu_custom_call.1} parent=11 // pred_fallthru
          _
        // Predicated region
        $region25: #{tpu_custom_call.1} parent=11 // pred_check
          %p265 = pneg %p131
        $region26: #{tpu_custom_call.1} parent=11 // pred_check_branch
          %267 = sbr.rel (%p265) target = $region28
        $region27: #{tpu_custom_call.1} parent=11 // pred_region
          _
        $region28: #{tpu_custom_call.1} parent=11 // pred_fallthru
          _
        // Predicated region
        $region29: #{tpu_custom_call.1} parent=11 // pred_check
          %p268 = pneg %p152
        $region30: #{tpu_custom_call.1} parent=11 // pred_check_branch
          %270 = sbr.rel (%p268) target = $region32
        $region31: #{tpu_custom_call.1} parent=11 // pred_region
          _
        $region32: #{tpu_custom_call.1} parent=11 // pred_fallthru
          _
        // Predicated region
        $region33: #{tpu_custom_call.1} parent=11 // pred_check
          %p271 = pneg %p173
        $region34: #{tpu_custom_call.1} parent=11 // pred_check_branch
          %273 = sbr.rel (%p271) target = $region36
        $region35: #{tpu_custom_call.1} parent=11 // pred_region
          _
        $region36: #{tpu_custom_call.1} parent=11 // pred_fallthru
          _
        // Predicated region
        $region37: #{tpu_custom_call.1} parent=11 // pred_check
          %p274 = pneg %p194
        $region38: #{tpu_custom_call.1} parent=11 // pred_check_branch
          %276 = sbr.rel (%p274) target = $region40
        $region39: #{tpu_custom_call.1} parent=11 // pred_region
          _
        $region40: #{tpu_custom_call.1} parent=11 // pred_fallthru
          _
        // Predicated region
        $region41: #{tpu_custom_call.1} parent=11 // pred_check
          %p277 = pneg %p215
        $region42: #{tpu_custom_call.1} parent=11 // pred_check_branch
          %279 = sbr.rel (%p277) target = $region44
        $region43: #{tpu_custom_call.1} parent=11 // pred_region
          _
        $region44: #{tpu_custom_call.1} parent=11 // pred_fallthru
          _
      $region12: #{tpu_custom_call.1} parent=5 // pred_fallthru
        _
      %p280 = scmp.lt.s32.totalorder %s21, 2
      // Predicated region
      $region45: #{tpu_custom_call.1} parent=5 // pred_check
        %p281 = pneg %p280
      $region46: #{tpu_custom_call.1} parent=5 // pred_check_branch
        %283 = sbr.rel (%p281) target = $region48
      $region47: #{tpu_custom_call.1} parent=5 // pred_region
        // Predicated region
        $region49: #{tpu_custom_call.1} parent=47 // pred_check
          %p284 = pneg %p41
        $region50: #{tpu_custom_call.1} parent=47 // pred_check_branch
          %286 = sbr.rel (%p284) target = $region52
        $region51: #{tpu_custom_call.1} parent=47 // pred_region
          %s287 = sand.u32 %s31, 1
          %s288 = scalar_lea.sflag [#allocation4], %s287
          %s289 = sand.u32 %s31, 1
          %s290 = smul.addr %s289, 128
          %s291 = scalar_lea.vmem [#allocation3], %s290
          %s293 = ssub.s32 2048, 2048
          %294 = vsyncadd %s288, %s293
          %s295 = smul.addr %s21, 32
          %s296 = smul.addr %s295, 64
          %s297 = scalar_lea.hbm %s0, %s296
          %s298 = sshll.u32 %s291, 4
          %s299 = int_to_ptr.vmem [resolvable:$true] %s298
          %304 = dma.hbm_to_vmem [thread:$0]  %s297, 2048, %s299, %s288, 64, 64, 4
        $region52: #{tpu_custom_call.1} parent=47 // pred_fallthru
          _
      $region48: #{tpu_custom_call.1} parent=5 // pred_fallthru
        _
      %p305 = scmp.le.s32.totalorder 1, %s21
      %p306 = scmp.lt.s32.totalorder %s21, 3
      %p307 = pnand %p305, %p306
      %p308 = pneg %p307
      // Predicated region
      $region53: #{tpu_custom_call.1} parent=5 // pred_check
        _
      $region54: #{tpu_custom_call.1} parent=5 // pred_check_branch
        %310 = sbr.rel (%p307) target = $region56
      $region55: #{tpu_custom_call.1} parent=5 // pred_region
        %s311 = ssub.s32 %s21, 1
        %s312 = sand.u32 %s34, 1
        %s313 = scalar_lea.sflag [#allocation4], %s312
        %s314 = sand.u32 %s34, 1
        %s315 = smul.addr %s314, 128
        %s316 = scalar_lea.vmem [#allocation3], %s315
        // Predicated region
        $region57: #{tpu_custom_call.1} parent=55 // pred_check
          %p317 = pneg %p47
        $region58: #{tpu_custom_call.1} parent=55 // pred_check_branch
          %319 = sbr.rel (%p317) target = $region60
        $region59: #{tpu_custom_call.1} parent=55 // pred_region
          %320 = dma.done %s313, 2048
        $region60: #{tpu_custom_call.1} parent=55 // pred_fallthru
          _
        %s321 = sand.u32 %s34, 1
        %s322 = scalar_lea.sflag [#allocation4], %s321
        %s323 = sand.u32 %s34, 1
        %s324 = smul.addr %s323, 128
        %s325 = scalar_lea.vmem [#allocation3], %s324
        %p326 = pneg %p47
        %p327 = pneg %p44
        %p328 = pneg %p68
        %p329 = pneg %p65
        %p330 = pneg %p89
        %p331 = pneg %p86
        %p332 = pneg %p110
        %p333 = pneg %p107
        %p334 = pneg %p131
        %p335 = pneg %p128
        %p336 = pneg %p152
        %p337 = pneg %p149
        %p338 = pneg %p173
        %p339 = pneg %p170
        %p340 = pneg %p194
        %p341 = pneg %p191
        %p342 = pneg %p215
        %p343 = pneg %p212
        %p344 = pneg %p241
        %p345 = pneg %p238
        %s346 = sand.u32 %s228, 1
        %s347 = scalar_lea.sflag [#allocation5], %s346
        %s348 = sand.u32 %s228, 1
        %s349 = smul.addr %s348, 256
        %s350 = scalar_lea.vmem [#allocation6], %s349
        %v352 = vld [vmem:[%s316] sm:$0xf]
        %v353 = vld [vmem:[%s316 + $0x4] sm:$0xf]
        %v354 = vld [vmem:[%s316 + $0x8] sm:$0xf]
        %v355 = vld [vmem:[%s316 + $0xc] sm:$0xf]
        %v356 = vld [vmem:[%s316 + $0x10] sm:$0xf]
        %v357 = vld [vmem:[%s316 + $0x14] sm:$0xf]
        %v358 = vld [vmem:[%s316 + $0x18] sm:$0xf]
        %v359 = vld [vmem:[%s316 + $0x1c] sm:$0xf]
        %v360 = vld [vmem:[%s316 + $0x20] sm:$0xf]
        %v361 = vld [vmem:[%s316 + $0x24] sm:$0xf]
        %v362 = vld [vmem:[%s316 + $0x28] sm:$0xf]
        %v363 = vld [vmem:[%s316 + $0x2c] sm:$0xf]
        %v364 = vld [vmem:[%s316 + $0x30] sm:$0xf]
        %v365 = vld [vmem:[%s316 + $0x34] sm:$0xf]
        %v366 = vld [vmem:[%s316 + $0x38] sm:$0xf]
        %v367 = vld [vmem:[%s316 + $0x3c] sm:$0xf]
        %v368 = vld [vmem:[%s316 + $0x40] sm:$0xf]
        %v369 = vld [vmem:[%s316 + $0x44] sm:$0xf]
        %v370 = vld [vmem:[%s316 + $0x48] sm:$0xf]
        %v371 = vld [vmem:[%s316 + $0x4c] sm:$0xf]
        %v372 = vld [vmem:[%s316 + $0x50] sm:$0xf]
        %v373 = vld [vmem:[%s316 + $0x54] sm:$0xf]
        %v374 = vld [vmem:[%s316 + $0x58] sm:$0xf]
        %v375 = vld [vmem:[%s316 + $0x5c] sm:$0xf]
        %v376 = vld [vmem:[%s316 + $0x60] sm:$0xf]
        %v377 = vld [vmem:[%s316 + $0x64] sm:$0xf]
        %v378 = vld [vmem:[%s316 + $0x68] sm:$0xf]
        %v379 = vld [vmem:[%s316 + $0x6c] sm:$0xf]
        %v380 = vld [vmem:[%s316 + $0x70] sm:$0xf]
        %v381 = vld [vmem:[%s316 + $0x74] sm:$0xf]
        %v382 = vld [vmem:[%s316 + $0x78] sm:$0xf]
        %v383 = vld [vmem:[%s316 + $0x7c] sm:$0xf]
        %v384 = vld [vmem:[%s1] sm:$0xf]
        %v385 = vld [vmem:[%s1 + $0x4] sm:$0xf]
        %v386 = vld [vmem:[%s1 + $0x8] sm:$0xf]
        %v387 = vld [vmem:[%s1 + $0xc] sm:$0xf]
        %v388 = vld [vmem:[%s2] sm:$0x1]
        %v390 = vlaneseq
        %v391 = vshrl.u32 %v390, 7
        %v392 = vsub.s32 0, %v391
        %v393 = vrot.slane %v388, %v392
        %v427 = vunpack.c.l.b16 %v352
        %v428 = vunpack.c.l.b16 %v353
        %v429 = vunpack.c.l.b16 %v354
        %v430 = vunpack.c.l.b16 %v355
        %v431 = vunpack.c.l.b16 %v356
        %v432 = vunpack.c.l.b16 %v357
        %v433 = vunpack.c.l.b16 %v358
        %v434 = vunpack.c.l.b16 %v359
        %v435 = vunpack.c.l.b16 %v360
        %v436 = vunpack.c.l.b16 %v361
        %v437 = vunpack.c.l.b16 %v362
        %v438 = vunpack.c.l.b16 %v363
        %v439 = vunpack.c.l.b16 %v364
        %v440 = vunpack.c.l.b16 %v365
        %v441 = vunpack.c.l.b16 %v366
        %v442 = vunpack.c.l.b16 %v367
        %v443 = vunpack.c.l.b16 %v368
        %v444 = vunpack.c.l.b16 %v369
        %v445 = vunpack.c.l.b16 %v370
        %v446 = vunpack.c.l.b16 %v371
        %v447 = vunpack.c.l.b16 %v372
        %v448 = vunpack.c.l.b16 %v373
        %v449 = vunpack.c.l.b16 %v374
        %v450 = vunpack.c.l.b16 %v375
        %v451 = vunpack.c.l.b16 %v376
        %v452 = vunpack.c.l.b16 %v377
        %v453 = vunpack.c.l.b16 %v378
        %v454 = vunpack.c.l.b16 %v379
        %v455 = vunpack.c.l.b16 %v380
        %v456 = vunpack.c.l.b16 %v381
        %v457 = vunpack.c.l.b16 %v382
        %v458 = vunpack.c.l.b16 %v383
        %v459 = vpack.c.b16 %v428, %v427
        %v460 = vpack.c.b16 %v430, %v429
        %v461 = vpack.c.b16 %v432, %v431
        %v462 = vpack.c.b16 %v434, %v433
        %v463 = vpack.c.b16 %v436, %v435
        %v464 = vpack.c.b16 %v438, %v437
        %v465 = vpack.c.b16 %v440, %v439
        %v466 = vpack.c.b16 %v442, %v441
        %v467 = vpack.c.b16 %v444, %v443
        %v468 = vpack.c.b16 %v446, %v445
        %v469 = vpack.c.b16 %v448, %v447
        %v470 = vpack.c.b16 %v450, %v449
        %v471 = vpack.c.b16 %v452, %v451
        %v472 = vpack.c.b16 %v454, %v453
        %v473 = vpack.c.b16 %v456, %v455
        %v474 = vpack.c.b16 %v458, %v457
        %v479 = vunpack.c.l.b16 %v384
        %v480 = vunpack.c.l.b16 %v385
        %v481 = vunpack.c.l.b16 %v386
        %v482 = vunpack.c.l.b16 %v387
        %v483 = vpack.c.b16 %v480, %v479
        %v484 = vpack.c.b16 %v482, %v481
        %vm487 = vcmask 261120
        %v489 = vsel %vm487, %v459, 0
        %v492 = vsel %vm487, %v460, 0
        %v495 = vsel %vm487, %v461, 0
        %v498 = vsel %vm487, %v462, 0
        %v501 = vsel %vm487, %v463, 0
        %v504 = vsel %vm487, %v464, 0
        %v507 = vsel %vm487, %v465, 0
        %v510 = vsel %vm487, %v466, 0
        %v513 = vsel %vm487, %v467, 0
        %v516 = vsel %vm487, %v468, 0
        %v519 = vsel %vm487, %v469, 0
        %v522 = vsel %vm487, %v470, 0
        %v525 = vsel %vm487, %v471, 0
        %v528 = vsel %vm487, %v472, 0
        %v531 = vsel %vm487, %v473, 0
        %v534 = vsel %vm487, %v474, 0
        %536 = vmatprep.subr.bf16.mxu0 0
        %537 = vmatpush1.bf16.msra.mxu0 0
        %538 = vmatprep.subr.bf16.mxu0 0
        %539 = vmatpush1.bf16.msra.mxu0 0
        %540 = vmatprep.subr.bf16.mxu0 0
        %541 = vmatpush1.bf16.msra.mxu0 0
        %542 = vmatprep.subr.bf16.mxu0 0
        %543 = vmatpush1.bf16.msra.mxu0 0
        %544 = vmatprep.subr.bf16.mxu0 0
        %545 = vmatpush1.bf16.msra.mxu0 0
        %546 = vmatprep.subr.bf16.mxu0 0
        %547 = vmatpush1.bf16.msra.mxu0 0
        %548 = vmatprep.subr.bf16.mxu0 0
        %549 = vmatpush1.bf16.msra.mxu0 %v484
        %550 = vmatprep.subr.bf16.mxu0 0
        %551 = vmatpush1.bf16.msra.mxu0 %v483
        %552 = vmatprep.subr.bf16.mxu0 0
        %553 = vmatpush2.bf16.msra.mxu0 0
        %554 = vmatprep.subr.bf16.mxu0 0
        %555 = vmatpush2.bf16.msra.mxu0 0
        %556 = vmatprep.subr.bf16.mxu0 0
        %557 = vmatpush2.bf16.msra.mxu0 0
        %558 = vmatprep.subr.bf16.mxu0 0
        %559 = vmatpush2.bf16.msra.mxu0 0
        %560 = vmatprep.subr.bf16.mxu0 0
        %561 = vmatpush2.bf16.msra.mxu0 0
        %562 = vmatprep.subr.bf16.mxu0 0
        %563 = vmatpush2.bf16.msra.mxu0 0
        %564 = vmatprep.subr.bf16.mxu0 0
        %565 = vmatpush2.bf16.msra.mxu0 0
        %566 = vmatprep.subr.bf16.mxu0 0
        %567 = vmatpush2.bf16.msra.mxu0 0
        %568 = vmatprep.mubr.bf16.mxu0 0
        %569 = vmatmul.mubr.bf16.gmra.mxu0 %v489
        %v570 = vpop.f32.mrf.mxu0
        %v571 = vadd.f32 %v393, %v570
        %v572 = vpop.f32.mrf.mxu0
        %v573 = vpop.f32.mrf.mxu0
        %v574 = vadd.f32 %v393, %v573
        %v575 = vpop.f32.mrf.mxu0
        %576 = vmatprep.mubr.bf16.mxu0 0
        %577 = vmatmul.mubr.bf16.gmra.mxu0 %v492
        %v578 = vpop.f32.mrf.mxu0
        %v579 = vadd.f32 %v393, %v578
        %v580 = vpop.f32.mrf.mxu0
        %v581 = vpop.f32.mrf.mxu0
        %v582 = vadd.f32 %v393, %v581
        %v583 = vpop.f32.mrf.mxu0
        %584 = vmatprep.mubr.bf16.mxu0 0
        %585 = vmatmul.mubr.bf16.gmra.mxu0 %v495
        %v586 = vpop.f32.mrf.mxu0
        %v587 = vadd.f32 %v393, %v586
        %v588 = vpop.f32.mrf.mxu0
        %v589 = vpop.f32.mrf.mxu0
        %v590 = vadd.f32 %v393, %v589
        %v591 = vpop.f32.mrf.mxu0
        %592 = vmatprep.mubr.bf16.mxu0 0
        %593 = vmatmul.mubr.bf16.gmra.mxu0 %v498
        %v594 = vpop.f32.mrf.mxu0
        %v595 = vadd.f32 %v393, %v594
        %v596 = vpop.f32.mrf.mxu0
        %v597 = vpop.f32.mrf.mxu0
        %v598 = vadd.f32 %v393, %v597
        %v599 = vpop.f32.mrf.mxu0
        %600 = vmatprep.mubr.bf16.mxu0 0
        %601 = vmatmul.mubr.bf16.gmra.mxu0 %v501
        %v602 = vpop.f32.mrf.mxu0
        %v603 = vadd.f32 %v393, %v602
        %v604 = vpop.f32.mrf.mxu0
        %v605 = vpop.f32.mrf.mxu0
        %v606 = vadd.f32 %v393, %v605
        %v607 = vpop.f32.mrf.mxu0
        %608 = vmatprep.mubr.bf16.mxu0 0
        %609 = vmatmul.mubr.bf16.gmra.mxu0 %v504
        %v610 = vpop.f32.mrf.mxu0
        %v611 = vadd.f32 %v393, %v610
        %v612 = vpop.f32.mrf.mxu0
        %v613 = vpop.f32.mrf.mxu0
        %v614 = vadd.f32 %v393, %v613
        %v615 = vpop.f32.mrf.mxu0
        %616 = vmatprep.mubr.bf16.mxu0 0
        %617 = vmatmul.mubr.bf16.gmra.mxu0 %v507
        %v618 = vpop.f32.mrf.mxu0
        %v619 = vadd.f32 %v393, %v618
        %v620 = vpop.f32.mrf.mxu0
        %v621 = vpop.f32.mrf.mxu0
        %v622 = vadd.f32 %v393, %v621
        %v623 = vpop.f32.mrf.mxu0
        %624 = vmatprep.mubr.bf16.mxu0 0
        %625 = vmatmul.mubr.bf16.gmra.mxu0 %v510
        %v626 = vpop.f32.mrf.mxu0
        %v627 = vadd.f32 %v393, %v626
        %v628 = vpop.f32.mrf.mxu0
        %v629 = vpop.f32.mrf.mxu0
        %v630 = vadd.f32 %v393, %v629
        %v631 = vpop.f32.mrf.mxu0
        %632 = vmatprep.mubr.bf16.mxu0 0
        %633 = vmatmul.mubr.bf16.gmra.mxu0 %v513
        %v634 = vpop.f32.mrf.mxu0
        %v635 = vadd.f32 %v393, %v634
        %v636 = vpop.f32.mrf.mxu0
        %v637 = vpop.f32.mrf.mxu0
        %v638 = vadd.f32 %v393, %v637
        %v639 = vpop.f32.mrf.mxu0
        %640 = vmatprep.mubr.bf16.mxu0 0
        %641 = vmatmul.mubr.bf16.gmra.mxu0 %v516
        %v642 = vpop.f32.mrf.mxu0
        %v643 = vadd.f32 %v393, %v642
        %v644 = vpop.f32.mrf.mxu0
        %v645 = vpop.f32.mrf.mxu0
        %v646 = vadd.f32 %v393, %v645
        %v647 = vpop.f32.mrf.mxu0
        %648 = vmatprep.mubr.bf16.mxu0 0
        %649 = vmatmul.mubr.bf16.gmra.mxu0 %v519
        %v650 = vpop.f32.mrf.mxu0
        %v651 = vadd.f32 %v393, %v650
        %v652 = vpop.f32.mrf.mxu0
        %v653 = vpop.f32.mrf.mxu0
        %v654 = vadd.f32 %v393, %v653
        %v655 = vpop.f32.mrf.mxu0
        %656 = vmatprep.mubr.bf16.mxu0 0
        %657 = vmatmul.mubr.bf16.gmra.mxu0 %v522
        %v658 = vpop.f32.mrf.mxu0
        %v659 = vadd.f32 %v393, %v658
        %v660 = vpop.f32.mrf.mxu0
        %v661 = vpop.f32.mrf.mxu0
        %v662 = vadd.f32 %v393, %v661
        %v663 = vpop.f32.mrf.mxu0
        %664 = vmatprep.mubr.bf16.mxu0 0
        %665 = vmatmul.mubr.bf16.gmra.mxu0 %v525
        %v666 = vpop.f32.mrf.mxu0
        %v667 = vadd.f32 %v393, %v666
        %v668 = vpop.f32.mrf.mxu0
        %v669 = vpop.f32.mrf.mxu0
        %v670 = vadd.f32 %v393, %v669
        %v671 = vpop.f32.mrf.mxu0
        %672 = vmatprep.mubr.bf16.mxu0 0
        %673 = vmatmul.mubr.bf16.gmra.mxu0 %v528
        %v674 = vpop.f32.mrf.mxu0
        %v675 = vadd.f32 %v393, %v674
        %v676 = vpop.f32.mrf.mxu0
        %v677 = vpop.f32.mrf.mxu0
        %v678 = vadd.f32 %v393, %v677
        %v679 = vpop.f32.mrf.mxu0
        %680 = vmatprep.mubr.bf16.mxu0 0
        %681 = vmatmul.mubr.bf16.gmra.mxu0 %v531
        %v682 = vpop.f32.mrf.mxu0
        %v683 = vadd.f32 %v393, %v682
        %v684 = vpop.f32.mrf.mxu0
        %v685 = vpop.f32.mrf.mxu0
        %v686 = vadd.f32 %v393, %v685
        %v687 = vpop.f32.mrf.mxu0
        %688 = vmatprep.mubr.bf16.mxu0 0
        %689 = vmatmul.mubr.bf16.gmra.mxu0 %v534
        %v690 = vpop.f32.mrf.mxu0
        %v691 = vadd.f32 %v393, %v690
        %v692 = vpop.f32.mrf.mxu0
        %v693 = vpop.f32.mrf.mxu0
        %v694 = vadd.f32 %v393, %v693
        %v695 = vpop.f32.mrf.mxu0
        %696 = vdwg.mxu0
        %v697 = vmax.f32 %v571, 0.0
        %v698 = vmax.f32 %v574, 0.0
        %v699 = vmax.f32 %v579, 0.0
        %v700 = vmax.f32 %v582, 0.0
        %v701 = vmax.f32 %v587, 0.0
        %v702 = vmax.f32 %v590, 0.0
        %v703 = vmax.f32 %v595, 0.0
        %v704 = vmax.f32 %v598, 0.0
        %v705 = vmax.f32 %v603, 0.0
        %v706 = vmax.f32 %v606, 0.0
        %v707 = vmax.f32 %v611, 0.0
        %v708 = vmax.f32 %v614, 0.0
        %v709 = vmax.f32 %v619, 0.0
        %v710 = vmax.f32 %v622, 0.0
        %v711 = vmax.f32 %v627, 0.0
        %v712 = vmax.f32 %v630, 0.0
        %v713 = vmax.f32 %v635, 0.0
        %v714 = vmax.f32 %v638, 0.0
        %v715 = vmax.f32 %v643, 0.0
        %v716 = vmax.f32 %v646, 0.0
        %v717 = vmax.f32 %v651, 0.0
        %v718 = vmax.f32 %v654, 0.0
        %v719 = vmax.f32 %v659, 0.0
        %v720 = vmax.f32 %v662, 0.0
        %v721 = vmax.f32 %v667, 0.0
        %v722 = vmax.f32 %v670, 0.0
        %v723 = vmax.f32 %v675, 0.0
        %v724 = vmax.f32 %v678, 0.0
        %v725 = vmax.f32 %v683, 0.0
        %v726 = vmax.f32 %v686, 0.0
        %v727 = vmax.f32 %v691, 0.0
        %v728 = vmax.f32 %v694, 0.0
        %vm729 = vcmask 130048
        %730 = vst.msk [vmem:[#allocation2] sm:$0xff] %vm729, 0.0
        %731 = vst.msk [vmem:[#allocation2 + $0x8] sm:$0xff] %vm729, 0.0
        %vm732 = vcmask 123904
        %733 = vst.msk [vmem:[#allocation2 + $0x10] sm:$0x3] %vm732, 0.0
        %734 = vst.msk [vmem:[#allocation2 + $0x18] sm:$0xff] %vm729, 0.0
        %735 = vst.msk [vmem:[#allocation2 + $0x20] sm:$0xff] %vm729, 0.0
        %736 = vst.msk [vmem:[#allocation2 + $0x28] sm:$0x3] %vm732, 0.0
        %737 = vst.msk [vmem:[#allocation2 + $0x30] sm:$0xff] %vm729, 0.0
        %738 = vst.msk [vmem:[#allocation2 + $0x38] sm:$0xff] %vm729, 0.0
        %739 = vst.msk [vmem:[#allocation2 + $0x40] sm:$0x3] %vm732, 0.0
        %740 = vst.msk [vmem:[#allocation2 + $0x48] sm:$0xff] %vm729, 0.0
        %741 = vst.msk [vmem:[#allocation2 + $0x50] sm:$0xff] %vm729, 0.0
        %742 = vst.msk [vmem:[#allocation2 + $0x58] sm:$0x3] %vm732, 0.0
        %743 = vst.msk [vmem:[#allocation2 + $0x60] sm:$0xff] %vm729, 0.0
        %744 = vst.msk [vmem:[#allocation2 + $0x68] sm:$0xff] %vm729, 0.0
        %745 = vst.msk [vmem:[#allocation2 + $0x70] sm:$0x3] %vm732, 0.0
        %746 = vst.msk [vmem:[#allocation2 + $0x78] sm:$0xff] %vm729, 0.0
        %747 = vst.msk [vmem:[#allocation2 + $0x80] sm:$0xff] %vm729, 0.0
        %748 = vst.msk [vmem:[#allocation2 + $0x88] sm:$0x3] %vm732, 0.0
        %749 = vst.msk [vmem:[#allocation2 + $0x90] sm:$0xff] %vm729, 0.0
        %750 = vst.msk [vmem:[#allocation2 + $0x98] sm:$0xff] %vm729, 0.0
        %751 = vst.msk [vmem:[#allocation2 + $0xa0] sm:$0x3] %vm732, 0.0
        %752 = vst.msk [vmem:[#allocation2 + $0xa8] sm:$0xff] %vm729, 0.0
        %753 = vst.msk [vmem:[#allocation2 + $0xb0] sm:$0xff] %vm729, 0.0
        %754 = vst.msk [vmem:[#allocation2 + $0xb8] sm:$0x3] %vm732, 0.0
        %755 = vst.msk [vmem:[#allocation2 + $0xc0] sm:$0xff] %vm729, 0.0
        %756 = vst.msk [vmem:[#allocation2 + $0xc8] sm:$0xff] %vm729, 0.0
        %757 = vst.msk [vmem:[#allocation2 + $0xd0] sm:$0x3] %vm732, 0.0
        %758 = vst.msk [vmem:[#allocation2 + $0xd8] sm:$0xff] %vm729, 0.0
        %759 = vst.msk [vmem:[#allocation2 + $0xe0] sm:$0xff] %vm729, 0.0
        %760 = vst.msk [vmem:[#allocation2 + $0xe8] sm:$0x3] %vm732, 0.0
        %761 = vst.msk [vmem:[#allocation2 + $0xf0] sm:$0xff] %vm729, 0.0
        %762 = vst.msk [vmem:[#allocation2 + $0xf8] sm:$0xff] %vm729, 0.0
        %763 = vst.msk [vmem:[#allocation2 + $0x100] sm:$0x3] %vm732, 0.0
        %764 = vst.msk [vmem:[#allocation2 + $0x108] sm:$0xff] %vm729, 0.0
        %765 = vst.msk [vmem:[#allocation2 + $0x110] sm:$0xff] %vm729, 0.0
        %766 = vst.msk [vmem:[#allocation2 + $0x118] sm:$0x3] %vm732, 0.0
        %767 = vst.msk [vmem:[#allocation2 + $0x120] sm:$0xff] %vm729, 0.0
        %768 = vst.msk [vmem:[#allocation2 + $0x128] sm:$0xff] %vm729, 0.0
        %769 = vst.msk [vmem:[#allocation2 + $0x130] sm:$0x3] %vm732, 0.0
        %770 = vst.msk [vmem:[#allocation2 + $0x138] sm:$0xff] %vm729, 0.0
        %771 = vst.msk [vmem:[#allocation2 + $0x140] sm:$0xff] %vm729, 0.0
        %772 = vst.msk [vmem:[#allocation2 + $0x148] sm:$0x3] %vm732, 0.0
        %773 = vst.msk [vmem:[#allocation2 + $0x150] sm:$0xff] %vm729, 0.0
        %774 = vst.msk [vmem:[#allocation2 + $0x158] sm:$0xff] %vm729, 0.0
        %775 = vst.msk [vmem:[#allocation2 + $0x160] sm:$0x3] %vm732, 0.0
        %776 = vst.msk [vmem:[#allocation2 + $0x168] sm:$0xff] %vm729, 0.0
        %777 = vst.msk [vmem:[#allocation2 + $0x170] sm:$0xff] %vm729, 0.0
        %778 = vst.msk [vmem:[#allocation2 + $0x178] sm:$0x3] %vm732, 0.0
        %779 = vst.msk [vmem:[#allocation2 + $0x180] sm:$0xff] %vm729, 0.0
        %780 = vst.msk [vmem:[#allocation2 + $0x188] sm:$0xff] %vm729, 0.0
        %781 = vst.msk [vmem:[#allocation2 + $0x190] sm:$0x3] %vm732, 0.0
        %782 = vst.msk [vmem:[#allocation2 + $0x198] sm:$0xff] %vm729, 0.0
        %783 = vst.msk [vmem:[#allocation2 + $0x1a0] sm:$0xff] %vm729, 0.0
        %784 = vst.msk [vmem:[#allocation2 + $0x1a8] sm:$0x3] %vm732, 0.0
        %s785 = scalar_lea.vmem [#allocation2], 24
        %786 = vst.msk [vmem:[%s785 + $0x1] sm:$0xff] %vm729, %v697
        %787 = vst.msk [vmem:[%s785 + $0x9] sm:$0xff] %vm729, %v698
        %788 = vst.msk [vmem:[%s785 + $0x19] sm:$0xff] %vm729, %v699
        %789 = vst.msk [vmem:[%s785 + $0x21] sm:$0xff] %vm729, %v700
        %790 = vst.msk [vmem:[%s785 + $0x31] sm:$0xff] %vm729, %v701
        %791 = vst.msk [vmem:[%s785 + $0x39] sm:$0xff] %vm729, %v702
        %792 = vst.msk [vmem:[%s785 + $0x49] sm:$0xff] %vm729, %v703
        %793 = vst.msk [vmem:[%s785 + $0x51] sm:$0xff] %vm729, %v704
        %794 = vst.msk [vmem:[%s785 + $0x61] sm:$0xff] %vm729, %v705
        %795 = vst.msk [vmem:[%s785 + $0x69] sm:$0xff] %vm729, %v706
        %796 = vst.msk [vmem:[%s785 + $0x79] sm:$0xff] %vm729, %v707
        %797 = vst.msk [vmem:[%s785 + $0x81] sm:$0xff] %vm729, %v708
        %798 = vst.msk [vmem:[%s785 + $0x91] sm:$0xff] %vm729, %v709
        %799 = vst.msk [vmem:[%s785 + $0x99] sm:$0xff] %vm729, %v710
        %800 = vst.msk [vmem:[%s785 + $0xa9] sm:$0xff] %vm729, %v711
        %801 = vst.msk [vmem:[%s785 + $0xb1] sm:$0xff] %vm729, %v712
        %802 = vst.msk [vmem:[%s785 + $0xc1] sm:$0xff] %vm729, %v713
        %803 = vst.msk [vmem:[%s785 + $0xc9] sm:$0xff] %vm729, %v714
        %804 = vst.msk [vmem:[%s785 + $0xd9] sm:$0xff] %vm729, %v715
        %805 = vst.msk [vmem:[%s785 + $0xe1] sm:$0xff] %vm729, %v716
        %806 = vst.msk [vmem:[%s785 + $0xf1] sm:$0xff] %vm729, %v717
        %807 = vst.msk [vmem:[%s785 + $0xf9] sm:$0xff] %vm729, %v718
        %808 = vst.msk [vmem:[%s785 + $0x109] sm:$0xff] %vm729, %v719
        %809 = vst.msk [vmem:[%s785 + $0x111] sm:$0xff] %vm729, %v720
        %810 = vst.msk [vmem:[%s785 + $0x121] sm:$0xff] %vm729, %v721
        %811 = vst.msk [vmem:[%s785 + $0x129] sm:$0xff] %vm729, %v722
        %812 = vst.msk [vmem:[%s785 + $0x139] sm:$0xff] %vm729, %v723
        %813 = vst.msk [vmem:[%s785 + $0x141] sm:$0xff] %vm729, %v724
        %814 = vst.msk [vmem:[%s785 + $0x151] sm:$0xff] %vm729, %v725
        %815 = vst.msk [vmem:[%s785 + $0x159] sm:$0xff] %vm729, %v726
        %816 = vst.msk [vmem:[%s785 + $0x169] sm:$0xff] %vm729, %v727
        %817 = vst.msk [vmem:[%s785 + $0x171] sm:$0xff] %vm729, %v728
        %v818 = vld [vmem:[#allocation2] sm:$0xff]
        %v819 = vld [vmem:[#allocation2 + $0x8] sm:$0xff]
        %v820 = vld [vmem:[#allocation2 + $0x18] sm:$0xff]
        %v821 = vld [vmem:[#allocation2 + $0x20] sm:$0xff]
        %v822 = vld [vmem:[#allocation2 + $0x30] sm:$0xff]
        %v823 = vld [vmem:[#allocation2 + $0x38] sm:$0xff]
        %v824 = vld [vmem:[#allocation2 + $0x48] sm:$0xff]
        %v825 = vld [vmem:[#allocation2 + $0x50] sm:$0xff]
        %v826 = vld [vmem:[#allocation2 + $0x60] sm:$0xff]
        %v827 = vld [vmem:[#allocation2 + $0x68] sm:$0xff]
        %v828 = vld [vmem:[#allocation2 + $0x78] sm:$0xff]
        %v829 = vld [vmem:[#allocation2 + $0x80] sm:$0xff]
        %v830 = vld [vmem:[#allocation2 + $0x90] sm:$0xff]
        %v831 = vld [vmem:[#allocation2 + $0x98] sm:$0xff]
        %v832 = vld [vmem:[#allocation2 + $0xa8] sm:$0xff]
        %v833 = vld [vmem:[#allocation2 + $0xb0] sm:$0xff]
        %v834 = vld [vmem:[#allocation2 + $0xc0] sm:$0xff]
        %v835 = vld [vmem:[#allocation2 + $0xc8] sm:$0xff]
        %v836 = vld [vmem:[#allocation2 + $0xd8] sm:$0xff]
        %v837 = vld [vmem:[#allocation2 + $0xe0] sm:$0xff]
        %v838 = vld [vmem:[#allocation2 + $0xf0] sm:$0xff]
        %v839 = vld [vmem:[#allocation2 + $0xf8] sm:$0xff]
        %v840 = vld [vmem:[#allocation2 + $0x108] sm:$0xff]
        %v841 = vld [vmem:[#allocation2 + $0x110] sm:$0xff]
        %v842 = vld [vmem:[#allocation2 + $0x120] sm:$0xff]
        %v843 = vld [vmem:[#allocation2 + $0x128] sm:$0xff]
        %v844 = vld [vmem:[#allocation2 + $0x138] sm:$0xff]
        %v845 = vld [vmem:[#allocation2 + $0x140] sm:$0xff]
        %v846 = vld [vmem:[#allocation2 + $0x150] sm:$0xff]
        %v847 = vld [vmem:[#allocation2 + $0x158] sm:$0xff]
        %v848 = vld [vmem:[#allocation2 + $0x168] sm:$0xff]
        %v849 = vld [vmem:[#allocation2 + $0x170] sm:$0xff]
        %v850 = vld [vmem:[#allocation2 + $0x1] sm:$0xff]
        %v851 = vld [vmem:[#allocation2 + $0x9] sm:$0xff]
        %v852 = vld [vmem:[#allocation2 + $0x19] sm:$0xff]
        %v853 = vld [vmem:[#allocation2 + $0x21] sm:$0xff]
        %v854 = vld [vmem:[#allocation2 + $0x31] sm:$0xff]
        %v855 = vld [vmem:[#allocation2 + $0x39] sm:$0xff]
        %v856 = vld [vmem:[#allocation2 + $0x49] sm:$0xff]
        %v857 = vld [vmem:[#allocation2 + $0x51] sm:$0xff]
        %v858 = vld [vmem:[#allocation2 + $0x61] sm:$0xff]
        %v859 = vld [vmem:[#allocation2 + $0x69] sm:$0xff]
        %v860 = vld [vmem:[#allocation2 + $0x79] sm:$0xff]
        %v861 = vld [vmem:[#allocation2 + $0x81] sm:$0xff]
        %v862 = vld [vmem:[#allocation2 + $0x91] sm:$0xff]
        %v863 = vld [vmem:[#allocation2 + $0x99] sm:$0xff]
        %v864 = vld [vmem:[#allocation2 + $0xa9] sm:$0xff]
        %v865 = vld [vmem:[#allocation2 + $0xb1] sm:$0xff]
        %v866 = vld [vmem:[#allocation2 + $0xc1] sm:$0xff]
        %v867 = vld [vmem:[#allocation2 + $0xc9] sm:$0xff]
        %v868 = vld [vmem:[#allocation2 + $0xd9] sm:$0xff]
        %v869 = vld [vmem:[#allocation2 + $0xe1] sm:$0xff]
        %v870 = vld [vmem:[#allocation2 + $0xf1] sm:$0xff]
        %v871 = vld [vmem:[#allocation2 + $0xf9] sm:$0xff]
        %v872 = vld [vmem:[#allocation2 + $0x109] sm:$0xff]
        %v873 = vld [vmem:[#allocation2 + $0x111] sm:$0xff]
        %v874 = vld [vmem:[#allocation2 + $0x121] sm:$0xff]
        %v875 = vld [vmem:[#allocation2 + $0x129] sm:$0xff]
        %v876 = vld [vmem:[#allocation2 + $0x139] sm:$0xff]
        %v877 = vld [vmem:[#allocation2 + $0x141] sm:$0xff]
        %v878 = vld [vmem:[#allocation2 + $0x151] sm:$0xff]
        %v879 = vld [vmem:[#allocation2 + $0x159] sm:$0xff]
        %v880 = vld [vmem:[#allocation2 + $0x169] sm:$0xff]
        %v881 = vld [vmem:[#allocation2 + $0x171] sm:$0xff]
        %v882 = vld [vmem:[#allocation2 + $0x2] sm:$0xff]
        %v883 = vld [vmem:[#allocation2 + $0xa] sm:$0xff]
        %v884 = vld [vmem:[#allocation2 + $0x1a] sm:$0xff]
        %v885 = vld [vmem:[#allocation2 + $0x22] sm:$0xff]
        %v886 = vld [vmem:[#allocation2 + $0x32] sm:$0xff]
        %v887 = vld [vmem:[#allocation2 + $0x3a] sm:$0xff]
        %v888 = vld [vmem:[#allocation2 + $0x4a] sm:$0xff]
        %v889 = vld [vmem:[#allocation2 + $0x52] sm:$0xff]
        %v890 = vld [vmem:[#allocation2 + $0x62] sm:$0xff]
        %v891 = vld [vmem:[#allocation2 + $0x6a] sm:$0xff]
        %v892 = vld [vmem:[#allocation2 + $0x7a] sm:$0xff]
        %v893 = vld [vmem:[#allocation2 + $0x82] sm:$0xff]
        %v894 = vld [vmem:[#allocation2 + $0x92] sm:$0xff]
        %v895 = vld [vmem:[#allocation2 + $0x9a] sm:$0xff]
        %v896 = vld [vmem:[#allocation2 + $0xaa] sm:$0xff]
        %v897 = vld [vmem:[#allocation2 + $0xb2] sm:$0xff]
        %v898 = vld [vmem:[#allocation2 + $0xc2] sm:$0xff]
        %v899 = vld [vmem:[#allocation2 + $0xca] sm:$0xff]
        %v900 = vld [vmem:[#allocation2 + $0xda] sm:$0xff]
        %v901 = vld [vmem:[#allocation2 + $0xe2] sm:$0xff]
        %v902 = vld [vmem:[#allocation2 + $0xf2] sm:$0xff]
        %v903 = vld [vmem:[#allocation2 + $0xfa] sm:$0xff]
        %v904 = vld [vmem:[#allocation2 + $0x10a] sm:$0xff]
        %v905 = vld [vmem:[#allocation2 + $0x112] sm:$0xff]
        %v906 = vld [vmem:[#allocation2 + $0x122] sm:$0xff]
        %v907 = vld [vmem:[#allocation2 + $0x12a] sm:$0xff]
        %v908 = vld [vmem:[#allocation2 + $0x13a] sm:$0xff]
        %v909 = vld [vmem:[#allocation2 + $0x142] sm:$0xff]
        %v910 = vld [vmem:[#allocation2 + $0x152] sm:$0xff]
        %v911 = vld [vmem:[#allocation2 + $0x15a] sm:$0xff]
        %v912 = vld [vmem:[#allocation2 + $0x16a] sm:$0xff]
        %v913 = vld [vmem:[#allocation2 + $0x172] sm:$0xff]
        %v914 = vld [vmem:[%s785] sm:$0xff]
        %v915 = vld [vmem:[%s785 + $0x8] sm:$0xff]
        %v916 = vld [vmem:[%s785 + $0x18] sm:$0xff]
        %v917 = vld [vmem:[%s785 + $0x20] sm:$0xff]
        %v918 = vld [vmem:[%s785 + $0x30] sm:$0xff]
        %v919 = vld [vmem:[%s785 + $0x38] sm:$0xff]
        %v920 = vld [vmem:[%s785 + $0x48] sm:$0xff]
        %v921 = vld [vmem:[%s785 + $0x50] sm:$0xff]
        %v922 = vld [vmem:[%s785 + $0x60] sm:$0xff]
        %v923 = vld [vmem:[%s785 + $0x68] sm:$0xff]
        %v924 = vld [vmem:[%s785 + $0x78] sm:$0xff]
        %v925 = vld [vmem:[%s785 + $0x80] sm:$0xff]
        %v926 = vld [vmem:[%s785 + $0x90] sm:$0xff]
        %v927 = vld [vmem:[%s785 + $0x98] sm:$0xff]
        %v928 = vld [vmem:[%s785 + $0xa8] sm:$0xff]
        %v929 = vld [vmem:[%s785 + $0xb0] sm:$0xff]
        %v930 = vld [vmem:[%s785 + $0xc0] sm:$0xff]
        %v931 = vld [vmem:[%s785 + $0xc8] sm:$0xff]
        %v932 = vld [vmem:[%s785 + $0xd8] sm:$0xff]
        %v933 = vld [vmem:[%s785 + $0xe0] sm:$0xff]
        %v934 = vld [vmem:[%s785 + $0xf0] sm:$0xff]
        %v935 = vld [vmem:[%s785 + $0xf8] sm:$0xff]
        %v936 = vld [vmem:[%s785 + $0x108] sm:$0xff]
        %v937 = vld [vmem:[%s785 + $0x110] sm:$0xff]
        %v938 = vld [vmem:[%s785 + $0x120] sm:$0xff]
        %v939 = vld [vmem:[%s785 + $0x128] sm:$0xff]
        %v940 = vld [vmem:[%s785 + $0x138] sm:$0xff]
        %v941 = vld [vmem:[%s785 + $0x140] sm:$0xff]
        %v942 = vld [vmem:[%s785 + $0x150] sm:$0xff]
        %v943 = vld [vmem:[%s785 + $0x158] sm:$0xff]
        %v944 = vld [vmem:[%s785 + $0x168] sm:$0xff]
        %v945 = vld [vmem:[%s785 + $0x170] sm:$0xff]
        %v946 = vld [vmem:[%s785 + $0x1] sm:$0xff]
        %v947 = vld [vmem:[%s785 + $0x9] sm:$0xff]
        %v948 = vld [vmem:[%s785 + $0x19] sm:$0xff]
        %v949 = vld [vmem:[%s785 + $0x21] sm:$0xff]
        %v950 = vld [vmem:[%s785 + $0x31] sm:$0xff]
        %v951 = vld [vmem:[%s785 + $0x39] sm:$0xff]
        %v952 = vld [vmem:[%s785 + $0x49] sm:$0xff]
        %v953 = vld [vmem:[%s785 + $0x51] sm:$0xff]
        %v954 = vld [vmem:[%s785 + $0x61] sm:$0xff]
        %v955 = vld [vmem:[%s785 + $0x69] sm:$0xff]
        %v956 = vld [vmem:[%s785 + $0x79] sm:$0xff]
        %v957 = vld [vmem:[%s785 + $0x81] sm:$0xff]
        %v958 = vld [vmem:[%s785 + $0x91] sm:$0xff]
        %v959 = vld [vmem:[%s785 + $0x99] sm:$0xff]
        %v960 = vld [vmem:[%s785 + $0xa9] sm:$0xff]
        %v961 = vld [vmem:[%s785 + $0xb1] sm:$0xff]
        %v962 = vld [vmem:[%s785 + $0xc1] sm:$0xff]
        %v963 = vld [vmem:[%s785 + $0xc9] sm:$0xff]
        %v964 = vld [vmem:[%s785 + $0xd9] sm:$0xff]
        %v965 = vld [vmem:[%s785 + $0xe1] sm:$0xff]
        %v966 = vld [vmem:[%s785 + $0xf1] sm:$0xff]
        %v967 = vld [vmem:[%s785 + $0xf9] sm:$0xff]
        %v968 = vld [vmem:[%s785 + $0x109] sm:$0xff]
        %v969 = vld [vmem:[%s785 + $0x111] sm:$0xff]
        %v970 = vld [vmem:[%s785 + $0x121] sm:$0xff]
        %v971 = vld [vmem:[%s785 + $0x129] sm:$0xff]
        %v972 = vld [vmem:[%s785 + $0x139] sm:$0xff]
        %v973 = vld [vmem:[%s785 + $0x141] sm:$0xff]
        %v974 = vld [vmem:[%s785 + $0x151] sm:$0xff]
        %v975 = vld [vmem:[%s785 + $0x159] sm:$0xff]
        %v976 = vld [vmem:[%s785 + $0x169] sm:$0xff]
        %v977 = vld [vmem:[%s785 + $0x171] sm:$0xff]
        %v978 = vld [vmem:[%s785 + $0x2] sm:$0xff]
        %v979 = vld [vmem:[%s785 + $0xa] sm:$0xff]
        %v980 = vld [vmem:[%s785 + $0x1a] sm:$0xff]
        %v981 = vld [vmem:[%s785 + $0x22] sm:$0xff]
        %v982 = vld [vmem:[%s785 + $0x32] sm:$0xff]
        %v983 = vld [vmem:[%s785 + $0x3a] sm:$0xff]
        %v984 = vld [vmem:[%s785 + $0x4a] sm:$0xff]
        %v985 = vld [vmem:[%s785 + $0x52] sm:$0xff]
        %v986 = vld [vmem:[%s785 + $0x62] sm:$0xff]
        %v987 = vld [vmem:[%s785 + $0x6a] sm:$0xff]
        %v988 = vld [vmem:[%s785 + $0x7a] sm:$0xff]
        %v989 = vld [vmem:[%s785 + $0x82] sm:$0xff]
        %v990 = vld [vmem:[%s785 + $0x92] sm:$0xff]
        %v991 = vld [vmem:[%s785 + $0x9a] sm:$0xff]
        %v992 = vld [vmem:[%s785 + $0xaa] sm:$0xff]
        %v993 = vld [vmem:[%s785 + $0xb2] sm:$0xff]
        %v994 = vld [vmem:[%s785 + $0xc2] sm:$0xff]
        %v995 = vld [vmem:[%s785 + $0xca] sm:$0xff]
        %v996 = vld [vmem:[%s785 + $0xda] sm:$0xff]
        %v997 = vld [vmem:[%s785 + $0xe2] sm:$0xff]
        %v998 = vld [vmem:[%s785 + $0xf2] sm:$0xff]
        %v999 = vld [vmem:[%s785 + $0xfa] sm:$0xff]
        %v1000 = vld [vmem:[%s785 + $0x10a] sm:$0xff]
        %v1001 = vld [vmem:[%s785 + $0x112] sm:$0xff]
        %v1002 = vld [vmem:[%s785 + $0x122] sm:$0xff]
        %v1003 = vld [vmem:[%s785 + $0x12a] sm:$0xff]
        %v1004 = vld [vmem:[%s785 + $0x13a] sm:$0xff]
        %v1005 = vld [vmem:[%s785 + $0x142] sm:$0xff]
        %v1006 = vld [vmem:[%s785 + $0x152] sm:$0xff]
        %v1007 = vld [vmem:[%s785 + $0x15a] sm:$0xff]
        %v1008 = vld [vmem:[%s785 + $0x16a] sm:$0xff]
        %v1009 = vld [vmem:[%s785 + $0x172] sm:$0xff]
        %s1010 = scalar_lea.vmem [#allocation2], 48
        %v1011 = vld [vmem:[%s1010] sm:$0xff]
        %v1012 = vld [vmem:[%s1010 + $0x8] sm:$0xff]
        %v1013 = vld [vmem:[%s1010 + $0x18] sm:$0xff]
        %v1014 = vld [vmem:[%s1010 + $0x20] sm:$0xff]
        %v1015 = vld [vmem:[%s1010 + $0x30] sm:$0xff]
        %v1016 = vld [vmem:[%s1010 + $0x38] sm:$0xff]
        %v1017 = vld [vmem:[%s1010 + $0x48] sm:$0xff]
        %v1018 = vld [vmem:[%s1010 + $0x50] sm:$0xff]
        %v1019 = vld [vmem:[%s1010 + $0x60] sm:$0xff]
        %v1020 = vld [vmem:[%s1010 + $0x68] sm:$0xff]
        %v1021 = vld [vmem:[%s1010 + $0x78] sm:$0xff]
        %v1022 = vld [vmem:[%s1010 + $0x80] sm:$0xff]
        %v1023 = vld [vmem:[%s1010 + $0x90] sm:$0xff]
        %v1024 = vld [vmem:[%s1010 + $0x98] sm:$0xff]
        %v1025 = vld [vmem:[%s1010 + $0xa8] sm:$0xff]
        %v1026 = vld [vmem:[%s1010 + $0xb0] sm:$0xff]
        %v1027 = vld [vmem:[%s1010 + $0xc0] sm:$0xff]
        %v1028 = vld [vmem:[%s1010 + $0xc8] sm:$0xff]
        %v1029 = vld [vmem:[%s1010 + $0xd8] sm:$0xff]
        %v1030 = vld [vmem:[%s1010 + $0xe0] sm:$0xff]
        %v1031 = vld [vmem:[%s1010 + $0xf0] sm:$0xff]
        %v1032 = vld [vmem:[%s1010 + $0xf8] sm:$0xff]
        %v1033 = vld [vmem:[%s1010 + $0x108] sm:$0xff]
        %v1034 = vld [vmem:[%s1010 + $0x110] sm:$0xff]
        %v1035 = vld [vmem:[%s1010 + $0x120] sm:$0xff]
        %v1036 = vld [vmem:[%s1010 + $0x128] sm:$0xff]
        %v1037 = vld [vmem:[%s1010 + $0x138] sm:$0xff]
        %v1038 = vld [vmem:[%s1010 + $0x140] sm:$0xff]
        %v1039 = vld [vmem:[%s1010 + $0x150] sm:$0xff]
        %v1040 = vld [vmem:[%s1010 + $0x158] sm:$0xff]
        %v1041 = vld [vmem:[%s1010 + $0x168] sm:$0xff]
        %v1042 = vld [vmem:[%s1010 + $0x170] sm:$0xff]
        %v1043 = vld [vmem:[%s1010 + $0x1] sm:$0xff]
        %v1044 = vld [vmem:[%s1010 + $0x9] sm:$0xff]
        %v1045 = vld [vmem:[%s1010 + $0x19] sm:$0xff]
        %v1046 = vld [vmem:[%s1010 + $0x21] sm:$0xff]
        %v1047 = vld [vmem:[%s1010 + $0x31] sm:$0xff]
        %v1048 = vld [vmem:[%s1010 + $0x39] sm:$0xff]
        %v1049 = vld [vmem:[%s1010 + $0x49] sm:$0xff]
        %v1050 = vld [vmem:[%s1010 + $0x51] sm:$0xff]
        %v1051 = vld [vmem:[%s1010 + $0x61] sm:$0xff]
        %v1052 = vld [vmem:[%s1010 + $0x69] sm:$0xff]
        %v1053 = vld [vmem:[%s1010 + $0x79] sm:$0xff]
        %v1054 = vld [vmem:[%s1010 + $0x81] sm:$0xff]
        %v1055 = vld [vmem:[%s1010 + $0x91] sm:$0xff]
        %v1056 = vld [vmem:[%s1010 + $0x99] sm:$0xff]
        %v1057 = vld [vmem:[%s1010 + $0xa9] sm:$0xff]
        %v1058 = vld [vmem:[%s1010 + $0xb1] sm:$0xff]
        %v1059 = vld [vmem:[%s1010 + $0xc1] sm:$0xff]
        %v1060 = vld [vmem:[%s1010 + $0xc9] sm:$0xff]
        %v1061 = vld [vmem:[%s1010 + $0xd9] sm:$0xff]
        %v1062 = vld [vmem:[%s1010 + $0xe1] sm:$0xff]
        %v1063 = vld [vmem:[%s1010 + $0xf1] sm:$0xff]
        %v1064 = vld [vmem:[%s1010 + $0xf9] sm:$0xff]
        %v1065 = vld [vmem:[%s1010 + $0x109] sm:$0xff]
        %v1066 = vld [vmem:[%s1010 + $0x111] sm:$0xff]
        %v1067 = vld [vmem:[%s1010 + $0x121] sm:$0xff]
        %v1068 = vld [vmem:[%s1010 + $0x129] sm:$0xff]
        %v1069 = vld [vmem:[%s1010 + $0x139] sm:$0xff]
        %v1070 = vld [vmem:[%s1010 + $0x141] sm:$0xff]
        %v1071 = vld [vmem:[%s1010 + $0x151] sm:$0xff]
        %v1072 = vld [vmem:[%s1010 + $0x159] sm:$0xff]
        %v1073 = vld [vmem:[%s1010 + $0x169] sm:$0xff]
        %v1074 = vld [vmem:[%s1010 + $0x171] sm:$0xff]
        %v1075 = vld [vmem:[%s1010 + $0x2] sm:$0xff]
        %v1076 = vld [vmem:[%s1010 + $0xa] sm:$0xff]
        %v1077 = vld [vmem:[%s1010 + $0x1a] sm:$0xff]
        %v1078 = vld [vmem:[%s1010 + $0x22] sm:$0xff]
        %v1079 = vld [vmem:[%s1010 + $0x32] sm:$0xff]
        %v1080 = vld [vmem:[%s1010 + $0x3a] sm:$0xff]
        %v1081 = vld [vmem:[%s1010 + $0x4a] sm:$0xff]
        %v1082 = vld [vmem:[%s1010 + $0x52] sm:$0xff]
        %v1083 = vld [vmem:[%s1010 + $0x62] sm:$0xff]
        %v1084 = vld [vmem:[%s1010 + $0x6a] sm:$0xff]
        %v1085 = vld [vmem:[%s1010 + $0x7a] sm:$0xff]
        %v1086 = vld [vmem:[%s1010 + $0x82] sm:$0xff]
        %v1087 = vld [vmem:[%s1010 + $0x92] sm:$0xff]
        %v1088 = vld [vmem:[%s1010 + $0x9a] sm:$0xff]
        %v1089 = vld [vmem:[%s1010 + $0xaa] sm:$0xff]
        %v1090 = vld [vmem:[%s1010 + $0xb2] sm:$0xff]
        %v1091 = vld [vmem:[%s1010 + $0xc2] sm:$0xff]
        %v1092 = vld [vmem:[%s1010 + $0xca] sm:$0xff]
        %v1093 = vld [vmem:[%s1010 + $0xda] sm:$0xff]
        %v1094 = vld [vmem:[%s1010 + $0xe2] sm:$0xff]
        %v1095 = vld [vmem:[%s1010 + $0xf2] sm:$0xff]
        %v1096 = vld [vmem:[%s1010 + $0xfa] sm:$0xff]
        %v1097 = vld [vmem:[%s1010 + $0x10a] sm:$0xff]
        %v1098 = vld [vmem:[%s1010 + $0x112] sm:$0xff]
        %v1099 = vld [vmem:[%s1010 + $0x122] sm:$0xff]
        %v1100 = vld [vmem:[%s1010 + $0x12a] sm:$0xff]
        %v1101 = vld [vmem:[%s1010 + $0x13a] sm:$0xff]
        %v1102 = vld [vmem:[%s1010 + $0x142] sm:$0xff]
        %v1103 = vld [vmem:[%s1010 + $0x152] sm:$0xff]
        %v1104 = vld [vmem:[%s1010 + $0x15a] sm:$0xff]
        %v1105 = vld [vmem:[%s1010 + $0x16a] sm:$0xff]
        %v1106 = vld [vmem:[%s1010 + $0x172] sm:$0xff]
        %v1107 = vpack.c.bf16 %v819, %v818
        %v1108 = vpack.c.bf16 %v821, %v820
        %v1109 = vpack.c.bf16 %v823, %v822
        %v1110 = vpack.c.bf16 %v825, %v824
        %v1111 = vpack.c.bf16 %v827, %v826
        %v1112 = vpack.c.bf16 %v829, %v828
        %v1113 = vpack.c.bf16 %v831, %v830
        %v1114 = vpack.c.bf16 %v833, %v832
        %v1115 = vpack.c.bf16 %v835, %v834
        %v1116 = vpack.c.bf16 %v837, %v836
        %v1117 = vpack.c.bf16 %v839, %v838
        %v1118 = vpack.c.bf16 %v841, %v840
        %v1119 = vpack.c.bf16 %v843, %v842
        %v1120 = vpack.c.bf16 %v845, %v844
        %v1121 = vpack.c.bf16 %v847, %v846
        %v1122 = vpack.c.bf16 %v849, %v848
        %v1123 = vld [vmem:[%s3] sm:$0xf]
        %v1124 = vld [vmem:[%s3 + $0x4] sm:$0xf]
        %v1125 = vpack.c.bf16 %v851, %v850
        %v1126 = vpack.c.bf16 %v853, %v852
        %v1127 = vpack.c.bf16 %v855, %v854
        %v1128 = vpack.c.bf16 %v857, %v856
        %v1129 = vpack.c.bf16 %v859, %v858
        %v1130 = vpack.c.bf16 %v861, %v860
        %v1131 = vpack.c.bf16 %v863, %v862
        %v1132 = vpack.c.bf16 %v865, %v864
        %v1133 = vpack.c.bf16 %v867, %v866
        %v1134 = vpack.c.bf16 %v869, %v868
        %v1135 = vpack.c.bf16 %v871, %v870
        %v1136 = vpack.c.bf16 %v873, %v872
        %v1137 = vpack.c.bf16 %v875, %v874
        %v1138 = vpack.c.bf16 %v877, %v876
        %v1139 = vpack.c.bf16 %v879, %v878
        %v1140 = vpack.c.bf16 %v881, %v880
        %v1141 = vld [vmem:[%s3 + $0x8] sm:$0xf]
        %v1142 = vld [vmem:[%s3 + $0xc] sm:$0xf]
        %v1145 = vunpack.c.l.b16 %v1141
        %v1146 = vunpack.c.l.b16 %v1142
        %v1147 = vpack.c.b16 %v1146, %v1145
        %v1150 = vsel %vm729, %v1125, 0
        %v1153 = vsel %vm729, %v1126, 0
        %v1156 = vsel %vm729, %v1127, 0
        %v1159 = vsel %vm729, %v1128, 0
        %v1162 = vsel %vm729, %v1129, 0
        %v1165 = vsel %vm729, %v1130, 0
        %v1168 = vsel %vm729, %v1131, 0
        %v1171 = vsel %vm729, %v1132, 0
        %v1174 = vsel %vm729, %v1133, 0
        %v1177 = vsel %vm729, %v1134, 0
        %v1180 = vsel %vm729, %v1135, 0
        %v1183 = vsel %vm729, %v1136, 0
        %v1186 = vsel %vm729, %v1137, 0
        %v1189 = vsel %vm729, %v1138, 0
        %v1192 = vsel %vm729, %v1139, 0
        %v1195 = vsel %vm729, %v1140, 0
        %1197 = vmatprep.subr.bf16.mxu0 0
        %1198 = vmatpush1.bf16.msra.mxu0 0
        %1199 = vmatprep.subr.bf16.mxu0 0
        %1200 = vmatpush1.bf16.msra.mxu0 0
        %1201 = vmatprep.subr.bf16.mxu0 0
        %1202 = vmatpush1.bf16.msra.mxu0 0
        %1203 = vmatprep.subr.bf16.mxu0 0
        %1204 = vmatpush1.bf16.msra.mxu0 0
        %1205 = vmatprep.subr.bf16.mxu0 0
        %1206 = vmatpush1.bf16.msra.mxu0 0
        %1207 = vmatprep.subr.bf16.mxu0 0
        %1208 = vmatpush1.bf16.msra.mxu0 0
        %1209 = vmatprep.subr.bf16.mxu0 0
        %1210 = vmatpush1.bf16.msra.mxu0 0
        %1211 = vmatprep.subr.bf16.mxu0 0
        %1212 = vmatpush1.bf16.msra.mxu0 %v1147
        %1213 = vmatprep.subr.bf16.mxu0 0
        %1214 = vmatpush2.bf16.msra.mxu0 0
        %1215 = vmatprep.subr.bf16.mxu0 0
        %1216 = vmatpush2.bf16.msra.mxu0 0
        %1217 = vmatprep.subr.bf16.mxu0 0
        %1218 = vmatpush2.bf16.msra.mxu0 0
        %1219 = vmatprep.subr.bf16.mxu0 0
        %1220 = vmatpush2.bf16.msra.mxu0 0
        %1221 = vmatprep.subr.bf16.mxu0 0
        %1222 = vmatpush2.bf16.msra.mxu0 0
        %1223 = vmatprep.subr.bf16.mxu0 0
        %1224 = vmatpush2.bf16.msra.mxu0 0
        %1225 = vmatprep.subr.bf16.mxu0 0
        %1226 = vmatpush2.bf16.msra.mxu0 0
        %1227 = vmatprep.subr.bf16.mxu0 0
        %1228 = vmatpush2.bf16.msra.mxu0 0
        %1229 = vmatprep.mubr.bf16.mxu0 0
        %1230 = vmatmul.mubr.bf16.gmra.mxu0 %v1150
        %v1231 = vpop.f32.mrf.mxu0
        %v1232 = vadd.f32 0.0, %v1231
        %v1233 = vpop.f32.mrf.mxu0
        %v1234 = vpop.f32.mrf.mxu0
        %v1235 = vadd.f32 0.0, %v1234
        %v1236 = vpop.f32.mrf.mxu0
        %1237 = vmatprep.mubr.bf16.mxu0 0
        %1238 = vmatmul.mubr.bf16.gmra.mxu0 %v1153
        %v1239 = vpop.f32.mrf.mxu0
        %v1240 = vadd.f32 0.0, %v1239
        %v1241 = vpop.f32.mrf.mxu0
        %v1242 = vpop.f32.mrf.mxu0
        %v1243 = vadd.f32 0.0, %v1242
        %v1244 = vpop.f32.mrf.mxu0
        %1245 = vmatprep.mubr.bf16.mxu0 0
        %1246 = vmatmul.mubr.bf16.gmra.mxu0 %v1156
        %v1247 = vpop.f32.mrf.mxu0
        %v1248 = vadd.f32 0.0, %v1247
        %v1249 = vpop.f32.mrf.mxu0
        %v1250 = vpop.f32.mrf.mxu0
        %v1251 = vadd.f32 0.0, %v1250
        %v1252 = vpop.f32.mrf.mxu0
        %1253 = vmatprep.mubr.bf16.mxu0 0
        %1254 = vmatmul.mubr.bf16.gmra.mxu0 %v1159
        %v1255 = vpop.f32.mrf.mxu0
        %v1256 = vadd.f32 0.0, %v1255
        %v1257 = vpop.f32.mrf.mxu0
        %v1258 = vpop.f32.mrf.mxu0
        %v1259 = vadd.f32 0.0, %v1258
        %v1260 = vpop.f32.mrf.mxu0
        %1261 = vmatprep.mubr.bf16.mxu0 0
        %1262 = vmatmul.mubr.bf16.gmra.mxu0 %v1162
        %v1263 = vpop.f32.mrf.mxu0
        %v1264 = vadd.f32 0.0, %v1263
        %v1265 = vpop.f32.mrf.mxu0
        %v1266 = vpop.f32.mrf.mxu0
        %v1267 = vadd.f32 0.0, %v1266
        %v1268 = vpop.f32.mrf.mxu0
        %1269 = vmatprep.mubr.bf16.mxu0 0
        %1270 = vmatmul.mubr.bf16.gmra.mxu0 %v1165
        %v1271 = vpop.f32.mrf.mxu0
        %v1272 = vadd.f32 0.0, %v1271
        %v1273 = vpop.f32.mrf.mxu0
        %v1274 = vpop.f32.mrf.mxu0
        %v1275 = vadd.f32 0.0, %v1274
        %v1276 = vpop.f32.mrf.mxu0
        %1277 = vmatprep.mubr.bf16.mxu0 0
        %1278 = vmatmul.mubr.bf16.gmra.mxu0 %v1168
        %v1279 = vpop.f32.mrf.mxu0
        %v1280 = vadd.f32 0.0, %v1279
        %v1281 = vpop.f32.mrf.mxu0
        %v1282 = vpop.f32.mrf.mxu0
        %v1283 = vadd.f32 0.0, %v1282
        %v1284 = vpop.f32.mrf.mxu0
        %1285 = vmatprep.mubr.bf16.mxu0 0
        %1286 = vmatmul.mubr.bf16.gmra.mxu0 %v1171
        %v1287 = vpop.f32.mrf.mxu0
        %v1288 = vadd.f32 0.0, %v1287
        %v1289 = vpop.f32.mrf.mxu0
        %v1290 = vpop.f32.mrf.mxu0
        %v1291 = vadd.f32 0.0, %v1290
        %v1292 = vpop.f32.mrf.mxu0
        %1293 = vmatprep.mubr.bf16.mxu0 0
        %1294 = vmatmul.mubr.bf16.gmra.mxu0 %v1174
        %v1295 = vpop.f32.mrf.mxu0
        %v1296 = vadd.f32 0.0, %v1295
        %v1297 = vpop.f32.mrf.mxu0
        %v1298 = vpop.f32.mrf.mxu0
        %v1299 = vadd.f32 0.0, %v1298
        %v1300 = vpop.f32.mrf.mxu0
        %1301 = vmatprep.mubr.bf16.mxu0 0
        %1302 = vmatmul.mubr.bf16.gmra.mxu0 %v1177
        %v1303 = vpop.f32.mrf.mxu0
        %v1304 = vadd.f32 0.0, %v1303
        %v1305 = vpop.f32.mrf.mxu0
        %v1306 = vpop.f32.mrf.mxu0
        %v1307 = vadd.f32 0.0, %v1306
        %v1308 = vpop.f32.mrf.mxu0
        %1309 = vmatprep.mubr.bf16.mxu0 0
        %1310 = vmatmul.mubr.bf16.gmra.mxu0 %v1180
        %v1311 = vpop.f32.mrf.mxu0
        %v1312 = vadd.f32 0.0, %v1311
        %v1313 = vpop.f32.mrf.mxu0
        %v1314 = vpop.f32.mrf.mxu0
        %v1315 = vadd.f32 0.0, %v1314
        %v1316 = vpop.f32.mrf.mxu0
        %1317 = vmatprep.mubr.bf16.mxu0 0
        %1318 = vmatmul.mubr.bf16.gmra.mxu0 %v1183
        %v1319 = vpop.f32.mrf.mxu0
        %v1320 = vadd.f32 0.0, %v1319
        %v1321 = vpop.f32.mrf.mxu0
        %v1322 = vpop.f32.mrf.mxu0
        %v1323 = vadd.f32 0.0, %v1322
        %v1324 = vpop.f32.mrf.mxu0
        %1325 = vmatprep.mubr.bf16.mxu0 0
        %1326 = vmatmul.mubr.bf16.gmra.mxu0 %v1186
        %v1327 = vpop.f32.mrf.mxu0
        %v1328 = vadd.f32 0.0, %v1327
        %v1329 = vpop.f32.mrf.mxu0
        %v1330 = vpop.f32.mrf.mxu0
        %v1331 = vadd.f32 0.0, %v1330
        %v1332 = vpop.f32.mrf.mxu0
        %1333 = vmatprep.mubr.bf16.mxu0 0
        %1334 = vmatmul.mubr.bf16.gmra.mxu0 %v1189
        %v1335 = vpop.f32.mrf.mxu0
        %v1336 = vadd.f32 0.0, %v1335
        %v1337 = vpop.f32.mrf.mxu0
        %v1338 = vpop.f32.mrf.mxu0
        %v1339 = vadd.f32 0.0, %v1338
        %v1340 = vpop.f32.mrf.mxu0
        %1341 = vmatprep.mubr.bf16.mxu0 0
        %1342 = vmatmul.mubr.bf16.gmra.mxu0 %v1192
        %v1343 = vpop.f32.mrf.mxu0
        %v1344 = vadd.f32 0.0, %v1343
        %v1345 = vpop.f32.mrf.mxu0
        %v1346 = vpop.f32.mrf.mxu0
        %v1347 = vadd.f32 0.0, %v1346
        %v1348 = vpop.f32.mrf.mxu0
        %1349 = vmatprep.mubr.bf16.mxu0 0
        %1350 = vmatmul.mubr.bf16.gmra.mxu0 %v1195
        %v1351 = vpop.f32.mrf.mxu0
        %v1352 = vadd.f32 0.0, %v1351
        %v1353 = vpop.f32.mrf.mxu0
        %v1354 = vpop.f32.mrf.mxu0
        %v1355 = vadd.f32 0.0, %v1354
        %v1356 = vpop.f32.mrf.mxu0
        %1357 = vdwg.mxu0
        %v1360 = vunpack.c.l.b16 %v1123
        %v1361 = vunpack.c.l.b16 %v1124
        %v1362 = vpack.c.b16 %v1361, %v1360
        %v1365 = vsel %vm729, %v1107, 0
        %v1368 = vsel %vm729, %v1108, 0
        %v1371 = vsel %vm729, %v1109, 0
        %v1374 = vsel %vm729, %v1110, 0
        %v1377 = vsel %vm729, %v1111, 0
        %v1380 = vsel %vm729, %v1112, 0
        %v1383 = vsel %vm729, %v1113, 0
        %v1386 = vsel %vm729, %v1114, 0
        %v1389 = vsel %vm729, %v1115, 0
        %v1392 = vsel %vm729, %v1116, 0
        %v1395 = vsel %vm729, %v1117, 0
        %v1398 = vsel %vm729, %v1118, 0
        %v1401 = vsel %vm729, %v1119, 0
        %v1404 = vsel %vm729, %v1120, 0
        %v1407 = vsel %vm729, %v1121, 0
        %v1410 = vsel %vm729, %v1122, 0
        %1412 = vmatprep.subr.bf16.mxu0 0
        %1413 = vmatpush1.bf16.msra.mxu0 0
        %1414 = vmatprep.subr.bf16.mxu0 0
        %1415 = vmatpush1.bf16.msra.mxu0 0
        %1416 = vmatprep.subr.bf16.mxu0 0
        %1417 = vmatpush1.bf16.msra.mxu0 0
        %1418 = vmatprep.subr.bf16.mxu0 0
        %1419 = vmatpush1.bf16.msra.mxu0 0
        %1420 = vmatprep.subr.bf16.mxu0 0
        %1421 = vmatpush1.bf16.msra.mxu0 0
        %1422 = vmatprep.subr.bf16.mxu0 0
        %1423 = vmatpush1.bf16.msra.mxu0 0
        %1424 = vmatprep.subr.bf16.mxu0 0
        %1425 = vmatpush1.bf16.msra.mxu0 0
        %1426 = vmatprep.subr.bf16.mxu0 0
        %1427 = vmatpush1.bf16.msra.mxu0 %v1362
        %1428 = vmatprep.subr.bf16.mxu0 0
        %1429 = vmatpush2.bf16.msra.mxu0 0
        %1430 = vmatprep.subr.bf16.mxu0 0
        %1431 = vmatpush2.bf16.msra.mxu0 0
        %1432 = vmatprep.subr.bf16.mxu0 0
        %1433 = vmatpush2.bf16.msra.mxu0 0
        %1434 = vmatprep.subr.bf16.mxu0 0
        %1435 = vmatpush2.bf16.msra.mxu0 0
        %1436 = vmatprep.subr.bf16.mxu0 0
        %1437 = vmatpush2.bf16.msra.mxu0 0
        %1438 = vmatprep.subr.bf16.mxu0 0
        %1439 = vmatpush2.bf16.msra.mxu0 0
        %1440 = vmatprep.subr.bf16.mxu0 0
        %1441 = vmatpush2.bf16.msra.mxu0 0
        %1442 = vmatprep.subr.bf16.mxu0 0
        %1443 = vmatpush2.bf16.msra.mxu0 0
        %1444 = vmatprep.mubr.bf16.mxu0 0
        %1445 = vmatmul.mubr.bf16.gmra.mxu0 %v1365
        %v1446 = vpop.f32.mrf.mxu0
        %v1447 = vadd.f32 %v1232, %v1446
        %v1448 = vpop.f32.mrf.mxu0
        %v1449 = vpop.f32.mrf.mxu0
        %v1450 = vadd.f32 %v1235, %v1449
        %v1451 = vpop.f32.mrf.mxu0
        %1452 = vmatprep.mubr.bf16.mxu0 0
        %1453 = vmatmul.mubr.bf16.gmra.mxu0 %v1368
        %v1454 = vpop.f32.mrf.mxu0
        %v1455 = vadd.f32 %v1240, %v1454
        %v1456 = vpop.f32.mrf.mxu0
        %v1457 = vpop.f32.mrf.mxu0
        %v1458 = vadd.f32 %v1243, %v1457
        %v1459 = vpop.f32.mrf.mxu0
        %1460 = vmatprep.mubr.bf16.mxu0 0
        %1461 = vmatmul.mubr.bf16.gmra.mxu0 %v1371
        %v1462 = vpop.f32.mrf.mxu0
        %v1463 = vadd.f32 %v1248, %v1462
        %v1464 = vpop.f32.mrf.mxu0
        %v1465 = vpop.f32.mrf.mxu0
        %v1466 = vadd.f32 %v1251, %v1465
        %v1467 = vpop.f32.mrf.mxu0
        %1468 = vmatprep.mubr.bf16.mxu0 0
        %1469 = vmatmul.mubr.bf16.gmra.mxu0 %v1374
        %v1470 = vpop.f32.mrf.mxu0
        %v1471 = vadd.f32 %v1256, %v1470
        %v1472 = vpop.f32.mrf.mxu0
        %v1473 = vpop.f32.mrf.mxu0
        %v1474 = vadd.f32 %v1259, %v1473
        %v1475 = vpop.f32.mrf.mxu0
        %1476 = vmatprep.mubr.bf16.mxu0 0
        %1477 = vmatmul.mubr.bf16.gmra.mxu0 %v1377
        %v1478 = vpop.f32.mrf.mxu0
        %v1479 = vadd.f32 %v1264, %v1478
        %v1480 = vpop.f32.mrf.mxu0
        %v1481 = vpop.f32.mrf.mxu0
        %v1482 = vadd.f32 %v1267, %v1481
        %v1483 = vpop.f32.mrf.mxu0
        %1484 = vmatprep.mubr.bf16.mxu0 0
        %1485 = vmatmul.mubr.bf16.gmra.mxu0 %v1380
        %v1486 = vpop.f32.mrf.mxu0
        %v1487 = vadd.f32 %v1272, %v1486
        %v1488 = vpop.f32.mrf.mxu0
        %v1489 = vpop.f32.mrf.mxu0
        %v1490 = vadd.f32 %v1275, %v1489
        %v1491 = vpop.f32.mrf.mxu0
        %1492 = vmatprep.mubr.bf16.mxu0 0
        %1493 = vmatmul.mubr.bf16.gmra.mxu0 %v1383
        %v1494 = vpop.f32.mrf.mxu0
        %v1495 = vadd.f32 %v1280, %v1494
        %v1496 = vpop.f32.mrf.mxu0
        %v1497 = vpop.f32.mrf.mxu0
        %v1498 = vadd.f32 %v1283, %v1497
        %v1499 = vpop.f32.mrf.mxu0
        %1500 = vmatprep.mubr.bf16.mxu0 0
        %1501 = vmatmul.mubr.bf16.gmra.mxu0 %v1386
        %v1502 = vpop.f32.mrf.mxu0
        %v1503 = vadd.f32 %v1288, %v1502
        %v1504 = vpop.f32.mrf.mxu0
        %v1505 = vpop.f32.mrf.mxu0
        %v1506 = vadd.f32 %v1291, %v1505
        %v1507 = vpop.f32.mrf.mxu0
        %1508 = vmatprep.mubr.bf16.mxu0 0
        %1509 = vmatmul.mubr.bf16.gmra.mxu0 %v1389
        %v1510 = vpop.f32.mrf.mxu0
        %v1511 = vadd.f32 %v1296, %v1510
        %v1512 = vpop.f32.mrf.mxu0
        %v1513 = vpop.f32.mrf.mxu0
        %v1514 = vadd.f32 %v1299, %v1513
        %v1515 = vpop.f32.mrf.mxu0
        %1516 = vmatprep.mubr.bf16.mxu0 0
        %1517 = vmatmul.mubr.bf16.gmra.mxu0 %v1392
        %v1518 = vpop.f32.mrf.mxu0
        %v1519 = vadd.f32 %v1304, %v1518
        %v1520 = vpop.f32.mrf.mxu0
        %v1521 = vpop.f32.mrf.mxu0
        %v1522 = vadd.f32 %v1307, %v1521
        %v1523 = vpop.f32.mrf.mxu0
        %1524 = vmatprep.mubr.bf16.mxu0 0
        %1525 = vmatmul.mubr.bf16.gmra.mxu0 %v1395
        %v1526 = vpop.f32.mrf.mxu0
        %v1527 = vadd.f32 %v1312, %v1526
        %v1528 = vpop.f32.mrf.mxu0
        %v1529 = vpop.f32.mrf.mxu0
        %v1530 = vadd.f32 %v1315, %v1529
        %v1531 = vpop.f32.mrf.mxu0
        %1532 = vmatprep.mubr.bf16.mxu0 0
        %1533 = vmatmul.mubr.bf16.gmra.mxu0 %v1398
        %v1534 = vpop.f32.mrf.mxu0
        %v1535 = vadd.f32 %v1320, %v1534
        %v1536 = vpop.f32.mrf.mxu0
        %v1537 = vpop.f32.mrf.mxu0
        %v1538 = vadd.f32 %v1323, %v1537
        %v1539 = vpop.f32.mrf.mxu0
        %1540 = vmatprep.mubr.bf16.mxu0 0
        %1541 = vmatmul.mubr.bf16.gmra.mxu0 %v1401
        %v1542 = vpop.f32.mrf.mxu0
        %v1543 = vadd.f32 %v1328, %v1542
        %v1544 = vpop.f32.mrf.mxu0
        %v1545 = vpop.f32.mrf.mxu0
        %v1546 = vadd.f32 %v1331, %v1545
        %v1547 = vpop.f32.mrf.mxu0
        %1548 = vmatprep.mubr.bf16.mxu0 0
        %1549 = vmatmul.mubr.bf16.gmra.mxu0 %v1404
        %v1550 = vpop.f32.mrf.mxu0
        %v1551 = vadd.f32 %v1336, %v1550
        %v1552 = vpop.f32.mrf.mxu0
        %v1553 = vpop.f32.mrf.mxu0
        %v1554 = vadd.f32 %v1339, %v1553
        %v1555 = vpop.f32.mrf.mxu0
        %1556 = vmatprep.mubr.bf16.mxu0 0
        %1557 = vmatmul.mubr.bf16.gmra.mxu0 %v1407
        %v1558 = vpop.f32.mrf.mxu0
        %v1559 = vadd.f32 %v1344, %v1558
        %v1560 = vpop.f32.mrf.mxu0
        %v1561 = vpop.f32.mrf.mxu0
        %v1562 = vadd.f32 %v1347, %v1561
        %v1563 = vpop.f32.mrf.mxu0
        %1564 = vmatprep.mubr.bf16.mxu0 0
        %1565 = vmatmul.mubr.bf16.gmra.mxu0 %v1410
        %v1566 = vpop.f32.mrf.mxu0
        %v1567 = vadd.f32 %v1352, %v1566
        %v1568 = vpop.f32.mrf.mxu0
        %v1569 = vpop.f32.mrf.mxu0
        %v1570 = vadd.f32 %v1355, %v1569
        %v1571 = vpop.f32.mrf.mxu0
        %1572 = vdwg.mxu0
        %v1573 = vpack.c.bf16 %v883, %v882
        %v1574 = vpack.c.bf16 %v885, %v884
        %v1575 = vpack.c.bf16 %v887, %v886
        %v1576 = vpack.c.bf16 %v889, %v888
        %v1577 = vpack.c.bf16 %v891, %v890
        %v1578 = vpack.c.bf16 %v893, %v892
        %v1579 = vpack.c.bf16 %v895, %v894
        %v1580 = vpack.c.bf16 %v897, %v896
        %v1581 = vpack.c.bf16 %v899, %v898
        %v1582 = vpack.c.bf16 %v901, %v900
        %v1583 = vpack.c.bf16 %v903, %v902
        %v1584 = vpack.c.bf16 %v905, %v904
        %v1585 = vpack.c.bf16 %v907, %v906
        %v1586 = vpack.c.bf16 %v909, %v908
        %v1587 = vpack.c.bf16 %v911, %v910
        %v1588 = vpack.c.bf16 %v913, %v912
        %v1589 = vld [vmem:[%s3 + $0x10] sm:$0xf]
        %v1590 = vld [vmem:[%s3 + $0x14] sm:$0xf]
        %v1593 = vunpack.c.l.b16 %v1589
        %v1594 = vunpack.c.l.b16 %v1590
        %v1595 = vpack.c.b16 %v1594, %v1593
        %v1598 = vsel %vm729, %v1573, 0
        %v1601 = vsel %vm729, %v1574, 0
        %v1604 = vsel %vm729, %v1575, 0
        %v1607 = vsel %vm729, %v1576, 0
        %v1610 = vsel %vm729, %v1577, 0
        %v1613 = vsel %vm729, %v1578, 0
        %v1616 = vsel %vm729, %v1579, 0
        %v1619 = vsel %vm729, %v1580, 0
        %v1622 = vsel %vm729, %v1581, 0
        %v1625 = vsel %vm729, %v1582, 0
        %v1628 = vsel %vm729, %v1583, 0
        %v1631 = vsel %vm729, %v1584, 0
        %v1634 = vsel %vm729, %v1585, 0
        %v1637 = vsel %vm729, %v1586, 0
        %v1640 = vsel %vm729, %v1587, 0
        %v1643 = vsel %vm729, %v1588, 0
        %1645 = vmatprep.subr.bf16.mxu0 0
        %1646 = vmatpush1.bf16.msra.mxu0 0
        %1647 = vmatprep.subr.bf16.mxu0 0
        %1648 = vmatpush1.bf16.msra.mxu0 0
        %1649 = vmatprep.subr.bf16.mxu0 0
        %1650 = vmatpush1.bf16.msra.mxu0 0
        %1651 = vmatprep.subr.bf16.mxu0 0
        %1652 = vmatpush1.bf16.msra.mxu0 0
        %1653 = vmatprep.subr.bf16.mxu0 0
        %1654 = vmatpush1.bf16.msra.mxu0 0
        %1655 = vmatprep.subr.bf16.mxu0 0
        %1656 = vmatpush1.bf16.msra.mxu0 0
        %1657 = vmatprep.subr.bf16.mxu0 0
        %1658 = vmatpush1.bf16.msra.mxu0 0
        %1659 = vmatprep.subr.bf16.mxu0 0
        %1660 = vmatpush1.bf16.msra.mxu0 %v1595
        %1661 = vmatprep.subr.bf16.mxu0 0
        %1662 = vmatpush2.bf16.msra.mxu0 0
        %1663 = vmatprep.subr.bf16.mxu0 0
        %1664 = vmatpush2.bf16.msra.mxu0 0
        %1665 = vmatprep.subr.bf16.mxu0 0
        %1666 = vmatpush2.bf16.msra.mxu0 0
        %1667 = vmatprep.subr.bf16.mxu0 0
        %1668 = vmatpush2.bf16.msra.mxu0 0
        %1669 = vmatprep.subr.bf16.mxu0 0
        %1670 = vmatpush2.bf16.msra.mxu0 0
        %1671 = vmatprep.subr.bf16.mxu0 0
        %1672 = vmatpush2.bf16.msra.mxu0 0
        %1673 = vmatprep.subr.bf16.mxu0 0
        %1674 = vmatpush2.bf16.msra.mxu0 0
        %1675 = vmatprep.subr.bf16.mxu0 0
        %1676 = vmatpush2.bf16.msra.mxu0 0
        %1677 = vmatprep.mubr.bf16.mxu0 0
        %1678 = vmatmul.mubr.bf16.gmra.mxu0 %v1598
        %v1679 = vpop.f32.mrf.mxu0
        %v1680 = vadd.f32 0.0, %v1679
        %v1681 = vpop.f32.mrf.mxu0
        %v1682 = vpop.f32.mrf.mxu0
        %v1683 = vadd.f32 0.0, %v1682
        %v1684 = vpop.f32.mrf.mxu0
        %1685 = vmatprep.mubr.bf16.mxu0 0
        %1686 = vmatmul.mubr.bf16.gmra.mxu0 %v1601
        %v1687 = vpop.f32.mrf.mxu0
        %v1688 = vadd.f32 0.0, %v1687
        %v1689 = vpop.f32.mrf.mxu0
        %v1690 = vpop.f32.mrf.mxu0
        %v1691 = vadd.f32 0.0, %v1690
        %v1692 = vpop.f32.mrf.mxu0
        %1693 = vmatprep.mubr.bf16.mxu0 0
        %1694 = vmatmul.mubr.bf16.gmra.mxu0 %v1604
        %v1695 = vpop.f32.mrf.mxu0
        %v1696 = vadd.f32 0.0, %v1695
        %v1697 = vpop.f32.mrf.mxu0
        %v1698 = vpop.f32.mrf.mxu0
        %v1699 = vadd.f32 0.0, %v1698
        %v1700 = vpop.f32.mrf.mxu0
        %1701 = vmatprep.mubr.bf16.mxu0 0
        %1702 = vmatmul.mubr.bf16.gmra.mxu0 %v1607
        %v1703 = vpop.f32.mrf.mxu0
        %v1704 = vadd.f32 0.0, %v1703
        %v1705 = vpop.f32.mrf.mxu0
        %v1706 = vpop.f32.mrf.mxu0
        %v1707 = vadd.f32 0.0, %v1706
        %v1708 = vpop.f32.mrf.mxu0
        %1709 = vmatprep.mubr.bf16.mxu0 0
        %1710 = vmatmul.mubr.bf16.gmra.mxu0 %v1610
        %v1711 = vpop.f32.mrf.mxu0
        %v1712 = vadd.f32 0.0, %v1711
        %v1713 = vpop.f32.mrf.mxu0
        %v1714 = vpop.f32.mrf.mxu0
        %v1715 = vadd.f32 0.0, %v1714
        %v1716 = vpop.f32.mrf.mxu0
        %1717 = vmatprep.mubr.bf16.mxu0 0
        %1718 = vmatmul.mubr.bf16.gmra.mxu0 %v1613
        %v1719 = vpop.f32.mrf.mxu0
        %v1720 = vadd.f32 0.0, %v1719
        %v1721 = vpop.f32.mrf.mxu0
        %v1722 = vpop.f32.mrf.mxu0
        %v1723 = vadd.f32 0.0, %v1722
        %v1724 = vpop.f32.mrf.mxu0
        %1725 = vmatprep.mubr.bf16.mxu0 0
        %1726 = vmatmul.mubr.bf16.gmra.mxu0 %v1616
        %v1727 = vpop.f32.mrf.mxu0
        %v1728 = vadd.f32 0.0, %v1727
        %v1729 = vpop.f32.mrf.mxu0
        %v1730 = vpop.f32.mrf.mxu0
        %v1731 = vadd.f32 0.0, %v1730
        %v1732 = vpop.f32.mrf.mxu0
        %1733 = vmatprep.mubr.bf16.mxu0 0
        %1734 = vmatmul.mubr.bf16.gmra.mxu0 %v1619
        %v1735 = vpop.f32.mrf.mxu0
        %v1736 = vadd.f32 0.0, %v1735
        %v1737 = vpop.f32.mrf.mxu0
        %v1738 = vpop.f32.mrf.mxu0
        %v1739 = vadd.f32 0.0, %v1738
        %v1740 = vpop.f32.mrf.mxu0
        %1741 = vmatprep.mubr.bf16.mxu0 0
        %1742 = vmatmul.mubr.bf16.gmra.mxu0 %v1622
        %v1743 = vpop.f32.mrf.mxu0
        %v1744 = vadd.f32 0.0, %v1743
        %v1745 = vpop.f32.mrf.mxu0
        %v1746 = vpop.f32.mrf.mxu0
        %v1747 = vadd.f32 0.0, %v1746
        %v1748 = vpop.f32.mrf.mxu0
        %1749 = vmatprep.mubr.bf16.mxu0 0
        %1750 = vmatmul.mubr.bf16.gmra.mxu0 %v1625
        %v1751 = vpop.f32.mrf.mxu0
        %v1752 = vadd.f32 0.0, %v1751
        %v1753 = vpop.f32.mrf.mxu0
        %v1754 = vpop.f32.mrf.mxu0
        %v1755 = vadd.f32 0.0, %v1754
        %v1756 = vpop.f32.mrf.mxu0
        %1757 = vmatprep.mubr.bf16.mxu0 0
        %1758 = vmatmul.mubr.bf16.gmra.mxu0 %v1628
        %v1759 = vpop.f32.mrf.mxu0
        %v1760 = vadd.f32 0.0, %v1759
        %v1761 = vpop.f32.mrf.mxu0
        %v1762 = vpop.f32.mrf.mxu0
        %v1763 = vadd.f32 0.0, %v1762
        %v1764 = vpop.f32.mrf.mxu0
        %1765 = vmatprep.mubr.bf16.mxu0 0
        %1766 = vmatmul.mubr.bf16.gmra.mxu0 %v1631
        %v1767 = vpop.f32.mrf.mxu0
        %v1768 = vadd.f32 0.0, %v1767
        %v1769 = vpop.f32.mrf.mxu0
        %v1770 = vpop.f32.mrf.mxu0
        %v1771 = vadd.f32 0.0, %v1770
        %v1772 = vpop.f32.mrf.mxu0
        %1773 = vmatprep.mubr.bf16.mxu0 0
        %1774 = vmatmul.mubr.bf16.gmra.mxu0 %v1634
        %v1775 = vpop.f32.mrf.mxu0
        %v1776 = vadd.f32 0.0, %v1775
        %v1777 = vpop.f32.mrf.mxu0
        %v1778 = vpop.f32.mrf.mxu0
        %v1779 = vadd.f32 0.0, %v1778
        %v1780 = vpop.f32.mrf.mxu0
        %1781 = vmatprep.mubr.bf16.mxu0 0
        %1782 = vmatmul.mubr.bf16.gmra.mxu0 %v1637
        %v1783 = vpop.f32.mrf.mxu0
        %v1784 = vadd.f32 0.0, %v1783
        %v1785 = vpop.f32.mrf.mxu0
        %v1786 = vpop.f32.mrf.mxu0
        %v1787 = vadd.f32 0.0, %v1786
        %v1788 = vpop.f32.mrf.mxu0
        %1789 = vmatprep.mubr.bf16.mxu0 0
        %1790 = vmatmul.mubr.bf16.gmra.mxu0 %v1640
        %v1791 = vpop.f32.mrf.mxu0
        %v1792 = vadd.f32 0.0, %v1791
        %v1793 = vpop.f32.mrf.mxu0
        %v1794 = vpop.f32.mrf.mxu0
        %v1795 = vadd.f32 0.0, %v1794
        %v1796 = vpop.f32.mrf.mxu0
        %1797 = vmatprep.mubr.bf16.mxu0 0
        %1798 = vmatmul.mubr.bf16.gmra.mxu0 %v1643
        %v1799 = vpop.f32.mrf.mxu0
        %v1800 = vadd.f32 0.0, %v1799
        %v1801 = vpop.f32.mrf.mxu0
        %v1802 = vpop.f32.mrf.mxu0
        %v1803 = vadd.f32 0.0, %v1802
        %v1804 = vpop.f32.mrf.mxu0
        %1805 = vdwg.mxu0
        %v1806 = vadd.f32 %v1447, %v1680
        %v1807 = vadd.f32 %v1450, %v1683
        %v1808 = vadd.f32 %v1455, %v1688
        %v1809 = vadd.f32 %v1458, %v1691
        %v1810 = vadd.f32 %v1463, %v1696
        %v1811 = vadd.f32 %v1466, %v1699
        %v1812 = vadd.f32 %v1471, %v1704
        %v1813 = vadd.f32 %v1474, %v1707
        %v1814 = vadd.f32 %v1479, %v1712
        %v1815 = vadd.f32 %v1482, %v1715
        %v1816 = vadd.f32 %v1487, %v1720
        %v1817 = vadd.f32 %v1490, %v1723
        %v1818 = vadd.f32 %v1495, %v1728
        %v1819 = vadd.f32 %v1498, %v1731
        %v1820 = vadd.f32 %v1503, %v1736
        %v1821 = vadd.f32 %v1506, %v1739
        %v1822 = vadd.f32 %v1511, %v1744
        %v1823 = vadd.f32 %v1514, %v1747
        %v1824 = vadd.f32 %v1519, %v1752
        %v1825 = vadd.f32 %v1522, %v1755
        %v1826 = vadd.f32 %v1527, %v1760
        %v1827 = vadd.f32 %v1530, %v1763
        %v1828 = vadd.f32 %v1535, %v1768
        %v1829 = vadd.f32 %v1538, %v1771
        %v1830 = vadd.f32 %v1543, %v1776
        %v1831 = vadd.f32 %v1546, %v1779
        %v1832 = vadd.f32 %v1551, %v1784
        %v1833 = vadd.f32 %v1554, %v1787
        %v1834 = vadd.f32 %v1559, %v1792
        %v1835 = vadd.f32 %v1562, %v1795
        %v1836 = vadd.f32 %v1567, %v1800
        %v1837 = vadd.f32 %v1570, %v1803
        %v1838 = vpack.c.bf16 %v915, %v914
        %v1839 = vpack.c.bf16 %v917, %v916
        %v1840 = vpack.c.bf16 %v919, %v918
        %v1841 = vpack.c.bf16 %v921, %v920
        %v1842 = vpack.c.bf16 %v923, %v922
        %v1843 = vpack.c.bf16 %v925, %v924
        %v1844 = vpack.c.bf16 %v927, %v926
        %v1845 = vpack.c.bf16 %v929, %v928
        %v1846 = vpack.c.bf16 %v931, %v930
        %v1847 = vpack.c.bf16 %v933, %v932
        %v1848 = vpack.c.bf16 %v935, %v934
        %v1849 = vpack.c.bf16 %v937, %v936
        %v1850 = vpack.c.bf16 %v939, %v938
        %v1851 = vpack.c.bf16 %v941, %v940
        %v1852 = vpack.c.bf16 %v943, %v942
        %v1853 = vpack.c.bf16 %v945, %v944
        %v1854 = vld [vmem:[%s3 + $0x18] sm:$0xf]
        %v1855 = vld [vmem:[%s3 + $0x1c] sm:$0xf]
        %v1858 = vunpack.c.l.b16 %v1854
        %v1859 = vunpack.c.l.b16 %v1855
        %v1860 = vpack.c.b16 %v1859, %v1858
        %v1863 = vsel %vm729, %v1838, 0
        %v1866 = vsel %vm729, %v1839, 0
        %v1869 = vsel %vm729, %v1840, 0
        %v1872 = vsel %vm729, %v1841, 0
        %v1875 = vsel %vm729, %v1842, 0
        %v1878 = vsel %vm729, %v1843, 0
        %v1881 = vsel %vm729, %v1844, 0
        %v1884 = vsel %vm729, %v1845, 0
        %v1887 = vsel %vm729, %v1846, 0
        %v1890 = vsel %vm729, %v1847, 0
        %v1893 = vsel %vm729, %v1848, 0
        %v1896 = vsel %vm729, %v1849, 0
        %v1899 = vsel %vm729, %v1850, 0
        %v1902 = vsel %vm729, %v1851, 0
        %v1905 = vsel %vm729, %v1852, 0
        %v1908 = vsel %vm729, %v1853, 0
        %1910 = vmatprep.subr.bf16.mxu0 0
        %1911 = vmatpush1.bf16.msra.mxu0 0
        %1912 = vmatprep.subr.bf16.mxu0 0
        %1913 = vmatpush1.bf16.msra.mxu0 0
        %1914 = vmatprep.subr.bf16.mxu0 0
        %1915 = vmatpush1.bf16.msra.mxu0 0
        %1916 = vmatprep.subr.bf16.mxu0 0
        %1917 = vmatpush1.bf16.msra.mxu0 0
        %1918 = vmatprep.subr.bf16.mxu0 0
        %1919 = vmatpush1.bf16.msra.mxu0 0
        %1920 = vmatprep.subr.bf16.mxu0 0
        %1921 = vmatpush1.bf16.msra.mxu0 0
        %1922 = vmatprep.subr.bf16.mxu0 0
        %1923 = vmatpush1.bf16.msra.mxu0 0
        %1924 = vmatprep.subr.bf16.mxu0 0
        %1925 = vmatpush1.bf16.msra.mxu0 %v1860
        %1926 = vmatprep.subr.bf16.mxu0 0
        %1927 = vmatpush2.bf16.msra.mxu0 0
        %1928 = vmatprep.subr.bf16.mxu0 0
        %1929 = vmatpush2.bf16.msra.mxu0 0
        %1930 = vmatprep.subr.bf16.mxu0 0
        %1931 = vmatpush2.bf16.msra.mxu0 0
        %1932 = vmatprep.subr.bf16.mxu0 0
        %1933 = vmatpush2.bf16.msra.mxu0 0
        %1934 = vmatprep.subr.bf16.mxu0 0
        %1935 = vmatpush2.bf16.msra.mxu0 0
        %1936 = vmatprep.subr.bf16.mxu0 0
        %1937 = vmatpush2.bf16.msra.mxu0 0
        %1938 = vmatprep.subr.bf16.mxu0 0
        %1939 = vmatpush2.bf16.msra.mxu0 0
        %1940 = vmatprep.subr.bf16.mxu0 0
        %1941 = vmatpush2.bf16.msra.mxu0 0
        %1942 = vmatprep.mubr.bf16.mxu0 0
        %1943 = vmatmul.mubr.bf16.gmra.mxu0 %v1863
        %v1944 = vpop.f32.mrf.mxu0
        %v1945 = vadd.f32 0.0, %v1944
        %v1946 = vpop.f32.mrf.mxu0
        %v1947 = vpop.f32.mrf.mxu0
        %v1948 = vadd.f32 0.0, %v1947
        %v1949 = vpop.f32.mrf.mxu0
        %1950 = vmatprep.mubr.bf16.mxu0 0
        %1951 = vmatmul.mubr.bf16.gmra.mxu0 %v1866
        %v1952 = vpop.f32.mrf.mxu0
        %v1953 = vadd.f32 0.0, %v1952
        %v1954 = vpop.f32.mrf.mxu0
        %v1955 = vpop.f32.mrf.mxu0
        %v1956 = vadd.f32 0.0, %v1955
        %v1957 = vpop.f32.mrf.mxu0
        %1958 = vmatprep.mubr.bf16.mxu0 0
        %1959 = vmatmul.mubr.bf16.gmra.mxu0 %v1869
        %v1960 = vpop.f32.mrf.mxu0
        %v1961 = vadd.f32 0.0, %v1960
        %v1962 = vpop.f32.mrf.mxu0
        %v1963 = vpop.f32.mrf.mxu0
        %v1964 = vadd.f32 0.0, %v1963
        %v1965 = vpop.f32.mrf.mxu0
        %1966 = vmatprep.mubr.bf16.mxu0 0
        %1967 = vmatmul.mubr.bf16.gmra.mxu0 %v1872
        %v1968 = vpop.f32.mrf.mxu0
        %v1969 = vadd.f32 0.0, %v1968
        %v1970 = vpop.f32.mrf.mxu0
        %v1971 = vpop.f32.mrf.mxu0
        %v1972 = vadd.f32 0.0, %v1971
        %v1973 = vpop.f32.mrf.mxu0
        %1974 = vmatprep.mubr.bf16.mxu0 0
        %1975 = vmatmul.mubr.bf16.gmra.mxu0 %v1875
        %v1976 = vpop.f32.mrf.mxu0
        %v1977 = vadd.f32 0.0, %v1976
        %v1978 = vpop.f32.mrf.mxu0
        %v1979 = vpop.f32.mrf.mxu0
        %v1980 = vadd.f32 0.0, %v1979
        %v1981 = vpop.f32.mrf.mxu0
        %1982 = vmatprep.mubr.bf16.mxu0 0
        %1983 = vmatmul.mubr.bf16.gmra.mxu0 %v1878
        %v1984 = vpop.f32.mrf.mxu0
        %v1985 = vadd.f32 0.0, %v1984
        %v1986 = vpop.f32.mrf.mxu0
        %v1987 = vpop.f32.mrf.mxu0
        %v1988 = vadd.f32 0.0, %v1987
        %v1989 = vpop.f32.mrf.mxu0
        %1990 = vmatprep.mubr.bf16.mxu0 0
        %1991 = vmatmul.mubr.bf16.gmra.mxu0 %v1881
        %v1992 = vpop.f32.mrf.mxu0
        %v1993 = vadd.f32 0.0, %v1992
        %v1994 = vpop.f32.mrf.mxu0
        %v1995 = vpop.f32.mrf.mxu0
        %v1996 = vadd.f32 0.0, %v1995
        %v1997 = vpop.f32.mrf.mxu0
        %1998 = vmatprep.mubr.bf16.mxu0 0
        %1999 = vmatmul.mubr.bf16.gmra.mxu0 %v1884
        %v2000 = vpop.f32.mrf.mxu0
        %v2001 = vadd.f32 0.0, %v2000
        %v2002 = vpop.f32.mrf.mxu0
        %v2003 = vpop.f32.mrf.mxu0
        %v2004 = vadd.f32 0.0, %v2003
        %v2005 = vpop.f32.mrf.mxu0
        %2006 = vmatprep.mubr.bf16.mxu0 0
        %2007 = vmatmul.mubr.bf16.gmra.mxu0 %v1887
        %v2008 = vpop.f32.mrf.mxu0
        %v2009 = vadd.f32 0.0, %v2008
        %v2010 = vpop.f32.mrf.mxu0
        %v2011 = vpop.f32.mrf.mxu0
        %v2012 = vadd.f32 0.0, %v2011
        %v2013 = vpop.f32.mrf.mxu0
        %2014 = vmatprep.mubr.bf16.mxu0 0
        %2015 = vmatmul.mubr.bf16.gmra.mxu0 %v1890
        %v2016 = vpop.f32.mrf.mxu0
        %v2017 = vadd.f32 0.0, %v2016
        %v2018 = vpop.f32.mrf.mxu0
        %v2019 = vpop.f32.mrf.mxu0
        %v2020 = vadd.f32 0.0, %v2019
        %v2021 = vpop.f32.mrf.mxu0
        %2022 = vmatprep.mubr.bf16.mxu0 0
        %2023 = vmatmul.mubr.bf16.gmra.mxu0 %v1893
        %v2024 = vpop.f32.mrf.mxu0
        %v2025 = vadd.f32 0.0, %v2024
        %v2026 = vpop.f32.mrf.mxu0
        %v2027 = vpop.f32.mrf.mxu0
        %v2028 = vadd.f32 0.0, %v2027
        %v2029 = vpop.f32.mrf.mxu0
        %2030 = vmatprep.mubr.bf16.mxu0 0
        %2031 = vmatmul.mubr.bf16.gmra.mxu0 %v1896
        %v2032 = vpop.f32.mrf.mxu0
        %v2033 = vadd.f32 0.0, %v2032
        %v2034 = vpop.f32.mrf.mxu0
        %v2035 = vpop.f32.mrf.mxu0
        %v2036 = vadd.f32 0.0, %v2035
        %v2037 = vpop.f32.mrf.mxu0
        %2038 = vmatprep.mubr.bf16.mxu0 0
        %2039 = vmatmul.mubr.bf16.gmra.mxu0 %v1899
        %v2040 = vpop.f32.mrf.mxu0
        %v2041 = vadd.f32 0.0, %v2040
        %v2042 = vpop.f32.mrf.mxu0
        %v2043 = vpop.f32.mrf.mxu0
        %v2044 = vadd.f32 0.0, %v2043
        %v2045 = vpop.f32.mrf.mxu0
        %2046 = vmatprep.mubr.bf16.mxu0 0
        %2047 = vmatmul.mubr.bf16.gmra.mxu0 %v1902
        %v2048 = vpop.f32.mrf.mxu0
        %v2049 = vadd.f32 0.0, %v2048
        %v2050 = vpop.f32.mrf.mxu0
        %v2051 = vpop.f32.mrf.mxu0
        %v2052 = vadd.f32 0.0, %v2051
        %v2053 = vpop.f32.mrf.mxu0
        %2054 = vmatprep.mubr.bf16.mxu0 0
        %2055 = vmatmul.mubr.bf16.gmra.mxu0 %v1905
        %v2056 = vpop.f32.mrf.mxu0
        %v2057 = vadd.f32 0.0, %v2056
        %v2058 = vpop.f32.mrf.mxu0
        %v2059 = vpop.f32.mrf.mxu0
        %v2060 = vadd.f32 0.0, %v2059
        %v2061 = vpop.f32.mrf.mxu0
        %2062 = vmatprep.mubr.bf16.mxu0 0
        %2063 = vmatmul.mubr.bf16.gmra.mxu0 %v1908
        %v2064 = vpop.f32.mrf.mxu0
        %v2065 = vadd.f32 0.0, %v2064
        %v2066 = vpop.f32.mrf.mxu0
        %v2067 = vpop.f32.mrf.mxu0
        %v2068 = vadd.f32 0.0, %v2067
        %v2069 = vpop.f32.mrf.mxu0
        %2070 = vdwg.mxu0
        %v2071 = vadd.f32 %v1806, %v1945
        %v2072 = vadd.f32 %v1807, %v1948
        %v2073 = vadd.f32 %v1808, %v1953
        %v2074 = vadd.f32 %v1809, %v1956
        %v2075 = vadd.f32 %v1810, %v1961
        %v2076 = vadd.f32 %v1811, %v1964
        %v2077 = vadd.f32 %v1812, %v1969
        %v2078 = vadd.f32 %v1813, %v1972
        %v2079 = vadd.f32 %v1814, %v1977
        %v2080 = vadd.f32 %v1815, %v1980
        %v2081 = vadd.f32 %v1816, %v1985
        %v2082 = vadd.f32 %v1817, %v1988
        %v2083 = vadd.f32 %v1818, %v1993
        %v2084 = vadd.f32 %v1819, %v1996
        %v2085 = vadd.f32 %v1820, %v2001
        %v2086 = vadd.f32 %v1821, %v2004
        %v2087 = vadd.f32 %v1822, %v2009
        %v2088 = vadd.f32 %v1823, %v2012
        %v2089 = vadd.f32 %v1824, %v2017
        %v2090 = vadd.f32 %v1825, %v2020
        %v2091 = vadd.f32 %v1826, %v2025
        %v2092 = vadd.f32 %v1827, %v2028
        %v2093 = vadd.f32 %v1828, %v2033
        %v2094 = vadd.f32 %v1829, %v2036
        %v2095 = vadd.f32 %v1830, %v2041
        %v2096 = vadd.f32 %v1831, %v2044
        %v2097 = vadd.f32 %v1832, %v2049
        %v2098 = vadd.f32 %v1833, %v2052
        %v2099 = vadd.f32 %v1834, %v2057
        %v2100 = vadd.f32 %v1835, %v2060
        %v2101 = vadd.f32 %v1836, %v2065
        %v2102 = vadd.f32 %v1837, %v2068
        %v2103 = vpack.c.bf16 %v947, %v946
        %v2104 = vpack.c.bf16 %v949, %v948
        %v2105 = vpack.c.bf16 %v951, %v950
        %v2106 = vpack.c.bf16 %v953, %v952
        %v2107 = vpack.c.bf16 %v955, %v954
        %v2108 = vpack.c.bf16 %v957, %v956
        %v2109 = vpack.c.bf16 %v959, %v958
        %v2110 = vpack.c.bf16 %v961, %v960
        %v2111 = vpack.c.bf16 %v963, %v962
        %v2112 = vpack.c.bf16 %v965, %v964
        %v2113 = vpack.c.bf16 %v967, %v966
        %v2114 = vpack.c.bf16 %v969, %v968
        %v2115 = vpack.c.bf16 %v971, %v970
        %v2116 = vpack.c.bf16 %v973, %v972
        %v2117 = vpack.c.bf16 %v975, %v974
        %v2118 = vpack.c.bf16 %v977, %v976
        %v2119 = vld [vmem:[%s3 + $0x20] sm:$0xf]
        %v2120 = vld [vmem:[%s3 + $0x24] sm:$0xf]
        %v2123 = vunpack.c.l.b16 %v2119
        %v2124 = vunpack.c.l.b16 %v2120
        %v2125 = vpack.c.b16 %v2124, %v2123
        %v2128 = vsel %vm729, %v2103, 0
        %v2131 = vsel %vm729, %v2104, 0
        %v2134 = vsel %vm729, %v2105, 0
        %v2137 = vsel %vm729, %v2106, 0
        %v2140 = vsel %vm729, %v2107, 0
        %v2143 = vsel %vm729, %v2108, 0
        %v2146 = vsel %vm729, %v2109, 0
        %v2149 = vsel %vm729, %v2110, 0
        %v2152 = vsel %vm729, %v2111, 0
        %v2155 = vsel %vm729, %v2112, 0
        %v2158 = vsel %vm729, %v2113, 0
        %v2161 = vsel %vm729, %v2114, 0
        %v2164 = vsel %vm729, %v2115, 0
        %v2167 = vsel %vm729, %v2116, 0
        %v2170 = vsel %vm729, %v2117, 0
        %v2173 = vsel %vm729, %v2118, 0
        %2175 = vmatprep.subr.bf16.mxu0 0
        %2176 = vmatpush1.bf16.msra.mxu0 0
        %2177 = vmatprep.subr.bf16.mxu0 0
        %2178 = vmatpush1.bf16.msra.mxu0 0
        %2179 = vmatprep.subr.bf16.mxu0 0
        %2180 = vmatpush1.bf16.msra.mxu0 0
        %2181 = vmatprep.subr.bf16.mxu0 0
        %2182 = vmatpush1.bf16.msra.mxu0 0
        %2183 = vmatprep.subr.bf16.mxu0 0
        %2184 = vmatpush1.bf16.msra.mxu0 0
        %2185 = vmatprep.subr.bf16.mxu0 0
        %2186 = vmatpush1.bf16.msra.mxu0 0
        %2187 = vmatprep.subr.bf16.mxu0 0
        %2188 = vmatpush1.bf16.msra.mxu0 0
        %2189 = vmatprep.subr.bf16.mxu0 0
        %2190 = vmatpush1.bf16.msra.mxu0 %v2125
        %2191 = vmatprep.subr.bf16.mxu0 0
        %2192 = vmatpush2.bf16.msra.mxu0 0
        %2193 = vmatprep.subr.bf16.mxu0 0
        %2194 = vmatpush2.bf16.msra.mxu0 0
        %2195 = vmatprep.subr.bf16.mxu0 0
        %2196 = vmatpush2.bf16.msra.mxu0 0
        %2197 = vmatprep.subr.bf16.mxu0 0
        %2198 = vmatpush2.bf16.msra.mxu0 0
        %2199 = vmatprep.subr.bf16.mxu0 0
        %2200 = vmatpush2.bf16.msra.mxu0 0
        %2201 = vmatprep.subr.bf16.mxu0 0
        %2202 = vmatpush2.bf16.msra.mxu0 0
        %2203 = vmatprep.subr.bf16.mxu0 0
        %2204 = vmatpush2.bf16.msra.mxu0 0
        %2205 = vmatprep.subr.bf16.mxu0 0
        %2206 = vmatpush2.bf16.msra.mxu0 0
        %2207 = vmatprep.mubr.bf16.mxu0 0
        %2208 = vmatmul.mubr.bf16.gmra.mxu0 %v2128
        %v2209 = vpop.f32.mrf.mxu0
        %v2210 = vadd.f32 0.0, %v2209
        %v2211 = vpop.f32.mrf.mxu0
        %v2212 = vpop.f32.mrf.mxu0
        %v2213 = vadd.f32 0.0, %v2212
        %v2214 = vpop.f32.mrf.mxu0
        %2215 = vmatprep.mubr.bf16.mxu0 0
        %2216 = vmatmul.mubr.bf16.gmra.mxu0 %v2131
        %v2217 = vpop.f32.mrf.mxu0
        %v2218 = vadd.f32 0.0, %v2217
        %v2219 = vpop.f32.mrf.mxu0
        %v2220 = vpop.f32.mrf.mxu0
        %v2221 = vadd.f32 0.0, %v2220
        %v2222 = vpop.f32.mrf.mxu0
        %2223 = vmatprep.mubr.bf16.mxu0 0
        %2224 = vmatmul.mubr.bf16.gmra.mxu0 %v2134
        %v2225 = vpop.f32.mrf.mxu0
        %v2226 = vadd.f32 0.0, %v2225
        %v2227 = vpop.f32.mrf.mxu0
        %v2228 = vpop.f32.mrf.mxu0
        %v2229 = vadd.f32 0.0, %v2228
        %v2230 = vpop.f32.mrf.mxu0
        %2231 = vmatprep.mubr.bf16.mxu0 0
        %2232 = vmatmul.mubr.bf16.gmra.mxu0 %v2137
        %v2233 = vpop.f32.mrf.mxu0
        %v2234 = vadd.f32 0.0, %v2233
        %v2235 = vpop.f32.mrf.mxu0
        %v2236 = vpop.f32.mrf.mxu0
        %v2237 = vadd.f32 0.0, %v2236
        %v2238 = vpop.f32.mrf.mxu0
        %2239 = vmatprep.mubr.bf16.mxu0 0
        %2240 = vmatmul.mubr.bf16.gmra.mxu0 %v2140
        %v2241 = vpop.f32.mrf.mxu0
        %v2242 = vadd.f32 0.0, %v2241
        %v2243 = vpop.f32.mrf.mxu0
        %v2244 = vpop.f32.mrf.mxu0
        %v2245 = vadd.f32 0.0, %v2244
        %v2246 = vpop.f32.mrf.mxu0
        %2247 = vmatprep.mubr.bf16.mxu0 0
        %2248 = vmatmul.mubr.bf16.gmra.mxu0 %v2143
        %v2249 = vpop.f32.mrf.mxu0
        %v2250 = vadd.f32 0.0, %v2249
        %v2251 = vpop.f32.mrf.mxu0
        %v2252 = vpop.f32.mrf.mxu0
        %v2253 = vadd.f32 0.0, %v2252
        %v2254 = vpop.f32.mrf.mxu0
        %2255 = vmatprep.mubr.bf16.mxu0 0
        %2256 = vmatmul.mubr.bf16.gmra.mxu0 %v2146
        %v2257 = vpop.f32.mrf.mxu0
        %v2258 = vadd.f32 0.0, %v2257
        %v2259 = vpop.f32.mrf.mxu0
        %v2260 = vpop.f32.mrf.mxu0
        %v2261 = vadd.f32 0.0, %v2260
        %v2262 = vpop.f32.mrf.mxu0
        %2263 = vmatprep.mubr.bf16.mxu0 0
        %2264 = vmatmul.mubr.bf16.gmra.mxu0 %v2149
        %v2265 = vpop.f32.mrf.mxu0
        %v2266 = vadd.f32 0.0, %v2265
        %v2267 = vpop.f32.mrf.mxu0
        %v2268 = vpop.f32.mrf.mxu0
        %v2269 = vadd.f32 0.0, %v2268
        %v2270 = vpop.f32.mrf.mxu0
        %2271 = vmatprep.mubr.bf16.mxu0 0
        %2272 = vmatmul.mubr.bf16.gmra.mxu0 %v2152
        %v2273 = vpop.f32.mrf.mxu0
        %v2274 = vadd.f32 0.0, %v2273
        %v2275 = vpop.f32.mrf.mxu0
        %v2276 = vpop.f32.mrf.mxu0
        %v2277 = vadd.f32 0.0, %v2276
        %v2278 = vpop.f32.mrf.mxu0
        %2279 = vmatprep.mubr.bf16.mxu0 0
        %2280 = vmatmul.mubr.bf16.gmra.mxu0 %v2155
        %v2281 = vpop.f32.mrf.mxu0
        %v2282 = vadd.f32 0.0, %v2281
        %v2283 = vpop.f32.mrf.mxu0
        %v2284 = vpop.f32.mrf.mxu0
        %v2285 = vadd.f32 0.0, %v2284
        %v2286 = vpop.f32.mrf.mxu0
        %2287 = vmatprep.mubr.bf16.mxu0 0
        %2288 = vmatmul.mubr.bf16.gmra.mxu0 %v2158
        %v2289 = vpop.f32.mrf.mxu0
        %v2290 = vadd.f32 0.0, %v2289
        %v2291 = vpop.f32.mrf.mxu0
        %v2292 = vpop.f32.mrf.mxu0
        %v2293 = vadd.f32 0.0, %v2292
        %v2294 = vpop.f32.mrf.mxu0
        %2295 = vmatprep.mubr.bf16.mxu0 0
        %2296 = vmatmul.mubr.bf16.gmra.mxu0 %v2161
        %v2297 = vpop.f32.mrf.mxu0
        %v2298 = vadd.f32 0.0, %v2297
        %v2299 = vpop.f32.mrf.mxu0
        %v2300 = vpop.f32.mrf.mxu0
        %v2301 = vadd.f32 0.0, %v2300
        %v2302 = vpop.f32.mrf.mxu0
        %2303 = vmatprep.mubr.bf16.mxu0 0
        %2304 = vmatmul.mubr.bf16.gmra.mxu0 %v2164
        %v2305 = vpop.f32.mrf.mxu0
        %v2306 = vadd.f32 0.0, %v2305
        %v2307 = vpop.f32.mrf.mxu0
        %v2308 = vpop.f32.mrf.mxu0
        %v2309 = vadd.f32 0.0, %v2308
        %v2310 = vpop.f32.mrf.mxu0
        %2311 = vmatprep.mubr.bf16.mxu0 0
        %2312 = vmatmul.mubr.bf16.gmra.mxu0 %v2167
        %v2313 = vpop.f32.mrf.mxu0
        %v2314 = vadd.f32 0.0, %v2313
        %v2315 = vpop.f32.mrf.mxu0
        %v2316 = vpop.f32.mrf.mxu0
        %v2317 = vadd.f32 0.0, %v2316
        %v2318 = vpop.f32.mrf.mxu0
        %2319 = vmatprep.mubr.bf16.mxu0 0
        %2320 = vmatmul.mubr.bf16.gmra.mxu0 %v2170
        %v2321 = vpop.f32.mrf.mxu0
        %v2322 = vadd.f32 0.0, %v2321
        %v2323 = vpop.f32.mrf.mxu0
        %v2324 = vpop.f32.mrf.mxu0
        %v2325 = vadd.f32 0.0, %v2324
        %v2326 = vpop.f32.mrf.mxu0
        %2327 = vmatprep.mubr.bf16.mxu0 0
        %2328 = vmatmul.mubr.bf16.gmra.mxu0 %v2173
        %v2329 = vpop.f32.mrf.mxu0
        %v2330 = vadd.f32 0.0, %v2329
        %v2331 = vpop.f32.mrf.mxu0
        %v2332 = vpop.f32.mrf.mxu0
        %v2333 = vadd.f32 0.0, %v2332
        %v2334 = vpop.f32.mrf.mxu0
        %2335 = vdwg.mxu0
        %v2336 = vadd.f32 %v2071, %v2210
        %v2337 = vadd.f32 %v2072, %v2213
        %v2338 = vadd.f32 %v2073, %v2218
        %v2339 = vadd.f32 %v2074, %v2221
        %v2340 = vadd.f32 %v2075, %v2226
        %v2341 = vadd.f32 %v2076, %v2229
        %v2342 = vadd.f32 %v2077, %v2234
        %v2343 = vadd.f32 %v2078, %v2237
        %v2344 = vadd.f32 %v2079, %v2242
        %v2345 = vadd.f32 %v2080, %v2245
        %v2346 = vadd.f32 %v2081, %v2250
        %v2347 = vadd.f32 %v2082, %v2253
        %v2348 = vadd.f32 %v2083, %v2258
        %v2349 = vadd.f32 %v2084, %v2261
        %v2350 = vadd.f32 %v2085, %v2266
        %v2351 = vadd.f32 %v2086, %v2269
        %v2352 = vadd.f32 %v2087, %v2274
        %v2353 = vadd.f32 %v2088, %v2277
        %v2354 = vadd.f32 %v2089, %v2282
        %v2355 = vadd.f32 %v2090, %v2285
        %v2356 = vadd.f32 %v2091, %v2290
        %v2357 = vadd.f32 %v2092, %v2293
        %v2358 = vadd.f32 %v2093, %v2298
        %v2359 = vadd.f32 %v2094, %v2301
        %v2360 = vadd.f32 %v2095, %v2306
        %v2361 = vadd.f32 %v2096, %v2309
        %v2362 = vadd.f32 %v2097, %v2314
        %v2363 = vadd.f32 %v2098, %v2317
        %v2364 = vadd.f32 %v2099, %v2322
        %v2365 = vadd.f32 %v2100, %v2325
        %v2366 = vadd.f32 %v2101, %v2330
        %v2367 = vadd.f32 %v2102, %v2333
        %v2368 = vpack.c.bf16 %v979, %v978
        %v2369 = vpack.c.bf16 %v981, %v980
        %v2370 = vpack.c.bf16 %v983, %v982
        %v2371 = vpack.c.bf16 %v985, %v984
        %v2372 = vpack.c.bf16 %v987, %v986
        %v2373 = vpack.c.bf16 %v989, %v988
        %v2374 = vpack.c.bf16 %v991, %v990
        %v2375 = vpack.c.bf16 %v993, %v992
        %v2376 = vpack.c.bf16 %v995, %v994
        %v2377 = vpack.c.bf16 %v997, %v996
        %v2378 = vpack.c.bf16 %v999, %v998
        %v2379 = vpack.c.bf16 %v1001, %v1000
        %v2380 = vpack.c.bf16 %v1003, %v1002
        %v2381 = vpack.c.bf16 %v1005, %v1004
        %v2382 = vpack.c.bf16 %v1007, %v1006
        %v2383 = vpack.c.bf16 %v1009, %v1008
        %v2384 = vld [vmem:[%s3 + $0x28] sm:$0xf]
        %v2385 = vld [vmem:[%s3 + $0x2c] sm:$0xf]
        %v2388 = vunpack.c.l.b16 %v2384
        %v2389 = vunpack.c.l.b16 %v2385
        %v2390 = vpack.c.b16 %v2389, %v2388
        %v2393 = vsel %vm729, %v2368, 0
        %v2396 = vsel %vm729, %v2369, 0
        %v2399 = vsel %vm729, %v2370, 0
        %v2402 = vsel %vm729, %v2371, 0
        %v2405 = vsel %vm729, %v2372, 0
        %v2408 = vsel %vm729, %v2373, 0
        %v2411 = vsel %vm729, %v2374, 0
        %v2414 = vsel %vm729, %v2375, 0
        %v2417 = vsel %vm729, %v2376, 0
        %v2420 = vsel %vm729, %v2377, 0
        %v2423 = vsel %vm729, %v2378, 0
        %v2426 = vsel %vm729, %v2379, 0
        %v2429 = vsel %vm729, %v2380, 0
        %v2432 = vsel %vm729, %v2381, 0
        %v2435 = vsel %vm729, %v2382, 0
        %v2438 = vsel %vm729, %v2383, 0
        %2440 = vmatprep.subr.bf16.mxu0 0
        %2441 = vmatpush1.bf16.msra.mxu0 0
        %2442 = vmatprep.subr.bf16.mxu0 0
        %2443 = vmatpush1.bf16.msra.mxu0 0
        %2444 = vmatprep.subr.bf16.mxu0 0
        %2445 = vmatpush1.bf16.msra.mxu0 0
        %2446 = vmatprep.subr.bf16.mxu0 0
        %2447 = vmatpush1.bf16.msra.mxu0 0
        %2448 = vmatprep.subr.bf16.mxu0 0
        %2449 = vmatpush1.bf16.msra.mxu0 0
        %2450 = vmatprep.subr.bf16.mxu0 0
        %2451 = vmatpush1.bf16.msra.mxu0 0
        %2452 = vmatprep.subr.bf16.mxu0 0
        %2453 = vmatpush1.bf16.msra.mxu0 0
        %2454 = vmatprep.subr.bf16.mxu0 0
        %2455 = vmatpush1.bf16.msra.mxu0 %v2390
        %2456 = vmatprep.subr.bf16.mxu0 0
        %2457 = vmatpush2.bf16.msra.mxu0 0
        %2458 = vmatprep.subr.bf16.mxu0 0
        %2459 = vmatpush2.bf16.msra.mxu0 0
        %2460 = vmatprep.subr.bf16.mxu0 0
        %2461 = vmatpush2.bf16.msra.mxu0 0
        %2462 = vmatprep.subr.bf16.mxu0 0
        %2463 = vmatpush2.bf16.msra.mxu0 0
        %2464 = vmatprep.subr.bf16.mxu0 0
        %2465 = vmatpush2.bf16.msra.mxu0 0
        %2466 = vmatprep.subr.bf16.mxu0 0
        %2467 = vmatpush2.bf16.msra.mxu0 0
        %2468 = vmatprep.subr.bf16.mxu0 0
        %2469 = vmatpush2.bf16.msra.mxu0 0
        %2470 = vmatprep.subr.bf16.mxu0 0
        %2471 = vmatpush2.bf16.msra.mxu0 0
        %2472 = vmatprep.mubr.bf16.mxu0 0
        %2473 = vmatmul.mubr.bf16.gmra.mxu0 %v2393
        %v2474 = vpop.f32.mrf.mxu0
        %v2475 = vadd.f32 0.0, %v2474
        %v2476 = vpop.f32.mrf.mxu0
        %v2477 = vpop.f32.mrf.mxu0
        %v2478 = vadd.f32 0.0, %v2477
        %v2479 = vpop.f32.mrf.mxu0
        %2480 = vmatprep.mubr.bf16.mxu0 0
        %2481 = vmatmul.mubr.bf16.gmra.mxu0 %v2396
        %v2482 = vpop.f32.mrf.mxu0
        %v2483 = vadd.f32 0.0, %v2482
        %v2484 = vpop.f32.mrf.mxu0
        %v2485 = vpop.f32.mrf.mxu0
        %v2486 = vadd.f32 0.0, %v2485
        %v2487 = vpop.f32.mrf.mxu0
        %2488 = vmatprep.mubr.bf16.mxu0 0
        %2489 = vmatmul.mubr.bf16.gmra.mxu0 %v2399
        %v2490 = vpop.f32.mrf.mxu0
        %v2491 = vadd.f32 0.0, %v2490
        %v2492 = vpop.f32.mrf.mxu0
        %v2493 = vpop.f32.mrf.mxu0
        %v2494 = vadd.f32 0.0, %v2493
        %v2495 = vpop.f32.mrf.mxu0
        %2496 = vmatprep.mubr.bf16.mxu0 0
        %2497 = vmatmul.mubr.bf16.gmra.mxu0 %v2402
        %v2498 = vpop.f32.mrf.mxu0
        %v2499 = vadd.f32 0.0, %v2498
        %v2500 = vpop.f32.mrf.mxu0
        %v2501 = vpop.f32.mrf.mxu0
        %v2502 = vadd.f32 0.0, %v2501
        %v2503 = vpop.f32.mrf.mxu0
        %2504 = vmatprep.mubr.bf16.mxu0 0
        %2505 = vmatmul.mubr.bf16.gmra.mxu0 %v2405
        %v2506 = vpop.f32.mrf.mxu0
        %v2507 = vadd.f32 0.0, %v2506
        %v2508 = vpop.f32.mrf.mxu0
        %v2509 = vpop.f32.mrf.mxu0
        %v2510 = vadd.f32 0.0, %v2509
        %v2511 = vpop.f32.mrf.mxu0
        %2512 = vmatprep.mubr.bf16.mxu0 0
        %2513 = vmatmul.mubr.bf16.gmra.mxu0 %v2408
        %v2514 = vpop.f32.mrf.mxu0
        %v2515 = vadd.f32 0.0, %v2514
        %v2516 = vpop.f32.mrf.mxu0
        %v2517 = vpop.f32.mrf.mxu0
        %v2518 = vadd.f32 0.0, %v2517
        %v2519 = vpop.f32.mrf.mxu0
        %2520 = vmatprep.mubr.bf16.mxu0 0
        %2521 = vmatmul.mubr.bf16.gmra.mxu0 %v2411
        %v2522 = vpop.f32.mrf.mxu0
        %v2523 = vadd.f32 0.0, %v2522
        %v2524 = vpop.f32.mrf.mxu0
        %v2525 = vpop.f32.mrf.mxu0
        %v2526 = vadd.f32 0.0, %v2525
        %v2527 = vpop.f32.mrf.mxu0
        %2528 = vmatprep.mubr.bf16.mxu0 0
        %2529 = vmatmul.mubr.bf16.gmra.mxu0 %v2414
        %v2530 = vpop.f32.mrf.mxu0
        %v2531 = vadd.f32 0.0, %v2530
        %v2532 = vpop.f32.mrf.mxu0
        %v2533 = vpop.f32.mrf.mxu0
        %v2534 = vadd.f32 0.0, %v2533
        %v2535 = vpop.f32.mrf.mxu0
        %2536 = vmatprep.mubr.bf16.mxu0 0
        %2537 = vmatmul.mubr.bf16.gmra.mxu0 %v2417
        %v2538 = vpop.f32.mrf.mxu0
        %v2539 = vadd.f32 0.0, %v2538
        %v2540 = vpop.f32.mrf.mxu0
        %v2541 = vpop.f32.mrf.mxu0
        %v2542 = vadd.f32 0.0, %v2541
        %v2543 = vpop.f32.mrf.mxu0
        %2544 = vmatprep.mubr.bf16.mxu0 0
        %2545 = vmatmul.mubr.bf16.gmra.mxu0 %v2420
        %v2546 = vpop.f32.mrf.mxu0
        %v2547 = vadd.f32 0.0, %v2546
        %v2548 = vpop.f32.mrf.mxu0
        %v2549 = vpop.f32.mrf.mxu0
        %v2550 = vadd.f32 0.0, %v2549
        %v2551 = vpop.f32.mrf.mxu0
        %2552 = vmatprep.mubr.bf16.mxu0 0
        %2553 = vmatmul.mubr.bf16.gmra.mxu0 %v2423
        %v2554 = vpop.f32.mrf.mxu0
        %v2555 = vadd.f32 0.0, %v2554
        %v2556 = vpop.f32.mrf.mxu0
        %v2557 = vpop.f32.mrf.mxu0
        %v2558 = vadd.f32 0.0, %v2557
        %v2559 = vpop.f32.mrf.mxu0
        %2560 = vmatprep.mubr.bf16.mxu0 0
        %2561 = vmatmul.mubr.bf16.gmra.mxu0 %v2426
        %v2562 = vpop.f32.mrf.mxu0
        %v2563 = vadd.f32 0.0, %v2562
        %v2564 = vpop.f32.mrf.mxu0
        %v2565 = vpop.f32.mrf.mxu0
        %v2566 = vadd.f32 0.0, %v2565
        %v2567 = vpop.f32.mrf.mxu0
        %2568 = vmatprep.mubr.bf16.mxu0 0
        %2569 = vmatmul.mubr.bf16.gmra.mxu0 %v2429
        %v2570 = vpop.f32.mrf.mxu0
        %v2571 = vadd.f32 0.0, %v2570
        %v2572 = vpop.f32.mrf.mxu0
        %v2573 = vpop.f32.mrf.mxu0
        %v2574 = vadd.f32 0.0, %v2573
        %v2575 = vpop.f32.mrf.mxu0
        %2576 = vmatprep.mubr.bf16.mxu0 0
        %2577 = vmatmul.mubr.bf16.gmra.mxu0 %v2432
        %v2578 = vpop.f32.mrf.mxu0
        %v2579 = vadd.f32 0.0, %v2578
        %v2580 = vpop.f32.mrf.mxu0
        %v2581 = vpop.f32.mrf.mxu0
        %v2582 = vadd.f32 0.0, %v2581
        %v2583 = vpop.f32.mrf.mxu0
        %2584 = vmatprep.mubr.bf16.mxu0 0
        %2585 = vmatmul.mubr.bf16.gmra.mxu0 %v2435
        %v2586 = vpop.f32.mrf.mxu0
        %v2587 = vadd.f32 0.0, %v2586
        %v2588 = vpop.f32.mrf.mxu0
        %v2589 = vpop.f32.mrf.mxu0
        %v2590 = vadd.f32 0.0, %v2589
        %v2591 = vpop.f32.mrf.mxu0
        %2592 = vmatprep.mubr.bf16.mxu0 0
        %2593 = vmatmul.mubr.bf16.gmra.mxu0 %v2438
        %v2594 = vpop.f32.mrf.mxu0
        %v2595 = vadd.f32 0.0, %v2594
        %v2596 = vpop.f32.mrf.mxu0
        %v2597 = vpop.f32.mrf.mxu0
        %v2598 = vadd.f32 0.0, %v2597
        %v2599 = vpop.f32.mrf.mxu0
        %2600 = vdwg.mxu0
        %v2601 = vadd.f32 %v2336, %v2475
        %v2602 = vadd.f32 %v2337, %v2478
        %v2603 = vadd.f32 %v2338, %v2483
        %v2604 = vadd.f32 %v2339, %v2486
        %v2605 = vadd.f32 %v2340, %v2491
        %v2606 = vadd.f32 %v2341, %v2494
        %v2607 = vadd.f32 %v2342, %v2499
        %v2608 = vadd.f32 %v2343, %v2502
        %v2609 = vadd.f32 %v2344, %v2507
        %v2610 = vadd.f32 %v2345, %v2510
        %v2611 = vadd.f32 %v2346, %v2515
        %v2612 = vadd.f32 %v2347, %v2518
        %v2613 = vadd.f32 %v2348, %v2523
        %v2614 = vadd.f32 %v2349, %v2526
        %v2615 = vadd.f32 %v2350, %v2531
        %v2616 = vadd.f32 %v2351, %v2534
        %v2617 = vadd.f32 %v2352, %v2539
        %v2618 = vadd.f32 %v2353, %v2542
        %v2619 = vadd.f32 %v2354, %v2547
        %v2620 = vadd.f32 %v2355, %v2550
        %v2621 = vadd.f32 %v2356, %v2555
        %v2622 = vadd.f32 %v2357, %v2558
        %v2623 = vadd.f32 %v2358, %v2563
        %v2624 = vadd.f32 %v2359, %v2566
        %v2625 = vadd.f32 %v2360, %v2571
        %v2626 = vadd.f32 %v2361, %v2574
        %v2627 = vadd.f32 %v2362, %v2579
        %v2628 = vadd.f32 %v2363, %v2582
        %v2629 = vadd.f32 %v2364, %v2587
        %v2630 = vadd.f32 %v2365, %v2590
        %v2631 = vadd.f32 %v2366, %v2595
        %v2632 = vadd.f32 %v2367, %v2598
        %v2633 = vpack.c.bf16 %v1012, %v1011
        %v2634 = vpack.c.bf16 %v1014, %v1013
        %v2635 = vpack.c.bf16 %v1016, %v1015
        %v2636 = vpack.c.bf16 %v1018, %v1017
        %v2637 = vpack.c.bf16 %v1020, %v1019
        %v2638 = vpack.c.bf16 %v1022, %v1021
        %v2639 = vpack.c.bf16 %v1024, %v1023
        %v2640 = vpack.c.bf16 %v1026, %v1025
        %v2641 = vpack.c.bf16 %v1028, %v1027
        %v2642 = vpack.c.bf16 %v1030, %v1029
        %v2643 = vpack.c.bf16 %v1032, %v1031
        %v2644 = vpack.c.bf16 %v1034, %v1033
        %v2645 = vpack.c.bf16 %v1036, %v1035
        %v2646 = vpack.c.bf16 %v1038, %v1037
        %v2647 = vpack.c.bf16 %v1040, %v1039
        %v2648 = vpack.c.bf16 %v1042, %v1041
        %v2649 = vld [vmem:[%s3 + $0x30] sm:$0xf]
        %v2650 = vld [vmem:[%s3 + $0x34] sm:$0xf]
        %v2653 = vunpack.c.l.b16 %v2649
        %v2654 = vunpack.c.l.b16 %v2650
        %v2655 = vpack.c.b16 %v2654, %v2653
        %v2658 = vsel %vm729, %v2633, 0
        %v2661 = vsel %vm729, %v2634, 0
        %v2664 = vsel %vm729, %v2635, 0
        %v2667 = vsel %vm729, %v2636, 0
        %v2670 = vsel %vm729, %v2637, 0
        %v2673 = vsel %vm729, %v2638, 0
        %v2676 = vsel %vm729, %v2639, 0
        %v2679 = vsel %vm729, %v2640, 0
        %v2682 = vsel %vm729, %v2641, 0
        %v2685 = vsel %vm729, %v2642, 0
        %v2688 = vsel %vm729, %v2643, 0
        %v2691 = vsel %vm729, %v2644, 0
        %v2694 = vsel %vm729, %v2645, 0
        %v2697 = vsel %vm729, %v2646, 0
        %v2700 = vsel %vm729, %v2647, 0
        %v2703 = vsel %vm729, %v2648, 0
        %2705 = vmatprep.subr.bf16.mxu0 0
        %2706 = vmatpush1.bf16.msra.mxu0 0
        %2707 = vmatprep.subr.bf16.mxu0 0
        %2708 = vmatpush1.bf16.msra.mxu0 0
        %2709 = vmatprep.subr.bf16.mxu0 0
        %2710 = vmatpush1.bf16.msra.mxu0 0
        %2711 = vmatprep.subr.bf16.mxu0 0
        %2712 = vmatpush1.bf16.msra.mxu0 0
        %2713 = vmatprep.subr.bf16.mxu0 0
        %2714 = vmatpush1.bf16.msra.mxu0 0
        %2715 = vmatprep.subr.bf16.mxu0 0
        %2716 = vmatpush1.bf16.msra.mxu0 0
        %2717 = vmatprep.subr.bf16.mxu0 0
        %2718 = vmatpush1.bf16.msra.mxu0 0
        %2719 = vmatprep.subr.bf16.mxu0 0
        %2720 = vmatpush1.bf16.msra.mxu0 %v2655
        %2721 = vmatprep.subr.bf16.mxu0 0
        %2722 = vmatpush2.bf16.msra.mxu0 0
        %2723 = vmatprep.subr.bf16.mxu0 0
        %2724 = vmatpush2.bf16.msra.mxu0 0
        %2725 = vmatprep.subr.bf16.mxu0 0
        %2726 = vmatpush2.bf16.msra.mxu0 0
        %2727 = vmatprep.subr.bf16.mxu0 0
        %2728 = vmatpush2.bf16.msra.mxu0 0
        %2729 = vmatprep.subr.bf16.mxu0 0
        %2730 = vmatpush2.bf16.msra.mxu0 0
        %2731 = vmatprep.subr.bf16.mxu0 0
        %2732 = vmatpush2.bf16.msra.mxu0 0
        %2733 = vmatprep.subr.bf16.mxu0 0
        %2734 = vmatpush2.bf16.msra.mxu0 0
        %2735 = vmatprep.subr.bf16.mxu0 0
        %2736 = vmatpush2.bf16.msra.mxu0 0
        %2737 = vmatprep.mubr.bf16.mxu0 0
        %2738 = vmatmul.mubr.bf16.gmra.mxu0 %v2658
        %v2739 = vpop.f32.mrf.mxu0
        %v2740 = vadd.f32 0.0, %v2739
        %v2741 = vpop.f32.mrf.mxu0
        %v2742 = vpop.f32.mrf.mxu0
        %v2743 = vadd.f32 0.0, %v2742
        %v2744 = vpop.f32.mrf.mxu0
        %2745 = vmatprep.mubr.bf16.mxu0 0
        %2746 = vmatmul.mubr.bf16.gmra.mxu0 %v2661
        %v2747 = vpop.f32.mrf.mxu0
        %v2748 = vadd.f32 0.0, %v2747
        %v2749 = vpop.f32.mrf.mxu0
        %v2750 = vpop.f32.mrf.mxu0
        %v2751 = vadd.f32 0.0, %v2750
        %v2752 = vpop.f32.mrf.mxu0
        %2753 = vmatprep.mubr.bf16.mxu0 0
        %2754 = vmatmul.mubr.bf16.gmra.mxu0 %v2664
        %v2755 = vpop.f32.mrf.mxu0
        %v2756 = vadd.f32 0.0, %v2755
        %v2757 = vpop.f32.mrf.mxu0
        %v2758 = vpop.f32.mrf.mxu0
        %v2759 = vadd.f32 0.0, %v2758
        %v2760 = vpop.f32.mrf.mxu0
        %2761 = vmatprep.mubr.bf16.mxu0 0
        %2762 = vmatmul.mubr.bf16.gmra.mxu0 %v2667
        %v2763 = vpop.f32.mrf.mxu0
        %v2764 = vadd.f32 0.0, %v2763
        %v2765 = vpop.f32.mrf.mxu0
        %v2766 = vpop.f32.mrf.mxu0
        %v2767 = vadd.f32 0.0, %v2766
        %v2768 = vpop.f32.mrf.mxu0
        %2769 = vmatprep.mubr.bf16.mxu0 0
        %2770 = vmatmul.mubr.bf16.gmra.mxu0 %v2670
        %v2771 = vpop.f32.mrf.mxu0
        %v2772 = vadd.f32 0.0, %v2771
        %v2773 = vpop.f32.mrf.mxu0
        %v2774 = vpop.f32.mrf.mxu0
        %v2775 = vadd.f32 0.0, %v2774
        %v2776 = vpop.f32.mrf.mxu0
        %2777 = vmatprep.mubr.bf16.mxu0 0
        %2778 = vmatmul.mubr.bf16.gmra.mxu0 %v2673
        %v2779 = vpop.f32.mrf.mxu0
        %v2780 = vadd.f32 0.0, %v2779
        %v2781 = vpop.f32.mrf.mxu0
        %v2782 = vpop.f32.mrf.mxu0
        %v2783 = vadd.f32 0.0, %v2782
        %v2784 = vpop.f32.mrf.mxu0
        %2785 = vmatprep.mubr.bf16.mxu0 0
        %2786 = vmatmul.mubr.bf16.gmra.mxu0 %v2676
        %v2787 = vpop.f32.mrf.mxu0
        %v2788 = vadd.f32 0.0, %v2787
        %v2789 = vpop.f32.mrf.mxu0
        %v2790 = vpop.f32.mrf.mxu0
        %v2791 = vadd.f32 0.0, %v2790
        %v2792 = vpop.f32.mrf.mxu0
        %2793 = vmatprep.mubr.bf16.mxu0 0
        %2794 = vmatmul.mubr.bf16.gmra.mxu0 %v2679
        %v2795 = vpop.f32.mrf.mxu0
        %v2796 = vadd.f32 0.0, %v2795
        %v2797 = vpop.f32.mrf.mxu0
        %v2798 = vpop.f32.mrf.mxu0
        %v2799 = vadd.f32 0.0, %v2798
        %v2800 = vpop.f32.mrf.mxu0
        %2801 = vmatprep.mubr.bf16.mxu0 0
        %2802 = vmatmul.mubr.bf16.gmra.mxu0 %v2682
        %v2803 = vpop.f32.mrf.mxu0
        %v2804 = vadd.f32 0.0, %v2803
        %v2805 = vpop.f32.mrf.mxu0
        %v2806 = vpop.f32.mrf.mxu0
        %v2807 = vadd.f32 0.0, %v2806
        %v2808 = vpop.f32.mrf.mxu0
        %2809 = vmatprep.mubr.bf16.mxu0 0
        %2810 = vmatmul.mubr.bf16.gmra.mxu0 %v2685
        %v2811 = vpop.f32.mrf.mxu0
        %v2812 = vadd.f32 0.0, %v2811
        %v2813 = vpop.f32.mrf.mxu0
        %v2814 = vpop.f32.mrf.mxu0
        %v2815 = vadd.f32 0.0, %v2814
        %v2816 = vpop.f32.mrf.mxu0
        %2817 = vmatprep.mubr.bf16.mxu0 0
        %2818 = vmatmul.mubr.bf16.gmra.mxu0 %v2688
        %v2819 = vpop.f32.mrf.mxu0
        %v2820 = vadd.f32 0.0, %v2819
        %v2821 = vpop.f32.mrf.mxu0
        %v2822 = vpop.f32.mrf.mxu0
        %v2823 = vadd.f32 0.0, %v2822
        %v2824 = vpop.f32.mrf.mxu0
        %2825 = vmatprep.mubr.bf16.mxu0 0
        %2826 = vmatmul.mubr.bf16.gmra.mxu0 %v2691
        %v2827 = vpop.f32.mrf.mxu0
        %v2828 = vadd.f32 0.0, %v2827
        %v2829 = vpop.f32.mrf.mxu0
        %v2830 = vpop.f32.mrf.mxu0
        %v2831 = vadd.f32 0.0, %v2830
        %v2832 = vpop.f32.mrf.mxu0
        %2833 = vmatprep.mubr.bf16.mxu0 0
        %2834 = vmatmul.mubr.bf16.gmra.mxu0 %v2694
        %v2835 = vpop.f32.mrf.mxu0
        %v2836 = vadd.f32 0.0, %v2835
        %v2837 = vpop.f32.mrf.mxu0
        %v2838 = vpop.f32.mrf.mxu0
        %v2839 = vadd.f32 0.0, %v2838
        %v2840 = vpop.f32.mrf.mxu0
        %2841 = vmatprep.mubr.bf16.mxu0 0
        %2842 = vmatmul.mubr.bf16.gmra.mxu0 %v2697
        %v2843 = vpop.f32.mrf.mxu0
        %v2844 = vadd.f32 0.0, %v2843
        %v2845 = vpop.f32.mrf.mxu0
        %v2846 = vpop.f32.mrf.mxu0
        %v2847 = vadd.f32 0.0, %v2846
        %v2848 = vpop.f32.mrf.mxu0
        %2849 = vmatprep.mubr.bf16.mxu0 0
        %2850 = vmatmul.mubr.bf16.gmra.mxu0 %v2700
        %v2851 = vpop.f32.mrf.mxu0
        %v2852 = vadd.f32 0.0, %v2851
        %v2853 = vpop.f32.mrf.mxu0
        %v2854 = vpop.f32.mrf.mxu0
        %v2855 = vadd.f32 0.0, %v2854
        %v2856 = vpop.f32.mrf.mxu0
        %2857 = vmatprep.mubr.bf16.mxu0 0
        %2858 = vmatmul.mubr.bf16.gmra.mxu0 %v2703
        %v2859 = vpop.f32.mrf.mxu0
        %v2860 = vadd.f32 0.0, %v2859
        %v2861 = vpop.f32.mrf.mxu0
        %v2862 = vpop.f32.mrf.mxu0
        %v2863 = vadd.f32 0.0, %v2862
        %v2864 = vpop.f32.mrf.mxu0
        %2865 = vdwg.mxu0
        %v2866 = vadd.f32 %v2601, %v2740
        %v2867 = vadd.f32 %v2602, %v2743
        %v2868 = vadd.f32 %v2603, %v2748
        %v2869 = vadd.f32 %v2604, %v2751
        %v2870 = vadd.f32 %v2605, %v2756
        %v2871 = vadd.f32 %v2606, %v2759
        %v2872 = vadd.f32 %v2607, %v2764
        %v2873 = vadd.f32 %v2608, %v2767
        %v2874 = vadd.f32 %v2609, %v2772
        %v2875 = vadd.f32 %v2610, %v2775
        %v2876 = vadd.f32 %v2611, %v2780
        %v2877 = vadd.f32 %v2612, %v2783
        %v2878 = vadd.f32 %v2613, %v2788
        %v2879 = vadd.f32 %v2614, %v2791
        %v2880 = vadd.f32 %v2615, %v2796
        %v2881 = vadd.f32 %v2616, %v2799
        %v2882 = vadd.f32 %v2617, %v2804
        %v2883 = vadd.f32 %v2618, %v2807
        %v2884 = vadd.f32 %v2619, %v2812
        %v2885 = vadd.f32 %v2620, %v2815
        %v2886 = vadd.f32 %v2621, %v2820
        %v2887 = vadd.f32 %v2622, %v2823
        %v2888 = vadd.f32 %v2623, %v2828
        %v2889 = vadd.f32 %v2624, %v2831
        %v2890 = vadd.f32 %v2625, %v2836
        %v2891 = vadd.f32 %v2626, %v2839
        %v2892 = vadd.f32 %v2627, %v2844
        %v2893 = vadd.f32 %v2628, %v2847
        %v2894 = vadd.f32 %v2629, %v2852
        %v2895 = vadd.f32 %v2630, %v2855
        %v2896 = vadd.f32 %v2631, %v2860
        %v2897 = vadd.f32 %v2632, %v2863
        %v2898 = vpack.c.bf16 %v1044, %v1043
        %v2899 = vpack.c.bf16 %v1046, %v1045
        %v2900 = vpack.c.bf16 %v1048, %v1047
        %v2901 = vpack.c.bf16 %v1050, %v1049
        %v2902 = vpack.c.bf16 %v1052, %v1051
        %v2903 = vpack.c.bf16 %v1054, %v1053
        %v2904 = vpack.c.bf16 %v1056, %v1055
        %v2905 = vpack.c.bf16 %v1058, %v1057
        %v2906 = vpack.c.bf16 %v1060, %v1059
        %v2907 = vpack.c.bf16 %v1062, %v1061
        %v2908 = vpack.c.bf16 %v1064, %v1063
        %v2909 = vpack.c.bf16 %v1066, %v1065
        %v2910 = vpack.c.bf16 %v1068, %v1067
        %v2911 = vpack.c.bf16 %v1070, %v1069
        %v2912 = vpack.c.bf16 %v1072, %v1071
        %v2913 = vpack.c.bf16 %v1074, %v1073
        %v2914 = vld [vmem:[%s3 + $0x38] sm:$0xf]
        %v2915 = vld [vmem:[%s3 + $0x3c] sm:$0xf]
        %v2918 = vunpack.c.l.b16 %v2914
        %v2919 = vunpack.c.l.b16 %v2915
        %v2920 = vpack.c.b16 %v2919, %v2918
        %v2923 = vsel %vm729, %v2898, 0
        %v2926 = vsel %vm729, %v2899, 0
        %v2929 = vsel %vm729, %v2900, 0
        %v2932 = vsel %vm729, %v2901, 0
        %v2935 = vsel %vm729, %v2902, 0
        %v2938 = vsel %vm729, %v2903, 0
        %v2941 = vsel %vm729, %v2904, 0
        %v2944 = vsel %vm729, %v2905, 0
        %v2947 = vsel %vm729, %v2906, 0
        %v2950 = vsel %vm729, %v2907, 0
        %v2953 = vsel %vm729, %v2908, 0
        %v2956 = vsel %vm729, %v2909, 0
        %v2959 = vsel %vm729, %v2910, 0
        %v2962 = vsel %vm729, %v2911, 0
        %v2965 = vsel %vm729, %v2912, 0
        %v2968 = vsel %vm729, %v2913, 0
        %2970 = vmatprep.subr.bf16.mxu0 0
        %2971 = vmatpush1.bf16.msra.mxu0 0
        %2972 = vmatprep.subr.bf16.mxu0 0
        %2973 = vmatpush1.bf16.msra.mxu0 0
        %2974 = vmatprep.subr.bf16.mxu0 0
        %2975 = vmatpush1.bf16.msra.mxu0 0
        %2976 = vmatprep.subr.bf16.mxu0 0
        %2977 = vmatpush1.bf16.msra.mxu0 0
        %2978 = vmatprep.subr.bf16.mxu0 0
        %2979 = vmatpush1.bf16.msra.mxu0 0
        %2980 = vmatprep.subr.bf16.mxu0 0
        %2981 = vmatpush1.bf16.msra.mxu0 0
        %2982 = vmatprep.subr.bf16.mxu0 0
        %2983 = vmatpush1.bf16.msra.mxu0 0
        %2984 = vmatprep.subr.bf16.mxu0 0
        %2985 = vmatpush1.bf16.msra.mxu0 %v2920
        %2986 = vmatprep.subr.bf16.mxu0 0
        %2987 = vmatpush2.bf16.msra.mxu0 0
        %2988 = vmatprep.subr.bf16.mxu0 0
        %2989 = vmatpush2.bf16.msra.mxu0 0
        %2990 = vmatprep.subr.bf16.mxu0 0
        %2991 = vmatpush2.bf16.msra.mxu0 0
        %2992 = vmatprep.subr.bf16.mxu0 0
        %2993 = vmatpush2.bf16.msra.mxu0 0
        %2994 = vmatprep.subr.bf16.mxu0 0
        %2995 = vmatpush2.bf16.msra.mxu0 0
        %2996 = vmatprep.subr.bf16.mxu0 0
        %2997 = vmatpush2.bf16.msra.mxu0 0
        %2998 = vmatprep.subr.bf16.mxu0 0
        %2999 = vmatpush2.bf16.msra.mxu0 0
        %3000 = vmatprep.subr.bf16.mxu0 0
        %3001 = vmatpush2.bf16.msra.mxu0 0
        %3002 = vmatprep.mubr.bf16.mxu0 0
        %3003 = vmatmul.mubr.bf16.gmra.mxu0 %v2923
        %v3004 = vpop.f32.mrf.mxu0
        %v3005 = vadd.f32 0.0, %v3004
        %v3006 = vpop.f32.mrf.mxu0
        %v3007 = vpop.f32.mrf.mxu0
        %v3008 = vadd.f32 0.0, %v3007
        %v3009 = vpop.f32.mrf.mxu0
        %3010 = vmatprep.mubr.bf16.mxu0 0
        %3011 = vmatmul.mubr.bf16.gmra.mxu0 %v2926
        %v3012 = vpop.f32.mrf.mxu0
        %v3013 = vadd.f32 0.0, %v3012
        %v3014 = vpop.f32.mrf.mxu0
        %v3015 = vpop.f32.mrf.mxu0
        %v3016 = vadd.f32 0.0, %v3015
        %v3017 = vpop.f32.mrf.mxu0
        %3018 = vmatprep.mubr.bf16.mxu0 0
        %3019 = vmatmul.mubr.bf16.gmra.mxu0 %v2929
        %v3020 = vpop.f32.mrf.mxu0
        %v3021 = vadd.f32 0.0, %v3020
        %v3022 = vpop.f32.mrf.mxu0
        %v3023 = vpop.f32.mrf.mxu0
        %v3024 = vadd.f32 0.0, %v3023
        %v3025 = vpop.f32.mrf.mxu0
        %3026 = vmatprep.mubr.bf16.mxu0 0
        %3027 = vmatmul.mubr.bf16.gmra.mxu0 %v2932
        %v3028 = vpop.f32.mrf.mxu0
        %v3029 = vadd.f32 0.0, %v3028
        %v3030 = vpop.f32.mrf.mxu0
        %v3031 = vpop.f32.mrf.mxu0
        %v3032 = vadd.f32 0.0, %v3031
        %v3033 = vpop.f32.mrf.mxu0
        %3034 = vmatprep.mubr.bf16.mxu0 0
        %3035 = vmatmul.mubr.bf16.gmra.mxu0 %v2935
        %v3036 = vpop.f32.mrf.mxu0
        %v3037 = vadd.f32 0.0, %v3036
        %v3038 = vpop.f32.mrf.mxu0
        %v3039 = vpop.f32.mrf.mxu0
        %v3040 = vadd.f32 0.0, %v3039
        %v3041 = vpop.f32.mrf.mxu0
        %3042 = vmatprep.mubr.bf16.mxu0 0
        %3043 = vmatmul.mubr.bf16.gmra.mxu0 %v2938
        %v3044 = vpop.f32.mrf.mxu0
        %v3045 = vadd.f32 0.0, %v3044
        %v3046 = vpop.f32.mrf.mxu0
        %v3047 = vpop.f32.mrf.mxu0
        %v3048 = vadd.f32 0.0, %v3047
        %v3049 = vpop.f32.mrf.mxu0
        %3050 = vmatprep.mubr.bf16.mxu0 0
        %3051 = vmatmul.mubr.bf16.gmra.mxu0 %v2941
        %v3052 = vpop.f32.mrf.mxu0
        %v3053 = vadd.f32 0.0, %v3052
        %v3054 = vpop.f32.mrf.mxu0
        %v3055 = vpop.f32.mrf.mxu0
        %v3056 = vadd.f32 0.0, %v3055
        %v3057 = vpop.f32.mrf.mxu0
        %3058 = vmatprep.mubr.bf16.mxu0 0
        %3059 = vmatmul.mubr.bf16.gmra.mxu0 %v2944
        %v3060 = vpop.f32.mrf.mxu0
        %v3061 = vadd.f32 0.0, %v3060
        %v3062 = vpop.f32.mrf.mxu0
        %v3063 = vpop.f32.mrf.mxu0
        %v3064 = vadd.f32 0.0, %v3063
        %v3065 = vpop.f32.mrf.mxu0
        %3066 = vmatprep.mubr.bf16.mxu0 0
        %3067 = vmatmul.mubr.bf16.gmra.mxu0 %v2947
        %v3068 = vpop.f32.mrf.mxu0
        %v3069 = vadd.f32 0.0, %v3068
        %v3070 = vpop.f32.mrf.mxu0
        %v3071 = vpop.f32.mrf.mxu0
        %v3072 = vadd.f32 0.0, %v3071
        %v3073 = vpop.f32.mrf.mxu0
        %3074 = vmatprep.mubr.bf16.mxu0 0
        %3075 = vmatmul.mubr.bf16.gmra.mxu0 %v2950
        %v3076 = vpop.f32.mrf.mxu0
        %v3077 = vadd.f32 0.0, %v3076
        %v3078 = vpop.f32.mrf.mxu0
        %v3079 = vpop.f32.mrf.mxu0
        %v3080 = vadd.f32 0.0, %v3079
        %v3081 = vpop.f32.mrf.mxu0
        %3082 = vmatprep.mubr.bf16.mxu0 0
        %3083 = vmatmul.mubr.bf16.gmra.mxu0 %v2953
        %v3084 = vpop.f32.mrf.mxu0
        %v3085 = vadd.f32 0.0, %v3084
        %v3086 = vpop.f32.mrf.mxu0
        %v3087 = vpop.f32.mrf.mxu0
        %v3088 = vadd.f32 0.0, %v3087
        %v3089 = vpop.f32.mrf.mxu0
        %3090 = vmatprep.mubr.bf16.mxu0 0
        %3091 = vmatmul.mubr.bf16.gmra.mxu0 %v2956
        %v3092 = vpop.f32.mrf.mxu0
        %v3093 = vadd.f32 0.0, %v3092
        %v3094 = vpop.f32.mrf.mxu0
        %v3095 = vpop.f32.mrf.mxu0
        %v3096 = vadd.f32 0.0, %v3095
        %v3097 = vpop.f32.mrf.mxu0
        %3098 = vmatprep.mubr.bf16.mxu0 0
        %3099 = vmatmul.mubr.bf16.gmra.mxu0 %v2959
        %v3100 = vpop.f32.mrf.mxu0
        %v3101 = vadd.f32 0.0, %v3100
        %v3102 = vpop.f32.mrf.mxu0
        %v3103 = vpop.f32.mrf.mxu0
        %v3104 = vadd.f32 0.0, %v3103
        %v3105 = vpop.f32.mrf.mxu0
        %3106 = vmatprep.mubr.bf16.mxu0 0
        %3107 = vmatmul.mubr.bf16.gmra.mxu0 %v2962
        %v3108 = vpop.f32.mrf.mxu0
        %v3109 = vadd.f32 0.0, %v3108
        %v3110 = vpop.f32.mrf.mxu0
        %v3111 = vpop.f32.mrf.mxu0
        %v3112 = vadd.f32 0.0, %v3111
        %v3113 = vpop.f32.mrf.mxu0
        %3114 = vmatprep.mubr.bf16.mxu0 0
        %3115 = vmatmul.mubr.bf16.gmra.mxu0 %v2965
        %v3116 = vpop.f32.mrf.mxu0
        %v3117 = vadd.f32 0.0, %v3116
        %v3118 = vpop.f32.mrf.mxu0
        %v3119 = vpop.f32.mrf.mxu0
        %v3120 = vadd.f32 0.0, %v3119
        %v3121 = vpop.f32.mrf.mxu0
        %3122 = vmatprep.mubr.bf16.mxu0 0
        %3123 = vmatmul.mubr.bf16.gmra.mxu0 %v2968
        %v3124 = vpop.f32.mrf.mxu0
        %v3125 = vadd.f32 0.0, %v3124
        %v3126 = vpop.f32.mrf.mxu0
        %v3127 = vpop.f32.mrf.mxu0
        %v3128 = vadd.f32 0.0, %v3127
        %v3129 = vpop.f32.mrf.mxu0
        %3130 = vdwg.mxu0
        %v3131 = vadd.f32 %v2866, %v3005
        %v3132 = vadd.f32 %v2867, %v3008
        %v3133 = vadd.f32 %v2868, %v3013
        %v3134 = vadd.f32 %v2869, %v3016
        %v3135 = vadd.f32 %v2870, %v3021
        %v3136 = vadd.f32 %v2871, %v3024
        %v3137 = vadd.f32 %v2872, %v3029
        %v3138 = vadd.f32 %v2873, %v3032
        %v3139 = vadd.f32 %v2874, %v3037
        %v3140 = vadd.f32 %v2875, %v3040
        %v3141 = vadd.f32 %v2876, %v3045
        %v3142 = vadd.f32 %v2877, %v3048
        %v3143 = vadd.f32 %v2878, %v3053
        %v3144 = vadd.f32 %v2879, %v3056
        %v3145 = vadd.f32 %v2880, %v3061
        %v3146 = vadd.f32 %v2881, %v3064
        %v3147 = vadd.f32 %v2882, %v3069
        %v3148 = vadd.f32 %v2883, %v3072
        %v3149 = vadd.f32 %v2884, %v3077
        %v3150 = vadd.f32 %v2885, %v3080
        %v3151 = vadd.f32 %v2886, %v3085
        %v3152 = vadd.f32 %v2887, %v3088
        %v3153 = vadd.f32 %v2888, %v3093
        %v3154 = vadd.f32 %v2889, %v3096
        %v3155 = vadd.f32 %v2890, %v3101
        %v3156 = vadd.f32 %v2891, %v3104
        %v3157 = vadd.f32 %v2892, %v3109
        %v3158 = vadd.f32 %v2893, %v3112
        %v3159 = vadd.f32 %v2894, %v3117
        %v3160 = vadd.f32 %v2895, %v3120
        %v3161 = vadd.f32 %v2896, %v3125
        %v3162 = vadd.f32 %v2897, %v3128
        %v3163 = vpack.c.bf16 %v1076, %v1075
        %v3164 = vpack.c.bf16 %v1078, %v1077
        %v3165 = vpack.c.bf16 %v1080, %v1079
        %v3166 = vpack.c.bf16 %v1082, %v1081
        %v3167 = vpack.c.bf16 %v1084, %v1083
        %v3168 = vpack.c.bf16 %v1086, %v1085
        %v3169 = vpack.c.bf16 %v1088, %v1087
        %v3170 = vpack.c.bf16 %v1090, %v1089
        %v3171 = vpack.c.bf16 %v1092, %v1091
        %v3172 = vpack.c.bf16 %v1094, %v1093
        %v3173 = vpack.c.bf16 %v1096, %v1095
        %v3174 = vpack.c.bf16 %v1098, %v1097
        %v3175 = vpack.c.bf16 %v1100, %v1099
        %v3176 = vpack.c.bf16 %v1102, %v1101
        %v3177 = vpack.c.bf16 %v1104, %v1103
        %v3178 = vpack.c.bf16 %v1106, %v1105
        %v3179 = vld [vmem:[%s3 + $0x40] sm:$0xf]
        %v3180 = vld [vmem:[%s3 + $0x44] sm:$0xf]
        %v3183 = vunpack.c.l.b16 %v3179
        %v3184 = vunpack.c.l.b16 %v3180
        %v3185 = vpack.c.b16 %v3184, %v3183
        %v3188 = vsel %vm729, %v3163, 0
        %v3191 = vsel %vm729, %v3164, 0
        %v3194 = vsel %vm729, %v3165, 0
        %v3197 = vsel %vm729, %v3166, 0
        %v3200 = vsel %vm729, %v3167, 0
        %v3203 = vsel %vm729, %v3168, 0
        %v3206 = vsel %vm729, %v3169, 0
        %v3209 = vsel %vm729, %v3170, 0
        %v3212 = vsel %vm729, %v3171, 0
        %v3215 = vsel %vm729, %v3172, 0
        %v3218 = vsel %vm729, %v3173, 0
        %v3221 = vsel %vm729, %v3174, 0
        %v3224 = vsel %vm729, %v3175, 0
        %v3227 = vsel %vm729, %v3176, 0
        %v3230 = vsel %vm729, %v3177, 0
        %v3233 = vsel %vm729, %v3178, 0
        %3235 = vmatprep.subr.bf16.mxu0 0
        %3236 = vmatpush1.bf16.msra.mxu0 0
        %3237 = vmatprep.subr.bf16.mxu0 0
        %3238 = vmatpush1.bf16.msra.mxu0 0
        %3239 = vmatprep.subr.bf16.mxu0 0
        %3240 = vmatpush1.bf16.msra.mxu0 0
        %3241 = vmatprep.subr.bf16.mxu0 0
        %3242 = vmatpush1.bf16.msra.mxu0 0
        %3243 = vmatprep.subr.bf16.mxu0 0
        %3244 = vmatpush1.bf16.msra.mxu0 0
        %3245 = vmatprep.subr.bf16.mxu0 0
        %3246 = vmatpush1.bf16.msra.mxu0 0
        %3247 = vmatprep.subr.bf16.mxu0 0
        %3248 = vmatpush1.bf16.msra.mxu0 0
        %3249 = vmatprep.subr.bf16.mxu0 0
        %3250 = vmatpush1.bf16.msra.mxu0 %v3185
        %3251 = vmatprep.subr.bf16.mxu0 0
        %3252 = vmatpush2.bf16.msra.mxu0 0
        %3253 = vmatprep.subr.bf16.mxu0 0
        %3254 = vmatpush2.bf16.msra.mxu0 0
        %3255 = vmatprep.subr.bf16.mxu0 0
        %3256 = vmatpush2.bf16.msra.mxu0 0
        %3257 = vmatprep.subr.bf16.mxu0 0
        %3258 = vmatpush2.bf16.msra.mxu0 0
        %3259 = vmatprep.subr.bf16.mxu0 0
        %3260 = vmatpush2.bf16.msra.mxu0 0
        %3261 = vmatprep.subr.bf16.mxu0 0
        %3262 = vmatpush2.bf16.msra.mxu0 0
        %3263 = vmatprep.subr.bf16.mxu0 0
        %3264 = vmatpush2.bf16.msra.mxu0 0
        %3265 = vmatprep.subr.bf16.mxu0 0
        %3266 = vmatpush2.bf16.msra.mxu0 0
        %3267 = vmatprep.mubr.bf16.mxu0 0
        %3268 = vmatmul.mubr.bf16.gmra.mxu0 %v3188
        %v3269 = vpop.f32.mrf.mxu0
        %v3270 = vadd.f32 0.0, %v3269
        %v3271 = vpop.f32.mrf.mxu0
        %v3272 = vpop.f32.mrf.mxu0
        %v3273 = vadd.f32 0.0, %v3272
        %v3274 = vpop.f32.mrf.mxu0
        %3275 = vmatprep.mubr.bf16.mxu0 0
        %3276 = vmatmul.mubr.bf16.gmra.mxu0 %v3191
        %v3277 = vpop.f32.mrf.mxu0
        %v3278 = vadd.f32 0.0, %v3277
        %v3279 = vpop.f32.mrf.mxu0
        %v3280 = vpop.f32.mrf.mxu0
        %v3281 = vadd.f32 0.0, %v3280
        %v3282 = vpop.f32.mrf.mxu0
        %3283 = vmatprep.mubr.bf16.mxu0 0
        %3284 = vmatmul.mubr.bf16.gmra.mxu0 %v3194
        %v3285 = vpop.f32.mrf.mxu0
        %v3286 = vadd.f32 0.0, %v3285
        %v3287 = vpop.f32.mrf.mxu0
        %v3288 = vpop.f32.mrf.mxu0
        %v3289 = vadd.f32 0.0, %v3288
        %v3290 = vpop.f32.mrf.mxu0
        %3291 = vmatprep.mubr.bf16.mxu0 0
        %3292 = vmatmul.mubr.bf16.gmra.mxu0 %v3197
        %v3293 = vpop.f32.mrf.mxu0
        %v3294 = vadd.f32 0.0, %v3293
        %v3295 = vpop.f32.mrf.mxu0
        %v3296 = vpop.f32.mrf.mxu0
        %v3297 = vadd.f32 0.0, %v3296
        %v3298 = vpop.f32.mrf.mxu0
        %3299 = vmatprep.mubr.bf16.mxu0 0
        %3300 = vmatmul.mubr.bf16.gmra.mxu0 %v3200
        %v3301 = vpop.f32.mrf.mxu0
        %v3302 = vadd.f32 0.0, %v3301
        %v3303 = vpop.f32.mrf.mxu0
        %v3304 = vpop.f32.mrf.mxu0
        %v3305 = vadd.f32 0.0, %v3304
        %v3306 = vpop.f32.mrf.mxu0
        %3307 = vmatprep.mubr.bf16.mxu0 0
        %3308 = vmatmul.mubr.bf16.gmra.mxu0 %v3203
        %v3309 = vpop.f32.mrf.mxu0
        %v3310 = vadd.f32 0.0, %v3309
        %v3311 = vpop.f32.mrf.mxu0
        %v3312 = vpop.f32.mrf.mxu0
        %v3313 = vadd.f32 0.0, %v3312
        %v3314 = vpop.f32.mrf.mxu0
        %3315 = vmatprep.mubr.bf16.mxu0 0
        %3316 = vmatmul.mubr.bf16.gmra.mxu0 %v3206
        %v3317 = vpop.f32.mrf.mxu0
        %v3318 = vadd.f32 0.0, %v3317
        %v3319 = vpop.f32.mrf.mxu0
        %v3320 = vpop.f32.mrf.mxu0
        %v3321 = vadd.f32 0.0, %v3320
        %v3322 = vpop.f32.mrf.mxu0
        %3323 = vmatprep.mubr.bf16.mxu0 0
        %3324 = vmatmul.mubr.bf16.gmra.mxu0 %v3209
        %v3325 = vpop.f32.mrf.mxu0
        %v3326 = vadd.f32 0.0, %v3325
        %v3327 = vpop.f32.mrf.mxu0
        %v3328 = vpop.f32.mrf.mxu0
        %v3329 = vadd.f32 0.0, %v3328
        %v3330 = vpop.f32.mrf.mxu0
        %3331 = vmatprep.mubr.bf16.mxu0 0
        %3332 = vmatmul.mubr.bf16.gmra.mxu0 %v3212
        %v3333 = vpop.f32.mrf.mxu0
        %v3334 = vadd.f32 0.0, %v3333
        %v3335 = vpop.f32.mrf.mxu0
        %v3336 = vpop.f32.mrf.mxu0
        %v3337 = vadd.f32 0.0, %v3336
        %v3338 = vpop.f32.mrf.mxu0
        %3339 = vmatprep.mubr.bf16.mxu0 0
        %3340 = vmatmul.mubr.bf16.gmra.mxu0 %v3215
        %v3341 = vpop.f32.mrf.mxu0
        %v3342 = vadd.f32 0.0, %v3341
        %v3343 = vpop.f32.mrf.mxu0
        %v3344 = vpop.f32.mrf.mxu0
        %v3345 = vadd.f32 0.0, %v3344
        %v3346 = vpop.f32.mrf.mxu0
        %3347 = vmatprep.mubr.bf16.mxu0 0
        %3348 = vmatmul.mubr.bf16.gmra.mxu0 %v3218
        %v3349 = vpop.f32.mrf.mxu0
        %v3350 = vadd.f32 0.0, %v3349
        %v3351 = vpop.f32.mrf.mxu0
        %v3352 = vpop.f32.mrf.mxu0
        %v3353 = vadd.f32 0.0, %v3352
        %v3354 = vpop.f32.mrf.mxu0
        %3355 = vmatprep.mubr.bf16.mxu0 0
        %3356 = vmatmul.mubr.bf16.gmra.mxu0 %v3221
        %v3357 = vpop.f32.mrf.mxu0
        %v3358 = vadd.f32 0.0, %v3357
        %v3359 = vpop.f32.mrf.mxu0
        %v3360 = vpop.f32.mrf.mxu0
        %v3361 = vadd.f32 0.0, %v3360
        %v3362 = vpop.f32.mrf.mxu0
        %3363 = vmatprep.mubr.bf16.mxu0 0
        %3364 = vmatmul.mubr.bf16.gmra.mxu0 %v3224
        %v3365 = vpop.f32.mrf.mxu0
        %v3366 = vadd.f32 0.0, %v3365
        %v3367 = vpop.f32.mrf.mxu0
        %v3368 = vpop.f32.mrf.mxu0
        %v3369 = vadd.f32 0.0, %v3368
        %v3370 = vpop.f32.mrf.mxu0
        %3371 = vmatprep.mubr.bf16.mxu0 0
        %3372 = vmatmul.mubr.bf16.gmra.mxu0 %v3227
        %v3373 = vpop.f32.mrf.mxu0
        %v3374 = vadd.f32 0.0, %v3373
        %v3375 = vpop.f32.mrf.mxu0
        %v3376 = vpop.f32.mrf.mxu0
        %v3377 = vadd.f32 0.0, %v3376
        %v3378 = vpop.f32.mrf.mxu0
        %3379 = vmatprep.mubr.bf16.mxu0 0
        %3380 = vmatmul.mubr.bf16.gmra.mxu0 %v3230
        %v3381 = vpop.f32.mrf.mxu0
        %v3382 = vadd.f32 0.0, %v3381
        %v3383 = vpop.f32.mrf.mxu0
        %v3384 = vpop.f32.mrf.mxu0
        %v3385 = vadd.f32 0.0, %v3384
        %v3386 = vpop.f32.mrf.mxu0
        %3387 = vmatprep.mubr.bf16.mxu0 0
        %3388 = vmatmul.mubr.bf16.gmra.mxu0 %v3233
        %v3389 = vpop.f32.mrf.mxu0
        %v3390 = vadd.f32 0.0, %v3389
        %v3391 = vpop.f32.mrf.mxu0
        %v3392 = vpop.f32.mrf.mxu0
        %v3393 = vadd.f32 0.0, %v3392
        %v3394 = vpop.f32.mrf.mxu0
        %3395 = vdwg.mxu0
        %v3396 = vadd.f32 %v3131, %v3270
        %v3397 = vadd.f32 %v3132, %v3273
        %v3398 = vadd.f32 %v3133, %v3278
        %v3399 = vadd.f32 %v3134, %v3281
        %v3400 = vadd.f32 %v3135, %v3286
        %v3401 = vadd.f32 %v3136, %v3289
        %v3402 = vadd.f32 %v3137, %v3294
        %v3403 = vadd.f32 %v3138, %v3297
        %v3404 = vadd.f32 %v3139, %v3302
        %v3405 = vadd.f32 %v3140, %v3305
        %v3406 = vadd.f32 %v3141, %v3310
        %v3407 = vadd.f32 %v3142, %v3313
        %v3408 = vadd.f32 %v3143, %v3318
        %v3409 = vadd.f32 %v3144, %v3321
        %v3410 = vadd.f32 %v3145, %v3326
        %v3411 = vadd.f32 %v3146, %v3329
        %v3412 = vadd.f32 %v3147, %v3334
        %v3413 = vadd.f32 %v3148, %v3337
        %v3414 = vadd.f32 %v3149, %v3342
        %v3415 = vadd.f32 %v3150, %v3345
        %v3416 = vadd.f32 %v3151, %v3350
        %v3417 = vadd.f32 %v3152, %v3353
        %v3418 = vadd.f32 %v3153, %v3358
        %v3419 = vadd.f32 %v3154, %v3361
        %v3420 = vadd.f32 %v3155, %v3366
        %v3421 = vadd.f32 %v3156, %v3369
        %v3422 = vadd.f32 %v3157, %v3374
        %v3423 = vadd.f32 %v3158, %v3377
        %v3424 = vadd.f32 %v3159, %v3382
        %v3425 = vadd.f32 %v3160, %v3385
        %v3426 = vadd.f32 %v3161, %v3390
        %v3427 = vadd.f32 %v3162, %v3393
        %v3428 = vld [vmem:[%s4] sm:$0x1]
        %v3430 = vlaneseq
        %v3431 = vshrl.u32 %v3430, 7
        %v3432 = vsub.s32 0, %v3431
        %v3433 = vrot.slane %v3428, %v3432
        %v3435 = vadd.f32 %v3396, %v3433
        %v3436 = vadd.f32 %v3397, %v3433
        %v3437 = vadd.f32 %v3398, %v3433
        %v3438 = vadd.f32 %v3399, %v3433
        %v3439 = vadd.f32 %v3400, %v3433
        %v3440 = vadd.f32 %v3401, %v3433
        %v3441 = vadd.f32 %v3402, %v3433
        %v3442 = vadd.f32 %v3403, %v3433
        %v3443 = vadd.f32 %v3404, %v3433
        %v3444 = vadd.f32 %v3405, %v3433
        %v3445 = vadd.f32 %v3406, %v3433
        %v3446 = vadd.f32 %v3407, %v3433
        %v3447 = vadd.f32 %v3408, %v3433
        %v3448 = vadd.f32 %v3409, %v3433
        %v3449 = vadd.f32 %v3410, %v3433
        %v3450 = vadd.f32 %v3411, %v3433
        %v3451 = vadd.f32 %v3412, %v3433
        %v3452 = vadd.f32 %v3413, %v3433
        %v3453 = vadd.f32 %v3414, %v3433
        %v3454 = vadd.f32 %v3415, %v3433
        %v3455 = vadd.f32 %v3416, %v3433
        %v3456 = vadd.f32 %v3417, %v3433
        %v3457 = vadd.f32 %v3418, %v3433
        %v3458 = vadd.f32 %v3419, %v3433
        %v3459 = vadd.f32 %v3420, %v3433
        %v3460 = vadd.f32 %v3421, %v3433
        %v3461 = vadd.f32 %v3422, %v3433
        %v3462 = vadd.f32 %v3423, %v3433
        %v3463 = vadd.f32 %v3424, %v3433
        %v3464 = vadd.f32 %v3425, %v3433
        %v3465 = vadd.f32 %v3426, %v3433
        %v3466 = vadd.f32 %v3427, %v3433
        %v3467 = vmax.f32 %v3435, 0.0
        %v3468 = vmax.f32 %v3436, 0.0
        %v3469 = vmax.f32 %v3437, 0.0
        %v3470 = vmax.f32 %v3438, 0.0
        %v3471 = vmax.f32 %v3439, 0.0
        %v3472 = vmax.f32 %v3440, 0.0
        %v3473 = vmax.f32 %v3441, 0.0
        %v3474 = vmax.f32 %v3442, 0.0
        %v3475 = vmax.f32 %v3443, 0.0
        %v3476 = vmax.f32 %v3444, 0.0
        %v3477 = vmax.f32 %v3445, 0.0
        %v3478 = vmax.f32 %v3446, 0.0
        %v3479 = vmax.f32 %v3447, 0.0
        %v3480 = vmax.f32 %v3448, 0.0
        %v3481 = vmax.f32 %v3449, 0.0
        %v3482 = vmax.f32 %v3450, 0.0
        %v3483 = vmax.f32 %v3451, 0.0
        %v3484 = vmax.f32 %v3452, 0.0
        %v3485 = vmax.f32 %v3453, 0.0
        %v3486 = vmax.f32 %v3454, 0.0
        %v3487 = vmax.f32 %v3455, 0.0
        %v3488 = vmax.f32 %v3456, 0.0
        %v3489 = vmax.f32 %v3457, 0.0
        %v3490 = vmax.f32 %v3458, 0.0
        %v3491 = vmax.f32 %v3459, 0.0
        %v3492 = vmax.f32 %v3460, 0.0
        %v3493 = vmax.f32 %v3461, 0.0
        %v3494 = vmax.f32 %v3462, 0.0
        %v3495 = vmax.f32 %v3463, 0.0
        %v3496 = vmax.f32 %v3464, 0.0
        %v3497 = vmax.f32 %v3465, 0.0
        %v3498 = vmax.f32 %v3466, 0.0
        %v3499 = vpack.c.bf16 %v3468, %v3467
        %v3500 = vpack.c.bf16 %v3470, %v3469
        %v3501 = vpack.c.bf16 %v3472, %v3471
        %v3502 = vpack.c.bf16 %v3474, %v3473
        %v3503 = vpack.c.bf16 %v3476, %v3475
        %v3504 = vpack.c.bf16 %v3478, %v3477
        %v3505 = vpack.c.bf16 %v3480, %v3479
        %v3506 = vpack.c.bf16 %v3482, %v3481
        %v3507 = vpack.c.bf16 %v3484, %v3483
        %v3508 = vpack.c.bf16 %v3486, %v3485
        %v3509 = vpack.c.bf16 %v3488, %v3487
        %v3510 = vpack.c.bf16 %v3490, %v3489
        %v3511 = vpack.c.bf16 %v3492, %v3491
        %v3512 = vpack.c.bf16 %v3494, %v3493
        %v3513 = vpack.c.bf16 %v3496, %v3495
        %v3514 = vpack.c.bf16 %v3498, %v3497
        %v3515 = vld [vmem:[%s5] sm:$0xf]
        %v3516 = vld [vmem:[%s5 + $0x4] sm:$0xf]
        %v3517 = vld [vmem:[%s6] sm:$0x1]
        %v3519 = vlaneseq
        %v3520 = vshrl.u32 %v3519, 7
        %v3521 = vsub.s32 0, %v3520
        %v3522 = vrot.slane %v3517, %v3521
        %v3526 = vunpack.c.l.b16 %v3515
        %v3527 = vunpack.c.l.b16 %v3516
        %v3528 = vpack.c.b16 %v3527, %v3526
        %v3531 = vsel %vm729, %v3499, 0
        %v3534 = vsel %vm729, %v3500, 0
        %v3537 = vsel %vm729, %v3501, 0
        %v3540 = vsel %vm729, %v3502, 0
        %v3543 = vsel %vm729, %v3503, 0
        %v3546 = vsel %vm729, %v3504, 0
        %v3549 = vsel %vm729, %v3505, 0
        %v3552 = vsel %vm729, %v3506, 0
        %v3555 = vsel %vm729, %v3507, 0
        %v3558 = vsel %vm729, %v3508, 0
        %v3561 = vsel %vm729, %v3509, 0
        %v3564 = vsel %vm729, %v3510, 0
        %v3567 = vsel %vm729, %v3511, 0
        %v3570 = vsel %vm729, %v3512, 0
        %v3573 = vsel %vm729, %v3513, 0
        %v3576 = vsel %vm729, %v3514, 0
        %3578 = vmatprep.subr.bf16.mxu0 0
        %3579 = vmatpush1.bf16.msra.mxu0 0
        %3580 = vmatprep.subr.bf16.mxu0 0
        %3581 = vmatpush1.bf16.msra.mxu0 0
        %3582 = vmatprep.subr.bf16.mxu0 0
        %3583 = vmatpush1.bf16.msra.mxu0 0
        %3584 = vmatprep.subr.bf16.mxu0 0
        %3585 = vmatpush1.bf16.msra.mxu0 0
        %3586 = vmatprep.subr.bf16.mxu0 0
        %3587 = vmatpush1.bf16.msra.mxu0 0
        %3588 = vmatprep.subr.bf16.mxu0 0
        %3589 = vmatpush1.bf16.msra.mxu0 0
        %3590 = vmatprep.subr.bf16.mxu0 0
        %3591 = vmatpush1.bf16.msra.mxu0 0
        %3592 = vmatprep.subr.bf16.mxu0 0
        %3593 = vmatpush1.bf16.msra.mxu0 %v3528
        %3594 = vmatprep.subr.bf16.mxu0 0
        %3595 = vmatpush2.bf16.msra.mxu0 0
        %3596 = vmatprep.subr.bf16.mxu0 0
        %3597 = vmatpush2.bf16.msra.mxu0 0
        %3598 = vmatprep.subr.bf16.mxu0 0
        %3599 = vmatpush2.bf16.msra.mxu0 0
        %3600 = vmatprep.subr.bf16.mxu0 0
        %3601 = vmatpush2.bf16.msra.mxu0 0
        %3602 = vmatprep.subr.bf16.mxu0 0
        %3603 = vmatpush2.bf16.msra.mxu0 0
        %3604 = vmatprep.subr.bf16.mxu0 0
        %3605 = vmatpush2.bf16.msra.mxu0 0
        %3606 = vmatprep.subr.bf16.mxu0 0
        %3607 = vmatpush2.bf16.msra.mxu0 0
        %3608 = vmatprep.subr.bf16.mxu0 0
        %3609 = vmatpush2.bf16.msra.mxu0 0
        %3610 = vmatprep.mubr.bf16.mxu0 0
        %3611 = vmatmul.mubr.bf16.gmra.mxu0 %v3531
        %v3612 = vpop.f32.mrf.mxu0
        %v3613 = vadd.f32 %v3522, %v3612
        %v3614 = vpop.f32.mrf.mxu0
        %v3615 = vpop.f32.mrf.mxu0
        %v3616 = vadd.f32 %v3522, %v3615
        %v3617 = vpop.f32.mrf.mxu0
        %3618 = vmatprep.mubr.bf16.mxu0 0
        %3619 = vmatmul.mubr.bf16.gmra.mxu0 %v3534
        %v3620 = vpop.f32.mrf.mxu0
        %v3621 = vadd.f32 %v3522, %v3620
        %v3622 = vpop.f32.mrf.mxu0
        %v3623 = vpop.f32.mrf.mxu0
        %v3624 = vadd.f32 %v3522, %v3623
        %v3625 = vpop.f32.mrf.mxu0
        %3626 = vmatprep.mubr.bf16.mxu0 0
        %3627 = vmatmul.mubr.bf16.gmra.mxu0 %v3537
        %v3628 = vpop.f32.mrf.mxu0
        %v3629 = vadd.f32 %v3522, %v3628
        %v3630 = vpop.f32.mrf.mxu0
        %v3631 = vpop.f32.mrf.mxu0
        %v3632 = vadd.f32 %v3522, %v3631
        %v3633 = vpop.f32.mrf.mxu0
        %3634 = vmatprep.mubr.bf16.mxu0 0
        %3635 = vmatmul.mubr.bf16.gmra.mxu0 %v3540
        %v3636 = vpop.f32.mrf.mxu0
        %v3637 = vadd.f32 %v3522, %v3636
        %v3638 = vpop.f32.mrf.mxu0
        %v3639 = vpop.f32.mrf.mxu0
        %v3640 = vadd.f32 %v3522, %v3639
        %v3641 = vpop.f32.mrf.mxu0
        %3642 = vmatprep.mubr.bf16.mxu0 0
        %3643 = vmatmul.mubr.bf16.gmra.mxu0 %v3543
        %v3644 = vpop.f32.mrf.mxu0
        %v3645 = vadd.f32 %v3522, %v3644
        %v3646 = vpop.f32.mrf.mxu0
        %v3647 = vpop.f32.mrf.mxu0
        %v3648 = vadd.f32 %v3522, %v3647
        %v3649 = vpop.f32.mrf.mxu0
        %3650 = vmatprep.mubr.bf16.mxu0 0
        %3651 = vmatmul.mubr.bf16.gmra.mxu0 %v3546
        %v3652 = vpop.f32.mrf.mxu0
        %v3653 = vadd.f32 %v3522, %v3652
        %v3654 = vpop.f32.mrf.mxu0
        %v3655 = vpop.f32.mrf.mxu0
        %v3656 = vadd.f32 %v3522, %v3655
        %v3657 = vpop.f32.mrf.mxu0
        %3658 = vmatprep.mubr.bf16.mxu0 0
        %3659 = vmatmul.mubr.bf16.gmra.mxu0 %v3549
        %v3660 = vpop.f32.mrf.mxu0
        %v3661 = vadd.f32 %v3522, %v3660
        %v3662 = vpop.f32.mrf.mxu0
        %v3663 = vpop.f32.mrf.mxu0
        %v3664 = vadd.f32 %v3522, %v3663
        %v3665 = vpop.f32.mrf.mxu0
        %3666 = vmatprep.mubr.bf16.mxu0 0
        %3667 = vmatmul.mubr.bf16.gmra.mxu0 %v3552
        %v3668 = vpop.f32.mrf.mxu0
        %v3669 = vadd.f32 %v3522, %v3668
        %v3670 = vpop.f32.mrf.mxu0
        %v3671 = vpop.f32.mrf.mxu0
        %v3672 = vadd.f32 %v3522, %v3671
        %v3673 = vpop.f32.mrf.mxu0
        %3674 = vmatprep.mubr.bf16.mxu0 0
        %3675 = vmatmul.mubr.bf16.gmra.mxu0 %v3555
        %v3676 = vpop.f32.mrf.mxu0
        %v3677 = vadd.f32 %v3522, %v3676
        %v3678 = vpop.f32.mrf.mxu0
        %v3679 = vpop.f32.mrf.mxu0
        %v3680 = vadd.f32 %v3522, %v3679
        %v3681 = vpop.f32.mrf.mxu0
        %3682 = vmatprep.mubr.bf16.mxu0 0
        %3683 = vmatmul.mubr.bf16.gmra.mxu0 %v3558
        %v3684 = vpop.f32.mrf.mxu0
        %v3685 = vadd.f32 %v3522, %v3684
        %v3686 = vpop.f32.mrf.mxu0
        %v3687 = vpop.f32.mrf.mxu0
        %v3688 = vadd.f32 %v3522, %v3687
        %v3689 = vpop.f32.mrf.mxu0
        %3690 = vmatprep.mubr.bf16.mxu0 0
        %3691 = vmatmul.mubr.bf16.gmra.mxu0 %v3561
        %v3692 = vpop.f32.mrf.mxu0
        %v3693 = vadd.f32 %v3522, %v3692
        %v3694 = vpop.f32.mrf.mxu0
        %v3695 = vpop.f32.mrf.mxu0
        %v3696 = vadd.f32 %v3522, %v3695
        %v3697 = vpop.f32.mrf.mxu0
        %3698 = vmatprep.mubr.bf16.mxu0 0
        %3699 = vmatmul.mubr.bf16.gmra.mxu0 %v3564
        %v3700 = vpop.f32.mrf.mxu0
        %v3701 = vadd.f32 %v3522, %v3700
        %v3702 = vpop.f32.mrf.mxu0
        %v3703 = vpop.f32.mrf.mxu0
        %v3704 = vadd.f32 %v3522, %v3703
        %v3705 = vpop.f32.mrf.mxu0
        %3706 = vmatprep.mubr.bf16.mxu0 0
        %3707 = vmatmul.mubr.bf16.gmra.mxu0 %v3567
        %v3708 = vpop.f32.mrf.mxu0
        %v3709 = vadd.f32 %v3522, %v3708
        %v3710 = vpop.f32.mrf.mxu0
        %v3711 = vpop.f32.mrf.mxu0
        %v3712 = vadd.f32 %v3522, %v3711
        %v3713 = vpop.f32.mrf.mxu0
        %3714 = vmatprep.mubr.bf16.mxu0 0
        %3715 = vmatmul.mubr.bf16.gmra.mxu0 %v3570
        %v3716 = vpop.f32.mrf.mxu0
        %v3717 = vadd.f32 %v3522, %v3716
        %v3718 = vpop.f32.mrf.mxu0
        %v3719 = vpop.f32.mrf.mxu0
        %v3720 = vadd.f32 %v3522, %v3719
        %v3721 = vpop.f32.mrf.mxu0
        %3722 = vmatprep.mubr.bf16.mxu0 0
        %3723 = vmatmul.mubr.bf16.gmra.mxu0 %v3573
        %v3724 = vpop.f32.mrf.mxu0
        %v3725 = vadd.f32 %v3522, %v3724
        %v3726 = vpop.f32.mrf.mxu0
        %v3727 = vpop.f32.mrf.mxu0
        %v3728 = vadd.f32 %v3522, %v3727
        %v3729 = vpop.f32.mrf.mxu0
        %3730 = vmatprep.mubr.bf16.mxu0 0
        %3731 = vmatmul.mubr.bf16.gmra.mxu0 %v3576
        %v3732 = vpop.f32.mrf.mxu0
        %v3733 = vadd.f32 %v3522, %v3732
        %v3734 = vpop.f32.mrf.mxu0
        %v3735 = vpop.f32.mrf.mxu0
        %v3736 = vadd.f32 %v3522, %v3735
        %v3737 = vpop.f32.mrf.mxu0
        %3738 = vdwg.mxu0
        %v3739 = vld [vmem:[%s7] sm:$0xf]
        %v3740 = vld [vmem:[%s7 + $0x4] sm:$0xf]
        %v3741 = vld [vmem:[%s7 + $0x8] sm:$0xf]
        %v3742 = vld [vmem:[%s7 + $0xc] sm:$0xf]
        %v3743 = vld [vmem:[%s8] sm:$0x1]
        %v3745 = vlaneseq
        %v3746 = vshrl.u32 %v3745, 7
        %v3747 = vsub.s32 0, %v3746
        %v3748 = vrot.slane %v3743, %v3747
        %v3754 = vunpack.c.l.b16 %v3739
        %v3755 = vunpack.c.l.b16 %v3740
        %v3756 = vunpack.c.l.b16 %v3741
        %v3757 = vunpack.c.l.b16 %v3742
        %v3758 = vpack.c.b16 %v3755, %v3754
        %v3759 = vpack.c.b16 %v3757, %v3756
        %3762 = vmatprep.subr.bf16.mxu0 0
        %3763 = vmatpush1.bf16.msra.mxu0 0
        %3764 = vmatprep.subr.bf16.mxu0 0
        %3765 = vmatpush1.bf16.msra.mxu0 0
        %3766 = vmatprep.subr.bf16.mxu0 0
        %3767 = vmatpush1.bf16.msra.mxu0 0
        %3768 = vmatprep.subr.bf16.mxu0 0
        %3769 = vmatpush1.bf16.msra.mxu0 0
        %3770 = vmatprep.subr.bf16.mxu0 0
        %3771 = vmatpush1.bf16.msra.mxu0 0
        %3772 = vmatprep.subr.bf16.mxu0 0
        %3773 = vmatpush1.bf16.msra.mxu0 0
        %3774 = vmatprep.subr.bf16.mxu0 0
        %3775 = vmatpush1.bf16.msra.mxu0 %v3759
        %3776 = vmatprep.subr.bf16.mxu0 0
        %3777 = vmatpush1.bf16.msra.mxu0 %v3758
        %3778 = vmatprep.subr.bf16.mxu0 0
        %3779 = vmatpush2.bf16.msra.mxu0 0
        %3780 = vmatprep.subr.bf16.mxu0 0
        %3781 = vmatpush2.bf16.msra.mxu0 0
        %3782 = vmatprep.subr.bf16.mxu0 0
        %3783 = vmatpush2.bf16.msra.mxu0 0
        %3784 = vmatprep.subr.bf16.mxu0 0
        %3785 = vmatpush2.bf16.msra.mxu0 0
        %3786 = vmatprep.subr.bf16.mxu0 0
        %3787 = vmatpush2.bf16.msra.mxu0 0
        %3788 = vmatprep.subr.bf16.mxu0 0
        %3789 = vmatpush2.bf16.msra.mxu0 0
        %3790 = vmatprep.subr.bf16.mxu0 0
        %3791 = vmatpush2.bf16.msra.mxu0 0
        %3792 = vmatprep.subr.bf16.mxu0 0
        %3793 = vmatpush2.bf16.msra.mxu0 0
        %3794 = vmatprep.mubr.bf16.mxu0 0
        %3795 = vmatmul.mubr.bf16.gmra.mxu0 %v489
        %v3796 = vpop.f32.mrf.mxu0
        %v3797 = vadd.f32 %v3748, %v3796
        %v3798 = vpop.f32.mrf.mxu0
        %v3799 = vpop.f32.mrf.mxu0
        %v3800 = vadd.f32 %v3748, %v3799
        %v3801 = vpop.f32.mrf.mxu0
        %3802 = vmatprep.mubr.bf16.mxu0 0
        %3803 = vmatmul.mubr.bf16.gmra.mxu0 %v492
        %v3804 = vpop.f32.mrf.mxu0
        %v3805 = vadd.f32 %v3748, %v3804
        %v3806 = vpop.f32.mrf.mxu0
        %v3807 = vpop.f32.mrf.mxu0
        %v3808 = vadd.f32 %v3748, %v3807
        %v3809 = vpop.f32.mrf.mxu0
        %3810 = vmatprep.mubr.bf16.mxu0 0
        %3811 = vmatmul.mubr.bf16.gmra.mxu0 %v495
        %v3812 = vpop.f32.mrf.mxu0
        %v3813 = vadd.f32 %v3748, %v3812
        %v3814 = vpop.f32.mrf.mxu0
        %v3815 = vpop.f32.mrf.mxu0
        %v3816 = vadd.f32 %v3748, %v3815
        %v3817 = vpop.f32.mrf.mxu0
        %3818 = vmatprep.mubr.bf16.mxu0 0
        %3819 = vmatmul.mubr.bf16.gmra.mxu0 %v498
        %v3820 = vpop.f32.mrf.mxu0
        %v3821 = vadd.f32 %v3748, %v3820
        %v3822 = vpop.f32.mrf.mxu0
        %v3823 = vpop.f32.mrf.mxu0
        %v3824 = vadd.f32 %v3748, %v3823
        %v3825 = vpop.f32.mrf.mxu0
        %3826 = vmatprep.mubr.bf16.mxu0 0
        %3827 = vmatmul.mubr.bf16.gmra.mxu0 %v501
        %v3828 = vpop.f32.mrf.mxu0
        %v3829 = vadd.f32 %v3748, %v3828
        %v3830 = vpop.f32.mrf.mxu0
        %v3831 = vpop.f32.mrf.mxu0
        %v3832 = vadd.f32 %v3748, %v3831
        %v3833 = vpop.f32.mrf.mxu0
        %3834 = vmatprep.mubr.bf16.mxu0 0
        %3835 = vmatmul.mubr.bf16.gmra.mxu0 %v504
        %v3836 = vpop.f32.mrf.mxu0
        %v3837 = vadd.f32 %v3748, %v3836
        %v3838 = vpop.f32.mrf.mxu0
        %v3839 = vpop.f32.mrf.mxu0
        %v3840 = vadd.f32 %v3748, %v3839
        %v3841 = vpop.f32.mrf.mxu0
        %3842 = vmatprep.mubr.bf16.mxu0 0
        %3843 = vmatmul.mubr.bf16.gmra.mxu0 %v507
        %v3844 = vpop.f32.mrf.mxu0
        %v3845 = vadd.f32 %v3748, %v3844
        %v3846 = vpop.f32.mrf.mxu0
        %v3847 = vpop.f32.mrf.mxu0
        %v3848 = vadd.f32 %v3748, %v3847
        %v3849 = vpop.f32.mrf.mxu0
        %3850 = vmatprep.mubr.bf16.mxu0 0
        %3851 = vmatmul.mubr.bf16.gmra.mxu0 %v510
        %v3852 = vpop.f32.mrf.mxu0
        %v3853 = vadd.f32 %v3748, %v3852
        %v3854 = vpop.f32.mrf.mxu0
        %v3855 = vpop.f32.mrf.mxu0
        %v3856 = vadd.f32 %v3748, %v3855
        %v3857 = vpop.f32.mrf.mxu0
        %3858 = vmatprep.mubr.bf16.mxu0 0
        %3859 = vmatmul.mubr.bf16.gmra.mxu0 %v513
        %v3860 = vpop.f32.mrf.mxu0
        %v3861 = vadd.f32 %v3748, %v3860
        %v3862 = vpop.f32.mrf.mxu0
        %v3863 = vpop.f32.mrf.mxu0
        %v3864 = vadd.f32 %v3748, %v3863
        %v3865 = vpop.f32.mrf.mxu0
        %3866 = vmatprep.mubr.bf16.mxu0 0
        %3867 = vmatmul.mubr.bf16.gmra.mxu0 %v516
        %v3868 = vpop.f32.mrf.mxu0
        %v3869 = vadd.f32 %v3748, %v3868
        %v3870 = vpop.f32.mrf.mxu0
        %v3871 = vpop.f32.mrf.mxu0
        %v3872 = vadd.f32 %v3748, %v3871
        %v3873 = vpop.f32.mrf.mxu0
        %3874 = vmatprep.mubr.bf16.mxu0 0
        %3875 = vmatmul.mubr.bf16.gmra.mxu0 %v519
        %v3876 = vpop.f32.mrf.mxu0
        %v3877 = vadd.f32 %v3748, %v3876
        %v3878 = vpop.f32.mrf.mxu0
        %v3879 = vpop.f32.mrf.mxu0
        %v3880 = vadd.f32 %v3748, %v3879
        %v3881 = vpop.f32.mrf.mxu0
        %3882 = vmatprep.mubr.bf16.mxu0 0
        %3883 = vmatmul.mubr.bf16.gmra.mxu0 %v522
        %v3884 = vpop.f32.mrf.mxu0
        %v3885 = vadd.f32 %v3748, %v3884
        %v3886 = vpop.f32.mrf.mxu0
        %v3887 = vpop.f32.mrf.mxu0
        %v3888 = vadd.f32 %v3748, %v3887
        %v3889 = vpop.f32.mrf.mxu0
        %3890 = vmatprep.mubr.bf16.mxu0 0
        %3891 = vmatmul.mubr.bf16.gmra.mxu0 %v525
        %v3892 = vpop.f32.mrf.mxu0
        %v3893 = vadd.f32 %v3748, %v3892
        %v3894 = vpop.f32.mrf.mxu0
        %v3895 = vpop.f32.mrf.mxu0
        %v3896 = vadd.f32 %v3748, %v3895
        %v3897 = vpop.f32.mrf.mxu0
        %3898 = vmatprep.mubr.bf16.mxu0 0
        %3899 = vmatmul.mubr.bf16.gmra.mxu0 %v528
        %v3900 = vpop.f32.mrf.mxu0
        %v3901 = vadd.f32 %v3748, %v3900
        %v3902 = vpop.f32.mrf.mxu0
        %v3903 = vpop.f32.mrf.mxu0
        %v3904 = vadd.f32 %v3748, %v3903
        %v3905 = vpop.f32.mrf.mxu0
        %3906 = vmatprep.mubr.bf16.mxu0 0
        %3907 = vmatmul.mubr.bf16.gmra.mxu0 %v531
        %v3908 = vpop.f32.mrf.mxu0
        %v3909 = vadd.f32 %v3748, %v3908
        %v3910 = vpop.f32.mrf.mxu0
        %v3911 = vpop.f32.mrf.mxu0
        %v3912 = vadd.f32 %v3748, %v3911
        %v3913 = vpop.f32.mrf.mxu0
        %3914 = vmatprep.mubr.bf16.mxu0 0
        %3915 = vmatmul.mubr.bf16.gmra.mxu0 %v534
        %v3916 = vpop.f32.mrf.mxu0
        %v3917 = vadd.f32 %v3748, %v3916
        %v3918 = vpop.f32.mrf.mxu0
        %v3919 = vpop.f32.mrf.mxu0
        %v3920 = vadd.f32 %v3748, %v3919
        %v3921 = vpop.f32.mrf.mxu0
        %3922 = vdwg.mxu0
        %v3923 = vadd.f32 %v3613, %v3797
        %v3924 = vadd.f32 %v3616, %v3800
        %v3925 = vadd.f32 %v3621, %v3805
        %v3926 = vadd.f32 %v3624, %v3808
        %v3927 = vadd.f32 %v3629, %v3813
        %v3928 = vadd.f32 %v3632, %v3816
        %v3929 = vadd.f32 %v3637, %v3821
        %v3930 = vadd.f32 %v3640, %v3824
        %v3931 = vadd.f32 %v3645, %v3829
        %v3932 = vadd.f32 %v3648, %v3832
        %v3933 = vadd.f32 %v3653, %v3837
        %v3934 = vadd.f32 %v3656, %v3840
        %v3935 = vadd.f32 %v3661, %v3845
        %v3936 = vadd.f32 %v3664, %v3848
        %v3937 = vadd.f32 %v3669, %v3853
        %v3938 = vadd.f32 %v3672, %v3856
        %v3939 = vadd.f32 %v3677, %v3861
        %v3940 = vadd.f32 %v3680, %v3864
        %v3941 = vadd.f32 %v3685, %v3869
        %v3942 = vadd.f32 %v3688, %v3872
        %v3943 = vadd.f32 %v3693, %v3877
        %v3944 = vadd.f32 %v3696, %v3880
        %v3945 = vadd.f32 %v3701, %v3885
        %v3946 = vadd.f32 %v3704, %v3888
        %v3947 = vadd.f32 %v3709, %v3893
        %v3948 = vadd.f32 %v3712, %v3896
        %v3949 = vadd.f32 %v3717, %v3901
        %v3950 = vadd.f32 %v3720, %v3904
        %v3951 = vadd.f32 %v3725, %v3909
        %v3952 = vadd.f32 %v3728, %v3912
        %v3953 = vadd.f32 %v3733, %v3917
        %v3954 = vadd.f32 %v3736, %v3920
        %v3955 = vmax.f32 %v3923, 0.0
        %v3956 = vmax.f32 %v3924, 0.0
        %v3957 = vmax.f32 %v3925, 0.0
        %v3958 = vmax.f32 %v3926, 0.0
        %v3959 = vmax.f32 %v3927, 0.0
        %v3960 = vmax.f32 %v3928, 0.0
        %v3961 = vmax.f32 %v3929, 0.0
        %v3962 = vmax.f32 %v3930, 0.0
        %v3963 = vmax.f32 %v3931, 0.0
        %v3964 = vmax.f32 %v3932, 0.0
        %v3965 = vmax.f32 %v3933, 0.0
        %v3966 = vmax.f32 %v3934, 0.0
        %v3967 = vmax.f32 %v3935, 0.0
        %v3968 = vmax.f32 %v3936, 0.0
        %v3969 = vmax.f32 %v3937, 0.0
        %v3970 = vmax.f32 %v3938, 0.0
        %v3971 = vmax.f32 %v3939, 0.0
        %v3972 = vmax.f32 %v3940, 0.0
        %v3973 = vmax.f32 %v3941, 0.0
        %v3974 = vmax.f32 %v3942, 0.0
        %v3975 = vmax.f32 %v3943, 0.0
        %v3976 = vmax.f32 %v3944, 0.0
        %v3977 = vmax.f32 %v3945, 0.0
        %v3978 = vmax.f32 %v3946, 0.0
        %v3979 = vmax.f32 %v3947, 0.0
        %v3980 = vmax.f32 %v3948, 0.0
        %v3981 = vmax.f32 %v3949, 0.0
        %v3982 = vmax.f32 %v3950, 0.0
        %v3983 = vmax.f32 %v3951, 0.0
        %v3984 = vmax.f32 %v3952, 0.0
        %v3985 = vmax.f32 %v3953, 0.0
        %v3986 = vmax.f32 %v3954, 0.0
        %vm3987 = vcmask 523264
        %3988 = vst.msk [vmem:[%s350] sm:$0xff] %vm3987, %v3955
        %3989 = vst.msk [vmem:[%s350 + $0x8] sm:$0xff] %vm3987, %v3956
        %3990 = vst.msk [vmem:[%s350 + $0x10] sm:$0xff] %vm3987, %v3957
        %3991 = vst.msk [vmem:[%s350 + $0x18] sm:$0xff] %vm3987, %v3958
        %3992 = vst.msk [vmem:[%s350 + $0x20] sm:$0xff] %vm3987, %v3959
        %3993 = vst.msk [vmem:[%s350 + $0x28] sm:$0xff] %vm3987, %v3960
        %3994 = vst.msk [vmem:[%s350 + $0x30] sm:$0xff] %vm3987, %v3961
        %3995 = vst.msk [vmem:[%s350 + $0x38] sm:$0xff] %vm3987, %v3962
        %3996 = vst.msk [vmem:[%s350 + $0x40] sm:$0xff] %vm3987, %v3963
        %3997 = vst.msk [vmem:[%s350 + $0x48] sm:$0xff] %vm3987, %v3964
        %3998 = vst.msk [vmem:[%s350 + $0x50] sm:$0xff] %vm3987, %v3965
        %3999 = vst.msk [vmem:[%s350 + $0x58] sm:$0xff] %vm3987, %v3966
        %4000 = vst.msk [vmem:[%s350 + $0x60] sm:$0xff] %vm3987, %v3967
        %4001 = vst.msk [vmem:[%s350 + $0x68] sm:$0xff] %vm3987, %v3968
        %4002 = vst.msk [vmem:[%s350 + $0x70] sm:$0xff] %vm3987, %v3969
        %4003 = vst.msk [vmem:[%s350 + $0x78] sm:$0xff] %vm3987, %v3970
        %4004 = vst.msk [vmem:[%s350 + $0x80] sm:$0xff] %vm3987, %v3971
        %4005 = vst.msk [vmem:[%s350 + $0x88] sm:$0xff] %vm3987, %v3972
        %4006 = vst.msk [vmem:[%s350 + $0x90] sm:$0xff] %vm3987, %v3973
        %4007 = vst.msk [vmem:[%s350 + $0x98] sm:$0xff] %vm3987, %v3974
        %4008 = vst.msk [vmem:[%s350 + $0xa0] sm:$0xff] %vm3987, %v3975
        %4009 = vst.msk [vmem:[%s350 + $0xa8] sm:$0xff] %vm3987, %v3976
        %4010 = vst.msk [vmem:[%s350 + $0xb0] sm:$0xff] %vm3987, %v3977
        %4011 = vst.msk [vmem:[%s350 + $0xb8] sm:$0xff] %vm3987, %v3978
        %4012 = vst.msk [vmem:[%s350 + $0xc0] sm:$0xff] %vm3987, %v3979
        %4013 = vst.msk [vmem:[%s350 + $0xc8] sm:$0xff] %vm3987, %v3980
        %4014 = vst.msk [vmem:[%s350 + $0xd0] sm:$0xff] %vm3987, %v3981
        %4015 = vst.msk [vmem:[%s350 + $0xd8] sm:$0xff] %vm3987, %v3982
        %4016 = vst.msk [vmem:[%s350 + $0xe0] sm:$0xff] %vm3987, %v3983
        %4017 = vst.msk [vmem:[%s350 + $0xe8] sm:$0xff] %vm3987, %v3984
        %4018 = vst.msk [vmem:[%s350 + $0xf0] sm:$0xff] %vm3987, %v3985
        %4019 = vst.msk [vmem:[%s350 + $0xf8] sm:$0xff] %vm3987, %v3986
        %s4020 = sand.u32 %s228, 1
        %s4021 = scalar_lea.sflag [#allocation5], %s4020
        %s4022 = sand.u32 %s228, 1
        %s4023 = smul.addr %s4022, 256
        %s4024 = scalar_lea.vmem [#allocation6], %s4023
        // Predicated region
        $region61: #{tpu_custom_call.1} parent=55 // pred_check
          %p4025 = pneg %p238
        $region62: #{tpu_custom_call.1} parent=55 // pred_check_branch
          %4027 = sbr.rel (%p4025) target = $region64
        $region63: #{tpu_custom_call.1} parent=55 // pred_region
          %s4029 = ssub.s32 4096, 4096
          %4030 = vsyncadd %s4021, %s4029
          %s4031 = smul.addr %s26, 32
          %s4032 = smul.addr %s4031, 128
          %s4033 = scalar_lea.hbm %s9, %s4032
          %s4034 = sshll.u32 %s4024, 4
          %s4035 = int_to_ptr.vmem [resolvable:$true] %s4034
          %4040 = dma.vmem_to_hbm [thread:$0]  %s4035, 4096, %s4033, %s4021, 128, 128, 8
        $region64: #{tpu_custom_call.1} parent=55 // pred_fallthru
          _
      $region56: #{tpu_custom_call.1} parent=5 // pred_fallthru
        _
      %p4041 = scmp.le.s32.totalorder 2, %s21
      // Predicated region
      $region65: #{tpu_custom_call.1} parent=5 // pred_check
        %p4042 = pneg %p4041
      $region66: #{tpu_custom_call.1} parent=5 // pred_check_branch
        %4044 = sbr.rel (%p4042) target = $region68
      $region67: #{tpu_custom_call.1} parent=5 // pred_region
        %s4045 = ssub.s32 %s21, 2
        // Predicated region
        $region69: #{tpu_custom_call.1} parent=67 // pred_check
          %p4046 = pneg %p244
        $region70: #{tpu_custom_call.1} parent=67 // pred_check_branch
          %4048 = sbr.rel (%p4046) target = $region72
        $region71: #{tpu_custom_call.1} parent=67 // pred_region
          %s4049 = sand.u32 %s229, 1
          %s4050 = scalar_lea.sflag [#allocation5], %s4049
          %s4051 = sand.u32 %s229, 1
          %s4052 = smul.addr %s4051, 256
          %s4053 = scalar_lea.vmem [#allocation6], %s4052
          %4054 = dma.done %s4050, 4096
        $region72: #{tpu_custom_call.1} parent=67 // pred_fallthru
          _
      $region68: #{tpu_custom_call.1} parent=5 // pred_fallthru
        _
    $region6: #{tpu_custom_call.1} parent=1 // loop_footer
      %s25 = sadd.s32 1, %s21
    $region7: #{tpu_custom_call.1} parent=1 // loop_footer_branch
      %20 = sbr.rel target = $region3
    $region8: #{tpu_custom_call.1} parent=1 // loop_exit
      _
    %4055 = vsyncpa [#allocation4], 1
    %s4056 = scalar_lea.sflag [#allocation4], 1
    %4057 = vsyncpa %s4056, 1
    %4058 = vsyncpa [#allocation5], 1
    %s4059 = scalar_lea.sflag [#allocation5], 1
    %4060 = vsyncpa %s4059, 1

</llo_original>
